<compile_context>
chip_gen: v5e
topology: v5e:2x2
jax: 0.10.0
libtpu: 0.0.40
codegen_flags: <defaults>
</compile_context>

<pallas_src>
import functools

import numpy as np

import jax
import jax.numpy as jnp
from jax.experimental import pallas as pl
from jax.experimental.pallas import tpu as pltpu


# ----------------------------------------------------------------------------
# Constant-matrix builders (pure numpy, done once outside jit)
# ----------------------------------------------------------------------------
def _kron_taps(w_taps, ow):
    """(kh*kw, cin, cout) per-tap weights -> (kh*kw, ow*cin, ow*cout) block-diag."""
    w = np.asarray(w_taps, np.float32)
    kk, cin, cout = w.shape
    eye = np.eye(ow, dtype=np.float32)
    out = np.zeros((kk, ow * cin, ow * cout), np.float32)
    for t in range(kk):
        out[t] = np.kron(eye, w[t])
    return out


def _pool_row_mats(h):
    """Row-selection matrices for 2x2 max pool (floor mode): (h//2, h)."""
    ho = h // 2
    re = np.zeros((ho, h), np.float32)
    ro = np.zeros((ho, h), np.float32)
    re[np.arange(ho), 2 * np.arange(ho)] = 1.0
    ro[np.arange(ho), 2 * np.arange(ho) + 1] = 1.0
    return re, ro


def _pool_col_mats(w, c):
    """Lane-selection matrices for 2x2 max pool in (H, W*C) layout: (w*c, (w//2)*c)."""
    wo = w // 2
    se = np.zeros((w * c, wo * c), np.float32)
    so = np.zeros((w * c, wo * c), np.float32)
    for p in range(wo):
        for k in range(c):
            se[(2 * p) * c + k, p * c + k] = 1.0
            so[(2 * p + 1) * c + k, p * c + k] = 1.0
    return se, so


def _dilpad_row_mat(h, stride, lo, hi):
    """Rows: zero-dilate by `stride` and zero-pad (lo, hi).  Shape (hp, h)."""
    hp = lo + stride * (h - 1) + 1 + hi
    m = np.zeros((hp, h), np.float32)
    m[lo + stride * np.arange(h), np.arange(h)] = 1.0
    return m


def _dilpad_col_mat(w, c, stride, lo, hi):
    """Lanes: zero-dilate by `stride` and zero-pad (lo, hi) in (H, W*C) layout."""
    wp = lo + stride * (w - 1) + 1 + hi
    m = np.zeros((w * c, wp * c), np.float32)
    for p in range(w):
        for k in range(c):
            m[p * c + k, (lo + stride * p) * c + k] = 1.0
    return m


# ----------------------------------------------------------------------------
# Parameters (deterministic, in-script) and kernel-ready constants
# ----------------------------------------------------------------------------
def init_params(key, num_channels, latent_dim=128):
    ks = jax.random.split(key, 6)
    s = 0.05

    def w(k, shape):
        return (s * jax.random.normal(k, shape)).astype(jnp.float32)

    return {
        # encoder
        "conv1_w": w(ks[0], (9, num_channels, 6)),      "conv1_b": jnp.zeros((6,), jnp.float32),
        "conv2_w": w(ks[1], (25, 6, 16)),               "conv2_b": jnp.zeros((16,), jnp.float32),
        "fc1_w":   w(ks[2], (7, 7 * 16, latent_dim)),   "fc1_b": jnp.zeros((latent_dim,), jnp.float32),
        # decoder
        "fc2_w":   w(ks[3], (7, latent_dim, 7 * 16)),   "fc2_b": jnp.zeros((7, 7 * 16), jnp.float32),
        "deconv1_w": w(ks[4], (25, 16, 6)),             "deconv1_b": jnp.zeros((6,), jnp.float32),
        "deconv2_w": w(ks[5], (9, 6, num_channels)),    "deconv2_b": jnp.zeros((num_channels,), jnp.float32),
    }


def build_kernel_constants(params, num_channels):
    """Precompute all kernel-side matrices once (outside jit)."""
    p = {k: np.asarray(v, np.float32) for k, v in params.items()}
    c = {}
    # conv1 (3x3, C->6) on a 32x32 image -> 30x30
    c["w1"] = _kron_taps(p["conv1_w"], 30)                   # (9, 30*C, 180)
    c["b1"] = np.tile(p["conv1_b"], 30)[None, :]             # (1, 180)
    # pool1: 30 -> 15
    c["p1_re"], c["p1_ro"] = _pool_row_mats(30)              # (15, 30)
    c["p1_se"], c["p1_so"] = _pool_col_mats(30, 6)           # (180, 90)
    # conv2 zero-pad 2 each side: 15 -> 19
    c["c2_pr"] = _dilpad_row_mat(15, 1, 2, 2)                # (19, 15)
    c["c2_pc"] = _dilpad_col_mat(15, 6, 1, 2, 2)             # (90, 114)
    # conv2 (5x5, 6->16): 19 -> 15
    c["w2"] = _kron_taps(p["conv2_w"], 15)                   # (25, 90, 240)
    c["b2"] = np.tile(p["conv2_b"], 15)[None, :]             # (1, 240)
    # pool2: 15 -> 7
    c["p2_re"], c["p2_ro"] = _pool_row_mats(15)              # (7, 15)
    c["p2_se"], c["p2_so"] = _pool_col_mats(15, 16)          # (240, 112)
    # encoder / decoder Linear (HWC flatten order, random weights)
    c["w3"] = p["fc1_w"]                                     # (7, 112, latent)
    c["b3"] = p["fc1_b"][None, :]                            # (1, latent)
    c["i7"] = np.eye(7, dtype=np.float32)                    # (7, 7)
    c["w4"] = p["fc2_w"]                                     # (7, latent, 112)
    c["b4"] = p["fc2_b"]                                     # (7, 112)
    # deconv1 (k=5, s=2, p=2): dilate-2 + pad-2 -> 17, conv -> 13
    c["d1_pr"] = _dilpad_row_mat(7, 2, 2, 2)                 # (17, 7)
    c["d1_pc"] = _dilpad_col_mat(7, 16, 2, 2, 2)             # (112, 272)
    c["w5"] = _kron_taps(p["deconv1_w"], 13)                 # (25, 208, 78)
    c["b5"] = np.tile(p["deconv1_b"], 13)[None, :]           # (1, 78)
    # deconv2 (k=3, s=2, p=0, dil=3, out_pad=1): dilate-2 + pad-(6,7) -> 38, conv -> 32
    c["d2_pr"] = _dilpad_row_mat(13, 2, 6, 7)                # (38, 13)
    c["d2_pc"] = _dilpad_col_mat(13, 6, 2, 6, 7)             # (78, 228)
    c["w6"] = _kron_taps(p["deconv2_w"], 32)                 # (9, 192, 32*C)
    c["b6"] = np.tile(p["deconv2_b"], 32)[None, :]           # (1, 32*C)
    return {k: jnp.asarray(v) for k, v in c.items()}


_CONST_ORDER = ("w1", "b1", "p1_re", "p1_ro", "p1_se", "p1_so",
                "c2_pr", "c2_pc", "w2", "b2",
                "p2_re", "p2_ro", "p2_se", "p2_so",
                "w3", "b3", "i7", "w4", "b4",
                "d1_pr", "d1_pc", "w5", "b5",
                "d2_pr", "d2_pc", "w6", "b6")


# ----------------------------------------------------------------------------
# The fused Pallas kernel: whole autoencoder for one image per grid step
# ----------------------------------------------------------------------------
def _lenet_kernel(x_ref,
                  w1_ref, b1_ref, p1re_ref, p1ro_ref, p1se_ref, p1so_ref,
                  c2pr_ref, c2pc_ref, w2_ref, b2_ref,
                  p2re_ref, p2ro_ref, p2se_ref, p2so_ref,
                  w3_ref, b3_ref, i7_ref, w4_ref, b4_ref,
                  d1pr_ref, d1pc_ref, w5_ref, b5_ref,
                  d2pr_ref, d2pc_ref, w6_ref, b6_ref,
                  o_ref, *, cin):
    f32 = jnp.float32

    def mm(a, b):
        return jnp.dot(a, b, preferred_element_type=f32)

    x = x_ref[...]                                    # (32, 32*cin), lanes = w*cin + ch

    # --- Conv2d(cin, 6, 3) + ReLU : (32, 32*cin) -> (30, 30*6)
    acc = jnp.zeros((30, 30 * 6), f32)
    for t in range(9):
        i, j = divmod(t, 3)
        acc = acc + mm(x[i:i + 30, j * cin:j * cin + 30 * cin], w1_ref[t])
    h = jnp.maximum(acc + b1_ref[...], 0.0)

    # --- MaxPool2d(2, 2) : (30, 30*6) -> (15, 15*6)   (selection matmuls + max)
    rmax = jnp.maximum(mm(p1re_ref[...], h), mm(p1ro_ref[...], h))
    h = jnp.maximum(mm(rmax, p1se_ref[...]), mm(rmax, p1so_ref[...]))

    # --- Conv2d(6, 16, 5, padding=2) + ReLU : (15, 15*6) -> (15, 15*16)
    hp = mm(c2pr_ref[...], mm(h, c2pc_ref[...]))      # zero-pad -> (19, 19*6)
    acc = jnp.zeros((15, 15 * 16), f32)
    for t in range(25):
        i, j = divmod(t, 5)
        acc = acc + mm(hp[i:i + 15, j * 6:j * 6 + 15 * 6], w2_ref[t])
    h = jnp.maximum(acc + b2_ref[...], 0.0)

    # --- MaxPool2d(2) : (15, 15*16) -> (7, 7*16)
    rmax = jnp.maximum(mm(p2re_ref[...], h), mm(p2ro_ref[...], h))
    feat = jnp.maximum(mm(rmax, p2se_ref[...]), mm(rmax, p2so_ref[...]))

    # --- Flatten + Linear(784, latent) + ReLU  (HWC flatten order)
    z = jnp.zeros((1, b3_ref.shape[1]), f32)
    for r in range(7):
        z = z + mm(feat[r:r + 1, :], w3_ref[r])
    z = jnp.maximum(z + b3_ref[...], 0.0)

    # --- Linear(latent, 784) + ReLU + View -> (7, 7*16)
    eye7 = i7_ref[...]
    d = jnp.zeros((7, 7 * 16), f32)
    for r in range(7):
        d = d + eye7[:, r:r + 1] * mm(z, w4_ref[r])   # place row r via outer broadcast
    d = jnp.maximum(d + b4_ref[...], 0.0)

    # --- ConvTranspose2d(16, 6, 5, stride=2, padding=2) + ReLU
    #     dilate-2 + pad-2 -> (17, 17*16); 5x5 conv -> (13, 13*6)
    dp = mm(d1pr_ref[...], mm(d, d1pc_ref[...]))
    acc = jnp.zeros((13, 13 * 6), f32)
    for t in range(25):
        i, j = divmod(t, 5)
        acc = acc + mm(dp[i:i + 13, j * 16:j * 16 + 13 * 16], w5_ref[t])
    d = jnp.maximum(acc + b5_ref[...], 0.0)

    # --- ConvTranspose2d(6, cin, 3, stride=2, dilation=3, output_padding=1) + Sigmoid
    #     dilate-2 + pad-(6,7) -> (38, 38*6); 3x3 conv (dilation 3) -> (32, 32*cin)
    dp = mm(d2pr_ref[...], mm(d, d2pc_ref[...]))
    acc = jnp.zeros((32, 32 * cin), f32)
    for t in range(9):
        i, j = divmod(t, 3)
        acc = acc + mm(dp[3 * i:3 * i + 32, 3 * j * 6:3 * j * 6 + 32 * 6], w6_ref[t])
    acc = acc + b6_ref[...]
    # sigmoid: exp on the EUP, reciprocal instead of a divide chain
    o_ref[...] = pl.reciprocal(1.0 + jnp.exp(-acc), approx=False).astype(o_ref.dtype)


# ----------------------------------------------------------------------------
# Wrapper: layout conversion + single pallas_call
# ----------------------------------------------------------------------------
def lenet_autoencoder_forward(x_nchw, consts):
    N, C, H, W = x_nchw.shape
    assert (H, W) == (32, 32), "LenetAutoencoder requires 32x32 inputs"
    # NCHW -> (N, H, W*C) channel-fastest-lane layout
    x2d = jnp.transpose(x_nchw, (0, 2, 3, 1)).reshape(N, H, W * C)

    const_args = [consts[k] for k in _CONST_ORDER]

    def full_spec(a):
        zero = (0,) * a.ndim
        return pl.BlockSpec(a.shape, lambda n, _z=zero: _z)

    out2d = pl.pallas_call(
        functools.partial(_lenet_kernel, cin=C),
        out_shape=jax.ShapeDtypeStruct((N, 32, 32 * C), jnp.float32),
        grid=(N,),
        in_specs=[pl.BlockSpec((None, 32, W * C), lambda n: (n, 0, 0))]
                 + [full_spec(a) for a in const_args],
        out_specs=pl.BlockSpec((None, 32, 32 * C), lambda n: (n, 0, 0)),
        compiler_params=pltpu.CompilerParams(
            dimension_semantics=("parallel",),
            vmem_limit_bytes=40 * 1024 * 1024),
    )(x2d, *const_args)

    return jnp.transpose(out2d.reshape(N, 32, 32, C), (0, 3, 1, 2))


# ----------------------------------------------------------------------------
# Pure-XLA reference (same random weights / layout conventions) for validation
# ----------------------------------------------------------------------------
def lenet_autoencoder_reference(x_nchw, params):
    C = x_nchw.shape[1]
    hi = jax.lax.Precision.HIGHEST
    dn = ("NHWC", "HWIO", "NHWC")
    x = jnp.transpose(x_nchw, (0, 2, 3, 1))

    h = jax.lax.conv_general_dilated(x, params["conv1_w"].reshape(3, 3, C, 6),
                                     (1, 1), "VALID", dimension_numbers=dn, precision=hi)
    h = jax.nn.relu(h + params["conv1_b"])
    h = jax.lax.reduce_window(h, -jnp.inf, jax.lax.max, (1, 2, 2, 1), (1, 2, 2, 1), "VALID")

    h = jax.lax.conv_general_dilated(h, params["conv2_w"].reshape(5, 5, 6, 16),
                                     (1, 1), ((2, 2), (2, 2)), dimension_numbers=dn, precision=hi)
    h = jax.nn.relu(h + params["conv2_b"])
    h = jax.lax.reduce_window(h, -jnp.inf, jax.lax.max, (1, 2, 2, 1), (1, 2, 2, 1), "VALID")

    n = h.shape[0]
    flat = h.reshape(n, 7 * 7 * 16)                                   # (h, w, c) order
    z = jax.nn.relu(flat @ params["fc1_w"].reshape(7 * 7 * 16, -1) + params["fc1_b"])

    d = jax.nn.relu(z @ jnp.transpose(params["fc2_w"], (1, 0, 2)).reshape(-1, 7 * 7 * 16)
                    + params["fc2_b"].reshape(1, 7 * 7 * 16))
    d = d.reshape(n, 7, 7, 16)

    d = jax.lax.conv_general_dilated(d, params["deconv1_w"].reshape(5, 5, 16, 6),
                                     (1, 1), ((2, 2), (2, 2)), lhs_dilation=(2, 2),
                                     dimension_numbers=dn, precision=hi)
    d = jax.nn.relu(d + params["deconv1_b"])

    d = jax.lax.conv_general_dilated(d, params["deconv2_w"].reshape(3, 3, 6, C),
                                     (1, 1), ((6, 7), (6, 7)), lhs_dilation=(2, 2),
                                     rhs_dilation=(3, 3), dimension_numbers=dn, precision=hi)
    out = jax.nn.sigmoid(d + params["deconv2_b"])
    return jnp.transpose(out, (0, 3, 1, 2))


# ----------------------------------------------------------------------------
if __name__ == "__main__":
    num_channels = 3
    batch = 2
    latent_dim = 128

    key = jax.random.PRNGKey(0)
    k_in, k_par = jax.random.split(key)

    x = jax.random.uniform(k_in, (batch, num_channels, 32, 32), dtype=jnp.float32)
    params = init_params(k_par, num_channels, latent_dim)
    consts = build_kernel_constants(params, num_channels)

    fwd = jax.jit(lenet_autoencoder_forward)
    y = jax.block_until_ready(fwd(x, consts))

    assert y.shape == (batch, num_channels, 32, 32), y.shape
    assert bool(jnp.all(jnp.isfinite(y)))
    assert bool(jnp.all((y >= 0.0) & (y <= 1.0)))  # sigmoid output range

    # Cross-check the fused kernel against a pure-XLA reference of the same net.
    y_ref = jax.block_until_ready(jax.jit(lenet_autoencoder_reference)(x, params))
    err = float(jnp.max(jnp.abs(y - y_ref)))
    assert err < 2e-3, f"mismatch vs reference: {err}"

    print("KERNEL_OK")
</pallas_src>

<mosaic_0001>
module attributes {stable_mosaic.version = 11 : i64} {
  func.func @_lenet_kernel(%arg0: i32, %arg1: memref<1x32x96xf32, #tpu.memory_space<vmem>>, %arg2: memref<9x90x180xf32, #tpu.memory_space<vmem>>, %arg3: memref<1x180xf32, #tpu.memory_space<vmem>>, %arg4: memref<15x30xf32, #tpu.memory_space<vmem>>, %arg5: memref<15x30xf32, #tpu.memory_space<vmem>>, %arg6: memref<180x90xf32, #tpu.memory_space<vmem>>, %arg7: memref<180x90xf32, #tpu.memory_space<vmem>>, %arg8: memref<19x15xf32, #tpu.memory_space<vmem>>, %arg9: memref<90x114xf32, #tpu.memory_space<vmem>>, %arg10: memref<25x90x240xf32, #tpu.memory_space<vmem>>, %arg11: memref<1x240xf32, #tpu.memory_space<vmem>>, %arg12: memref<7x15xf32, #tpu.memory_space<vmem>>, %arg13: memref<7x15xf32, #tpu.memory_space<vmem>>, %arg14: memref<240x112xf32, #tpu.memory_space<vmem>>, %arg15: memref<240x112xf32, #tpu.memory_space<vmem>>, %arg16: memref<7x112x128xf32, #tpu.memory_space<vmem>>, %arg17: memref<1x128xf32, #tpu.memory_space<vmem>>, %arg18: memref<7x7xf32, #tpu.memory_space<vmem>>, %arg19: memref<7x128x112xf32, #tpu.memory_space<vmem>>, %arg20: memref<7x112xf32, #tpu.memory_space<vmem>>, %arg21: memref<17x7xf32, #tpu.memory_space<vmem>>, %arg22: memref<112x272xf32, #tpu.memory_space<vmem>>, %arg23: memref<25x208x78xf32, #tpu.memory_space<vmem>>, %arg24: memref<1x78xf32, #tpu.memory_space<vmem>>, %arg25: memref<38x13xf32, #tpu.memory_space<vmem>>, %arg26: memref<78x228xf32, #tpu.memory_space<vmem>>, %arg27: memref<9x192x96xf32, #tpu.memory_space<vmem>>, %arg28: memref<1x96xf32, #tpu.memory_space<vmem>>, %arg29: memref<1x32x96xf32, #tpu.memory_space<vmem>>) attributes {dimension_semantics = [#tpu.dimension_semantics<parallel>], iteration_bounds = array<i64: 2>, scalar_prefetch = 0 : i64, scratch_operands = 0 : i64, tpu.core_type = #tpu.core_type<tc>, window_params = [{transform_indices = @transform_0, window_bounds = array<i64: 1, 32, 96>}, {pipeline_mode = #tpu.pipeline_mode<synchronous>, transform_indices = @transform_1, window_bounds = array<i64: 9, 90, 180>}, {pipeline_mode = #tpu.pipeline_mode<synchronous>, transform_indices = @transform_2, window_bounds = array<i64: 1, 180>}, {pipeline_mode = #tpu.pipeline_mode<synchronous>, transform_indices = @transform_3, window_bounds = array<i64: 15, 30>}, {pipeline_mode = #tpu.pipeline_mode<synchronous>, transform_indices = @transform_4, window_bounds = array<i64: 15, 30>}, {pipeline_mode = #tpu.pipeline_mode<synchronous>, transform_indices = @transform_5, window_bounds = array<i64: 180, 90>}, {pipeline_mode = #tpu.pipeline_mode<synchronous>, transform_indices = @transform_6, window_bounds = array<i64: 180, 90>}, {pipeline_mode = #tpu.pipeline_mode<synchronous>, transform_indices = @transform_7, window_bounds = array<i64: 19, 15>}, {pipeline_mode = #tpu.pipeline_mode<synchronous>, transform_indices = @transform_8, window_bounds = array<i64: 90, 114>}, {pipeline_mode = #tpu.pipeline_mode<synchronous>, transform_indices = @transform_9, window_bounds = array<i64: 25, 90, 240>}, {pipeline_mode = #tpu.pipeline_mode<synchronous>, transform_indices = @transform_10, window_bounds = array<i64: 1, 240>}, {pipeline_mode = #tpu.pipeline_mode<synchronous>, transform_indices = @transform_11, window_bounds = array<i64: 7, 15>}, {pipeline_mode = #tpu.pipeline_mode<synchronous>, transform_indices = @transform_12, window_bounds = array<i64: 7, 15>}, {pipeline_mode = #tpu.pipeline_mode<synchronous>, transform_indices = @transform_13, window_bounds = array<i64: 240, 112>}, {pipeline_mode = #tpu.pipeline_mode<synchronous>, transform_indices = @transform_14, window_bounds = array<i64: 240, 112>}, {pipeline_mode = #tpu.pipeline_mode<synchronous>, transform_indices = @transform_15, window_bounds = array<i64: 7, 112, 128>}, {pipeline_mode = #tpu.pipeline_mode<synchronous>, transform_indices = @transform_16, window_bounds = array<i64: 1, 128>}, {pipeline_mode = #tpu.pipeline_mode<synchronous>, transform_indices = @transform_17, window_bounds = array<i64: 7, 7>}, {pipeline_mode = #tpu.pipeline_mode<synchronous>, transform_indices = @transform_18, window_bounds = array<i64: 7, 128, 112>}, {pipeline_mode = #tpu.pipeline_mode<synchronous>, transform_indices = @transform_19, window_bounds = array<i64: 7, 112>}, {pipeline_mode = #tpu.pipeline_mode<synchronous>, transform_indices = @transform_20, window_bounds = array<i64: 17, 7>}, {pipeline_mode = #tpu.pipeline_mode<synchronous>, transform_indices = @transform_21, window_bounds = array<i64: 112, 272>}, {pipeline_mode = #tpu.pipeline_mode<synchronous>, transform_indices = @transform_22, window_bounds = array<i64: 25, 208, 78>}, {pipeline_mode = #tpu.pipeline_mode<synchronous>, transform_indices = @transform_23, window_bounds = array<i64: 1, 78>}, {pipeline_mode = #tpu.pipeline_mode<synchronous>, transform_indices = @transform_24, window_bounds = array<i64: 38, 13>}, {pipeline_mode = #tpu.pipeline_mode<synchronous>, transform_indices = @transform_25, window_bounds = array<i64: 78, 228>}, {pipeline_mode = #tpu.pipeline_mode<synchronous>, transform_indices = @transform_26, window_bounds = array<i64: 9, 192, 96>}, {pipeline_mode = #tpu.pipeline_mode<synchronous>, transform_indices = @transform_27, window_bounds = array<i64: 1, 96>}, {transform_indices = @transform_28, window_bounds = array<i64: 1, 32, 96>}]} {
    %c0 = arith.constant 0 : index
    %c0_0 = arith.constant 0 : index
    %c0_1 = arith.constant 0 : index
    %0 = vector.load %arg1[%c0, %c0_0, %c0_1] : memref<1x32x96xf32, #tpu.memory_space<vmem>>, vector<1x32x96xf32>
    %1 = vector.shape_cast %0 : vector<1x32x96xf32> to vector<32x96xf32>
    %cst = arith.constant 0.000000e+00 : f32
    %2 = vector.broadcast %cst : f32 to vector<30x180xf32>
    %3 = vector.extract_strided_slice %1 {offsets = [0, 0], sizes = [30, 90], strides = [1, 1]} : vector<32x96xf32> to vector<30x90xf32>
    %c0_2 = arith.constant 0 : index
    %c0_3 = arith.constant 0 : index
    %c0_4 = arith.constant 0 : index
    %4 = vector.load %arg2[%c0_2, %c0_3, %c0_4] : memref<9x90x180xf32, #tpu.memory_space<vmem>>, vector<1x90x180xf32>
    %5 = vector.shape_cast %4 : vector<1x90x180xf32> to vector<90x180xf32>
    %cst_5 = arith.constant dense<0.000000e+00> : vector<30x180xf32>
    %6 = tpu.matmul %3, %5, %cst_5 {dimension_numbers = #tpu.dot_dimension_numbers<[1], [0], [0], [1], [0, 0, 1, 1], [], []>} : vector<30x90xf32>, vector<90x180xf32>, vector<30x180xf32> -> vector<30x180xf32>
    %7 = arith.addf %2, %6 : vector<30x180xf32>
    %8 = vector.extract_strided_slice %1 {offsets = [0, 3], sizes = [30, 90], strides = [1, 1]} : vector<32x96xf32> to vector<30x90xf32>
    %c1 = arith.constant 1 : index
    %c0_6 = arith.constant 0 : index
    %c0_7 = arith.constant 0 : index
    %9 = vector.load %arg2[%c1, %c0_6, %c0_7] : memref<9x90x180xf32, #tpu.memory_space<vmem>>, vector<1x90x180xf32>
    %10 = vector.shape_cast %9 : vector<1x90x180xf32> to vector<90x180xf32>
    %cst_8 = arith.constant dense<0.000000e+00> : vector<30x180xf32>
    %11 = tpu.matmul %8, %10, %cst_8 {dimension_numbers = #tpu.dot_dimension_numbers<[1], [0], [0], [1], [0, 0, 1, 1], [], []>} : vector<30x90xf32>, vector<90x180xf32>, vector<30x180xf32> -> vector<30x180xf32>
    %12 = arith.addf %7, %11 : vector<30x180xf32>
    %13 = vector.extract_strided_slice %1 {offsets = [0, 6], sizes = [30, 90], strides = [1, 1]} : vector<32x96xf32> to vector<30x90xf32>
    %c2 = arith.constant 2 : index
    %c0_9 = arith.constant 0 : index
    %c0_10 = arith.constant 0 : index
    %14 = vector.load %arg2[%c2, %c0_9, %c0_10] : memref<9x90x180xf32, #tpu.memory_space<vmem>>, vector<1x90x180xf32>
    %15 = vector.shape_cast %14 : vector<1x90x180xf32> to vector<90x180xf32>
    %cst_11 = arith.constant dense<0.000000e+00> : vector<30x180xf32>
    %16 = tpu.matmul %13, %15, %cst_11 {dimension_numbers = #tpu.dot_dimension_numbers<[1], [0], [0], [1], [0, 0, 1, 1], [], []>} : vector<30x90xf32>, vector<90x180xf32>, vector<30x180xf32> -> vector<30x180xf32>
    %17 = arith.addf %12, %16 : vector<30x180xf32>
    %18 = vector.extract_strided_slice %1 {offsets = [1, 0], sizes = [30, 90], strides = [1, 1]} : vector<32x96xf32> to vector<30x90xf32>
    %c3 = arith.constant 3 : index
    %c0_12 = arith.constant 0 : index
    %c0_13 = arith.constant 0 : index
    %19 = vector.load %arg2[%c3, %c0_12, %c0_13] : memref<9x90x180xf32, #tpu.memory_space<vmem>>, vector<1x90x180xf32>
    %20 = vector.shape_cast %19 : vector<1x90x180xf32> to vector<90x180xf32>
    %cst_14 = arith.constant dense<0.000000e+00> : vector<30x180xf32>
    %21 = tpu.matmul %18, %20, %cst_14 {dimension_numbers = #tpu.dot_dimension_numbers<[1], [0], [0], [1], [0, 0, 1, 1], [], []>} : vector<30x90xf32>, vector<90x180xf32>, vector<30x180xf32> -> vector<30x180xf32>
    %22 = arith.addf %17, %21 : vector<30x180xf32>
    %23 = vector.extract_strided_slice %1 {offsets = [1, 3], sizes = [30, 90], strides = [1, 1]} : vector<32x96xf32> to vector<30x90xf32>
    %c4 = arith.constant 4 : index
    %c0_15 = arith.constant 0 : index
    %c0_16 = arith.constant 0 : index
    %24 = vector.load %arg2[%c4, %c0_15, %c0_16] : memref<9x90x180xf32, #tpu.memory_space<vmem>>, vector<1x90x180xf32>
    %25 = vector.shape_cast %24 : vector<1x90x180xf32> to vector<90x180xf32>
    %cst_17 = arith.constant dense<0.000000e+00> : vector<30x180xf32>
    %26 = tpu.matmul %23, %25, %cst_17 {dimension_numbers = #tpu.dot_dimension_numbers<[1], [0], [0], [1], [0, 0, 1, 1], [], []>} : vector<30x90xf32>, vector<90x180xf32>, vector<30x180xf32> -> vector<30x180xf32>
    %27 = arith.addf %22, %26 : vector<30x180xf32>
    %28 = vector.extract_strided_slice %1 {offsets = [1, 6], sizes = [30, 90], strides = [1, 1]} : vector<32x96xf32> to vector<30x90xf32>
    %c5 = arith.constant 5 : index
    %c0_18 = arith.constant 0 : index
    %c0_19 = arith.constant 0 : index
    %29 = vector.load %arg2[%c5, %c0_18, %c0_19] : memref<9x90x180xf32, #tpu.memory_space<vmem>>, vector<1x90x180xf32>
    %30 = vector.shape_cast %29 : vector<1x90x180xf32> to vector<90x180xf32>
    %cst_20 = arith.constant dense<0.000000e+00> : vector<30x180xf32>
    %31 = tpu.matmul %28, %30, %cst_20 {dimension_numbers = #tpu.dot_dimension_numbers<[1], [0], [0], [1], [0, 0, 1, 1], [], []>} : vector<30x90xf32>, vector<90x180xf32>, vector<30x180xf32> -> vector<30x180xf32>
    %32 = arith.addf %27, %31 : vector<30x180xf32>
    %33 = vector.extract_strided_slice %1 {offsets = [2, 0], sizes = [30, 90], strides = [1, 1]} : vector<32x96xf32> to vector<30x90xf32>
    %c6 = arith.constant 6 : index
    %c0_21 = arith.constant 0 : index
    %c0_22 = arith.constant 0 : index
    %34 = vector.load %arg2[%c6, %c0_21, %c0_22] : memref<9x90x180xf32, #tpu.memory_space<vmem>>, vector<1x90x180xf32>
    %35 = vector.shape_cast %34 : vector<1x90x180xf32> to vector<90x180xf32>
    %cst_23 = arith.constant dense<0.000000e+00> : vector<30x180xf32>
    %36 = tpu.matmul %33, %35, %cst_23 {dimension_numbers = #tpu.dot_dimension_numbers<[1], [0], [0], [1], [0, 0, 1, 1], [], []>} : vector<30x90xf32>, vector<90x180xf32>, vector<30x180xf32> -> vector<30x180xf32>
    %37 = arith.addf %32, %36 : vector<30x180xf32>
    %38 = vector.extract_strided_slice %1 {offsets = [2, 3], sizes = [30, 90], strides = [1, 1]} : vector<32x96xf32> to vector<30x90xf32>
    %c7 = arith.constant 7 : index
    %c0_24 = arith.constant 0 : index
    %c0_25 = arith.constant 0 : index
    %39 = vector.load %arg2[%c7, %c0_24, %c0_25] : memref<9x90x180xf32, #tpu.memory_space<vmem>>, vector<1x90x180xf32>
    %40 = vector.shape_cast %39 : vector<1x90x180xf32> to vector<90x180xf32>
    %cst_26 = arith.constant dense<0.000000e+00> : vector<30x180xf32>
    %41 = tpu.matmul %38, %40, %cst_26 {dimension_numbers = #tpu.dot_dimension_numbers<[1], [0], [0], [1], [0, 0, 1, 1], [], []>} : vector<30x90xf32>, vector<90x180xf32>, vector<30x180xf32> -> vector<30x180xf32>
    %42 = arith.addf %37, %41 : vector<30x180xf32>
    %43 = vector.extract_strided_slice %1 {offsets = [2, 6], sizes = [30, 90], strides = [1, 1]} : vector<32x96xf32> to vector<30x90xf32>
    %c8 = arith.constant 8 : index
    %c0_27 = arith.constant 0 : index
    %c0_28 = arith.constant 0 : index
    %44 = vector.load %arg2[%c8, %c0_27, %c0_28] : memref<9x90x180xf32, #tpu.memory_space<vmem>>, vector<1x90x180xf32>
    %45 = vector.shape_cast %44 : vector<1x90x180xf32> to vector<90x180xf32>
    %cst_29 = arith.constant dense<0.000000e+00> : vector<30x180xf32>
    %46 = tpu.matmul %43, %45, %cst_29 {dimension_numbers = #tpu.dot_dimension_numbers<[1], [0], [0], [1], [0, 0, 1, 1], [], []>} : vector<30x90xf32>, vector<90x180xf32>, vector<30x180xf32> -> vector<30x180xf32>
    %47 = arith.addf %42, %46 : vector<30x180xf32>
    %c0_30 = arith.constant 0 : index
    %c0_31 = arith.constant 0 : index
    %48 = vector.load %arg3[%c0_30, %c0_31] : memref<1x180xf32, #tpu.memory_space<vmem>>, vector<1x180xf32>
    %49 = vector.broadcast %48 : vector<1x180xf32> to vector<30x180xf32>
    %50 = arith.addf %47, %49 : vector<30x180xf32>
    %cst_32 = arith.constant 0.000000e+00 : f32
    %51 = vector.broadcast %cst_32 : f32 to vector<30x180xf32>
    %52 = arith.maximumf %50, %51 : vector<30x180xf32>
    %c0_33 = arith.constant 0 : index
    %c0_34 = arith.constant 0 : index
    %53 = vector.load %arg4[%c0_33, %c0_34] : memref<15x30xf32, #tpu.memory_space<vmem>>, vector<15x30xf32>
    %cst_35 = arith.constant dense<0.000000e+00> : vector<15x180xf32>
    %54 = tpu.matmul %53, %52, %cst_35 {dimension_numbers = #tpu.dot_dimension_numbers<[1], [0], [0], [1], [0, 0, 1, 1], [], []>} : vector<15x30xf32>, vector<30x180xf32>, vector<15x180xf32> -> vector<15x180xf32>
    %c0_36 = arith.constant 0 : index
    %c0_37 = arith.constant 0 : index
    %55 = vector.load %arg5[%c0_36, %c0_37] : memref<15x30xf32, #tpu.memory_space<vmem>>, vector<15x30xf32>
    %cst_38 = arith.constant dense<0.000000e+00> : vector<15x180xf32>
    %56 = tpu.matmul %55, %52, %cst_38 {dimension_numbers = #tpu.dot_dimension_numbers<[1], [0], [0], [1], [0, 0, 1, 1], [], []>} : vector<15x30xf32>, vector<30x180xf32>, vector<15x180xf32> -> vector<15x180xf32>
    %57 = arith.maximumf %54, %56 : vector<15x180xf32>
    %c0_39 = arith.constant 0 : index
    %c0_40 = arith.constant 0 : index
    %58 = vector.load %arg6[%c0_39, %c0_40] : memref<180x90xf32, #tpu.memory_space<vmem>>, vector<180x90xf32>
    %cst_41 = arith.constant dense<0.000000e+00> : vector<15x90xf32>
    %59 = tpu.matmul %57, %58, %cst_41 {dimension_numbers = #tpu.dot_dimension_numbers<[1], [0], [0], [1], [0, 0, 1, 1], [], []>} : vector<15x180xf32>, vector<180x90xf32>, vector<15x90xf32> -> vector<15x90xf32>
    %c0_42 = arith.constant 0 : index
    %c0_43 = arith.constant 0 : index
    %60 = vector.load %arg7[%c0_42, %c0_43] : memref<180x90xf32, #tpu.memory_space<vmem>>, vector<180x90xf32>
    %cst_44 = arith.constant dense<0.000000e+00> : vector<15x90xf32>
    %61 = tpu.matmul %57, %60, %cst_44 {dimension_numbers = #tpu.dot_dimension_numbers<[1], [0], [0], [1], [0, 0, 1, 1], [], []>} : vector<15x180xf32>, vector<180x90xf32>, vector<15x90xf32> -> vector<15x90xf32>
    %62 = arith.maximumf %59, %61 : vector<15x90xf32>
    %c0_45 = arith.constant 0 : index
    %c0_46 = arith.constant 0 : index
    %63 = vector.load %arg8[%c0_45, %c0_46] : memref<19x15xf32, #tpu.memory_space<vmem>>, vector<19x15xf32>
    %c0_47 = arith.constant 0 : index
    %c0_48 = arith.constant 0 : index
    %64 = vector.load %arg9[%c0_47, %c0_48] : memref<90x114xf32, #tpu.memory_space<vmem>>, vector<90x114xf32>
    %cst_49 = arith.constant dense<0.000000e+00> : vector<15x114xf32>
    %65 = tpu.matmul %62, %64, %cst_49 {dimension_numbers = #tpu.dot_dimension_numbers<[1], [0], [0], [1], [0, 0, 1, 1], [], []>} : vector<15x90xf32>, vector<90x114xf32>, vector<15x114xf32> -> vector<15x114xf32>
    %cst_50 = arith.constant dense<0.000000e+00> : vector<19x114xf32>
    %66 = tpu.matmul %63, %65, %cst_50 {dimension_numbers = #tpu.dot_dimension_numbers<[1], [0], [0], [1], [0, 0, 1, 1], [], []>} : vector<19x15xf32>, vector<15x114xf32>, vector<19x114xf32> -> vector<19x114xf32>
    %cst_51 = arith.constant 0.000000e+00 : f32
    %67 = vector.broadcast %cst_51 : f32 to vector<15x240xf32>
    %68 = vector.extract_strided_slice %66 {offsets = [0, 0], sizes = [15, 90], strides = [1, 1]} : vector<19x114xf32> to vector<15x90xf32>
    %c0_52 = arith.constant 0 : index
    %c0_53 = arith.constant 0 : index
    %c0_54 = arith.constant 0 : index
    %69 = vector.load %arg10[%c0_52, %c0_53, %c0_54] : memref<25x90x240xf32, #tpu.memory_space<vmem>>, vector<1x90x240xf32>
    %70 = vector.shape_cast %69 : vector<1x90x240xf32> to vector<90x240xf32>
    %cst_55 = arith.constant dense<0.000000e+00> : vector<15x240xf32>
    %71 = tpu.matmul %68, %70, %cst_55 {dimension_numbers = #tpu.dot_dimension_numbers<[1], [0], [0], [1], [0, 0, 1, 1], [], []>} : vector<15x90xf32>, vector<90x240xf32>, vector<15x240xf32> -> vector<15x240xf32>
    %72 = arith.addf %67, %71 : vector<15x240xf32>
    %73 = vector.extract_strided_slice %66 {offsets = [0, 6], sizes = [15, 90], strides = [1, 1]} : vector<19x114xf32> to vector<15x90xf32>
    %c1_56 = arith.constant 1 : index
    %c0_57 = arith.constant 0 : index
    %c0_58 = arith.constant 0 : index
    %74 = vector.load %arg10[%c1_56, %c0_57, %c0_58] : memref<25x90x240xf32, #tpu.memory_space<vmem>>, vector<1x90x240xf32>
    %75 = vector.shape_cast %74 : vector<1x90x240xf32> to vector<90x240xf32>
    %cst_59 = arith.constant dense<0.000000e+00> : vector<15x240xf32>
    %76 = tpu.matmul %73, %75, %cst_59 {dimension_numbers = #tpu.dot_dimension_numbers<[1], [0], [0], [1], [0, 0, 1, 1], [], []>} : vector<15x90xf32>, vector<90x240xf32>, vector<15x240xf32> -> vector<15x240xf32>
    %77 = arith.addf %72, %76 : vector<15x240xf32>
    %78 = vector.extract_strided_slice %66 {offsets = [0, 12], sizes = [15, 90], strides = [1, 1]} : vector<19x114xf32> to vector<15x90xf32>
    %c2_60 = arith.constant 2 : index
    %c0_61 = arith.constant 0 : index
    %c0_62 = arith.constant 0 : index
    %79 = vector.load %arg10[%c2_60, %c0_61, %c0_62] : memref<25x90x240xf32, #tpu.memory_space<vmem>>, vector<1x90x240xf32>
    %80 = vector.shape_cast %79 : vector<1x90x240xf32> to vector<90x240xf32>
    %cst_63 = arith.constant dense<0.000000e+00> : vector<15x240xf32>
    %81 = tpu.matmul %78, %80, %cst_63 {dimension_numbers = #tpu.dot_dimension_numbers<[1], [0], [0], [1], [0, 0, 1, 1], [], []>} : vector<15x90xf32>, vector<90x240xf32>, vector<15x240xf32> -> vector<15x240xf32>
    %82 = arith.addf %77, %81 : vector<15x240xf32>
    %83 = vector.extract_strided_slice %66 {offsets = [0, 18], sizes = [15, 90], strides = [1, 1]} : vector<19x114xf32> to vector<15x90xf32>
    %c3_64 = arith.constant 3 : index
    %c0_65 = arith.constant 0 : index
    %c0_66 = arith.constant 0 : index
    %84 = vector.load %arg10[%c3_64, %c0_65, %c0_66] : memref<25x90x240xf32, #tpu.memory_space<vmem>>, vector<1x90x240xf32>
    %85 = vector.shape_cast %84 : vector<1x90x240xf32> to vector<90x240xf32>
    %cst_67 = arith.constant dense<0.000000e+00> : vector<15x240xf32>
    %86 = tpu.matmul %83, %85, %cst_67 {dimension_numbers = #tpu.dot_dimension_numbers<[1], [0], [0], [1], [0, 0, 1, 1], [], []>} : vector<15x90xf32>, vector<90x240xf32>, vector<15x240xf32> -> vector<15x240xf32>
    %87 = arith.addf %82, %86 : vector<15x240xf32>
    %88 = vector.extract_strided_slice %66 {offsets = [0, 24], sizes = [15, 90], strides = [1, 1]} : vector<19x114xf32> to vector<15x90xf32>
    %c4_68 = arith.constant 4 : index
    %c0_69 = arith.constant 0 : index
    %c0_70 = arith.constant 0 : index
    %89 = vector.load %arg10[%c4_68, %c0_69, %c0_70] : memref<25x90x240xf32, #tpu.memory_space<vmem>>, vector<1x90x240xf32>
    %90 = vector.shape_cast %89 : vector<1x90x240xf32> to vector<90x240xf32>
    %cst_71 = arith.constant dense<0.000000e+00> : vector<15x240xf32>
    %91 = tpu.matmul %88, %90, %cst_71 {dimension_numbers = #tpu.dot_dimension_numbers<[1], [0], [0], [1], [0, 0, 1, 1], [], []>} : vector<15x90xf32>, vector<90x240xf32>, vector<15x240xf32> -> vector<15x240xf32>
    %92 = arith.addf %87, %91 : vector<15x240xf32>
    %93 = vector.extract_strided_slice %66 {offsets = [1, 0], sizes = [15, 90], strides = [1, 1]} : vector<19x114xf32> to vector<15x90xf32>
    %c5_72 = arith.constant 5 : index
    %c0_73 = arith.constant 0 : index
    %c0_74 = arith.constant 0 : index
    %94 = vector.load %arg10[%c5_72, %c0_73, %c0_74] : memref<25x90x240xf32, #tpu.memory_space<vmem>>, vector<1x90x240xf32>
    %95 = vector.shape_cast %94 : vector<1x90x240xf32> to vector<90x240xf32>
    %cst_75 = arith.constant dense<0.000000e+00> : vector<15x240xf32>
    %96 = tpu.matmul %93, %95, %cst_75 {dimension_numbers = #tpu.dot_dimension_numbers<[1], [0], [0], [1], [0, 0, 1, 1], [], []>} : vector<15x90xf32>, vector<90x240xf32>, vector<15x240xf32> -> vector<15x240xf32>
    %97 = arith.addf %92, %96 : vector<15x240xf32>
    %98 = vector.extract_strided_slice %66 {offsets = [1, 6], sizes = [15, 90], strides = [1, 1]} : vector<19x114xf32> to vector<15x90xf32>
    %c6_76 = arith.constant 6 : index
    %c0_77 = arith.constant 0 : index
    %c0_78 = arith.constant 0 : index
    %99 = vector.load %arg10[%c6_76, %c0_77, %c0_78] : memref<25x90x240xf32, #tpu.memory_space<vmem>>, vector<1x90x240xf32>
    %100 = vector.shape_cast %99 : vector<1x90x240xf32> to vector<90x240xf32>
    %cst_79 = arith.constant dense<0.000000e+00> : vector<15x240xf32>
    %101 = tpu.matmul %98, %100, %cst_79 {dimension_numbers = #tpu.dot_dimension_numbers<[1], [0], [0], [1], [0, 0, 1, 1], [], []>} : vector<15x90xf32>, vector<90x240xf32>, vector<15x240xf32> -> vector<15x240xf32>
    %102 = arith.addf %97, %101 : vector<15x240xf32>
    %103 = vector.extract_strided_slice %66 {offsets = [1, 12], sizes = [15, 90], strides = [1, 1]} : vector<19x114xf32> to vector<15x90xf32>
    %c7_80 = arith.constant 7 : index
    %c0_81 = arith.constant 0 : index
    %c0_82 = arith.constant 0 : index
    %104 = vector.load %arg10[%c7_80, %c0_81, %c0_82] : memref<25x90x240xf32, #tpu.memory_space<vmem>>, vector<1x90x240xf32>
    %105 = vector.shape_cast %104 : vector<1x90x240xf32> to vector<90x240xf32>
    %cst_83 = arith.constant dense<0.000000e+00> : vector<15x240xf32>
    %106 = tpu.matmul %103, %105, %cst_83 {dimension_numbers = #tpu.dot_dimension_numbers<[1], [0], [0], [1], [0, 0, 1, 1], [], []>} : vector<15x90xf32>, vector<90x240xf32>, vector<15x240xf32> -> vector<15x240xf32>
    %107 = arith.addf %102, %106 : vector<15x240xf32>
    %108 = vector.extract_strided_slice %66 {offsets = [1, 18], sizes = [15, 90], strides = [1, 1]} : vector<19x114xf32> to vector<15x90xf32>
    %c8_84 = arith.constant 8 : index
    %c0_85 = arith.constant 0 : index
    %c0_86 = arith.constant 0 : index
    %109 = vector.load %arg10[%c8_84, %c0_85, %c0_86] : memref<25x90x240xf32, #tpu.memory_space<vmem>>, vector<1x90x240xf32>
    %110 = vector.shape_cast %109 : vector<1x90x240xf32> to vector<90x240xf32>
    %cst_87 = arith.constant dense<0.000000e+00> : vector<15x240xf32>
    %111 = tpu.matmul %108, %110, %cst_87 {dimension_numbers = #tpu.dot_dimension_numbers<[1], [0], [0], [1], [0, 0, 1, 1], [], []>} : vector<15x90xf32>, vector<90x240xf32>, vector<15x240xf32> -> vector<15x240xf32>
    %112 = arith.addf %107, %111 : vector<15x240xf32>
    %113 = vector.extract_strided_slice %66 {offsets = [1, 24], sizes = [15, 90], strides = [1, 1]} : vector<19x114xf32> to vector<15x90xf32>
    %c9 = arith.constant 9 : index
    %c0_88 = arith.constant 0 : index
    %c0_89 = arith.constant 0 : index
    %114 = vector.load %arg10[%c9, %c0_88, %c0_89] : memref<25x90x240xf32, #tpu.memory_space<vmem>>, vector<1x90x240xf32>
    %115 = vector.shape_cast %114 : vector<1x90x240xf32> to vector<90x240xf32>
    %cst_90 = arith.constant dense<0.000000e+00> : vector<15x240xf32>
    %116 = tpu.matmul %113, %115, %cst_90 {dimension_numbers = #tpu.dot_dimension_numbers<[1], [0], [0], [1], [0, 0, 1, 1], [], []>} : vector<15x90xf32>, vector<90x240xf32>, vector<15x240xf32> -> vector<15x240xf32>
    %117 = arith.addf %112, %116 : vector<15x240xf32>
    %118 = vector.extract_strided_slice %66 {offsets = [2, 0], sizes = [15, 90], strides = [1, 1]} : vector<19x114xf32> to vector<15x90xf32>
    %c10 = arith.constant 10 : index
    %c0_91 = arith.constant 0 : index
    %c0_92 = arith.constant 0 : index
    %119 = vector.load %arg10[%c10, %c0_91, %c0_92] : memref<25x90x240xf32, #tpu.memory_space<vmem>>, vector<1x90x240xf32>
    %120 = vector.shape_cast %119 : vector<1x90x240xf32> to vector<90x240xf32>
    %cst_93 = arith.constant dense<0.000000e+00> : vector<15x240xf32>
    %121 = tpu.matmul %118, %120, %cst_93 {dimension_numbers = #tpu.dot_dimension_numbers<[1], [0], [0], [1], [0, 0, 1, 1], [], []>} : vector<15x90xf32>, vector<90x240xf32>, vector<15x240xf32> -> vector<15x240xf32>
    %122 = arith.addf %117, %121 : vector<15x240xf32>
    %123 = vector.extract_strided_slice %66 {offsets = [2, 6], sizes = [15, 90], strides = [1, 1]} : vector<19x114xf32> to vector<15x90xf32>
    %c11 = arith.constant 11 : index
    %c0_94 = arith.constant 0 : index
    %c0_95 = arith.constant 0 : index
    %124 = vector.load %arg10[%c11, %c0_94, %c0_95] : memref<25x90x240xf32, #tpu.memory_space<vmem>>, vector<1x90x240xf32>
    %125 = vector.shape_cast %124 : vector<1x90x240xf32> to vector<90x240xf32>
    %cst_96 = arith.constant dense<0.000000e+00> : vector<15x240xf32>
    %126 = tpu.matmul %123, %125, %cst_96 {dimension_numbers = #tpu.dot_dimension_numbers<[1], [0], [0], [1], [0, 0, 1, 1], [], []>} : vector<15x90xf32>, vector<90x240xf32>, vector<15x240xf32> -> vector<15x240xf32>
    %127 = arith.addf %122, %126 : vector<15x240xf32>
    %128 = vector.extract_strided_slice %66 {offsets = [2, 12], sizes = [15, 90], strides = [1, 1]} : vector<19x114xf32> to vector<15x90xf32>
    %c12 = arith.constant 12 : index
    %c0_97 = arith.constant 0 : index
    %c0_98 = arith.constant 0 : index
    %129 = vector.load %arg10[%c12, %c0_97, %c0_98] : memref<25x90x240xf32, #tpu.memory_space<vmem>>, vector<1x90x240xf32>
    %130 = vector.shape_cast %129 : vector<1x90x240xf32> to vector<90x240xf32>
    %cst_99 = arith.constant dense<0.000000e+00> : vector<15x240xf32>
    %131 = tpu.matmul %128, %130, %cst_99 {dimension_numbers = #tpu.dot_dimension_numbers<[1], [0], [0], [1], [0, 0, 1, 1], [], []>} : vector<15x90xf32>, vector<90x240xf32>, vector<15x240xf32> -> vector<15x240xf32>
    %132 = arith.addf %127, %131 : vector<15x240xf32>
    %133 = vector.extract_strided_slice %66 {offsets = [2, 18], sizes = [15, 90], strides = [1, 1]} : vector<19x114xf32> to vector<15x90xf32>
    %c13 = arith.constant 13 : index
    %c0_100 = arith.constant 0 : index
    %c0_101 = arith.constant 0 : index
    %134 = vector.load %arg10[%c13, %c0_100, %c0_101] : memref<25x90x240xf32, #tpu.memory_space<vmem>>, vector<1x90x240xf32>
    %135 = vector.shape_cast %134 : vector<1x90x240xf32> to vector<90x240xf32>
    %cst_102 = arith.constant dense<0.000000e+00> : vector<15x240xf32>
    %136 = tpu.matmul %133, %135, %cst_102 {dimension_numbers = #tpu.dot_dimension_numbers<[1], [0], [0], [1], [0, 0, 1, 1], [], []>} : vector<15x90xf32>, vector<90x240xf32>, vector<15x240xf32> -> vector<15x240xf32>
    %137 = arith.addf %132, %136 : vector<15x240xf32>
    %138 = vector.extract_strided_slice %66 {offsets = [2, 24], sizes = [15, 90], strides = [1, 1]} : vector<19x114xf32> to vector<15x90xf32>
    %c14 = arith.constant 14 : index
    %c0_103 = arith.constant 0 : index
    %c0_104 = arith.constant 0 : index
    %139 = vector.load %arg10[%c14, %c0_103, %c0_104] : memref<25x90x240xf32, #tpu.memory_space<vmem>>, vector<1x90x240xf32>
    %140 = vector.shape_cast %139 : vector<1x90x240xf32> to vector<90x240xf32>
    %cst_105 = arith.constant dense<0.000000e+00> : vector<15x240xf32>
    %141 = tpu.matmul %138, %140, %cst_105 {dimension_numbers = #tpu.dot_dimension_numbers<[1], [0], [0], [1], [0, 0, 1, 1], [], []>} : vector<15x90xf32>, vector<90x240xf32>, vector<15x240xf32> -> vector<15x240xf32>
    %142 = arith.addf %137, %141 : vector<15x240xf32>
    %143 = vector.extract_strided_slice %66 {offsets = [3, 0], sizes = [15, 90], strides = [1, 1]} : vector<19x114xf32> to vector<15x90xf32>
    %c15 = arith.constant 15 : index
    %c0_106 = arith.constant 0 : index
    %c0_107 = arith.constant 0 : index
    %144 = vector.load %arg10[%c15, %c0_106, %c0_107] : memref<25x90x240xf32, #tpu.memory_space<vmem>>, vector<1x90x240xf32>
    %145 = vector.shape_cast %144 : vector<1x90x240xf32> to vector<90x240xf32>
    %cst_108 = arith.constant dense<0.000000e+00> : vector<15x240xf32>
    %146 = tpu.matmul %143, %145, %cst_108 {dimension_numbers = #tpu.dot_dimension_numbers<[1], [0], [0], [1], [0, 0, 1, 1], [], []>} : vector<15x90xf32>, vector<90x240xf32>, vector<15x240xf32> -> vector<15x240xf32>
    %147 = arith.addf %142, %146 : vector<15x240xf32>
    %148 = vector.extract_strided_slice %66 {offsets = [3, 6], sizes = [15, 90], strides = [1, 1]} : vector<19x114xf32> to vector<15x90xf32>
    %c16 = arith.constant 16 : index
    %c0_109 = arith.constant 0 : index
    %c0_110 = arith.constant 0 : index
    %149 = vector.load %arg10[%c16, %c0_109, %c0_110] : memref<25x90x240xf32, #tpu.memory_space<vmem>>, vector<1x90x240xf32>
    %150 = vector.shape_cast %149 : vector<1x90x240xf32> to vector<90x240xf32>
    %cst_111 = arith.constant dense<0.000000e+00> : vector<15x240xf32>
    %151 = tpu.matmul %148, %150, %cst_111 {dimension_numbers = #tpu.dot_dimension_numbers<[1], [0], [0], [1], [0, 0, 1, 1], [], []>} : vector<15x90xf32>, vector<90x240xf32>, vector<15x240xf32> -> vector<15x240xf32>
    %152 = arith.addf %147, %151 : vector<15x240xf32>
    %153 = vector.extract_strided_slice %66 {offsets = [3, 12], sizes = [15, 90], strides = [1, 1]} : vector<19x114xf32> to vector<15x90xf32>
    %c17 = arith.constant 17 : index
    %c0_112 = arith.constant 0 : index
    %c0_113 = arith.constant 0 : index
    %154 = vector.load %arg10[%c17, %c0_112, %c0_113] : memref<25x90x240xf32, #tpu.memory_space<vmem>>, vector<1x90x240xf32>
    %155 = vector.shape_cast %154 : vector<1x90x240xf32> to vector<90x240xf32>
    %cst_114 = arith.constant dense<0.000000e+00> : vector<15x240xf32>
    %156 = tpu.matmul %153, %155, %cst_114 {dimension_numbers = #tpu.dot_dimension_numbers<[1], [0], [0], [1], [0, 0, 1, 1], [], []>} : vector<15x90xf32>, vector<90x240xf32>, vector<15x240xf32> -> vector<15x240xf32>
    %157 = arith.addf %152, %156 : vector<15x240xf32>
    %158 = vector.extract_strided_slice %66 {offsets = [3, 18], sizes = [15, 90], strides = [1, 1]} : vector<19x114xf32> to vector<15x90xf32>
    %c18 = arith.constant 18 : index
    %c0_115 = arith.constant 0 : index
    %c0_116 = arith.constant 0 : index
    %159 = vector.load %arg10[%c18, %c0_115, %c0_116] : memref<25x90x240xf32, #tpu.memory_space<vmem>>, vector<1x90x240xf32>
    %160 = vector.shape_cast %159 : vector<1x90x240xf32> to vector<90x240xf32>
    %cst_117 = arith.constant dense<0.000000e+00> : vector<15x240xf32>
    %161 = tpu.matmul %158, %160, %cst_117 {dimension_numbers = #tpu.dot_dimension_numbers<[1], [0], [0], [1], [0, 0, 1, 1], [], []>} : vector<15x90xf32>, vector<90x240xf32>, vector<15x240xf32> -> vector<15x240xf32>
    %162 = arith.addf %157, %161 : vector<15x240xf32>
    %163 = vector.extract_strided_slice %66 {offsets = [3, 24], sizes = [15, 90], strides = [1, 1]} : vector<19x114xf32> to vector<15x90xf32>
    %c19 = arith.constant 19 : index
    %c0_118 = arith.constant 0 : index
    %c0_119 = arith.constant 0 : index
    %164 = vector.load %arg10[%c19, %c0_118, %c0_119] : memref<25x90x240xf32, #tpu.memory_space<vmem>>, vector<1x90x240xf32>
    %165 = vector.shape_cast %164 : vector<1x90x240xf32> to vector<90x240xf32>
    %cst_120 = arith.constant dense<0.000000e+00> : vector<15x240xf32>
    %166 = tpu.matmul %163, %165, %cst_120 {dimension_numbers = #tpu.dot_dimension_numbers<[1], [0], [0], [1], [0, 0, 1, 1], [], []>} : vector<15x90xf32>, vector<90x240xf32>, vector<15x240xf32> -> vector<15x240xf32>
    %167 = arith.addf %162, %166 : vector<15x240xf32>
    %168 = vector.extract_strided_slice %66 {offsets = [4, 0], sizes = [15, 90], strides = [1, 1]} : vector<19x114xf32> to vector<15x90xf32>
    %c20 = arith.constant 20 : index
    %c0_121 = arith.constant 0 : index
    %c0_122 = arith.constant 0 : index
    %169 = vector.load %arg10[%c20, %c0_121, %c0_122] : memref<25x90x240xf32, #tpu.memory_space<vmem>>, vector<1x90x240xf32>
    %170 = vector.shape_cast %169 : vector<1x90x240xf32> to vector<90x240xf32>
    %cst_123 = arith.constant dense<0.000000e+00> : vector<15x240xf32>
    %171 = tpu.matmul %168, %170, %cst_123 {dimension_numbers = #tpu.dot_dimension_numbers<[1], [0], [0], [1], [0, 0, 1, 1], [], []>} : vector<15x90xf32>, vector<90x240xf32>, vector<15x240xf32> -> vector<15x240xf32>
    %172 = arith.addf %167, %171 : vector<15x240xf32>
    %173 = vector.extract_strided_slice %66 {offsets = [4, 6], sizes = [15, 90], strides = [1, 1]} : vector<19x114xf32> to vector<15x90xf32>
    %c21 = arith.constant 21 : index
    %c0_124 = arith.constant 0 : index
    %c0_125 = arith.constant 0 : index
    %174 = vector.load %arg10[%c21, %c0_124, %c0_125] : memref<25x90x240xf32, #tpu.memory_space<vmem>>, vector<1x90x240xf32>
    %175 = vector.shape_cast %174 : vector<1x90x240xf32> to vector<90x240xf32>
    %cst_126 = arith.constant dense<0.000000e+00> : vector<15x240xf32>
    %176 = tpu.matmul %173, %175, %cst_126 {dimension_numbers = #tpu.dot_dimension_numbers<[1], [0], [0], [1], [0, 0, 1, 1], [], []>} : vector<15x90xf32>, vector<90x240xf32>, vector<15x240xf32> -> vector<15x240xf32>
    %177 = arith.addf %172, %176 : vector<15x240xf32>
    %178 = vector.extract_strided_slice %66 {offsets = [4, 12], sizes = [15, 90], strides = [1, 1]} : vector<19x114xf32> to vector<15x90xf32>
    %c22 = arith.constant 22 : index
    %c0_127 = arith.constant 0 : index
    %c0_128 = arith.constant 0 : index
    %179 = vector.load %arg10[%c22, %c0_127, %c0_128] : memref<25x90x240xf32, #tpu.memory_space<vmem>>, vector<1x90x240xf32>
    %180 = vector.shape_cast %179 : vector<1x90x240xf32> to vector<90x240xf32>
    %cst_129 = arith.constant dense<0.000000e+00> : vector<15x240xf32>
    %181 = tpu.matmul %178, %180, %cst_129 {dimension_numbers = #tpu.dot_dimension_numbers<[1], [0], [0], [1], [0, 0, 1, 1], [], []>} : vector<15x90xf32>, vector<90x240xf32>, vector<15x240xf32> -> vector<15x240xf32>
    %182 = arith.addf %177, %181 : vector<15x240xf32>
    %183 = vector.extract_strided_slice %66 {offsets = [4, 18], sizes = [15, 90], strides = [1, 1]} : vector<19x114xf32> to vector<15x90xf32>
    %c23 = arith.constant 23 : index
    %c0_130 = arith.constant 0 : index
    %c0_131 = arith.constant 0 : index
    %184 = vector.load %arg10[%c23, %c0_130, %c0_131] : memref<25x90x240xf32, #tpu.memory_space<vmem>>, vector<1x90x240xf32>
    %185 = vector.shape_cast %184 : vector<1x90x240xf32> to vector<90x240xf32>
    %cst_132 = arith.constant dense<0.000000e+00> : vector<15x240xf32>
    %186 = tpu.matmul %183, %185, %cst_132 {dimension_numbers = #tpu.dot_dimension_numbers<[1], [0], [0], [1], [0, 0, 1, 1], [], []>} : vector<15x90xf32>, vector<90x240xf32>, vector<15x240xf32> -> vector<15x240xf32>
    %187 = arith.addf %182, %186 : vector<15x240xf32>
    %188 = vector.extract_strided_slice %66 {offsets = [4, 24], sizes = [15, 90], strides = [1, 1]} : vector<19x114xf32> to vector<15x90xf32>
    %c24 = arith.constant 24 : index
    %c0_133 = arith.constant 0 : index
    %c0_134 = arith.constant 0 : index
    %189 = vector.load %arg10[%c24, %c0_133, %c0_134] : memref<25x90x240xf32, #tpu.memory_space<vmem>>, vector<1x90x240xf32>
    %190 = vector.shape_cast %189 : vector<1x90x240xf32> to vector<90x240xf32>
    %cst_135 = arith.constant dense<0.000000e+00> : vector<15x240xf32>
    %191 = tpu.matmul %188, %190, %cst_135 {dimension_numbers = #tpu.dot_dimension_numbers<[1], [0], [0], [1], [0, 0, 1, 1], [], []>} : vector<15x90xf32>, vector<90x240xf32>, vector<15x240xf32> -> vector<15x240xf32>
    %192 = arith.addf %187, %191 : vector<15x240xf32>
    %c0_136 = arith.constant 0 : index
    %c0_137 = arith.constant 0 : index
    %193 = vector.load %arg11[%c0_136, %c0_137] : memref<1x240xf32, #tpu.memory_space<vmem>>, vector<1x240xf32>
    %194 = vector.broadcast %193 : vector<1x240xf32> to vector<15x240xf32>
    %195 = arith.addf %192, %194 : vector<15x240xf32>
    %cst_138 = arith.constant 0.000000e+00 : f32
    %196 = vector.broadcast %cst_138 : f32 to vector<15x240xf32>
    %197 = arith.maximumf %195, %196 : vector<15x240xf32>
    %c0_139 = arith.constant 0 : index
    %c0_140 = arith.constant 0 : index
    %198 = vector.load %arg12[%c0_139, %c0_140] : memref<7x15xf32, #tpu.memory_space<vmem>>, vector<7x15xf32>
    %cst_141 = arith.constant dense<0.000000e+00> : vector<7x240xf32>
    %199 = tpu.matmul %198, %197, %cst_141 {dimension_numbers = #tpu.dot_dimension_numbers<[1], [0], [0], [1], [0, 0, 1, 1], [], []>} : vector<7x15xf32>, vector<15x240xf32>, vector<7x240xf32> -> vector<7x240xf32>
    %c0_142 = arith.constant 0 : index
    %c0_143 = arith.constant 0 : index
    %200 = vector.load %arg13[%c0_142, %c0_143] : memref<7x15xf32, #tpu.memory_space<vmem>>, vector<7x15xf32>
    %cst_144 = arith.constant dense<0.000000e+00> : vector<7x240xf32>
    %201 = tpu.matmul %200, %197, %cst_144 {dimension_numbers = #tpu.dot_dimension_numbers<[1], [0], [0], [1], [0, 0, 1, 1], [], []>} : vector<7x15xf32>, vector<15x240xf32>, vector<7x240xf32> -> vector<7x240xf32>
    %202 = arith.maximumf %199, %201 : vector<7x240xf32>
    %c0_145 = arith.constant 0 : index
    %c0_146 = arith.constant 0 : index
    %203 = vector.load %arg14[%c0_145, %c0_146] : memref<240x112xf32, #tpu.memory_space<vmem>>, vector<240x112xf32>
    %cst_147 = arith.constant dense<0.000000e+00> : vector<7x112xf32>
    %204 = tpu.matmul %202, %203, %cst_147 {dimension_numbers = #tpu.dot_dimension_numbers<[1], [0], [0], [1], [0, 0, 1, 1], [], []>} : vector<7x240xf32>, vector<240x112xf32>, vector<7x112xf32> -> vector<7x112xf32>
    %c0_148 = arith.constant 0 : index
    %c0_149 = arith.constant 0 : index
    %205 = vector.load %arg15[%c0_148, %c0_149] : memref<240x112xf32, #tpu.memory_space<vmem>>, vector<240x112xf32>
    %cst_150 = arith.constant dense<0.000000e+00> : vector<7x112xf32>
    %206 = tpu.matmul %202, %205, %cst_150 {dimension_numbers = #tpu.dot_dimension_numbers<[1], [0], [0], [1], [0, 0, 1, 1], [], []>} : vector<7x240xf32>, vector<240x112xf32>, vector<7x112xf32> -> vector<7x112xf32>
    %207 = arith.maximumf %204, %206 : vector<7x112xf32>
    %cst_151 = arith.constant 0.000000e+00 : f32
    %208 = vector.broadcast %cst_151 : f32 to vector<1x128xf32>
    %209 = vector.extract_strided_slice %207 {offsets = [0, 0], sizes = [1, 112], strides = [1, 1]} : vector<7x112xf32> to vector<1x112xf32>
    %c0_152 = arith.constant 0 : index
    %c0_153 = arith.constant 0 : index
    %c0_154 = arith.constant 0 : index
    %210 = vector.load %arg16[%c0_152, %c0_153, %c0_154] : memref<7x112x128xf32, #tpu.memory_space<vmem>>, vector<1x112x128xf32>
    %211 = vector.shape_cast %210 : vector<1x112x128xf32> to vector<112x128xf32>
    %cst_155 = arith.constant dense<0.000000e+00> : vector<1x128xf32>
    %212 = tpu.matmul %209, %211, %cst_155 {dimension_numbers = #tpu.dot_dimension_numbers<[1], [0], [0], [1], [0, 0, 1, 1], [], []>} : vector<1x112xf32>, vector<112x128xf32>, vector<1x128xf32> -> vector<1x128xf32>
    %213 = arith.addf %208, %212 : vector<1x128xf32>
    %214 = vector.extract_strided_slice %207 {offsets = [1, 0], sizes = [1, 112], strides = [1, 1]} : vector<7x112xf32> to vector<1x112xf32>
    %c1_156 = arith.constant 1 : index
    %c0_157 = arith.constant 0 : index
    %c0_158 = arith.constant 0 : index
    %215 = vector.load %arg16[%c1_156, %c0_157, %c0_158] : memref<7x112x128xf32, #tpu.memory_space<vmem>>, vector<1x112x128xf32>
    %216 = vector.shape_cast %215 : vector<1x112x128xf32> to vector<112x128xf32>
    %cst_159 = arith.constant dense<0.000000e+00> : vector<1x128xf32>
    %217 = tpu.matmul %214, %216, %cst_159 {dimension_numbers = #tpu.dot_dimension_numbers<[1], [0], [0], [1], [0, 0, 1, 1], [], []>} : vector<1x112xf32>, vector<112x128xf32>, vector<1x128xf32> -> vector<1x128xf32>
    %218 = arith.addf %213, %217 : vector<1x128xf32>
    %219 = vector.extract_strided_slice %207 {offsets = [2, 0], sizes = [1, 112], strides = [1, 1]} : vector<7x112xf32> to vector<1x112xf32>
    %c2_160 = arith.constant 2 : index
    %c0_161 = arith.constant 0 : index
    %c0_162 = arith.constant 0 : index
    %220 = vector.load %arg16[%c2_160, %c0_161, %c0_162] : memref<7x112x128xf32, #tpu.memory_space<vmem>>, vector<1x112x128xf32>
    %221 = vector.shape_cast %220 : vector<1x112x128xf32> to vector<112x128xf32>
    %cst_163 = arith.constant dense<0.000000e+00> : vector<1x128xf32>
    %222 = tpu.matmul %219, %221, %cst_163 {dimension_numbers = #tpu.dot_dimension_numbers<[1], [0], [0], [1], [0, 0, 1, 1], [], []>} : vector<1x112xf32>, vector<112x128xf32>, vector<1x128xf32> -> vector<1x128xf32>
    %223 = arith.addf %218, %222 : vector<1x128xf32>
    %224 = vector.extract_strided_slice %207 {offsets = [3, 0], sizes = [1, 112], strides = [1, 1]} : vector<7x112xf32> to vector<1x112xf32>
    %c3_164 = arith.constant 3 : index
    %c0_165 = arith.constant 0 : index
    %c0_166 = arith.constant 0 : index
    %225 = vector.load %arg16[%c3_164, %c0_165, %c0_166] : memref<7x112x128xf32, #tpu.memory_space<vmem>>, vector<1x112x128xf32>
    %226 = vector.shape_cast %225 : vector<1x112x128xf32> to vector<112x128xf32>
    %cst_167 = arith.constant dense<0.000000e+00> : vector<1x128xf32>
    %227 = tpu.matmul %224, %226, %cst_167 {dimension_numbers = #tpu.dot_dimension_numbers<[1], [0], [0], [1], [0, 0, 1, 1], [], []>} : vector<1x112xf32>, vector<112x128xf32>, vector<1x128xf32> -> vector<1x128xf32>
    %228 = arith.addf %223, %227 : vector<1x128xf32>
    %229 = vector.extract_strided_slice %207 {offsets = [4, 0], sizes = [1, 112], strides = [1, 1]} : vector<7x112xf32> to vector<1x112xf32>
    %c4_168 = arith.constant 4 : index
    %c0_169 = arith.constant 0 : index
    %c0_170 = arith.constant 0 : index
    %230 = vector.load %arg16[%c4_168, %c0_169, %c0_170] : memref<7x112x128xf32, #tpu.memory_space<vmem>>, vector<1x112x128xf32>
    %231 = vector.shape_cast %230 : vector<1x112x128xf32> to vector<112x128xf32>
    %cst_171 = arith.constant dense<0.000000e+00> : vector<1x128xf32>
    %232 = tpu.matmul %229, %231, %cst_171 {dimension_numbers = #tpu.dot_dimension_numbers<[1], [0], [0], [1], [0, 0, 1, 1], [], []>} : vector<1x112xf32>, vector<112x128xf32>, vector<1x128xf32> -> vector<1x128xf32>
    %233 = arith.addf %228, %232 : vector<1x128xf32>
    %234 = vector.extract_strided_slice %207 {offsets = [5, 0], sizes = [1, 112], strides = [1, 1]} : vector<7x112xf32> to vector<1x112xf32>
    %c5_172 = arith.constant 5 : index
    %c0_173 = arith.constant 0 : index
    %c0_174 = arith.constant 0 : index
    %235 = vector.load %arg16[%c5_172, %c0_173, %c0_174] : memref<7x112x128xf32, #tpu.memory_space<vmem>>, vector<1x112x128xf32>
    %236 = vector.shape_cast %235 : vector<1x112x128xf32> to vector<112x128xf32>
    %cst_175 = arith.constant dense<0.000000e+00> : vector<1x128xf32>
    %237 = tpu.matmul %234, %236, %cst_175 {dimension_numbers = #tpu.dot_dimension_numbers<[1], [0], [0], [1], [0, 0, 1, 1], [], []>} : vector<1x112xf32>, vector<112x128xf32>, vector<1x128xf32> -> vector<1x128xf32>
    %238 = arith.addf %233, %237 : vector<1x128xf32>
    %239 = vector.extract_strided_slice %207 {offsets = [6, 0], sizes = [1, 112], strides = [1, 1]} : vector<7x112xf32> to vector<1x112xf32>
    %c6_176 = arith.constant 6 : index
    %c0_177 = arith.constant 0 : index
    %c0_178 = arith.constant 0 : index
    %240 = vector.load %arg16[%c6_176, %c0_177, %c0_178] : memref<7x112x128xf32, #tpu.memory_space<vmem>>, vector<1x112x128xf32>
    %241 = vector.shape_cast %240 : vector<1x112x128xf32> to vector<112x128xf32>
    %cst_179 = arith.constant dense<0.000000e+00> : vector<1x128xf32>
    %242 = tpu.matmul %239, %241, %cst_179 {dimension_numbers = #tpu.dot_dimension_numbers<[1], [0], [0], [1], [0, 0, 1, 1], [], []>} : vector<1x112xf32>, vector<112x128xf32>, vector<1x128xf32> -> vector<1x128xf32>
    %243 = arith.addf %238, %242 : vector<1x128xf32>
    %c0_180 = arith.constant 0 : index
    %c0_181 = arith.constant 0 : index
    %244 = vector.load %arg17[%c0_180, %c0_181] : memref<1x128xf32, #tpu.memory_space<vmem>>, vector<1x128xf32>
    %245 = arith.addf %243, %244 : vector<1x128xf32>
    %cst_182 = arith.constant 0.000000e+00 : f32
    %246 = vector.broadcast %cst_182 : f32 to vector<1x128xf32>
    %247 = arith.maximumf %245, %246 : vector<1x128xf32>
    %c0_183 = arith.constant 0 : index
    %c0_184 = arith.constant 0 : index
    %248 = vector.load %arg18[%c0_183, %c0_184] : memref<7x7xf32, #tpu.memory_space<vmem>>, vector<7x7xf32>
    %cst_185 = arith.constant 0.000000e+00 : f32
    %249 = vector.broadcast %cst_185 : f32 to vector<7x112xf32>
    %250 = vector.extract_strided_slice %248 {offsets = [0, 0], sizes = [7, 1], strides = [1, 1]} : vector<7x7xf32> to vector<7x1xf32>
    %c0_186 = arith.constant 0 : index
    %c0_187 = arith.constant 0 : index
    %c0_188 = arith.constant 0 : index
    %251 = vector.load %arg19[%c0_186, %c0_187, %c0_188] : memref<7x128x112xf32, #tpu.memory_space<vmem>>, vector<1x128x112xf32>
    %252 = vector.shape_cast %251 : vector<1x128x112xf32> to vector<128x112xf32>
    %cst_189 = arith.constant dense<0.000000e+00> : vector<1x112xf32>
    %253 = tpu.matmul %247, %252, %cst_189 {dimension_numbers = #tpu.dot_dimension_numbers<[1], [0], [0], [1], [0, 0, 1, 1], [], []>} : vector<1x128xf32>, vector<128x112xf32>, vector<1x112xf32> -> vector<1x112xf32>
    %254 = vector.broadcast %250 : vector<7x1xf32> to vector<7x112xf32>
    %255 = vector.broadcast %253 : vector<1x112xf32> to vector<7x112xf32>
    %256 = arith.mulf %254, %255 : vector<7x112xf32>
    %257 = arith.addf %249, %256 : vector<7x112xf32>
    %258 = vector.extract_strided_slice %248 {offsets = [0, 1], sizes = [7, 1], strides = [1, 1]} : vector<7x7xf32> to vector<7x1xf32>
    %c1_190 = arith.constant 1 : index
    %c0_191 = arith.constant 0 : index
    %c0_192 = arith.constant 0 : index
    %259 = vector.load %arg19[%c1_190, %c0_191, %c0_192] : memref<7x128x112xf32, #tpu.memory_space<vmem>>, vector<1x128x112xf32>
    %260 = vector.shape_cast %259 : vector<1x128x112xf32> to vector<128x112xf32>
    %cst_193 = arith.constant dense<0.000000e+00> : vector<1x112xf32>
    %261 = tpu.matmul %247, %260, %cst_193 {dimension_numbers = #tpu.dot_dimension_numbers<[1], [0], [0], [1], [0, 0, 1, 1], [], []>} : vector<1x128xf32>, vector<128x112xf32>, vector<1x112xf32> -> vector<1x112xf32>
    %262 = vector.broadcast %258 : vector<7x1xf32> to vector<7x112xf32>
    %263 = vector.broadcast %261 : vector<1x112xf32> to vector<7x112xf32>
    %264 = arith.mulf %262, %263 : vector<7x112xf32>
    %265 = arith.addf %257, %264 : vector<7x112xf32>
    %266 = vector.extract_strided_slice %248 {offsets = [0, 2], sizes = [7, 1], strides = [1, 1]} : vector<7x7xf32> to vector<7x1xf32>
    %c2_194 = arith.constant 2 : index
    %c0_195 = arith.constant 0 : index
    %c0_196 = arith.constant 0 : index
    %267 = vector.load %arg19[%c2_194, %c0_195, %c0_196] : memref<7x128x112xf32, #tpu.memory_space<vmem>>, vector<1x128x112xf32>
    %268 = vector.shape_cast %267 : vector<1x128x112xf32> to vector<128x112xf32>
    %cst_197 = arith.constant dense<0.000000e+00> : vector<1x112xf32>
    %269 = tpu.matmul %247, %268, %cst_197 {dimension_numbers = #tpu.dot_dimension_numbers<[1], [0], [0], [1], [0, 0, 1, 1], [], []>} : vector<1x128xf32>, vector<128x112xf32>, vector<1x112xf32> -> vector<1x112xf32>
    %270 = vector.broadcast %266 : vector<7x1xf32> to vector<7x112xf32>
    %271 = vector.broadcast %269 : vector<1x112xf32> to vector<7x112xf32>
    %272 = arith.mulf %270, %271 : vector<7x112xf32>
    %273 = arith.addf %265, %272 : vector<7x112xf32>
    %274 = vector.extract_strided_slice %248 {offsets = [0, 3], sizes = [7, 1], strides = [1, 1]} : vector<7x7xf32> to vector<7x1xf32>
    %c3_198 = arith.constant 3 : index
    %c0_199 = arith.constant 0 : index
    %c0_200 = arith.constant 0 : index
    %275 = vector.load %arg19[%c3_198, %c0_199, %c0_200] : memref<7x128x112xf32, #tpu.memory_space<vmem>>, vector<1x128x112xf32>
    %276 = vector.shape_cast %275 : vector<1x128x112xf32> to vector<128x112xf32>
    %cst_201 = arith.constant dense<0.000000e+00> : vector<1x112xf32>
    %277 = tpu.matmul %247, %276, %cst_201 {dimension_numbers = #tpu.dot_dimension_numbers<[1], [0], [0], [1], [0, 0, 1, 1], [], []>} : vector<1x128xf32>, vector<128x112xf32>, vector<1x112xf32> -> vector<1x112xf32>
    %278 = vector.broadcast %274 : vector<7x1xf32> to vector<7x112xf32>
    %279 = vector.broadcast %277 : vector<1x112xf32> to vector<7x112xf32>
    %280 = arith.mulf %278, %279 : vector<7x112xf32>
    %281 = arith.addf %273, %280 : vector<7x112xf32>
    %282 = vector.extract_strided_slice %248 {offsets = [0, 4], sizes = [7, 1], strides = [1, 1]} : vector<7x7xf32> to vector<7x1xf32>
    %c4_202 = arith.constant 4 : index
    %c0_203 = arith.constant 0 : index
    %c0_204 = arith.constant 0 : index
    %283 = vector.load %arg19[%c4_202, %c0_203, %c0_204] : memref<7x128x112xf32, #tpu.memory_space<vmem>>, vector<1x128x112xf32>
    %284 = vector.shape_cast %283 : vector<1x128x112xf32> to vector<128x112xf32>
    %cst_205 = arith.constant dense<0.000000e+00> : vector<1x112xf32>
    %285 = tpu.matmul %247, %284, %cst_205 {dimension_numbers = #tpu.dot_dimension_numbers<[1], [0], [0], [1], [0, 0, 1, 1], [], []>} : vector<1x128xf32>, vector<128x112xf32>, vector<1x112xf32> -> vector<1x112xf32>
    %286 = vector.broadcast %282 : vector<7x1xf32> to vector<7x112xf32>
    %287 = vector.broadcast %285 : vector<1x112xf32> to vector<7x112xf32>
    %288 = arith.mulf %286, %287 : vector<7x112xf32>
    %289 = arith.addf %281, %288 : vector<7x112xf32>
    %290 = vector.extract_strided_slice %248 {offsets = [0, 5], sizes = [7, 1], strides = [1, 1]} : vector<7x7xf32> to vector<7x1xf32>
    %c5_206 = arith.constant 5 : index
    %c0_207 = arith.constant 0 : index
    %c0_208 = arith.constant 0 : index
    %291 = vector.load %arg19[%c5_206, %c0_207, %c0_208] : memref<7x128x112xf32, #tpu.memory_space<vmem>>, vector<1x128x112xf32>
    %292 = vector.shape_cast %291 : vector<1x128x112xf32> to vector<128x112xf32>
    %cst_209 = arith.constant dense<0.000000e+00> : vector<1x112xf32>
    %293 = tpu.matmul %247, %292, %cst_209 {dimension_numbers = #tpu.dot_dimension_numbers<[1], [0], [0], [1], [0, 0, 1, 1], [], []>} : vector<1x128xf32>, vector<128x112xf32>, vector<1x112xf32> -> vector<1x112xf32>
    %294 = vector.broadcast %290 : vector<7x1xf32> to vector<7x112xf32>
    %295 = vector.broadcast %293 : vector<1x112xf32> to vector<7x112xf32>
    %296 = arith.mulf %294, %295 : vector<7x112xf32>
    %297 = arith.addf %289, %296 : vector<7x112xf32>
    %298 = vector.extract_strided_slice %248 {offsets = [0, 6], sizes = [7, 1], strides = [1, 1]} : vector<7x7xf32> to vector<7x1xf32>
    %c6_210 = arith.constant 6 : index
    %c0_211 = arith.constant 0 : index
    %c0_212 = arith.constant 0 : index
    %299 = vector.load %arg19[%c6_210, %c0_211, %c0_212] : memref<7x128x112xf32, #tpu.memory_space<vmem>>, vector<1x128x112xf32>
    %300 = vector.shape_cast %299 : vector<1x128x112xf32> to vector<128x112xf32>
    %cst_213 = arith.constant dense<0.000000e+00> : vector<1x112xf32>
    %301 = tpu.matmul %247, %300, %cst_213 {dimension_numbers = #tpu.dot_dimension_numbers<[1], [0], [0], [1], [0, 0, 1, 1], [], []>} : vector<1x128xf32>, vector<128x112xf32>, vector<1x112xf32> -> vector<1x112xf32>
    %302 = vector.broadcast %298 : vector<7x1xf32> to vector<7x112xf32>
    %303 = vector.broadcast %301 : vector<1x112xf32> to vector<7x112xf32>
    %304 = arith.mulf %302, %303 : vector<7x112xf32>
    %305 = arith.addf %297, %304 : vector<7x112xf32>
    %c0_214 = arith.constant 0 : index
    %c0_215 = arith.constant 0 : index
    %306 = vector.load %arg20[%c0_214, %c0_215] : memref<7x112xf32, #tpu.memory_space<vmem>>, vector<7x112xf32>
    %307 = arith.addf %305, %306 : vector<7x112xf32>
    %cst_216 = arith.constant 0.000000e+00 : f32
    %308 = vector.broadcast %cst_216 : f32 to vector<7x112xf32>
    %309 = arith.maximumf %307, %308 : vector<7x112xf32>
    %c0_217 = arith.constant 0 : index
    %c0_218 = arith.constant 0 : index
    %310 = vector.load %arg21[%c0_217, %c0_218] : memref<17x7xf32, #tpu.memory_space<vmem>>, vector<17x7xf32>
    %c0_219 = arith.constant 0 : index
    %c0_220 = arith.constant 0 : index
    %311 = vector.load %arg22[%c0_219, %c0_220] : memref<112x272xf32, #tpu.memory_space<vmem>>, vector<112x272xf32>
    %cst_221 = arith.constant dense<0.000000e+00> : vector<7x272xf32>
    %312 = tpu.matmul %309, %311, %cst_221 {dimension_numbers = #tpu.dot_dimension_numbers<[1], [0], [0], [1], [0, 0, 1, 1], [], []>} : vector<7x112xf32>, vector<112x272xf32>, vector<7x272xf32> -> vector<7x272xf32>
    %cst_222 = arith.constant dense<0.000000e+00> : vector<17x272xf32>
    %313 = tpu.matmul %310, %312, %cst_222 {dimension_numbers = #tpu.dot_dimension_numbers<[1], [0], [0], [1], [0, 0, 1, 1], [], []>} : vector<17x7xf32>, vector<7x272xf32>, vector<17x272xf32> -> vector<17x272xf32>
    %cst_223 = arith.constant 0.000000e+00 : f32
    %314 = vector.broadcast %cst_223 : f32 to vector<13x78xf32>
    %315 = vector.extract_strided_slice %313 {offsets = [0, 0], sizes = [13, 208], strides = [1, 1]} : vector<17x272xf32> to vector<13x208xf32>
    %c0_224 = arith.constant 0 : index
    %c0_225 = arith.constant 0 : index
    %c0_226 = arith.constant 0 : index
    %316 = vector.load %arg23[%c0_224, %c0_225, %c0_226] : memref<25x208x78xf32, #tpu.memory_space<vmem>>, vector<1x208x78xf32>
    %317 = vector.shape_cast %316 : vector<1x208x78xf32> to vector<208x78xf32>
    %cst_227 = arith.constant dense<0.000000e+00> : vector<13x78xf32>
    %318 = tpu.matmul %315, %317, %cst_227 {dimension_numbers = #tpu.dot_dimension_numbers<[1], [0], [0], [1], [0, 0, 1, 1], [], []>} : vector<13x208xf32>, vector<208x78xf32>, vector<13x78xf32> -> vector<13x78xf32>
    %319 = arith.addf %314, %318 : vector<13x78xf32>
    %320 = vector.extract_strided_slice %313 {offsets = [0, 16], sizes = [13, 208], strides = [1, 1]} : vector<17x272xf32> to vector<13x208xf32>
    %c1_228 = arith.constant 1 : index
    %c0_229 = arith.constant 0 : index
    %c0_230 = arith.constant 0 : index
    %321 = vector.load %arg23[%c1_228, %c0_229, %c0_230] : memref<25x208x78xf32, #tpu.memory_space<vmem>>, vector<1x208x78xf32>
    %322 = vector.shape_cast %321 : vector<1x208x78xf32> to vector<208x78xf32>
    %cst_231 = arith.constant dense<0.000000e+00> : vector<13x78xf32>
    %323 = tpu.matmul %320, %322, %cst_231 {dimension_numbers = #tpu.dot_dimension_numbers<[1], [0], [0], [1], [0, 0, 1, 1], [], []>} : vector<13x208xf32>, vector<208x78xf32>, vector<13x78xf32> -> vector<13x78xf32>
    %324 = arith.addf %319, %323 : vector<13x78xf32>
    %325 = vector.extract_strided_slice %313 {offsets = [0, 32], sizes = [13, 208], strides = [1, 1]} : vector<17x272xf32> to vector<13x208xf32>
    %c2_232 = arith.constant 2 : index
    %c0_233 = arith.constant 0 : index
    %c0_234 = arith.constant 0 : index
    %326 = vector.load %arg23[%c2_232, %c0_233, %c0_234] : memref<25x208x78xf32, #tpu.memory_space<vmem>>, vector<1x208x78xf32>
    %327 = vector.shape_cast %326 : vector<1x208x78xf32> to vector<208x78xf32>
    %cst_235 = arith.constant dense<0.000000e+00> : vector<13x78xf32>
    %328 = tpu.matmul %325, %327, %cst_235 {dimension_numbers = #tpu.dot_dimension_numbers<[1], [0], [0], [1], [0, 0, 1, 1], [], []>} : vector<13x208xf32>, vector<208x78xf32>, vector<13x78xf32> -> vector<13x78xf32>
    %329 = arith.addf %324, %328 : vector<13x78xf32>
    %330 = vector.extract_strided_slice %313 {offsets = [0, 48], sizes = [13, 208], strides = [1, 1]} : vector<17x272xf32> to vector<13x208xf32>
    %c3_236 = arith.constant 3 : index
    %c0_237 = arith.constant 0 : index
    %c0_238 = arith.constant 0 : index
    %331 = vector.load %arg23[%c3_236, %c0_237, %c0_238] : memref<25x208x78xf32, #tpu.memory_space<vmem>>, vector<1x208x78xf32>
    %332 = vector.shape_cast %331 : vector<1x208x78xf32> to vector<208x78xf32>
    %cst_239 = arith.constant dense<0.000000e+00> : vector<13x78xf32>
    %333 = tpu.matmul %330, %332, %cst_239 {dimension_numbers = #tpu.dot_dimension_numbers<[1], [0], [0], [1], [0, 0, 1, 1], [], []>} : vector<13x208xf32>, vector<208x78xf32>, vector<13x78xf32> -> vector<13x78xf32>
    %334 = arith.addf %329, %333 : vector<13x78xf32>
    %335 = vector.extract_strided_slice %313 {offsets = [0, 64], sizes = [13, 208], strides = [1, 1]} : vector<17x272xf32> to vector<13x208xf32>
    %c4_240 = arith.constant 4 : index
    %c0_241 = arith.constant 0 : index
    %c0_242 = arith.constant 0 : index
    %336 = vector.load %arg23[%c4_240, %c0_241, %c0_242] : memref<25x208x78xf32, #tpu.memory_space<vmem>>, vector<1x208x78xf32>
    %337 = vector.shape_cast %336 : vector<1x208x78xf32> to vector<208x78xf32>
    %cst_243 = arith.constant dense<0.000000e+00> : vector<13x78xf32>
    %338 = tpu.matmul %335, %337, %cst_243 {dimension_numbers = #tpu.dot_dimension_numbers<[1], [0], [0], [1], [0, 0, 1, 1], [], []>} : vector<13x208xf32>, vector<208x78xf32>, vector<13x78xf32> -> vector<13x78xf32>
    %339 = arith.addf %334, %338 : vector<13x78xf32>
    %340 = vector.extract_strided_slice %313 {offsets = [1, 0], sizes = [13, 208], strides = [1, 1]} : vector<17x272xf32> to vector<13x208xf32>
    %c5_244 = arith.constant 5 : index
    %c0_245 = arith.constant 0 : index
    %c0_246 = arith.constant 0 : index
    %341 = vector.load %arg23[%c5_244, %c0_245, %c0_246] : memref<25x208x78xf32, #tpu.memory_space<vmem>>, vector<1x208x78xf32>
    %342 = vector.shape_cast %341 : vector<1x208x78xf32> to vector<208x78xf32>
    %cst_247 = arith.constant dense<0.000000e+00> : vector<13x78xf32>
    %343 = tpu.matmul %340, %342, %cst_247 {dimension_numbers = #tpu.dot_dimension_numbers<[1], [0], [0], [1], [0, 0, 1, 1], [], []>} : vector<13x208xf32>, vector<208x78xf32>, vector<13x78xf32> -> vector<13x78xf32>
    %344 = arith.addf %339, %343 : vector<13x78xf32>
    %345 = vector.extract_strided_slice %313 {offsets = [1, 16], sizes = [13, 208], strides = [1, 1]} : vector<17x272xf32> to vector<13x208xf32>
    %c6_248 = arith.constant 6 : index
    %c0_249 = arith.constant 0 : index
    %c0_250 = arith.constant 0 : index
    %346 = vector.load %arg23[%c6_248, %c0_249, %c0_250] : memref<25x208x78xf32, #tpu.memory_space<vmem>>, vector<1x208x78xf32>
    %347 = vector.shape_cast %346 : vector<1x208x78xf32> to vector<208x78xf32>
    %cst_251 = arith.constant dense<0.000000e+00> : vector<13x78xf32>
    %348 = tpu.matmul %345, %347, %cst_251 {dimension_numbers = #tpu.dot_dimension_numbers<[1], [0], [0], [1], [0, 0, 1, 1], [], []>} : vector<13x208xf32>, vector<208x78xf32>, vector<13x78xf32> -> vector<13x78xf32>
    %349 = arith.addf %344, %348 : vector<13x78xf32>
    %350 = vector.extract_strided_slice %313 {offsets = [1, 32], sizes = [13, 208], strides = [1, 1]} : vector<17x272xf32> to vector<13x208xf32>
    %c7_252 = arith.constant 7 : index
    %c0_253 = arith.constant 0 : index
    %c0_254 = arith.constant 0 : index
    %351 = vector.load %arg23[%c7_252, %c0_253, %c0_254] : memref<25x208x78xf32, #tpu.memory_space<vmem>>, vector<1x208x78xf32>
    %352 = vector.shape_cast %351 : vector<1x208x78xf32> to vector<208x78xf32>
    %cst_255 = arith.constant dense<0.000000e+00> : vector<13x78xf32>
    %353 = tpu.matmul %350, %352, %cst_255 {dimension_numbers = #tpu.dot_dimension_numbers<[1], [0], [0], [1], [0, 0, 1, 1], [], []>} : vector<13x208xf32>, vector<208x78xf32>, vector<13x78xf32> -> vector<13x78xf32>
    %354 = arith.addf %349, %353 : vector<13x78xf32>
    %355 = vector.extract_strided_slice %313 {offsets = [1, 48], sizes = [13, 208], strides = [1, 1]} : vector<17x272xf32> to vector<13x208xf32>
    %c8_256 = arith.constant 8 : index
    %c0_257 = arith.constant 0 : index
    %c0_258 = arith.constant 0 : index
    %356 = vector.load %arg23[%c8_256, %c0_257, %c0_258] : memref<25x208x78xf32, #tpu.memory_space<vmem>>, vector<1x208x78xf32>
    %357 = vector.shape_cast %356 : vector<1x208x78xf32> to vector<208x78xf32>
    %cst_259 = arith.constant dense<0.000000e+00> : vector<13x78xf32>
    %358 = tpu.matmul %355, %357, %cst_259 {dimension_numbers = #tpu.dot_dimension_numbers<[1], [0], [0], [1], [0, 0, 1, 1], [], []>} : vector<13x208xf32>, vector<208x78xf32>, vector<13x78xf32> -> vector<13x78xf32>
    %359 = arith.addf %354, %358 : vector<13x78xf32>
    %360 = vector.extract_strided_slice %313 {offsets = [1, 64], sizes = [13, 208], strides = [1, 1]} : vector<17x272xf32> to vector<13x208xf32>
    %c9_260 = arith.constant 9 : index
    %c0_261 = arith.constant 0 : index
    %c0_262 = arith.constant 0 : index
    %361 = vector.load %arg23[%c9_260, %c0_261, %c0_262] : memref<25x208x78xf32, #tpu.memory_space<vmem>>, vector<1x208x78xf32>
    %362 = vector.shape_cast %361 : vector<1x208x78xf32> to vector<208x78xf32>
    %cst_263 = arith.constant dense<0.000000e+00> : vector<13x78xf32>
    %363 = tpu.matmul %360, %362, %cst_263 {dimension_numbers = #tpu.dot_dimension_numbers<[1], [0], [0], [1], [0, 0, 1, 1], [], []>} : vector<13x208xf32>, vector<208x78xf32>, vector<13x78xf32> -> vector<13x78xf32>
    %364 = arith.addf %359, %363 : vector<13x78xf32>
    %365 = vector.extract_strided_slice %313 {offsets = [2, 0], sizes = [13, 208], strides = [1, 1]} : vector<17x272xf32> to vector<13x208xf32>
    %c10_264 = arith.constant 10 : index
    %c0_265 = arith.constant 0 : index
    %c0_266 = arith.constant 0 : index
    %366 = vector.load %arg23[%c10_264, %c0_265, %c0_266] : memref<25x208x78xf32, #tpu.memory_space<vmem>>, vector<1x208x78xf32>
    %367 = vector.shape_cast %366 : vector<1x208x78xf32> to vector<208x78xf32>
    %cst_267 = arith.constant dense<0.000000e+00> : vector<13x78xf32>
    %368 = tpu.matmul %365, %367, %cst_267 {dimension_numbers = #tpu.dot_dimension_numbers<[1], [0], [0], [1], [0, 0, 1, 1], [], []>} : vector<13x208xf32>, vector<208x78xf32>, vector<13x78xf32> -> vector<13x78xf32>
    %369 = arith.addf %364, %368 : vector<13x78xf32>
    %370 = vector.extract_strided_slice %313 {offsets = [2, 16], sizes = [13, 208], strides = [1, 1]} : vector<17x272xf32> to vector<13x208xf32>
    %c11_268 = arith.constant 11 : index
    %c0_269 = arith.constant 0 : index
    %c0_270 = arith.constant 0 : index
    %371 = vector.load %arg23[%c11_268, %c0_269, %c0_270] : memref<25x208x78xf32, #tpu.memory_space<vmem>>, vector<1x208x78xf32>
    %372 = vector.shape_cast %371 : vector<1x208x78xf32> to vector<208x78xf32>
    %cst_271 = arith.constant dense<0.000000e+00> : vector<13x78xf32>
    %373 = tpu.matmul %370, %372, %cst_271 {dimension_numbers = #tpu.dot_dimension_numbers<[1], [0], [0], [1], [0, 0, 1, 1], [], []>} : vector<13x208xf32>, vector<208x78xf32>, vector<13x78xf32> -> vector<13x78xf32>
    %374 = arith.addf %369, %373 : vector<13x78xf32>
    %375 = vector.extract_strided_slice %313 {offsets = [2, 32], sizes = [13, 208], strides = [1, 1]} : vector<17x272xf32> to vector<13x208xf32>
    %c12_272 = arith.constant 12 : index
    %c0_273 = arith.constant 0 : index
    %c0_274 = arith.constant 0 : index
    %376 = vector.load %arg23[%c12_272, %c0_273, %c0_274] : memref<25x208x78xf32, #tpu.memory_space<vmem>>, vector<1x208x78xf32>
    %377 = vector.shape_cast %376 : vector<1x208x78xf32> to vector<208x78xf32>
    %cst_275 = arith.constant dense<0.000000e+00> : vector<13x78xf32>
    %378 = tpu.matmul %375, %377, %cst_275 {dimension_numbers = #tpu.dot_dimension_numbers<[1], [0], [0], [1], [0, 0, 1, 1], [], []>} : vector<13x208xf32>, vector<208x78xf32>, vector<13x78xf32> -> vector<13x78xf32>
    %379 = arith.addf %374, %378 : vector<13x78xf32>
    %380 = vector.extract_strided_slice %313 {offsets = [2, 48], sizes = [13, 208], strides = [1, 1]} : vector<17x272xf32> to vector<13x208xf32>
    %c13_276 = arith.constant 13 : index
    %c0_277 = arith.constant 0 : index
    %c0_278 = arith.constant 0 : index
    %381 = vector.load %arg23[%c13_276, %c0_277, %c0_278] : memref<25x208x78xf32, #tpu.memory_space<vmem>>, vector<1x208x78xf32>
    %382 = vector.shape_cast %381 : vector<1x208x78xf32> to vector<208x78xf32>
    %cst_279 = arith.constant dense<0.000000e+00> : vector<13x78xf32>
    %383 = tpu.matmul %380, %382, %cst_279 {dimension_numbers = #tpu.dot_dimension_numbers<[1], [0], [0], [1], [0, 0, 1, 1], [], []>} : vector<13x208xf32>, vector<208x78xf32>, vector<13x78xf32> -> vector<13x78xf32>
    %384 = arith.addf %379, %383 : vector<13x78xf32>
    %385 = vector.extract_strided_slice %313 {offsets = [2, 64], sizes = [13, 208], strides = [1, 1]} : vector<17x272xf32> to vector<13x208xf32>
    %c14_280 = arith.constant 14 : index
    %c0_281 = arith.constant 0 : index
    %c0_282 = arith.constant 0 : index
    %386 = vector.load %arg23[%c14_280, %c0_281, %c0_282] : memref<25x208x78xf32, #tpu.memory_space<vmem>>, vector<1x208x78xf32>
    %387 = vector.shape_cast %386 : vector<1x208x78xf32> to vector<208x78xf32>
    %cst_283 = arith.constant dense<0.000000e+00> : vector<13x78xf32>
    %388 = tpu.matmul %385, %387, %cst_283 {dimension_numbers = #tpu.dot_dimension_numbers<[1], [0], [0], [1], [0, 0, 1, 1], [], []>} : vector<13x208xf32>, vector<208x78xf32>, vector<13x78xf32> -> vector<13x78xf32>
    %389 = arith.addf %384, %388 : vector<13x78xf32>
    %390 = vector.extract_strided_slice %313 {offsets = [3, 0], sizes = [13, 208], strides = [1, 1]} : vector<17x272xf32> to vector<13x208xf32>
    %c15_284 = arith.constant 15 : index
    %c0_285 = arith.constant 0 : index
    %c0_286 = arith.constant 0 : index
    %391 = vector.load %arg23[%c15_284, %c0_285, %c0_286] : memref<25x208x78xf32, #tpu.memory_space<vmem>>, vector<1x208x78xf32>
    %392 = vector.shape_cast %391 : vector<1x208x78xf32> to vector<208x78xf32>
    %cst_287 = arith.constant dense<0.000000e+00> : vector<13x78xf32>
    %393 = tpu.matmul %390, %392, %cst_287 {dimension_numbers = #tpu.dot_dimension_numbers<[1], [0], [0], [1], [0, 0, 1, 1], [], []>} : vector<13x208xf32>, vector<208x78xf32>, vector<13x78xf32> -> vector<13x78xf32>
    %394 = arith.addf %389, %393 : vector<13x78xf32>
    %395 = vector.extract_strided_slice %313 {offsets = [3, 16], sizes = [13, 208], strides = [1, 1]} : vector<17x272xf32> to vector<13x208xf32>
    %c16_288 = arith.constant 16 : index
    %c0_289 = arith.constant 0 : index
    %c0_290 = arith.constant 0 : index
    %396 = vector.load %arg23[%c16_288, %c0_289, %c0_290] : memref<25x208x78xf32, #tpu.memory_space<vmem>>, vector<1x208x78xf32>
    %397 = vector.shape_cast %396 : vector<1x208x78xf32> to vector<208x78xf32>
    %cst_291 = arith.constant dense<0.000000e+00> : vector<13x78xf32>
    %398 = tpu.matmul %395, %397, %cst_291 {dimension_numbers = #tpu.dot_dimension_numbers<[1], [0], [0], [1], [0, 0, 1, 1], [], []>} : vector<13x208xf32>, vector<208x78xf32>, vector<13x78xf32> -> vector<13x78xf32>
    %399 = arith.addf %394, %398 : vector<13x78xf32>
    %400 = vector.extract_strided_slice %313 {offsets = [3, 32], sizes = [13, 208], strides = [1, 1]} : vector<17x272xf32> to vector<13x208xf32>
    %c17_292 = arith.constant 17 : index
    %c0_293 = arith.constant 0 : index
    %c0_294 = arith.constant 0 : index
    %401 = vector.load %arg23[%c17_292, %c0_293, %c0_294] : memref<25x208x78xf32, #tpu.memory_space<vmem>>, vector<1x208x78xf32>
    %402 = vector.shape_cast %401 : vector<1x208x78xf32> to vector<208x78xf32>
    %cst_295 = arith.constant dense<0.000000e+00> : vector<13x78xf32>
    %403 = tpu.matmul %400, %402, %cst_295 {dimension_numbers = #tpu.dot_dimension_numbers<[1], [0], [0], [1], [0, 0, 1, 1], [], []>} : vector<13x208xf32>, vector<208x78xf32>, vector<13x78xf32> -> vector<13x78xf32>
    %404 = arith.addf %399, %403 : vector<13x78xf32>
    %405 = vector.extract_strided_slice %313 {offsets = [3, 48], sizes = [13, 208], strides = [1, 1]} : vector<17x272xf32> to vector<13x208xf32>
    %c18_296 = arith.constant 18 : index
    %c0_297 = arith.constant 0 : index
    %c0_298 = arith.constant 0 : index
    %406 = vector.load %arg23[%c18_296, %c0_297, %c0_298] : memref<25x208x78xf32, #tpu.memory_space<vmem>>, vector<1x208x78xf32>
    %407 = vector.shape_cast %406 : vector<1x208x78xf32> to vector<208x78xf32>
    %cst_299 = arith.constant dense<0.000000e+00> : vector<13x78xf32>
    %408 = tpu.matmul %405, %407, %cst_299 {dimension_numbers = #tpu.dot_dimension_numbers<[1], [0], [0], [1], [0, 0, 1, 1], [], []>} : vector<13x208xf32>, vector<208x78xf32>, vector<13x78xf32> -> vector<13x78xf32>
    %409 = arith.addf %404, %408 : vector<13x78xf32>
    %410 = vector.extract_strided_slice %313 {offsets = [3, 64], sizes = [13, 208], strides = [1, 1]} : vector<17x272xf32> to vector<13x208xf32>
    %c19_300 = arith.constant 19 : index
    %c0_301 = arith.constant 0 : index
    %c0_302 = arith.constant 0 : index
    %411 = vector.load %arg23[%c19_300, %c0_301, %c0_302] : memref<25x208x78xf32, #tpu.memory_space<vmem>>, vector<1x208x78xf32>
    %412 = vector.shape_cast %411 : vector<1x208x78xf32> to vector<208x78xf32>
    %cst_303 = arith.constant dense<0.000000e+00> : vector<13x78xf32>
    %413 = tpu.matmul %410, %412, %cst_303 {dimension_numbers = #tpu.dot_dimension_numbers<[1], [0], [0], [1], [0, 0, 1, 1], [], []>} : vector<13x208xf32>, vector<208x78xf32>, vector<13x78xf32> -> vector<13x78xf32>
    %414 = arith.addf %409, %413 : vector<13x78xf32>
    %415 = vector.extract_strided_slice %313 {offsets = [4, 0], sizes = [13, 208], strides = [1, 1]} : vector<17x272xf32> to vector<13x208xf32>
    %c20_304 = arith.constant 20 : index
    %c0_305 = arith.constant 0 : index
    %c0_306 = arith.constant 0 : index
    %416 = vector.load %arg23[%c20_304, %c0_305, %c0_306] : memref<25x208x78xf32, #tpu.memory_space<vmem>>, vector<1x208x78xf32>
    %417 = vector.shape_cast %416 : vector<1x208x78xf32> to vector<208x78xf32>
    %cst_307 = arith.constant dense<0.000000e+00> : vector<13x78xf32>
    %418 = tpu.matmul %415, %417, %cst_307 {dimension_numbers = #tpu.dot_dimension_numbers<[1], [0], [0], [1], [0, 0, 1, 1], [], []>} : vector<13x208xf32>, vector<208x78xf32>, vector<13x78xf32> -> vector<13x78xf32>
    %419 = arith.addf %414, %418 : vector<13x78xf32>
    %420 = vector.extract_strided_slice %313 {offsets = [4, 16], sizes = [13, 208], strides = [1, 1]} : vector<17x272xf32> to vector<13x208xf32>
    %c21_308 = arith.constant 21 : index
    %c0_309 = arith.constant 0 : index
    %c0_310 = arith.constant 0 : index
    %421 = vector.load %arg23[%c21_308, %c0_309, %c0_310] : memref<25x208x78xf32, #tpu.memory_space<vmem>>, vector<1x208x78xf32>
    %422 = vector.shape_cast %421 : vector<1x208x78xf32> to vector<208x78xf32>
    %cst_311 = arith.constant dense<0.000000e+00> : vector<13x78xf32>
    %423 = tpu.matmul %420, %422, %cst_311 {dimension_numbers = #tpu.dot_dimension_numbers<[1], [0], [0], [1], [0, 0, 1, 1], [], []>} : vector<13x208xf32>, vector<208x78xf32>, vector<13x78xf32> -> vector<13x78xf32>
    %424 = arith.addf %419, %423 : vector<13x78xf32>
    %425 = vector.extract_strided_slice %313 {offsets = [4, 32], sizes = [13, 208], strides = [1, 1]} : vector<17x272xf32> to vector<13x208xf32>
    %c22_312 = arith.constant 22 : index
    %c0_313 = arith.constant 0 : index
    %c0_314 = arith.constant 0 : index
    %426 = vector.load %arg23[%c22_312, %c0_313, %c0_314] : memref<25x208x78xf32, #tpu.memory_space<vmem>>, vector<1x208x78xf32>
    %427 = vector.shape_cast %426 : vector<1x208x78xf32> to vector<208x78xf32>
    %cst_315 = arith.constant dense<0.000000e+00> : vector<13x78xf32>
    %428 = tpu.matmul %425, %427, %cst_315 {dimension_numbers = #tpu.dot_dimension_numbers<[1], [0], [0], [1], [0, 0, 1, 1], [], []>} : vector<13x208xf32>, vector<208x78xf32>, vector<13x78xf32> -> vector<13x78xf32>
    %429 = arith.addf %424, %428 : vector<13x78xf32>
    %430 = vector.extract_strided_slice %313 {offsets = [4, 48], sizes = [13, 208], strides = [1, 1]} : vector<17x272xf32> to vector<13x208xf32>
    %c23_316 = arith.constant 23 : index
    %c0_317 = arith.constant 0 : index
    %c0_318 = arith.constant 0 : index
    %431 = vector.load %arg23[%c23_316, %c0_317, %c0_318] : memref<25x208x78xf32, #tpu.memory_space<vmem>>, vector<1x208x78xf32>
    %432 = vector.shape_cast %431 : vector<1x208x78xf32> to vector<208x78xf32>
    %cst_319 = arith.constant dense<0.000000e+00> : vector<13x78xf32>
    %433 = tpu.matmul %430, %432, %cst_319 {dimension_numbers = #tpu.dot_dimension_numbers<[1], [0], [0], [1], [0, 0, 1, 1], [], []>} : vector<13x208xf32>, vector<208x78xf32>, vector<13x78xf32> -> vector<13x78xf32>
    %434 = arith.addf %429, %433 : vector<13x78xf32>
    %435 = vector.extract_strided_slice %313 {offsets = [4, 64], sizes = [13, 208], strides = [1, 1]} : vector<17x272xf32> to vector<13x208xf32>
    %c24_320 = arith.constant 24 : index
    %c0_321 = arith.constant 0 : index
    %c0_322 = arith.constant 0 : index
    %436 = vector.load %arg23[%c24_320, %c0_321, %c0_322] : memref<25x208x78xf32, #tpu.memory_space<vmem>>, vector<1x208x78xf32>
    %437 = vector.shape_cast %436 : vector<1x208x78xf32> to vector<208x78xf32>
    %cst_323 = arith.constant dense<0.000000e+00> : vector<13x78xf32>
    %438 = tpu.matmul %435, %437, %cst_323 {dimension_numbers = #tpu.dot_dimension_numbers<[1], [0], [0], [1], [0, 0, 1, 1], [], []>} : vector<13x208xf32>, vector<208x78xf32>, vector<13x78xf32> -> vector<13x78xf32>
    %439 = arith.addf %434, %438 : vector<13x78xf32>
    %c0_324 = arith.constant 0 : index
    %c0_325 = arith.constant 0 : index
    %440 = vector.load %arg24[%c0_324, %c0_325] : memref<1x78xf32, #tpu.memory_space<vmem>>, vector<1x78xf32>
    %441 = vector.broadcast %440 : vector<1x78xf32> to vector<13x78xf32>
    %442 = arith.addf %439, %441 : vector<13x78xf32>
    %cst_326 = arith.constant 0.000000e+00 : f32
    %443 = vector.broadcast %cst_326 : f32 to vector<13x78xf32>
    %444 = arith.maximumf %442, %443 : vector<13x78xf32>
    %c0_327 = arith.constant 0 : index
    %c0_328 = arith.constant 0 : index
    %445 = vector.load %arg25[%c0_327, %c0_328] : memref<38x13xf32, #tpu.memory_space<vmem>>, vector<38x13xf32>
    %c0_329 = arith.constant 0 : index
    %c0_330 = arith.constant 0 : index
    %446 = vector.load %arg26[%c0_329, %c0_330] : memref<78x228xf32, #tpu.memory_space<vmem>>, vector<78x228xf32>
    %cst_331 = arith.constant dense<0.000000e+00> : vector<13x228xf32>
    %447 = tpu.matmul %444, %446, %cst_331 {dimension_numbers = #tpu.dot_dimension_numbers<[1], [0], [0], [1], [0, 0, 1, 1], [], []>} : vector<13x78xf32>, vector<78x228xf32>, vector<13x228xf32> -> vector<13x228xf32>
    %cst_332 = arith.constant dense<0.000000e+00> : vector<38x228xf32>
    %448 = tpu.matmul %445, %447, %cst_332 {dimension_numbers = #tpu.dot_dimension_numbers<[1], [0], [0], [1], [0, 0, 1, 1], [], []>} : vector<38x13xf32>, vector<13x228xf32>, vector<38x228xf32> -> vector<38x228xf32>
    %cst_333 = arith.constant 0.000000e+00 : f32
    %449 = vector.broadcast %cst_333 : f32 to vector<32x96xf32>
    %450 = vector.extract_strided_slice %448 {offsets = [0, 0], sizes = [32, 192], strides = [1, 1]} : vector<38x228xf32> to vector<32x192xf32>
    %c0_334 = arith.constant 0 : index
    %c0_335 = arith.constant 0 : index
    %c0_336 = arith.constant 0 : index
    %451 = vector.load %arg27[%c0_334, %c0_335, %c0_336] : memref<9x192x96xf32, #tpu.memory_space<vmem>>, vector<1x192x96xf32>
    %452 = vector.shape_cast %451 : vector<1x192x96xf32> to vector<192x96xf32>
    %cst_337 = arith.constant dense<0.000000e+00> : vector<32x96xf32>
    %453 = tpu.matmul %450, %452, %cst_337 {dimension_numbers = #tpu.dot_dimension_numbers<[1], [0], [0], [1], [0, 0, 1, 1], [], []>} : vector<32x192xf32>, vector<192x96xf32>, vector<32x96xf32> -> vector<32x96xf32>
    %454 = arith.addf %449, %453 : vector<32x96xf32>
    %455 = vector.extract_strided_slice %448 {offsets = [0, 18], sizes = [32, 192], strides = [1, 1]} : vector<38x228xf32> to vector<32x192xf32>
    %c1_338 = arith.constant 1 : index
    %c0_339 = arith.constant 0 : index
    %c0_340 = arith.constant 0 : index
    %456 = vector.load %arg27[%c1_338, %c0_339, %c0_340] : memref<9x192x96xf32, #tpu.memory_space<vmem>>, vector<1x192x96xf32>
    %457 = vector.shape_cast %456 : vector<1x192x96xf32> to vector<192x96xf32>
    %cst_341 = arith.constant dense<0.000000e+00> : vector<32x96xf32>
    %458 = tpu.matmul %455, %457, %cst_341 {dimension_numbers = #tpu.dot_dimension_numbers<[1], [0], [0], [1], [0, 0, 1, 1], [], []>} : vector<32x192xf32>, vector<192x96xf32>, vector<32x96xf32> -> vector<32x96xf32>
    %459 = arith.addf %454, %458 : vector<32x96xf32>
    %460 = vector.extract_strided_slice %448 {offsets = [0, 36], sizes = [32, 192], strides = [1, 1]} : vector<38x228xf32> to vector<32x192xf32>
    %c2_342 = arith.constant 2 : index
    %c0_343 = arith.constant 0 : index
    %c0_344 = arith.constant 0 : index
    %461 = vector.load %arg27[%c2_342, %c0_343, %c0_344] : memref<9x192x96xf32, #tpu.memory_space<vmem>>, vector<1x192x96xf32>
    %462 = vector.shape_cast %461 : vector<1x192x96xf32> to vector<192x96xf32>
    %cst_345 = arith.constant dense<0.000000e+00> : vector<32x96xf32>
    %463 = tpu.matmul %460, %462, %cst_345 {dimension_numbers = #tpu.dot_dimension_numbers<[1], [0], [0], [1], [0, 0, 1, 1], [], []>} : vector<32x192xf32>, vector<192x96xf32>, vector<32x96xf32> -> vector<32x96xf32>
    %464 = arith.addf %459, %463 : vector<32x96xf32>
    %465 = vector.extract_strided_slice %448 {offsets = [3, 0], sizes = [32, 192], strides = [1, 1]} : vector<38x228xf32> to vector<32x192xf32>
    %c3_346 = arith.constant 3 : index
    %c0_347 = arith.constant 0 : index
    %c0_348 = arith.constant 0 : index
    %466 = vector.load %arg27[%c3_346, %c0_347, %c0_348] : memref<9x192x96xf32, #tpu.memory_space<vmem>>, vector<1x192x96xf32>
    %467 = vector.shape_cast %466 : vector<1x192x96xf32> to vector<192x96xf32>
    %cst_349 = arith.constant dense<0.000000e+00> : vector<32x96xf32>
    %468 = tpu.matmul %465, %467, %cst_349 {dimension_numbers = #tpu.dot_dimension_numbers<[1], [0], [0], [1], [0, 0, 1, 1], [], []>} : vector<32x192xf32>, vector<192x96xf32>, vector<32x96xf32> -> vector<32x96xf32>
    %469 = arith.addf %464, %468 : vector<32x96xf32>
    %470 = vector.extract_strided_slice %448 {offsets = [3, 18], sizes = [32, 192], strides = [1, 1]} : vector<38x228xf32> to vector<32x192xf32>
    %c4_350 = arith.constant 4 : index
    %c0_351 = arith.constant 0 : index
    %c0_352 = arith.constant 0 : index
    %471 = vector.load %arg27[%c4_350, %c0_351, %c0_352] : memref<9x192x96xf32, #tpu.memory_space<vmem>>, vector<1x192x96xf32>
    %472 = vector.shape_cast %471 : vector<1x192x96xf32> to vector<192x96xf32>
    %cst_353 = arith.constant dense<0.000000e+00> : vector<32x96xf32>
    %473 = tpu.matmul %470, %472, %cst_353 {dimension_numbers = #tpu.dot_dimension_numbers<[1], [0], [0], [1], [0, 0, 1, 1], [], []>} : vector<32x192xf32>, vector<192x96xf32>, vector<32x96xf32> -> vector<32x96xf32>
    %474 = arith.addf %469, %473 : vector<32x96xf32>
    %475 = vector.extract_strided_slice %448 {offsets = [3, 36], sizes = [32, 192], strides = [1, 1]} : vector<38x228xf32> to vector<32x192xf32>
    %c5_354 = arith.constant 5 : index
    %c0_355 = arith.constant 0 : index
    %c0_356 = arith.constant 0 : index
    %476 = vector.load %arg27[%c5_354, %c0_355, %c0_356] : memref<9x192x96xf32, #tpu.memory_space<vmem>>, vector<1x192x96xf32>
    %477 = vector.shape_cast %476 : vector<1x192x96xf32> to vector<192x96xf32>
    %cst_357 = arith.constant dense<0.000000e+00> : vector<32x96xf32>
    %478 = tpu.matmul %475, %477, %cst_357 {dimension_numbers = #tpu.dot_dimension_numbers<[1], [0], [0], [1], [0, 0, 1, 1], [], []>} : vector<32x192xf32>, vector<192x96xf32>, vector<32x96xf32> -> vector<32x96xf32>
    %479 = arith.addf %474, %478 : vector<32x96xf32>
    %480 = vector.extract_strided_slice %448 {offsets = [6, 0], sizes = [32, 192], strides = [1, 1]} : vector<38x228xf32> to vector<32x192xf32>
    %c6_358 = arith.constant 6 : index
    %c0_359 = arith.constant 0 : index
    %c0_360 = arith.constant 0 : index
    %481 = vector.load %arg27[%c6_358, %c0_359, %c0_360] : memref<9x192x96xf32, #tpu.memory_space<vmem>>, vector<1x192x96xf32>
    %482 = vector.shape_cast %481 : vector<1x192x96xf32> to vector<192x96xf32>
    %cst_361 = arith.constant dense<0.000000e+00> : vector<32x96xf32>
    %483 = tpu.matmul %480, %482, %cst_361 {dimension_numbers = #tpu.dot_dimension_numbers<[1], [0], [0], [1], [0, 0, 1, 1], [], []>} : vector<32x192xf32>, vector<192x96xf32>, vector<32x96xf32> -> vector<32x96xf32>
    %484 = arith.addf %479, %483 : vector<32x96xf32>
    %485 = vector.extract_strided_slice %448 {offsets = [6, 18], sizes = [32, 192], strides = [1, 1]} : vector<38x228xf32> to vector<32x192xf32>
    %c7_362 = arith.constant 7 : index
    %c0_363 = arith.constant 0 : index
    %c0_364 = arith.constant 0 : index
    %486 = vector.load %arg27[%c7_362, %c0_363, %c0_364] : memref<9x192x96xf32, #tpu.memory_space<vmem>>, vector<1x192x96xf32>
    %487 = vector.shape_cast %486 : vector<1x192x96xf32> to vector<192x96xf32>
    %cst_365 = arith.constant dense<0.000000e+00> : vector<32x96xf32>
    %488 = tpu.matmul %485, %487, %cst_365 {dimension_numbers = #tpu.dot_dimension_numbers<[1], [0], [0], [1], [0, 0, 1, 1], [], []>} : vector<32x192xf32>, vector<192x96xf32>, vector<32x96xf32> -> vector<32x96xf32>
    %489 = arith.addf %484, %488 : vector<32x96xf32>
    %490 = vector.extract_strided_slice %448 {offsets = [6, 36], sizes = [32, 192], strides = [1, 1]} : vector<38x228xf32> to vector<32x192xf32>
    %c8_366 = arith.constant 8 : index
    %c0_367 = arith.constant 0 : index
    %c0_368 = arith.constant 0 : index
    %491 = vector.load %arg27[%c8_366, %c0_367, %c0_368] : memref<9x192x96xf32, #tpu.memory_space<vmem>>, vector<1x192x96xf32>
    %492 = vector.shape_cast %491 : vector<1x192x96xf32> to vector<192x96xf32>
    %cst_369 = arith.constant dense<0.000000e+00> : vector<32x96xf32>
    %493 = tpu.matmul %490, %492, %cst_369 {dimension_numbers = #tpu.dot_dimension_numbers<[1], [0], [0], [1], [0, 0, 1, 1], [], []>} : vector<32x192xf32>, vector<192x96xf32>, vector<32x96xf32> -> vector<32x96xf32>
    %494 = arith.addf %489, %493 : vector<32x96xf32>
    %c0_370 = arith.constant 0 : index
    %c0_371 = arith.constant 0 : index
    %495 = vector.load %arg28[%c0_370, %c0_371] : memref<1x96xf32, #tpu.memory_space<vmem>>, vector<1x96xf32>
    %496 = vector.broadcast %495 : vector<1x96xf32> to vector<32x96xf32>
    %497 = arith.addf %494, %496 : vector<32x96xf32>
    %cst_372 = arith.constant 0.000000e+00 : f32
    %498 = vector.broadcast %cst_372 : f32 to vector<32x96xf32>
    %499 = arith.subf %498, %497 : vector<32x96xf32>
    %500 = math.exp %499 : vector<32x96xf32>
    %cst_373 = arith.constant 1.000000e+00 : f32
    %501 = vector.broadcast %cst_373 : f32 to vector<32x96xf32>
    %502 = arith.addf %501, %500 : vector<32x96xf32>
    %503 = tpu.reciprocal %502 : vector<32x96xf32> -> vector<32x96xf32>
    %c0_374 = arith.constant 0 : index
    %c0_375 = arith.constant 0 : index
    %c0_376 = arith.constant 0 : index
    %504 = vector.load %arg29[%c0_374, %c0_375, %c0_376] : memref<1x32x96xf32, #tpu.memory_space<vmem>>, vector<1x32x96xf32>
    %505 = vector.shape_cast %504 : vector<1x32x96xf32> to vector<32x96xf32>
    %506 = vector.shape_cast %503 : vector<32x96xf32> to vector<1x32x96xf32>
    tpu.vector_store %arg29[%c0_374, %c0_375, %c0_376], %506 {strides = array<i32>} : memref<1x32x96xf32, #tpu.memory_space<vmem>>, vector<1x32x96xf32>,
    return
  }
  func.func @transform_0(%arg0: i32) -> (i32, i32, i32) {
    %c0_i32 = arith.constant 0 : i32
    %c0_i32_0 = arith.constant 0 : i32
    %c0_i32_1 = arith.constant 0 : i32
    return %arg0, %c0_i32, %c0_i32_0 : i32, i32, i32
  }
  func.func @transform_1(%arg0: i32) -> (i32, i32, i32) {
    %c0_i32 = arith.constant 0 : i32
    %c0_i32_0 = arith.constant 0 : i32
    %c0_i32_1 = arith.constant 0 : i32
    %c0_i32_2 = arith.constant 0 : i32
    return %c0_i32, %c0_i32_0, %c0_i32_1 : i32, i32, i32
  }
  func.func @transform_2(%arg0: i32) -> (i32, i32) {
    %c0_i32 = arith.constant 0 : i32
    %c0_i32_0 = arith.constant 0 : i32
    %c0_i32_1 = arith.constant 0 : i32
    return %c0_i32, %c0_i32_0 : i32, i32
  }
  func.func @transform_3(%arg0: i32) -> (i32, i32) {
    %c0_i32 = arith.constant 0 : i32
    %c0_i32_0 = arith.constant 0 : i32
    %c0_i32_1 = arith.constant 0 : i32
    return %c0_i32, %c0_i32_0 : i32, i32
  }
  func.func @transform_4(%arg0: i32) -> (i32, i32) {
    %c0_i32 = arith.constant 0 : i32
    %c0_i32_0 = arith.constant 0 : i32
    %c0_i32_1 = arith.constant 0 : i32
    return %c0_i32, %c0_i32_0 : i32, i32
  }
  func.func @transform_5(%arg0: i32) -> (i32, i32) {
    %c0_i32 = arith.constant 0 : i32
    %c0_i32_0 = arith.constant 0 : i32
    %c0_i32_1 = arith.constant 0 : i32
    return %c0_i32, %c0_i32_0 : i32, i32
  }
  func.func @transform_6(%arg0: i32) -> (i32, i32) {
    %c0_i32 = arith.constant 0 : i32
    %c0_i32_0 = arith.constant 0 : i32
    %c0_i32_1 = arith.constant 0 : i32
    return %c0_i32, %c0_i32_0 : i32, i32
  }
  func.func @transform_7(%arg0: i32) -> (i32, i32) {
    %c0_i32 = arith.constant 0 : i32
    %c0_i32_0 = arith.constant 0 : i32
    %c0_i32_1 = arith.constant 0 : i32
    return %c0_i32, %c0_i32_0 : i32, i32
  }
  func.func @transform_8(%arg0: i32) -> (i32, i32) {
    %c0_i32 = arith.constant 0 : i32
    %c0_i32_0 = arith.constant 0 : i32
    %c0_i32_1 = arith.constant 0 : i32
    return %c0_i32, %c0_i32_0 : i32, i32
  }
  func.func @transform_9(%arg0: i32) -> (i32, i32, i32) {
    %c0_i32 = arith.constant 0 : i32
    %c0_i32_0 = arith.constant 0 : i32
    %c0_i32_1 = arith.constant 0 : i32
    %c0_i32_2 = arith.constant 0 : i32
    return %c0_i32, %c0_i32_0, %c0_i32_1 : i32, i32, i32
  }
  func.func @transform_10(%arg0: i32) -> (i32, i32) {
    %c0_i32 = arith.constant 0 : i32
    %c0_i32_0 = arith.constant 0 : i32
    %c0_i32_1 = arith.constant 0 : i32
    return %c0_i32, %c0_i32_0 : i32, i32
  }
  func.func @transform_11(%arg0: i32) -> (i32, i32) {
    %c0_i32 = arith.constant 0 : i32
    %c0_i32_0 = arith.constant 0 : i32
    %c0_i32_1 = arith.constant 0 : i32
    return %c0_i32, %c0_i32_0 : i32, i32
  }
  func.func @transform_12(%arg0: i32) -> (i32, i32) {
    %c0_i32 = arith.constant 0 : i32
    %c0_i32_0 = arith.constant 0 : i32
    %c0_i32_1 = arith.constant 0 : i32
    return %c0_i32, %c0_i32_0 : i32, i32
  }
  func.func @transform_13(%arg0: i32) -> (i32, i32) {
    %c0_i32 = arith.constant 0 : i32
    %c0_i32_0 = arith.constant 0 : i32
    %c0_i32_1 = arith.constant 0 : i32
    return %c0_i32, %c0_i32_0 : i32, i32
  }
  func.func @transform_14(%arg0: i32) -> (i32, i32) {
    %c0_i32 = arith.constant 0 : i32
    %c0_i32_0 = arith.constant 0 : i32
    %c0_i32_1 = arith.constant 0 : i32
    return %c0_i32, %c0_i32_0 : i32, i32
  }
  func.func @transform_15(%arg0: i32) -> (i32, i32, i32) {
    %c0_i32 = arith.constant 0 : i32
    %c0_i32_0 = arith.constant 0 : i32
    %c0_i32_1 = arith.constant 0 : i32
    %c0_i32_2 = arith.constant 0 : i32
    return %c0_i32, %c0_i32_0, %c0_i32_1 : i32, i32, i32
  }
  func.func @transform_16(%arg0: i32) -> (i32, i32) {
    %c0_i32 = arith.constant 0 : i32
    %c0_i32_0 = arith.constant 0 : i32
    %c0_i32_1 = arith.constant 0 : i32
    return %c0_i32, %c0_i32_0 : i32, i32
  }
  func.func @transform_17(%arg0: i32) -> (i32, i32) {
    %c0_i32 = arith.constant 0 : i32
    %c0_i32_0 = arith.constant 0 : i32
    %c0_i32_1 = arith.constant 0 : i32
    return %c0_i32, %c0_i32_0 : i32, i32
  }
  func.func @transform_18(%arg0: i32) -> (i32, i32, i32) {
    %c0_i32 = arith.constant 0 : i32
    %c0_i32_0 = arith.constant 0 : i32
    %c0_i32_1 = arith.constant 0 : i32
    %c0_i32_2 = arith.constant 0 : i32
    return %c0_i32, %c0_i32_0, %c0_i32_1 : i32, i32, i32
  }
  func.func @transform_19(%arg0: i32) -> (i32, i32) {
    %c0_i32 = arith.constant 0 : i32
    %c0_i32_0 = arith.constant 0 : i32
    %c0_i32_1 = arith.constant 0 : i32
    return %c0_i32, %c0_i32_0 : i32, i32
  }
  func.func @transform_20(%arg0: i32) -> (i32, i32) {
    %c0_i32 = arith.constant 0 : i32
    %c0_i32_0 = arith.constant 0 : i32
    %c0_i32_1 = arith.constant 0 : i32
    return %c0_i32, %c0_i32_0 : i32, i32
  }
  func.func @transform_21(%arg0: i32) -> (i32, i32) {
    %c0_i32 = arith.constant 0 : i32
    %c0_i32_0 = arith.constant 0 : i32
    %c0_i32_1 = arith.constant 0 : i32
    return %c0_i32, %c0_i32_0 : i32, i32
  }
  func.func @transform_22(%arg0: i32) -> (i32, i32, i32) {
    %c0_i32 = arith.constant 0 : i32
    %c0_i32_0 = arith.constant 0 : i32
    %c0_i32_1 = arith.constant 0 : i32
    %c0_i32_2 = arith.constant 0 : i32
    return %c0_i32, %c0_i32_0, %c0_i32_1 : i32, i32, i32
  }
  func.func @transform_23(%arg0: i32) -> (i32, i32) {
    %c0_i32 = arith.constant 0 : i32
    %c0_i32_0 = arith.constant 0 : i32
    %c0_i32_1 = arith.constant 0 : i32
    return %c0_i32, %c0_i32_0 : i32, i32
  }
  func.func @transform_24(%arg0: i32) -> (i32, i32) {
    %c0_i32 = arith.constant 0 : i32
    %c0_i32_0 = arith.constant 0 : i32
    %c0_i32_1 = arith.constant 0 : i32
    return %c0_i32, %c0_i32_0 : i32, i32
  }
  func.func @transform_25(%arg0: i32) -> (i32, i32) {
    %c0_i32 = arith.constant 0 : i32
    %c0_i32_0 = arith.constant 0 : i32
    %c0_i32_1 = arith.constant 0 : i32
    return %c0_i32, %c0_i32_0 : i32, i32
  }
  func.func @transform_26(%arg0: i32) -> (i32, i32, i32) {
    %c0_i32 = arith.constant 0 : i32
    %c0_i32_0 = arith.constant 0 : i32
    %c0_i32_1 = arith.constant 0 : i32
    %c0_i32_2 = arith.constant 0 : i32
    return %c0_i32, %c0_i32_0, %c0_i32_1 : i32, i32, i32
  }
  func.func @transform_27(%arg0: i32) -> (i32, i32) {
    %c0_i32 = arith.constant 0 : i32
    %c0_i32_0 = arith.constant 0 : i32
    %c0_i32_1 = arith.constant 0 : i32
    return %c0_i32, %c0_i32_0 : i32, i32
  }
  func.func @transform_28(%arg0: i32) -> (i32, i32, i32) {
    %c0_i32 = arith.constant 0 : i32
    %c0_i32_0 = arith.constant 0 : i32
    %c0_i32_1 = arith.constant 0 : i32
    return %arg0, %c0_i32, %c0_i32_0 : i32, i32, i32
  }
}

</mosaic_0001>

<llo_original>
// kernel: lenet_autoencoder_forward.1
$region0: #{lenet_autoencoder_forward.1}
  #allocation0 [shape = 'u32[]', space=smem, size = 0x4, offset = 0x4, fixed_abs, tag = 'smem constant byte address 0x4 - core index']
  #allocation1 [shape = 'u32[72,128]{1,0:T(1,128)}', space=vmem, size = 0x9000, scoped, tag = 'internal scratch']
  %s0 = inlined_call_operand.vmem [shape: f32[2,32,96], index: 0, kind: input, shape index: {}]
  %s1 = inlined_call_operand.vmem [shape: f32[9,90,180], index: 1, kind: input, shape index: {}]
  %s2 = inlined_call_operand.vmem [shape: f32[1,180], index: 2, kind: input, shape index: {}]
  %s3 = inlined_call_operand.vmem [shape: f32[15,30], index: 3, kind: input, shape index: {}]
  %s4 = inlined_call_operand.vmem [shape: f32[15,30], index: 4, kind: input, shape index: {}]
  %s5 = inlined_call_operand.vmem [shape: f32[180,90], index: 5, kind: input, shape index: {}]
  %s6 = inlined_call_operand.vmem [shape: f32[180,90], index: 6, kind: input, shape index: {}]
  %s7 = inlined_call_operand.vmem [shape: f32[19,15], index: 7, kind: input, shape index: {}]
  %s8 = inlined_call_operand.vmem [shape: f32[90,114], index: 8, kind: input, shape index: {}]
  %s9 = inlined_call_operand.vmem [shape: f32[25,90,240], index: 9, kind: input, shape index: {}]
  %s10 = inlined_call_operand.vmem [shape: f32[1,240], index: 10, kind: input, shape index: {}]
  %s11 = inlined_call_operand.vmem [shape: f32[7,15], index: 11, kind: input, shape index: {}]
  %s12 = inlined_call_operand.vmem [shape: f32[7,15], index: 12, kind: input, shape index: {}]
  %s13 = inlined_call_operand.vmem [shape: f32[240,112], index: 13, kind: input, shape index: {}]
  %s14 = inlined_call_operand.vmem [shape: f32[240,112], index: 14, kind: input, shape index: {}]
  %s15 = inlined_call_operand.vmem [shape: f32[7,112,128], index: 15, kind: input, shape index: {}]
  %s16 = inlined_call_operand.vmem [shape: f32[1,128], index: 16, kind: input, shape index: {}]
  %s17 = inlined_call_operand.vmem [shape: f32[7,7], index: 17, kind: input, shape index: {}]
  %s18 = inlined_call_operand.vmem [shape: f32[7,128,112], index: 18, kind: input, shape index: {}]
  %s19 = inlined_call_operand.vmem [shape: f32[7,112], index: 19, kind: input, shape index: {}]
  %s20 = inlined_call_operand.vmem [shape: f32[17,7], index: 20, kind: input, shape index: {}]
  %s21 = inlined_call_operand.vmem [shape: f32[112,272], index: 21, kind: input, shape index: {}]
  %s22 = inlined_call_operand.vmem [shape: f32[25,208,78], index: 22, kind: input, shape index: {}]
  %s23 = inlined_call_operand.vmem [shape: f32[1,78], index: 23, kind: input, shape index: {}]
  %s24 = inlined_call_operand.vmem [shape: f32[38,13], index: 24, kind: input, shape index: {}]
  %s25 = inlined_call_operand.vmem [shape: f32[78,228], index: 25, kind: input, shape index: {}]
  %s26 = inlined_call_operand.vmem [shape: f32[9,192,96], index: 26, kind: input, shape index: {}]
  %s27 = inlined_call_operand.vmem [shape: f32[1,96], index: 27, kind: input, shape index: {}]
  %s28 = inlined_call_operand.vmem [shape: f32[2,32,96], index: 28, kind: output, shape index: {}]
  %s29 = sld [smem:[#allocation0]]
  $region145: #{lenet_autoencoder_forward.1} parent=0
    _
  %s31 = ssub.s32 1, %s29
  %s32 = scalar_select 0, %s31, %s29
  loop: start=0, step=1, limit=4
  $region2: #{lenet_autoencoder_forward.1} parent=0 // loop_pre_header
    _
  $region3: #{lenet_autoencoder_forward.1} parent=0 // loop_header
    %s34 = sphi 0, %s38
    %p35 = scmp.ge.s32.totalorder %s34, 4
    %s44 = sphi 0, %s46
    %s47 = sphi 0, %s44
    %s48 = sphi 0, %s47
    %s64 = sphi 0, %s48
    %s68 = sphi 0, %s68
    %s70 = sphi 0, %s68
    %s71 = sphi 0, %s70
    %s85 = sphi 0, %s71
    %s89 = sphi 0, %s89
    %s91 = sphi 0, %s89
    %s92 = sphi 0, %s91
    %s106 = sphi 0, %s92
    %s110 = sphi 0, %s110
    %s112 = sphi 0, %s110
    %s113 = sphi 0, %s112
    %s127 = sphi 0, %s113
    %s131 = sphi 0, %s131
    %s133 = sphi 0, %s131
    %s134 = sphi 0, %s133
    %s148 = sphi 0, %s134
    %s152 = sphi 0, %s152
    %s154 = sphi 0, %s152
    %s155 = sphi 0, %s154
    %s169 = sphi 0, %s155
    %s173 = sphi 0, %s173
    %s175 = sphi 0, %s173
    %s176 = sphi 0, %s175
    %s190 = sphi 0, %s176
    %s194 = sphi 0, %s194
    %s196 = sphi 0, %s194
    %s197 = sphi 0, %s196
    %s211 = sphi 0, %s197
    %s215 = sphi 0, %s215
    %s217 = sphi 0, %s215
    %s218 = sphi 0, %s217
    %s232 = sphi 0, %s218
    %s236 = sphi 0, %s236
    %s238 = sphi 0, %s236
    %s239 = sphi 0, %s238
    %s253 = sphi 0, %s239
    %s257 = sphi 0, %s257
    %s259 = sphi 0, %s257
    %s260 = sphi 0, %s259
    %s274 = sphi 0, %s260
    %s278 = sphi 0, %s278
    %s280 = sphi 0, %s278
    %s281 = sphi 0, %s280
    %s295 = sphi 0, %s281
    %s299 = sphi 0, %s299
    %s301 = sphi 0, %s299
    %s302 = sphi 0, %s301
    %s316 = sphi 0, %s302
    %s320 = sphi 0, %s320
    %s322 = sphi 0, %s320
    %s323 = sphi 0, %s322
    %s337 = sphi 0, %s323
    %s341 = sphi 0, %s341
    %s343 = sphi 0, %s341
    %s344 = sphi 0, %s343
    %s358 = sphi 0, %s344
    %s362 = sphi 0, %s362
    %s364 = sphi 0, %s362
    %s365 = sphi 0, %s364
    %s379 = sphi 0, %s365
    %s383 = sphi 0, %s383
    %s385 = sphi 0, %s383
    %s386 = sphi 0, %s385
    %s400 = sphi 0, %s386
    %s404 = sphi 0, %s404
    %s406 = sphi 0, %s404
    %s407 = sphi 0, %s406
    %s421 = sphi 0, %s407
    %s425 = sphi 0, %s425
    %s427 = sphi 0, %s425
    %s428 = sphi 0, %s427
    %s442 = sphi 0, %s428
    %s446 = sphi 0, %s446
    %s448 = sphi 0, %s446
    %s449 = sphi 0, %s448
    %s463 = sphi 0, %s449
    %s467 = sphi 0, %s467
    %s469 = sphi 0, %s467
    %s470 = sphi 0, %s469
    %s484 = sphi 0, %s470
    %s488 = sphi 0, %s488
    %s490 = sphi 0, %s488
    %s491 = sphi 0, %s490
    %s505 = sphi 0, %s491
    %s509 = sphi 0, %s509
    %s511 = sphi 0, %s509
    %s512 = sphi 0, %s511
    %s526 = sphi 0, %s512
    %s530 = sphi 0, %s530
    %s532 = sphi 0, %s530
    %s533 = sphi 0, %s532
    %s547 = sphi 0, %s533
    %s551 = sphi 0, %s551
    %s553 = sphi 0, %s551
    %s554 = sphi 0, %s553
    %s568 = sphi 0, %s554
    %s572 = sphi 0, %s572
    %s574 = sphi 0, %s572
    %s575 = sphi 0, %s574
    %s589 = sphi 0, %s575
    %s593 = sphi 0, %s593
    %s595 = sphi 0, %s593
    %s596 = sphi 0, %s595
    %s610 = sphi 0, %s596
    %s614 = sphi 0, %s614
    %s616 = sphi 0, %s614
    %s617 = sphi 0, %s616
    %s631 = sphi 0, %s617
    %s637 = sphi 0, %s639
    %s640 = sphi 0, %s637
    %s641 = sphi 0, %s640
    %s657 = sphi 0, %s641
  $region4: #{lenet_autoencoder_forward.1} parent=0 // loop_header_branch
    %37 = sbr.rel (%p35) target = $region8
  $region5: #{lenet_autoencoder_forward.1} parent=0 // loop_body
    %s39 = ssub.s32 %s34, 1
    %s40 = ssub.s32 %s34, 2
    %s41 = sadd.s32 %s34, 1
    %s42 = ssub.s32 %s34, %s41
    %p43 = scmp.eq.s32.totalorder %s42, 0
    %s45 = sadd.s32 %s44, 1
    %s46 = scalar_select %p43, %s44, %s45
    %p49 = pneg %p43
    %p50 = scmp.eq.s32.totalorder %s34, 1
    %p51 = por %p49, %p50
    %p52 = scmp.ne.s32.totalorder %s44, %s47
    %p53 = scmp.eq.s32.totalorder %s34, 0
    %p54 = por %p52, %p53
    %p55 = scmp.ne.s32.totalorder %s44, %s47
    %p56 = scmp.eq.s32.totalorder %s39, 1
    %p57 = por %p55, %p56
    %p58 = scmp.ne.s32.totalorder %s47, %s48
    %p59 = scmp.eq.s32.totalorder %s39, 0
    %p60 = por %p58, %p59
    %p61 = scmp.ne.s32.totalorder %s47, %s48
    %p62 = scmp.eq.s32.totalorder %s40, 1
    %p63 = por %p61, %p62
    %p65 = scmp.ne.s32.totalorder %s48, %s64
    %p66 = scmp.eq.s32.totalorder %s40, 0
    %p67 = por %p65, %p66
    %s69 = sadd.s32 %s68, 1
    %p72 = scmp.eq.s32.totalorder %s34, 1
    %p73 = scmp.ne.s32.totalorder %s68, %s70
    %p74 = scmp.eq.s32.totalorder %s34, 0
    %p75 = por %p73, %p74
    %p76 = scmp.ne.s32.totalorder %s68, %s70
    %p77 = scmp.eq.s32.totalorder %s39, 1
    %p78 = por %p76, %p77
    %p79 = scmp.ne.s32.totalorder %s70, %s71
    %p80 = scmp.eq.s32.totalorder %s39, 0
    %p81 = por %p79, %p80
    %p82 = scmp.ne.s32.totalorder %s70, %s71
    %p83 = scmp.eq.s32.totalorder %s40, 1
    %p84 = por %p82, %p83
    %p86 = scmp.ne.s32.totalorder %s71, %s85
    %p87 = scmp.eq.s32.totalorder %s40, 0
    %p88 = por %p86, %p87
    %s90 = sadd.s32 %s89, 1
    %p93 = scmp.eq.s32.totalorder %s34, 1
    %p94 = scmp.ne.s32.totalorder %s89, %s91
    %p95 = scmp.eq.s32.totalorder %s34, 0
    %p96 = por %p94, %p95
    %p97 = scmp.ne.s32.totalorder %s89, %s91
    %p98 = scmp.eq.s32.totalorder %s39, 1
    %p99 = por %p97, %p98
    %p100 = scmp.ne.s32.totalorder %s91, %s92
    %p101 = scmp.eq.s32.totalorder %s39, 0
    %p102 = por %p100, %p101
    %p103 = scmp.ne.s32.totalorder %s91, %s92
    %p104 = scmp.eq.s32.totalorder %s40, 1
    %p105 = por %p103, %p104
    %p107 = scmp.ne.s32.totalorder %s92, %s106
    %p108 = scmp.eq.s32.totalorder %s40, 0
    %p109 = por %p107, %p108
    %s111 = sadd.s32 %s110, 1
    %p114 = scmp.eq.s32.totalorder %s34, 1
    %p115 = scmp.ne.s32.totalorder %s110, %s112
    %p116 = scmp.eq.s32.totalorder %s34, 0
    %p117 = por %p115, %p116
    %p118 = scmp.ne.s32.totalorder %s110, %s112
    %p119 = scmp.eq.s32.totalorder %s39, 1
    %p120 = por %p118, %p119
    %p121 = scmp.ne.s32.totalorder %s112, %s113
    %p122 = scmp.eq.s32.totalorder %s39, 0
    %p123 = por %p121, %p122
    %p124 = scmp.ne.s32.totalorder %s112, %s113
    %p125 = scmp.eq.s32.totalorder %s40, 1
    %p126 = por %p124, %p125
    %p128 = scmp.ne.s32.totalorder %s113, %s127
    %p129 = scmp.eq.s32.totalorder %s40, 0
    %p130 = por %p128, %p129
    %s132 = sadd.s32 %s131, 1
    %p135 = scmp.eq.s32.totalorder %s34, 1
    %p136 = scmp.ne.s32.totalorder %s131, %s133
    %p137 = scmp.eq.s32.totalorder %s34, 0
    %p138 = por %p136, %p137
    %p139 = scmp.ne.s32.totalorder %s131, %s133
    %p140 = scmp.eq.s32.totalorder %s39, 1
    %p141 = por %p139, %p140
    %p142 = scmp.ne.s32.totalorder %s133, %s134
    %p143 = scmp.eq.s32.totalorder %s39, 0
    %p144 = por %p142, %p143
    %p145 = scmp.ne.s32.totalorder %s133, %s134
    %p146 = scmp.eq.s32.totalorder %s40, 1
    %p147 = por %p145, %p146
    %p149 = scmp.ne.s32.totalorder %s134, %s148
    %p150 = scmp.eq.s32.totalorder %s40, 0
    %p151 = por %p149, %p150
    %s153 = sadd.s32 %s152, 1
    %p156 = scmp.eq.s32.totalorder %s34, 1
    %p157 = scmp.ne.s32.totalorder %s152, %s154
    %p158 = scmp.eq.s32.totalorder %s34, 0
    %p159 = por %p157, %p158
    %p160 = scmp.ne.s32.totalorder %s152, %s154
    %p161 = scmp.eq.s32.totalorder %s39, 1
    %p162 = por %p160, %p161
    %p163 = scmp.ne.s32.totalorder %s154, %s155
    %p164 = scmp.eq.s32.totalorder %s39, 0
    %p165 = por %p163, %p164
    %p166 = scmp.ne.s32.totalorder %s154, %s155
    %p167 = scmp.eq.s32.totalorder %s40, 1
    %p168 = por %p166, %p167
    %p170 = scmp.ne.s32.totalorder %s155, %s169
    %p171 = scmp.eq.s32.totalorder %s40, 0
    %p172 = por %p170, %p171
    %s174 = sadd.s32 %s173, 1
    %p177 = scmp.eq.s32.totalorder %s34, 1
    %p178 = scmp.ne.s32.totalorder %s173, %s175
    %p179 = scmp.eq.s32.totalorder %s34, 0
    %p180 = por %p178, %p179
    %p181 = scmp.ne.s32.totalorder %s173, %s175
    %p182 = scmp.eq.s32.totalorder %s39, 1
    %p183 = por %p181, %p182
    %p184 = scmp.ne.s32.totalorder %s175, %s176
    %p185 = scmp.eq.s32.totalorder %s39, 0
    %p186 = por %p184, %p185
    %p187 = scmp.ne.s32.totalorder %s175, %s176
    %p188 = scmp.eq.s32.totalorder %s40, 1
    %p189 = por %p187, %p188
    %p191 = scmp.ne.s32.totalorder %s176, %s190
    %p192 = scmp.eq.s32.totalorder %s40, 0
    %p193 = por %p191, %p192
    %s195 = sadd.s32 %s194, 1
    %p198 = scmp.eq.s32.totalorder %s34, 1
    %p199 = scmp.ne.s32.totalorder %s194, %s196
    %p200 = scmp.eq.s32.totalorder %s34, 0
    %p201 = por %p199, %p200
    %p202 = scmp.ne.s32.totalorder %s194, %s196
    %p203 = scmp.eq.s32.totalorder %s39, 1
    %p204 = por %p202, %p203
    %p205 = scmp.ne.s32.totalorder %s196, %s197
    %p206 = scmp.eq.s32.totalorder %s39, 0
    %p207 = por %p205, %p206
    %p208 = scmp.ne.s32.totalorder %s196, %s197
    %p209 = scmp.eq.s32.totalorder %s40, 1
    %p210 = por %p208, %p209
    %p212 = scmp.ne.s32.totalorder %s197, %s211
    %p213 = scmp.eq.s32.totalorder %s40, 0
    %p214 = por %p212, %p213
    %s216 = sadd.s32 %s215, 1
    %p219 = scmp.eq.s32.totalorder %s34, 1
    %p220 = scmp.ne.s32.totalorder %s215, %s217
    %p221 = scmp.eq.s32.totalorder %s34, 0
    %p222 = por %p220, %p221
    %p223 = scmp.ne.s32.totalorder %s215, %s217
    %p224 = scmp.eq.s32.totalorder %s39, 1
    %p225 = por %p223, %p224
    %p226 = scmp.ne.s32.totalorder %s217, %s218
    %p227 = scmp.eq.s32.totalorder %s39, 0
    %p228 = por %p226, %p227
    %p229 = scmp.ne.s32.totalorder %s217, %s218
    %p230 = scmp.eq.s32.totalorder %s40, 1
    %p231 = por %p229, %p230
    %p233 = scmp.ne.s32.totalorder %s218, %s232
    %p234 = scmp.eq.s32.totalorder %s40, 0
    %p235 = por %p233, %p234
    %s237 = sadd.s32 %s236, 1
    %p240 = scmp.eq.s32.totalorder %s34, 1
    %p241 = scmp.ne.s32.totalorder %s236, %s238
    %p242 = scmp.eq.s32.totalorder %s34, 0
    %p243 = por %p241, %p242
    %p244 = scmp.ne.s32.totalorder %s236, %s238
    %p245 = scmp.eq.s32.totalorder %s39, 1
    %p246 = por %p244, %p245
    %p247 = scmp.ne.s32.totalorder %s238, %s239
    %p248 = scmp.eq.s32.totalorder %s39, 0
    %p249 = por %p247, %p248
    %p250 = scmp.ne.s32.totalorder %s238, %s239
    %p251 = scmp.eq.s32.totalorder %s40, 1
    %p252 = por %p250, %p251
    %p254 = scmp.ne.s32.totalorder %s239, %s253
    %p255 = scmp.eq.s32.totalorder %s40, 0
    %p256 = por %p254, %p255
    %s258 = sadd.s32 %s257, 1
    %p261 = scmp.eq.s32.totalorder %s34, 1
    %p262 = scmp.ne.s32.totalorder %s257, %s259
    %p263 = scmp.eq.s32.totalorder %s34, 0
    %p264 = por %p262, %p263
    %p265 = scmp.ne.s32.totalorder %s257, %s259
    %p266 = scmp.eq.s32.totalorder %s39, 1
    %p267 = por %p265, %p266
    %p268 = scmp.ne.s32.totalorder %s259, %s260
    %p269 = scmp.eq.s32.totalorder %s39, 0
    %p270 = por %p268, %p269
    %p271 = scmp.ne.s32.totalorder %s259, %s260
    %p272 = scmp.eq.s32.totalorder %s40, 1
    %p273 = por %p271, %p272
    %p275 = scmp.ne.s32.totalorder %s260, %s274
    %p276 = scmp.eq.s32.totalorder %s40, 0
    %p277 = por %p275, %p276
    %s279 = sadd.s32 %s278, 1
    %p282 = scmp.eq.s32.totalorder %s34, 1
    %p283 = scmp.ne.s32.totalorder %s278, %s280
    %p284 = scmp.eq.s32.totalorder %s34, 0
    %p285 = por %p283, %p284
    %p286 = scmp.ne.s32.totalorder %s278, %s280
    %p287 = scmp.eq.s32.totalorder %s39, 1
    %p288 = por %p286, %p287
    %p289 = scmp.ne.s32.totalorder %s280, %s281
    %p290 = scmp.eq.s32.totalorder %s39, 0
    %p291 = por %p289, %p290
    %p292 = scmp.ne.s32.totalorder %s280, %s281
    %p293 = scmp.eq.s32.totalorder %s40, 1
    %p294 = por %p292, %p293
    %p296 = scmp.ne.s32.totalorder %s281, %s295
    %p297 = scmp.eq.s32.totalorder %s40, 0
    %p298 = por %p296, %p297
    %s300 = sadd.s32 %s299, 1
    %p303 = scmp.eq.s32.totalorder %s34, 1
    %p304 = scmp.ne.s32.totalorder %s299, %s301
    %p305 = scmp.eq.s32.totalorder %s34, 0
    %p306 = por %p304, %p305
    %p307 = scmp.ne.s32.totalorder %s299, %s301
    %p308 = scmp.eq.s32.totalorder %s39, 1
    %p309 = por %p307, %p308
    %p310 = scmp.ne.s32.totalorder %s301, %s302
    %p311 = scmp.eq.s32.totalorder %s39, 0
    %p312 = por %p310, %p311
    %p313 = scmp.ne.s32.totalorder %s301, %s302
    %p314 = scmp.eq.s32.totalorder %s40, 1
    %p315 = por %p313, %p314
    %p317 = scmp.ne.s32.totalorder %s302, %s316
    %p318 = scmp.eq.s32.totalorder %s40, 0
    %p319 = por %p317, %p318
    %s321 = sadd.s32 %s320, 1
    %p324 = scmp.eq.s32.totalorder %s34, 1
    %p325 = scmp.ne.s32.totalorder %s320, %s322
    %p326 = scmp.eq.s32.totalorder %s34, 0
    %p327 = por %p325, %p326
    %p328 = scmp.ne.s32.totalorder %s320, %s322
    %p329 = scmp.eq.s32.totalorder %s39, 1
    %p330 = por %p328, %p329
    %p331 = scmp.ne.s32.totalorder %s322, %s323
    %p332 = scmp.eq.s32.totalorder %s39, 0
    %p333 = por %p331, %p332
    %p334 = scmp.ne.s32.totalorder %s322, %s323
    %p335 = scmp.eq.s32.totalorder %s40, 1
    %p336 = por %p334, %p335
    %p338 = scmp.ne.s32.totalorder %s323, %s337
    %p339 = scmp.eq.s32.totalorder %s40, 0
    %p340 = por %p338, %p339
    %s342 = sadd.s32 %s341, 1
    %p345 = scmp.eq.s32.totalorder %s34, 1
    %p346 = scmp.ne.s32.totalorder %s341, %s343
    %p347 = scmp.eq.s32.totalorder %s34, 0
    %p348 = por %p346, %p347
    %p349 = scmp.ne.s32.totalorder %s341, %s343
    %p350 = scmp.eq.s32.totalorder %s39, 1
    %p351 = por %p349, %p350
    %p352 = scmp.ne.s32.totalorder %s343, %s344
    %p353 = scmp.eq.s32.totalorder %s39, 0
    %p354 = por %p352, %p353
    %p355 = scmp.ne.s32.totalorder %s343, %s344
    %p356 = scmp.eq.s32.totalorder %s40, 1
    %p357 = por %p355, %p356
    %p359 = scmp.ne.s32.totalorder %s344, %s358
    %p360 = scmp.eq.s32.totalorder %s40, 0
    %p361 = por %p359, %p360
    %s363 = sadd.s32 %s362, 1
    %p366 = scmp.eq.s32.totalorder %s34, 1
    %p367 = scmp.ne.s32.totalorder %s362, %s364
    %p368 = scmp.eq.s32.totalorder %s34, 0
    %p369 = por %p367, %p368
    %p370 = scmp.ne.s32.totalorder %s362, %s364
    %p371 = scmp.eq.s32.totalorder %s39, 1
    %p372 = por %p370, %p371
    %p373 = scmp.ne.s32.totalorder %s364, %s365
    %p374 = scmp.eq.s32.totalorder %s39, 0
    %p375 = por %p373, %p374
    %p376 = scmp.ne.s32.totalorder %s364, %s365
    %p377 = scmp.eq.s32.totalorder %s40, 1
    %p378 = por %p376, %p377
    %p380 = scmp.ne.s32.totalorder %s365, %s379
    %p381 = scmp.eq.s32.totalorder %s40, 0
    %p382 = por %p380, %p381
    %s384 = sadd.s32 %s383, 1
    %p387 = scmp.eq.s32.totalorder %s34, 1
    %p388 = scmp.ne.s32.totalorder %s383, %s385
    %p389 = scmp.eq.s32.totalorder %s34, 0
    %p390 = por %p388, %p389
    %p391 = scmp.ne.s32.totalorder %s383, %s385
    %p392 = scmp.eq.s32.totalorder %s39, 1
    %p393 = por %p391, %p392
    %p394 = scmp.ne.s32.totalorder %s385, %s386
    %p395 = scmp.eq.s32.totalorder %s39, 0
    %p396 = por %p394, %p395
    %p397 = scmp.ne.s32.totalorder %s385, %s386
    %p398 = scmp.eq.s32.totalorder %s40, 1
    %p399 = por %p397, %p398
    %p401 = scmp.ne.s32.totalorder %s386, %s400
    %p402 = scmp.eq.s32.totalorder %s40, 0
    %p403 = por %p401, %p402
    %s405 = sadd.s32 %s404, 1
    %p408 = scmp.eq.s32.totalorder %s34, 1
    %p409 = scmp.ne.s32.totalorder %s404, %s406
    %p410 = scmp.eq.s32.totalorder %s34, 0
    %p411 = por %p409, %p410
    %p412 = scmp.ne.s32.totalorder %s404, %s406
    %p413 = scmp.eq.s32.totalorder %s39, 1
    %p414 = por %p412, %p413
    %p415 = scmp.ne.s32.totalorder %s406, %s407
    %p416 = scmp.eq.s32.totalorder %s39, 0
    %p417 = por %p415, %p416
    %p418 = scmp.ne.s32.totalorder %s406, %s407
    %p419 = scmp.eq.s32.totalorder %s40, 1
    %p420 = por %p418, %p419
    %p422 = scmp.ne.s32.totalorder %s407, %s421
    %p423 = scmp.eq.s32.totalorder %s40, 0
    %p424 = por %p422, %p423
    %s426 = sadd.s32 %s425, 1
    %p429 = scmp.eq.s32.totalorder %s34, 1
    %p430 = scmp.ne.s32.totalorder %s425, %s427
    %p431 = scmp.eq.s32.totalorder %s34, 0
    %p432 = por %p430, %p431
    %p433 = scmp.ne.s32.totalorder %s425, %s427
    %p434 = scmp.eq.s32.totalorder %s39, 1
    %p435 = por %p433, %p434
    %p436 = scmp.ne.s32.totalorder %s427, %s428
    %p437 = scmp.eq.s32.totalorder %s39, 0
    %p438 = por %p436, %p437
    %p439 = scmp.ne.s32.totalorder %s427, %s428
    %p440 = scmp.eq.s32.totalorder %s40, 1
    %p441 = por %p439, %p440
    %p443 = scmp.ne.s32.totalorder %s428, %s442
    %p444 = scmp.eq.s32.totalorder %s40, 0
    %p445 = por %p443, %p444
    %s447 = sadd.s32 %s446, 1
    %p450 = scmp.eq.s32.totalorder %s34, 1
    %p451 = scmp.ne.s32.totalorder %s446, %s448
    %p452 = scmp.eq.s32.totalorder %s34, 0
    %p453 = por %p451, %p452
    %p454 = scmp.ne.s32.totalorder %s446, %s448
    %p455 = scmp.eq.s32.totalorder %s39, 1
    %p456 = por %p454, %p455
    %p457 = scmp.ne.s32.totalorder %s448, %s449
    %p458 = scmp.eq.s32.totalorder %s39, 0
    %p459 = por %p457, %p458
    %p460 = scmp.ne.s32.totalorder %s448, %s449
    %p461 = scmp.eq.s32.totalorder %s40, 1
    %p462 = por %p460, %p461
    %p464 = scmp.ne.s32.totalorder %s449, %s463
    %p465 = scmp.eq.s32.totalorder %s40, 0
    %p466 = por %p464, %p465
    %s468 = sadd.s32 %s467, 1
    %p471 = scmp.eq.s32.totalorder %s34, 1
    %p472 = scmp.ne.s32.totalorder %s467, %s469
    %p473 = scmp.eq.s32.totalorder %s34, 0
    %p474 = por %p472, %p473
    %p475 = scmp.ne.s32.totalorder %s467, %s469
    %p476 = scmp.eq.s32.totalorder %s39, 1
    %p477 = por %p475, %p476
    %p478 = scmp.ne.s32.totalorder %s469, %s470
    %p479 = scmp.eq.s32.totalorder %s39, 0
    %p480 = por %p478, %p479
    %p481 = scmp.ne.s32.totalorder %s469, %s470
    %p482 = scmp.eq.s32.totalorder %s40, 1
    %p483 = por %p481, %p482
    %p485 = scmp.ne.s32.totalorder %s470, %s484
    %p486 = scmp.eq.s32.totalorder %s40, 0
    %p487 = por %p485, %p486
    %s489 = sadd.s32 %s488, 1
    %p492 = scmp.eq.s32.totalorder %s34, 1
    %p493 = scmp.ne.s32.totalorder %s488, %s490
    %p494 = scmp.eq.s32.totalorder %s34, 0
    %p495 = por %p493, %p494
    %p496 = scmp.ne.s32.totalorder %s488, %s490
    %p497 = scmp.eq.s32.totalorder %s39, 1
    %p498 = por %p496, %p497
    %p499 = scmp.ne.s32.totalorder %s490, %s491
    %p500 = scmp.eq.s32.totalorder %s39, 0
    %p501 = por %p499, %p500
    %p502 = scmp.ne.s32.totalorder %s490, %s491
    %p503 = scmp.eq.s32.totalorder %s40, 1
    %p504 = por %p502, %p503
    %p506 = scmp.ne.s32.totalorder %s491, %s505
    %p507 = scmp.eq.s32.totalorder %s40, 0
    %p508 = por %p506, %p507
    %s510 = sadd.s32 %s509, 1
    %p513 = scmp.eq.s32.totalorder %s34, 1
    %p514 = scmp.ne.s32.totalorder %s509, %s511
    %p515 = scmp.eq.s32.totalorder %s34, 0
    %p516 = por %p514, %p515
    %p517 = scmp.ne.s32.totalorder %s509, %s511
    %p518 = scmp.eq.s32.totalorder %s39, 1
    %p519 = por %p517, %p518
    %p520 = scmp.ne.s32.totalorder %s511, %s512
    %p521 = scmp.eq.s32.totalorder %s39, 0
    %p522 = por %p520, %p521
    %p523 = scmp.ne.s32.totalorder %s511, %s512
    %p524 = scmp.eq.s32.totalorder %s40, 1
    %p525 = por %p523, %p524
    %p527 = scmp.ne.s32.totalorder %s512, %s526
    %p528 = scmp.eq.s32.totalorder %s40, 0
    %p529 = por %p527, %p528
    %s531 = sadd.s32 %s530, 1
    %p534 = scmp.eq.s32.totalorder %s34, 1
    %p535 = scmp.ne.s32.totalorder %s530, %s532
    %p536 = scmp.eq.s32.totalorder %s34, 0
    %p537 = por %p535, %p536
    %p538 = scmp.ne.s32.totalorder %s530, %s532
    %p539 = scmp.eq.s32.totalorder %s39, 1
    %p540 = por %p538, %p539
    %p541 = scmp.ne.s32.totalorder %s532, %s533
    %p542 = scmp.eq.s32.totalorder %s39, 0
    %p543 = por %p541, %p542
    %p544 = scmp.ne.s32.totalorder %s532, %s533
    %p545 = scmp.eq.s32.totalorder %s40, 1
    %p546 = por %p544, %p545
    %p548 = scmp.ne.s32.totalorder %s533, %s547
    %p549 = scmp.eq.s32.totalorder %s40, 0
    %p550 = por %p548, %p549
    %s552 = sadd.s32 %s551, 1
    %p555 = scmp.eq.s32.totalorder %s34, 1
    %p556 = scmp.ne.s32.totalorder %s551, %s553
    %p557 = scmp.eq.s32.totalorder %s34, 0
    %p558 = por %p556, %p557
    %p559 = scmp.ne.s32.totalorder %s551, %s553
    %p560 = scmp.eq.s32.totalorder %s39, 1
    %p561 = por %p559, %p560
    %p562 = scmp.ne.s32.totalorder %s553, %s554
    %p563 = scmp.eq.s32.totalorder %s39, 0
    %p564 = por %p562, %p563
    %p565 = scmp.ne.s32.totalorder %s553, %s554
    %p566 = scmp.eq.s32.totalorder %s40, 1
    %p567 = por %p565, %p566
    %p569 = scmp.ne.s32.totalorder %s554, %s568
    %p570 = scmp.eq.s32.totalorder %s40, 0
    %p571 = por %p569, %p570
    %s573 = sadd.s32 %s572, 1
    %p576 = scmp.eq.s32.totalorder %s34, 1
    %p577 = scmp.ne.s32.totalorder %s572, %s574
    %p578 = scmp.eq.s32.totalorder %s34, 0
    %p579 = por %p577, %p578
    %p580 = scmp.ne.s32.totalorder %s572, %s574
    %p581 = scmp.eq.s32.totalorder %s39, 1
    %p582 = por %p580, %p581
    %p583 = scmp.ne.s32.totalorder %s574, %s575
    %p584 = scmp.eq.s32.totalorder %s39, 0
    %p585 = por %p583, %p584
    %p586 = scmp.ne.s32.totalorder %s574, %s575
    %p587 = scmp.eq.s32.totalorder %s40, 1
    %p588 = por %p586, %p587
    %p590 = scmp.ne.s32.totalorder %s575, %s589
    %p591 = scmp.eq.s32.totalorder %s40, 0
    %p592 = por %p590, %p591
    %s594 = sadd.s32 %s593, 1
    %p597 = scmp.eq.s32.totalorder %s34, 1
    %p598 = scmp.ne.s32.totalorder %s593, %s595
    %p599 = scmp.eq.s32.totalorder %s34, 0
    %p600 = por %p598, %p599
    %p601 = scmp.ne.s32.totalorder %s593, %s595
    %p602 = scmp.eq.s32.totalorder %s39, 1
    %p603 = por %p601, %p602
    %p604 = scmp.ne.s32.totalorder %s595, %s596
    %p605 = scmp.eq.s32.totalorder %s39, 0
    %p606 = por %p604, %p605
    %p607 = scmp.ne.s32.totalorder %s595, %s596
    %p608 = scmp.eq.s32.totalorder %s40, 1
    %p609 = por %p607, %p608
    %p611 = scmp.ne.s32.totalorder %s596, %s610
    %p612 = scmp.eq.s32.totalorder %s40, 0
    %p613 = por %p611, %p612
    %s615 = sadd.s32 %s614, 1
    %p618 = scmp.eq.s32.totalorder %s34, 1
    %p619 = scmp.ne.s32.totalorder %s614, %s616
    %p620 = scmp.eq.s32.totalorder %s34, 0
    %p621 = por %p619, %p620
    %p622 = scmp.ne.s32.totalorder %s614, %s616
    %p623 = scmp.eq.s32.totalorder %s39, 1
    %p624 = por %p622, %p623
    %p625 = scmp.ne.s32.totalorder %s616, %s617
    %p626 = scmp.eq.s32.totalorder %s39, 0
    %p627 = por %p625, %p626
    %p628 = scmp.ne.s32.totalorder %s616, %s617
    %p629 = scmp.eq.s32.totalorder %s40, 1
    %p630 = por %p628, %p629
    %p632 = scmp.ne.s32.totalorder %s617, %s631
    %p633 = scmp.eq.s32.totalorder %s40, 0
    %p634 = por %p632, %p633
    %s635 = ssub.s32 %s34, %s41
    %p636 = scmp.eq.s32.totalorder %s635, 0
    %s638 = sadd.s32 %s637, 1
    %s639 = scalar_select %p636, %s637, %s638
    %p642 = pneg %p636
    %p643 = scmp.eq.s32.totalorder %s34, 1
    %p644 = por %p642, %p643
    %p645 = scmp.ne.s32.totalorder %s637, %s640
    %p646 = scmp.eq.s32.totalorder %s34, 0
    %p647 = por %p645, %p646
    %p648 = scmp.ne.s32.totalorder %s637, %s640
    %p649 = scmp.eq.s32.totalorder %s39, 1
    %p650 = por %p648, %p649
    %p651 = scmp.ne.s32.totalorder %s640, %s641
    %p652 = scmp.eq.s32.totalorder %s39, 0
    %p653 = por %p651, %p652
    %p654 = scmp.ne.s32.totalorder %s640, %s641
    %p655 = scmp.eq.s32.totalorder %s40, 1
    %p656 = por %p654, %p655
    %p658 = scmp.ne.s32.totalorder %s641, %s657
    %p659 = scmp.eq.s32.totalorder %s40, 0
    %p660 = por %p658, %p659
    %p661 = scmp.le.s32.totalorder 1, %s34
    %p662 = scmp.lt.s32.totalorder %s34, 3
    %p663 = pnand %p661, %p662
    %p664 = pneg %p663
    // Predicated region
    $region9: #{lenet_autoencoder_forward.1} parent=5 // pred_check
      _
    $region10: #{lenet_autoencoder_forward.1} parent=5 // pred_check_branch
      %666 = sbr.rel (%p663) target = $region12
    $region11: #{lenet_autoencoder_forward.1} parent=5 // pred_region
      %s667 = ssub.s32 %s34, 1
      // Predicated region
      $region13: #{lenet_autoencoder_forward.1} parent=11 // pred_check
        %p668 = pneg %p81
      $region14: #{lenet_autoencoder_forward.1} parent=11 // pred_check_branch
        %670 = sbr.rel (%p668) target = $region16
      $region15: #{lenet_autoencoder_forward.1} parent=11 // pred_region
        _
      $region16: #{lenet_autoencoder_forward.1} parent=11 // pred_fallthru
        _
      // Predicated region
      $region17: #{lenet_autoencoder_forward.1} parent=11 // pred_check
        %p671 = pneg %p102
      $region18: #{lenet_autoencoder_forward.1} parent=11 // pred_check_branch
        %673 = sbr.rel (%p671) target = $region20
      $region19: #{lenet_autoencoder_forward.1} parent=11 // pred_region
        _
      $region20: #{lenet_autoencoder_forward.1} parent=11 // pred_fallthru
        _
      // Predicated region
      $region21: #{lenet_autoencoder_forward.1} parent=11 // pred_check
        %p674 = pneg %p123
      $region22: #{lenet_autoencoder_forward.1} parent=11 // pred_check_branch
        %676 = sbr.rel (%p674) target = $region24
      $region23: #{lenet_autoencoder_forward.1} parent=11 // pred_region
        _
      $region24: #{lenet_autoencoder_forward.1} parent=11 // pred_fallthru
        _
      // Predicated region
      $region25: #{lenet_autoencoder_forward.1} parent=11 // pred_check
        %p677 = pneg %p144
      $region26: #{lenet_autoencoder_forward.1} parent=11 // pred_check_branch
        %679 = sbr.rel (%p677) target = $region28
      $region27: #{lenet_autoencoder_forward.1} parent=11 // pred_region
        _
      $region28: #{lenet_autoencoder_forward.1} parent=11 // pred_fallthru
        _
      // Predicated region
      $region29: #{lenet_autoencoder_forward.1} parent=11 // pred_check
        %p680 = pneg %p165
      $region30: #{lenet_autoencoder_forward.1} parent=11 // pred_check_branch
        %682 = sbr.rel (%p680) target = $region32
      $region31: #{lenet_autoencoder_forward.1} parent=11 // pred_region
        _
      $region32: #{lenet_autoencoder_forward.1} parent=11 // pred_fallthru
        _
      // Predicated region
      $region33: #{lenet_autoencoder_forward.1} parent=11 // pred_check
        %p683 = pneg %p186
      $region34: #{lenet_autoencoder_forward.1} parent=11 // pred_check_branch
        %685 = sbr.rel (%p683) target = $region36
      $region35: #{lenet_autoencoder_forward.1} parent=11 // pred_region
        _
      $region36: #{lenet_autoencoder_forward.1} parent=11 // pred_fallthru
        _
      // Predicated region
      $region37: #{lenet_autoencoder_forward.1} parent=11 // pred_check
        %p686 = pneg %p207
      $region38: #{lenet_autoencoder_forward.1} parent=11 // pred_check_branch
        %688 = sbr.rel (%p686) target = $region40
      $region39: #{lenet_autoencoder_forward.1} parent=11 // pred_region
        _
      $region40: #{lenet_autoencoder_forward.1} parent=11 // pred_fallthru
        _
      // Predicated region
      $region41: #{lenet_autoencoder_forward.1} parent=11 // pred_check
        %p689 = pneg %p228
      $region42: #{lenet_autoencoder_forward.1} parent=11 // pred_check_branch
        %691 = sbr.rel (%p689) target = $region44
      $region43: #{lenet_autoencoder_forward.1} parent=11 // pred_region
        _
      $region44: #{lenet_autoencoder_forward.1} parent=11 // pred_fallthru
        _
      // Predicated region
      $region45: #{lenet_autoencoder_forward.1} parent=11 // pred_check
        %p692 = pneg %p249
      $region46: #{lenet_autoencoder_forward.1} parent=11 // pred_check_branch
        %694 = sbr.rel (%p692) target = $region48
      $region47: #{lenet_autoencoder_forward.1} parent=11 // pred_region
        _
      $region48: #{lenet_autoencoder_forward.1} parent=11 // pred_fallthru
        _
      // Predicated region
      $region49: #{lenet_autoencoder_forward.1} parent=11 // pred_check
        %p695 = pneg %p270
      $region50: #{lenet_autoencoder_forward.1} parent=11 // pred_check_branch
        %697 = sbr.rel (%p695) target = $region52
      $region51: #{lenet_autoencoder_forward.1} parent=11 // pred_region
        _
      $region52: #{lenet_autoencoder_forward.1} parent=11 // pred_fallthru
        _
      // Predicated region
      $region53: #{lenet_autoencoder_forward.1} parent=11 // pred_check
        %p698 = pneg %p291
      $region54: #{lenet_autoencoder_forward.1} parent=11 // pred_check_branch
        %700 = sbr.rel (%p698) target = $region56
      $region55: #{lenet_autoencoder_forward.1} parent=11 // pred_region
        _
      $region56: #{lenet_autoencoder_forward.1} parent=11 // pred_fallthru
        _
      // Predicated region
      $region57: #{lenet_autoencoder_forward.1} parent=11 // pred_check
        %p701 = pneg %p312
      $region58: #{lenet_autoencoder_forward.1} parent=11 // pred_check_branch
        %703 = sbr.rel (%p701) target = $region60
      $region59: #{lenet_autoencoder_forward.1} parent=11 // pred_region
        _
      $region60: #{lenet_autoencoder_forward.1} parent=11 // pred_fallthru
        _
      // Predicated region
      $region61: #{lenet_autoencoder_forward.1} parent=11 // pred_check
        %p704 = pneg %p333
      $region62: #{lenet_autoencoder_forward.1} parent=11 // pred_check_branch
        %706 = sbr.rel (%p704) target = $region64
      $region63: #{lenet_autoencoder_forward.1} parent=11 // pred_region
        _
      $region64: #{lenet_autoencoder_forward.1} parent=11 // pred_fallthru
        _
      // Predicated region
      $region65: #{lenet_autoencoder_forward.1} parent=11 // pred_check
        %p707 = pneg %p354
      $region66: #{lenet_autoencoder_forward.1} parent=11 // pred_check_branch
        %709 = sbr.rel (%p707) target = $region68
      $region67: #{lenet_autoencoder_forward.1} parent=11 // pred_region
        _
      $region68: #{lenet_autoencoder_forward.1} parent=11 // pred_fallthru
        _
      // Predicated region
      $region69: #{lenet_autoencoder_forward.1} parent=11 // pred_check
        %p710 = pneg %p375
      $region70: #{lenet_autoencoder_forward.1} parent=11 // pred_check_branch
        %712 = sbr.rel (%p710) target = $region72
      $region71: #{lenet_autoencoder_forward.1} parent=11 // pred_region
        _
      $region72: #{lenet_autoencoder_forward.1} parent=11 // pred_fallthru
        _
      // Predicated region
      $region73: #{lenet_autoencoder_forward.1} parent=11 // pred_check
        %p713 = pneg %p396
      $region74: #{lenet_autoencoder_forward.1} parent=11 // pred_check_branch
        %715 = sbr.rel (%p713) target = $region76
      $region75: #{lenet_autoencoder_forward.1} parent=11 // pred_region
        _
      $region76: #{lenet_autoencoder_forward.1} parent=11 // pred_fallthru
        _
      // Predicated region
      $region77: #{lenet_autoencoder_forward.1} parent=11 // pred_check
        %p716 = pneg %p417
      $region78: #{lenet_autoencoder_forward.1} parent=11 // pred_check_branch
        %718 = sbr.rel (%p716) target = $region80
      $region79: #{lenet_autoencoder_forward.1} parent=11 // pred_region
        _
      $region80: #{lenet_autoencoder_forward.1} parent=11 // pred_fallthru
        _
      // Predicated region
      $region81: #{lenet_autoencoder_forward.1} parent=11 // pred_check
        %p719 = pneg %p438
      $region82: #{lenet_autoencoder_forward.1} parent=11 // pred_check_branch
        %721 = sbr.rel (%p719) target = $region84
      $region83: #{lenet_autoencoder_forward.1} parent=11 // pred_region
        _
      $region84: #{lenet_autoencoder_forward.1} parent=11 // pred_fallthru
        _
      // Predicated region
      $region85: #{lenet_autoencoder_forward.1} parent=11 // pred_check
        %p722 = pneg %p459
      $region86: #{lenet_autoencoder_forward.1} parent=11 // pred_check_branch
        %724 = sbr.rel (%p722) target = $region88
      $region87: #{lenet_autoencoder_forward.1} parent=11 // pred_region
        _
      $region88: #{lenet_autoencoder_forward.1} parent=11 // pred_fallthru
        _
      // Predicated region
      $region89: #{lenet_autoencoder_forward.1} parent=11 // pred_check
        %p725 = pneg %p480
      $region90: #{lenet_autoencoder_forward.1} parent=11 // pred_check_branch
        %727 = sbr.rel (%p725) target = $region92
      $region91: #{lenet_autoencoder_forward.1} parent=11 // pred_region
        _
      $region92: #{lenet_autoencoder_forward.1} parent=11 // pred_fallthru
        _
      // Predicated region
      $region93: #{lenet_autoencoder_forward.1} parent=11 // pred_check
        %p728 = pneg %p501
      $region94: #{lenet_autoencoder_forward.1} parent=11 // pred_check_branch
        %730 = sbr.rel (%p728) target = $region96
      $region95: #{lenet_autoencoder_forward.1} parent=11 // pred_region
        _
      $region96: #{lenet_autoencoder_forward.1} parent=11 // pred_fallthru
        _
      // Predicated region
      $region97: #{lenet_autoencoder_forward.1} parent=11 // pred_check
        %p731 = pneg %p522
      $region98: #{lenet_autoencoder_forward.1} parent=11 // pred_check_branch
        %733 = sbr.rel (%p731) target = $region100
      $region99: #{lenet_autoencoder_forward.1} parent=11 // pred_region
        _
      $region100: #{lenet_autoencoder_forward.1} parent=11 // pred_fallthru
        _
      // Predicated region
      $region101: #{lenet_autoencoder_forward.1} parent=11 // pred_check
        %p734 = pneg %p543
      $region102: #{lenet_autoencoder_forward.1} parent=11 // pred_check_branch
        %736 = sbr.rel (%p734) target = $region104
      $region103: #{lenet_autoencoder_forward.1} parent=11 // pred_region
        _
      $region104: #{lenet_autoencoder_forward.1} parent=11 // pred_fallthru
        _
      // Predicated region
      $region105: #{lenet_autoencoder_forward.1} parent=11 // pred_check
        %p737 = pneg %p564
      $region106: #{lenet_autoencoder_forward.1} parent=11 // pred_check_branch
        %739 = sbr.rel (%p737) target = $region108
      $region107: #{lenet_autoencoder_forward.1} parent=11 // pred_region
        _
      $region108: #{lenet_autoencoder_forward.1} parent=11 // pred_fallthru
        _
      // Predicated region
      $region109: #{lenet_autoencoder_forward.1} parent=11 // pred_check
        %p740 = pneg %p585
      $region110: #{lenet_autoencoder_forward.1} parent=11 // pred_check_branch
        %742 = sbr.rel (%p740) target = $region112
      $region111: #{lenet_autoencoder_forward.1} parent=11 // pred_region
        _
      $region112: #{lenet_autoencoder_forward.1} parent=11 // pred_fallthru
        _
      // Predicated region
      $region113: #{lenet_autoencoder_forward.1} parent=11 // pred_check
        %p743 = pneg %p606
      $region114: #{lenet_autoencoder_forward.1} parent=11 // pred_check_branch
        %745 = sbr.rel (%p743) target = $region116
      $region115: #{lenet_autoencoder_forward.1} parent=11 // pred_region
        _
      $region116: #{lenet_autoencoder_forward.1} parent=11 // pred_fallthru
        _
      // Predicated region
      $region117: #{lenet_autoencoder_forward.1} parent=11 // pred_check
        %p746 = pneg %p627
      $region118: #{lenet_autoencoder_forward.1} parent=11 // pred_check_branch
        %748 = sbr.rel (%p746) target = $region120
      $region119: #{lenet_autoencoder_forward.1} parent=11 // pred_region
        _
      $region120: #{lenet_autoencoder_forward.1} parent=11 // pred_fallthru
        _
    $region12: #{lenet_autoencoder_forward.1} parent=5 // pred_fallthru
      _
    %p749 = scmp.lt.s32.totalorder %s34, 2
    // Predicated region
    $region121: #{lenet_autoencoder_forward.1} parent=5 // pred_check
      %p750 = pneg %p749
    $region122: #{lenet_autoencoder_forward.1} parent=5 // pred_check_branch
      %752 = sbr.rel (%p750) target = $region124
    $region123: #{lenet_autoencoder_forward.1} parent=5 // pred_region
      // Predicated region
      $region125: #{lenet_autoencoder_forward.1} parent=123 // pred_check
        %p753 = pneg %p54
      $region126: #{lenet_autoencoder_forward.1} parent=123 // pred_check_branch
        %755 = sbr.rel (%p753) target = $region128
      $region127: #{lenet_autoencoder_forward.1} parent=123 // pred_region
        %p756 = scmp.lt.s32.totalorder %s34, 1
        %s757 = scalar_select %p756, %s34, 1
        %s758 = smul.addr %s757, 4
        %s759 = smul.addr %s758, 8
        %s760 = scalar_lea.vmem %s0, %s759
      $region128: #{lenet_autoencoder_forward.1} parent=123 // pred_fallthru
        _
    $region124: #{lenet_autoencoder_forward.1} parent=5 // pred_fallthru
      _
    %p761 = scmp.le.s32.totalorder 1, %s34
    %p762 = scmp.lt.s32.totalorder %s34, 3
    %p763 = pnand %p761, %p762
    %p764 = pneg %p763
    // Predicated region
    $region129: #{lenet_autoencoder_forward.1} parent=5 // pred_check
      _
    $region130: #{lenet_autoencoder_forward.1} parent=5 // pred_check_branch
      %766 = sbr.rel (%p763) target = $region132
    $region131: #{lenet_autoencoder_forward.1} parent=5 // pred_region
      %s767 = ssub.s32 %s34, 1
      %p768 = scmp.lt.s32.totalorder %s39, 1
      %s769 = scalar_select %p768, %s39, 1
      %s770 = smul.addr %s769, 4
      %s771 = smul.addr %s770, 8
      %s772 = scalar_lea.vmem %s0, %s771
      %p773 = pneg %p60
      %p774 = pneg %p57
      %p775 = pneg %p81
      %p776 = pneg %p78
      %p777 = pneg %p102
      %p778 = pneg %p99
      %p779 = pneg %p123
      %p780 = pneg %p120
      %p781 = pneg %p144
      %p782 = pneg %p141
      %p783 = pneg %p165
      %p784 = pneg %p162
      %p785 = pneg %p186
      %p786 = pneg %p183
      %p787 = pneg %p207
      %p788 = pneg %p204
      %p789 = pneg %p228
      %p790 = pneg %p225
      %p791 = pneg %p249
      %p792 = pneg %p246
      %p793 = pneg %p270
      %p794 = pneg %p267
      %p795 = pneg %p291
      %p796 = pneg %p288
      %p797 = pneg %p312
      %p798 = pneg %p309
      %p799 = pneg %p333
      %p800 = pneg %p330
      %p801 = pneg %p354
      %p802 = pneg %p351
      %p803 = pneg %p375
      %p804 = pneg %p372
      %p805 = pneg %p396
      %p806 = pneg %p393
      %p807 = pneg %p417
      %p808 = pneg %p414
      %p809 = pneg %p438
      %p810 = pneg %p435
      %p811 = pneg %p459
      %p812 = pneg %p456
      %p813 = pneg %p480
      %p814 = pneg %p477
      %p815 = pneg %p501
      %p816 = pneg %p498
      %p817 = pneg %p522
      %p818 = pneg %p519
      %p819 = pneg %p543
      %p820 = pneg %p540
      %p821 = pneg %p564
      %p822 = pneg %p561
      %p823 = pneg %p585
      %p824 = pneg %p582
      %p825 = pneg %p606
      %p826 = pneg %p603
      %p827 = pneg %p627
      %p828 = pneg %p624
      %p829 = pneg %p653
      %p830 = pneg %p650
      %p831 = scmp.lt.s32.totalorder %s39, 1
      %s832 = scalar_select %p831, %s39, 1
      %s833 = smul.addr %s832, 4
      %s834 = smul.addr %s833, 8
      %s835 = scalar_lea.vmem %s28, %s834
      %p836 = scmp.lt.s32.totalorder %s39, 1
      %s837 = scalar_select %p836, %s39, 1
      %s838 = smul.addr %s837, 4
      %s839 = smul.addr %s838, 8
      %s840 = scalar_lea.vmem %s0, %s839
      %p841 = scmp.lt.s32.totalorder %s39, 1
      %s842 = scalar_select %p841, %s39, 1
      %s843 = smul.addr %s842, 4
      %s844 = smul.addr %s843, 8
      %s845 = scalar_lea.vmem %s28, %s844
      %v846 = vld [vmem:[%s840] sm:$0xff]
      %v847 = vld [vmem:[%s840 + $0x8] sm:$0xff]
      %v848 = vld [vmem:[%s840 + $0x10] sm:$0xff]
      %v849 = vld [vmem:[%s840 + $0x18] sm:$0xff]
      %v850 = vld [vmem:[%s1] sm:$0xff]
      %v851 = vld [vmem:[%s1 + $0x8] sm:$0xff]
      %v852 = vld [vmem:[%s1 + $0x10] sm:$0xff]
      %v853 = vld [vmem:[%s1 + $0x18] sm:$0xff]
      %v854 = vld [vmem:[%s1 + $0x20] sm:$0xff]
      %v855 = vld [vmem:[%s1 + $0x28] sm:$0xff]
      %v856 = vld [vmem:[%s1 + $0x30] sm:$0xff]
      %v857 = vld [vmem:[%s1 + $0x38] sm:$0xff]
      %v858 = vld [vmem:[%s1 + $0x40] sm:$0xff]
      %v859 = vld [vmem:[%s1 + $0x48] sm:$0xff]
      %v860 = vld [vmem:[%s1 + $0x50] sm:$0xff]
      %v861 = vld [vmem:[%s1 + $0x58] sm:$0xff]
      %v862 = vld [vmem:[%s1 + $0x60] sm:$0xff]
      %v863 = vld [vmem:[%s1 + $0x68] sm:$0xff]
      %v864 = vld [vmem:[%s1 + $0x70] sm:$0xff]
      %v865 = vld [vmem:[%s1 + $0x78] sm:$0xff]
      %v866 = vld [vmem:[%s1 + $0x80] sm:$0xff]
      %v867 = vld [vmem:[%s1 + $0x88] sm:$0xff]
      %v868 = vld [vmem:[%s1 + $0x90] sm:$0xff]
      %v869 = vld [vmem:[%s1 + $0x98] sm:$0xff]
      %v870 = vld [vmem:[%s1 + $0xa0] sm:$0xff]
      %v871 = vld [vmem:[%s1 + $0xa8] sm:$0xff]
      %v872 = vld [vmem:[%s1 + $0xb0] sm:$0x3]
      %v873 = vld [vmem:[%s1 + $0xb8] sm:$0x3]
      %s874 = scalar_lea.vmem %s1, 192
      %v875 = vld [vmem:[%s874] sm:$0xff]
      %v876 = vld [vmem:[%s874 + $0x8] sm:$0xff]
      %v877 = vld [vmem:[%s874 + $0x10] sm:$0xff]
      %v878 = vld [vmem:[%s874 + $0x18] sm:$0xff]
      %v879 = vld [vmem:[%s874 + $0x20] sm:$0xff]
      %v880 = vld [vmem:[%s874 + $0x28] sm:$0xff]
      %v881 = vld [vmem:[%s874 + $0x30] sm:$0xff]
      %v882 = vld [vmem:[%s874 + $0x38] sm:$0xff]
      %v883 = vld [vmem:[%s874 + $0x40] sm:$0xff]
      %v884 = vld [vmem:[%s874 + $0x48] sm:$0xff]
      %v885 = vld [vmem:[%s874 + $0x50] sm:$0xff]
      %v886 = vld [vmem:[%s874 + $0x58] sm:$0xff]
      %v887 = vld [vmem:[%s874 + $0x60] sm:$0xff]
      %v888 = vld [vmem:[%s874 + $0x68] sm:$0xff]
      %v889 = vld [vmem:[%s874 + $0x70] sm:$0xff]
      %v890 = vld [vmem:[%s874 + $0x78] sm:$0xff]
      %v891 = vld [vmem:[%s874 + $0x80] sm:$0xff]
      %v892 = vld [vmem:[%s874 + $0x88] sm:$0xff]
      %v893 = vld [vmem:[%s874 + $0x90] sm:$0xff]
      %v894 = vld [vmem:[%s874 + $0x98] sm:$0xff]
      %v895 = vld [vmem:[%s874 + $0xa0] sm:$0xff]
      %v896 = vld [vmem:[%s874 + $0xa8] sm:$0xff]
      %v897 = vld [vmem:[%s874 + $0xb0] sm:$0x3]
      %v898 = vld [vmem:[%s874 + $0xb8] sm:$0x3]
      %903 = vrot.lane.b32.xlu0 %v846, 125
      %v904 = vpop.permute.xlu0 %903
      %905 = vrot.lane.b32.xlu0 %v847, 125
      %v906 = vpop.permute.xlu0 %905
      %907 = vrot.lane.b32.xlu0 %v848, 125
      %v908 = vpop.permute.xlu0 %907
      %909 = vrot.lane.b32.xlu0 %v849, 125
      %v910 = vpop.permute.xlu0 %909
      %vm911 = vcmask 736256
      %v912 = vsel %vm911, %v904, 0
      %v914 = vsel %vm911, %v906, 0
      %v916 = vsel %vm911, %v908, 0
      %v918 = vsel %vm911, %v910, 0
      %vm920 = vcmask 1041408
      %v922 = vsel %vm920, %v897, 0
      %v925 = vsel %vm920, %v898, 0
      %927 = vmatpush.msra.mxu0 0.0
      %928 = vmatpush.msra.mxu0 0.0
      %929 = vmatpush.msra.mxu0 0.0
      %930 = vmatpush.msra.mxu0 0.0
      %931 = vmatpush.msra.mxu0 %v922
      %932 = vmatpush.msra.mxu0 %v895
      %933 = vmatpush.msra.mxu0 %v893
      %934 = vmatpush.msra.mxu0 %v891
      %935 = vmatpush.msra.mxu0 %v889
      %936 = vmatpush.msra.mxu0 %v887
      %937 = vmatpush.msra.mxu0 %v885
      %938 = vmatpush.msra.mxu0 %v883
      %939 = vmatpush.msra.mxu0 %v881
      %940 = vmatpush.msra.mxu0 %v879
      %941 = vmatpush.msra.mxu0 %v877
      %942 = vmatpush.msra.mxu0 %v875
      %943 = vmatmul.f32.gmra.mxu0 %v912
      %v944 = vpop.f32.mrf.mxu0
      %v945 = vadd.f32 0.0, %v944
      %946 = vmatmul.f32.gmra.mxu0 %v914
      %v947 = vpop.f32.mrf.mxu0
      %v948 = vadd.f32 0.0, %v947
      %949 = vmatmul.f32.gmra.mxu0 %v916
      %v950 = vpop.f32.mrf.mxu0
      %v951 = vadd.f32 0.0, %v950
      %952 = vmatmul.f32.gmra.mxu0 %v918
      %v953 = vpop.f32.mrf.mxu0
      %v954 = vadd.f32 0.0, %v953
      %955 = vdwg.mxu0
      %956 = vmatpush.msra.mxu0 0.0
      %957 = vmatpush.msra.mxu0 0.0
      %958 = vmatpush.msra.mxu0 0.0
      %959 = vmatpush.msra.mxu0 0.0
      %960 = vmatpush.msra.mxu0 %v925
      %961 = vmatpush.msra.mxu0 %v896
      %962 = vmatpush.msra.mxu0 %v894
      %963 = vmatpush.msra.mxu0 %v892
      %964 = vmatpush.msra.mxu0 %v890
      %965 = vmatpush.msra.mxu0 %v888
      %966 = vmatpush.msra.mxu0 %v886
      %967 = vmatpush.msra.mxu0 %v884
      %968 = vmatpush.msra.mxu0 %v882
      %969 = vmatpush.msra.mxu0 %v880
      %970 = vmatpush.msra.mxu0 %v878
      %971 = vmatpush.msra.mxu0 %v876
      %972 = vmatmul.f32.gmra.mxu0 %v912
      %v973 = vpop.f32.mrf.mxu0
      %v974 = vadd.f32 0.0, %v973
      %975 = vmatmul.f32.gmra.mxu0 %v914
      %v976 = vpop.f32.mrf.mxu0
      %v977 = vadd.f32 0.0, %v976
      %978 = vmatmul.f32.gmra.mxu0 %v916
      %v979 = vpop.f32.mrf.mxu0
      %v980 = vadd.f32 0.0, %v979
      %981 = vmatmul.f32.gmra.mxu0 %v918
      %v982 = vpop.f32.mrf.mxu0
      %v983 = vadd.f32 0.0, %v982
      %984 = vdwg.mxu0
      %v985 = vsel %vm911, %v846, 0
      %v987 = vsel %vm911, %v847, 0
      %v989 = vsel %vm911, %v848, 0
      %v991 = vsel %vm911, %v849, 0
      %v994 = vsel %vm920, %v872, 0
      %v997 = vsel %vm920, %v873, 0
      %999 = vmatpush.msra.mxu0 0.0
      %1000 = vmatpush.msra.mxu0 0.0
      %1001 = vmatpush.msra.mxu0 0.0
      %1002 = vmatpush.msra.mxu0 0.0
      %1003 = vmatpush.msra.mxu0 %v994
      %1004 = vmatpush.msra.mxu0 %v870
      %1005 = vmatpush.msra.mxu0 %v868
      %1006 = vmatpush.msra.mxu0 %v866
      %1007 = vmatpush.msra.mxu0 %v864
      %1008 = vmatpush.msra.mxu0 %v862
      %1009 = vmatpush.msra.mxu0 %v860
      %1010 = vmatpush.msra.mxu0 %v858
      %1011 = vmatpush.msra.mxu0 %v856
      %1012 = vmatpush.msra.mxu0 %v854
      %1013 = vmatpush.msra.mxu0 %v852
      %1014 = vmatpush.msra.mxu0 %v850
      %1015 = vmatmul.f32.gmra.mxu0 %v985
      %v1016 = vpop.f32.mrf.mxu0
      %v1017 = vadd.f32 %v945, %v1016
      %1018 = vmatmul.f32.gmra.mxu0 %v987
      %v1019 = vpop.f32.mrf.mxu0
      %v1020 = vadd.f32 %v948, %v1019
      %1021 = vmatmul.f32.gmra.mxu0 %v989
      %v1022 = vpop.f32.mrf.mxu0
      %v1023 = vadd.f32 %v951, %v1022
      %1024 = vmatmul.f32.gmra.mxu0 %v991
      %v1025 = vpop.f32.mrf.mxu0
      %v1026 = vadd.f32 %v954, %v1025
      %1027 = vdwg.mxu0
      %1028 = vmatpush.msra.mxu0 0.0
      %1029 = vmatpush.msra.mxu0 0.0
      %1030 = vmatpush.msra.mxu0 0.0
      %1031 = vmatpush.msra.mxu0 0.0
      %1032 = vmatpush.msra.mxu0 %v997
      %1033 = vmatpush.msra.mxu0 %v871
      %1034 = vmatpush.msra.mxu0 %v869
      %1035 = vmatpush.msra.mxu0 %v867
      %1036 = vmatpush.msra.mxu0 %v865
      %1037 = vmatpush.msra.mxu0 %v863
      %1038 = vmatpush.msra.mxu0 %v861
      %1039 = vmatpush.msra.mxu0 %v859
      %1040 = vmatpush.msra.mxu0 %v857
      %1041 = vmatpush.msra.mxu0 %v855
      %1042 = vmatpush.msra.mxu0 %v853
      %1043 = vmatpush.msra.mxu0 %v851
      %1044 = vmatmul.f32.gmra.mxu0 %v985
      %v1045 = vpop.f32.mrf.mxu0
      %v1046 = vadd.f32 %v974, %v1045
      %1047 = vmatmul.f32.gmra.mxu0 %v987
      %v1048 = vpop.f32.mrf.mxu0
      %v1049 = vadd.f32 %v977, %v1048
      %1050 = vmatmul.f32.gmra.mxu0 %v989
      %v1051 = vpop.f32.mrf.mxu0
      %v1052 = vadd.f32 %v980, %v1051
      %1053 = vmatmul.f32.gmra.mxu0 %v991
      %v1054 = vpop.f32.mrf.mxu0
      %v1055 = vadd.f32 %v983, %v1054
      %1056 = vdwg.mxu0
      %s1057 = scalar_lea.vmem %s1, 384
      %v1058 = vld [vmem:[%s1057] sm:$0xff]
      %v1059 = vld [vmem:[%s1057 + $0x8] sm:$0xff]
      %v1060 = vld [vmem:[%s1057 + $0x10] sm:$0xff]
      %v1061 = vld [vmem:[%s1057 + $0x18] sm:$0xff]
      %v1062 = vld [vmem:[%s1057 + $0x20] sm:$0xff]
      %v1063 = vld [vmem:[%s1057 + $0x28] sm:$0xff]
      %v1064 = vld [vmem:[%s1057 + $0x30] sm:$0xff]
      %v1065 = vld [vmem:[%s1057 + $0x38] sm:$0xff]
      %v1066 = vld [vmem:[%s1057 + $0x40] sm:$0xff]
      %v1067 = vld [vmem:[%s1057 + $0x48] sm:$0xff]
      %v1068 = vld [vmem:[%s1057 + $0x50] sm:$0xff]
      %v1069 = vld [vmem:[%s1057 + $0x58] sm:$0xff]
      %v1070 = vld [vmem:[%s1057 + $0x60] sm:$0xff]
      %v1071 = vld [vmem:[%s1057 + $0x68] sm:$0xff]
      %v1072 = vld [vmem:[%s1057 + $0x70] sm:$0xff]
      %v1073 = vld [vmem:[%s1057 + $0x78] sm:$0xff]
      %v1074 = vld [vmem:[%s1057 + $0x80] sm:$0xff]
      %v1075 = vld [vmem:[%s1057 + $0x88] sm:$0xff]
      %v1076 = vld [vmem:[%s1057 + $0x90] sm:$0xff]
      %v1077 = vld [vmem:[%s1057 + $0x98] sm:$0xff]
      %v1078 = vld [vmem:[%s1057 + $0xa0] sm:$0xff]
      %v1079 = vld [vmem:[%s1057 + $0xa8] sm:$0xff]
      %v1080 = vld [vmem:[%s1057 + $0xb0] sm:$0x3]
      %v1081 = vld [vmem:[%s1057 + $0xb8] sm:$0x3]
      %1082 = vrot.lane.b32.xlu0 %v846, 122
      %v1083 = vpop.permute.xlu0 %1082
      %1084 = vrot.lane.b32.xlu0 %v847, 122
      %v1085 = vpop.permute.xlu0 %1084
      %1086 = vrot.lane.b32.xlu0 %v848, 122
      %v1087 = vpop.permute.xlu0 %1086
      %1088 = vrot.lane.b32.xlu0 %v849, 122
      %v1089 = vpop.permute.xlu0 %1088
      %v1090 = vsel %vm911, %v1083, 0
      %v1092 = vsel %vm911, %v1085, 0
      %v1094 = vsel %vm911, %v1087, 0
      %v1096 = vsel %vm911, %v1089, 0
      %v1099 = vsel %vm920, %v1080, 0
      %v1102 = vsel %vm920, %v1081, 0
      %1104 = vmatpush.msra.mxu0 0.0
      %1105 = vmatpush.msra.mxu0 0.0
      %1106 = vmatpush.msra.mxu0 0.0
      %1107 = vmatpush.msra.mxu0 0.0
      %1108 = vmatpush.msra.mxu0 %v1099
      %1109 = vmatpush.msra.mxu0 %v1078
      %1110 = vmatpush.msra.mxu0 %v1076
      %1111 = vmatpush.msra.mxu0 %v1074
      %1112 = vmatpush.msra.mxu0 %v1072
      %1113 = vmatpush.msra.mxu0 %v1070
      %1114 = vmatpush.msra.mxu0 %v1068
      %1115 = vmatpush.msra.mxu0 %v1066
      %1116 = vmatpush.msra.mxu0 %v1064
      %1117 = vmatpush.msra.mxu0 %v1062
      %1118 = vmatpush.msra.mxu0 %v1060
      %1119 = vmatpush.msra.mxu0 %v1058
      %1120 = vmatmul.f32.gmra.mxu0 %v1090
      %v1121 = vpop.f32.mrf.mxu0
      %v1122 = vadd.f32 0.0, %v1121
      %1123 = vmatmul.f32.gmra.mxu0 %v1092
      %v1124 = vpop.f32.mrf.mxu0
      %v1125 = vadd.f32 0.0, %v1124
      %1126 = vmatmul.f32.gmra.mxu0 %v1094
      %v1127 = vpop.f32.mrf.mxu0
      %v1128 = vadd.f32 0.0, %v1127
      %1129 = vmatmul.f32.gmra.mxu0 %v1096
      %v1130 = vpop.f32.mrf.mxu0
      %v1131 = vadd.f32 0.0, %v1130
      %1132 = vdwg.mxu0
      %1133 = vmatpush.msra.mxu0 0.0
      %1134 = vmatpush.msra.mxu0 0.0
      %1135 = vmatpush.msra.mxu0 0.0
      %1136 = vmatpush.msra.mxu0 0.0
      %1137 = vmatpush.msra.mxu0 %v1102
      %1138 = vmatpush.msra.mxu0 %v1079
      %1139 = vmatpush.msra.mxu0 %v1077
      %1140 = vmatpush.msra.mxu0 %v1075
      %1141 = vmatpush.msra.mxu0 %v1073
      %1142 = vmatpush.msra.mxu0 %v1071
      %1143 = vmatpush.msra.mxu0 %v1069
      %1144 = vmatpush.msra.mxu0 %v1067
      %1145 = vmatpush.msra.mxu0 %v1065
      %1146 = vmatpush.msra.mxu0 %v1063
      %1147 = vmatpush.msra.mxu0 %v1061
      %1148 = vmatpush.msra.mxu0 %v1059
      %1149 = vmatmul.f32.gmra.mxu0 %v1090
      %v1150 = vpop.f32.mrf.mxu0
      %v1151 = vadd.f32 0.0, %v1150
      %1152 = vmatmul.f32.gmra.mxu0 %v1092
      %v1153 = vpop.f32.mrf.mxu0
      %v1154 = vadd.f32 0.0, %v1153
      %1155 = vmatmul.f32.gmra.mxu0 %v1094
      %v1156 = vpop.f32.mrf.mxu0
      %v1157 = vadd.f32 0.0, %v1156
      %1158 = vmatmul.f32.gmra.mxu0 %v1096
      %v1159 = vpop.f32.mrf.mxu0
      %v1160 = vadd.f32 0.0, %v1159
      %1161 = vdwg.mxu0
      %v1162 = vadd.f32 %v1017, %v1122
      %v1163 = vadd.f32 %v1046, %v1151
      %v1164 = vadd.f32 %v1020, %v1125
      %v1165 = vadd.f32 %v1049, %v1154
      %v1166 = vadd.f32 %v1023, %v1128
      %v1167 = vadd.f32 %v1052, %v1157
      %v1168 = vadd.f32 %v1026, %v1131
      %v1169 = vadd.f32 %v1055, %v1160
      %s1170 = scalar_lea.vmem %s1, 576
      %v1171 = vld [vmem:[%s1170] sm:$0xff]
      %v1172 = vld [vmem:[%s1170 + $0x8] sm:$0xff]
      %v1173 = vld [vmem:[%s1170 + $0x10] sm:$0xff]
      %v1174 = vld [vmem:[%s1170 + $0x18] sm:$0xff]
      %v1175 = vld [vmem:[%s1170 + $0x20] sm:$0xff]
      %v1176 = vld [vmem:[%s1170 + $0x28] sm:$0xff]
      %v1177 = vld [vmem:[%s1170 + $0x30] sm:$0xff]
      %v1178 = vld [vmem:[%s1170 + $0x38] sm:$0xff]
      %v1179 = vld [vmem:[%s1170 + $0x40] sm:$0xff]
      %v1180 = vld [vmem:[%s1170 + $0x48] sm:$0xff]
      %v1181 = vld [vmem:[%s1170 + $0x50] sm:$0xff]
      %v1182 = vld [vmem:[%s1170 + $0x58] sm:$0xff]
      %v1183 = vld [vmem:[%s1170 + $0x60] sm:$0xff]
      %v1184 = vld [vmem:[%s1170 + $0x68] sm:$0xff]
      %v1185 = vld [vmem:[%s1170 + $0x70] sm:$0xff]
      %v1186 = vld [vmem:[%s1170 + $0x78] sm:$0xff]
      %v1187 = vld [vmem:[%s1170 + $0x80] sm:$0xff]
      %v1188 = vld [vmem:[%s1170 + $0x88] sm:$0xff]
      %v1189 = vld [vmem:[%s1170 + $0x90] sm:$0xff]
      %v1190 = vld [vmem:[%s1170 + $0x98] sm:$0xff]
      %v1191 = vld [vmem:[%s1170 + $0xa0] sm:$0xff]
      %v1192 = vld [vmem:[%s1170 + $0xa8] sm:$0xff]
      %v1193 = vld [vmem:[%s1170 + $0xb0] sm:$0x3]
      %v1194 = vld [vmem:[%s1170 + $0xb8] sm:$0x3]
      %vm1195 = vcmask 1046528
      %v1196 = vrot.slane %v846, 1
      %v1197 = vrot.slane %v847, 1
      %v1198 = vsel %vm1195, %v1196, %v1197
      %v1199 = vrot.slane %v848, 1
      %v1200 = vsel %vm1195, %v1197, %v1199
      %v1201 = vrot.slane %v849, 1
      %v1202 = vsel %vm1195, %v1199, %v1201
      %v1203 = vsel %vm911, %v1198, 0
      %v1205 = vsel %vm911, %v1200, 0
      %v1207 = vsel %vm911, %v1202, 0
      %v1209 = vsel %vm911, %v1201, 0
      %v1212 = vsel %vm920, %v1193, 0
      %v1215 = vsel %vm920, %v1194, 0
      %1217 = vmatpush.msra.mxu0 0.0
      %1218 = vmatpush.msra.mxu0 0.0
      %1219 = vmatpush.msra.mxu0 0.0
      %1220 = vmatpush.msra.mxu0 0.0
      %1221 = vmatpush.msra.mxu0 %v1212
      %1222 = vmatpush.msra.mxu0 %v1191
      %1223 = vmatpush.msra.mxu0 %v1189
      %1224 = vmatpush.msra.mxu0 %v1187
      %1225 = vmatpush.msra.mxu0 %v1185
      %1226 = vmatpush.msra.mxu0 %v1183
      %1227 = vmatpush.msra.mxu0 %v1181
      %1228 = vmatpush.msra.mxu0 %v1179
      %1229 = vmatpush.msra.mxu0 %v1177
      %1230 = vmatpush.msra.mxu0 %v1175
      %1231 = vmatpush.msra.mxu0 %v1173
      %1232 = vmatpush.msra.mxu0 %v1171
      %1233 = vmatmul.f32.gmra.mxu0 %v1203
      %v1234 = vpop.f32.mrf.mxu0
      %v1235 = vadd.f32 0.0, %v1234
      %1236 = vmatmul.f32.gmra.mxu0 %v1205
      %v1237 = vpop.f32.mrf.mxu0
      %v1238 = vadd.f32 0.0, %v1237
      %1239 = vmatmul.f32.gmra.mxu0 %v1207
      %v1240 = vpop.f32.mrf.mxu0
      %v1241 = vadd.f32 0.0, %v1240
      %1242 = vmatmul.f32.gmra.mxu0 %v1209
      %v1243 = vpop.f32.mrf.mxu0
      %v1244 = vadd.f32 0.0, %v1243
      %1245 = vdwg.mxu0
      %1246 = vmatpush.msra.mxu0 0.0
      %1247 = vmatpush.msra.mxu0 0.0
      %1248 = vmatpush.msra.mxu0 0.0
      %1249 = vmatpush.msra.mxu0 0.0
      %1250 = vmatpush.msra.mxu0 %v1215
      %1251 = vmatpush.msra.mxu0 %v1192
      %1252 = vmatpush.msra.mxu0 %v1190
      %1253 = vmatpush.msra.mxu0 %v1188
      %1254 = vmatpush.msra.mxu0 %v1186
      %1255 = vmatpush.msra.mxu0 %v1184
      %1256 = vmatpush.msra.mxu0 %v1182
      %1257 = vmatpush.msra.mxu0 %v1180
      %1258 = vmatpush.msra.mxu0 %v1178
      %1259 = vmatpush.msra.mxu0 %v1176
      %1260 = vmatpush.msra.mxu0 %v1174
      %1261 = vmatpush.msra.mxu0 %v1172
      %1262 = vmatmul.f32.gmra.mxu0 %v1203
      %v1263 = vpop.f32.mrf.mxu0
      %v1264 = vadd.f32 0.0, %v1263
      %1265 = vmatmul.f32.gmra.mxu0 %v1205
      %v1266 = vpop.f32.mrf.mxu0
      %v1267 = vadd.f32 0.0, %v1266
      %1268 = vmatmul.f32.gmra.mxu0 %v1207
      %v1269 = vpop.f32.mrf.mxu0
      %v1270 = vadd.f32 0.0, %v1269
      %1271 = vmatmul.f32.gmra.mxu0 %v1209
      %v1272 = vpop.f32.mrf.mxu0
      %v1273 = vadd.f32 0.0, %v1272
      %1274 = vdwg.mxu0
      %v1275 = vadd.f32 %v1162, %v1235
      %v1276 = vadd.f32 %v1163, %v1264
      %v1277 = vadd.f32 %v1164, %v1238
      %v1278 = vadd.f32 %v1165, %v1267
      %v1279 = vadd.f32 %v1166, %v1241
      %v1280 = vadd.f32 %v1167, %v1270
      %v1281 = vadd.f32 %v1168, %v1244
      %v1282 = vadd.f32 %v1169, %v1273
      %s1283 = scalar_lea.vmem %s1, 768
      %v1284 = vld [vmem:[%s1283] sm:$0xff]
      %v1285 = vld [vmem:[%s1283 + $0x8] sm:$0xff]
      %v1286 = vld [vmem:[%s1283 + $0x10] sm:$0xff]
      %v1287 = vld [vmem:[%s1283 + $0x18] sm:$0xff]
      %v1288 = vld [vmem:[%s1283 + $0x20] sm:$0xff]
      %v1289 = vld [vmem:[%s1283 + $0x28] sm:$0xff]
      %v1290 = vld [vmem:[%s1283 + $0x30] sm:$0xff]
      %v1291 = vld [vmem:[%s1283 + $0x38] sm:$0xff]
      %v1292 = vld [vmem:[%s1283 + $0x40] sm:$0xff]
      %v1293 = vld [vmem:[%s1283 + $0x48] sm:$0xff]
      %v1294 = vld [vmem:[%s1283 + $0x50] sm:$0xff]
      %v1295 = vld [vmem:[%s1283 + $0x58] sm:$0xff]
      %v1296 = vld [vmem:[%s1283 + $0x60] sm:$0xff]
      %v1297 = vld [vmem:[%s1283 + $0x68] sm:$0xff]
      %v1298 = vld [vmem:[%s1283 + $0x70] sm:$0xff]
      %v1299 = vld [vmem:[%s1283 + $0x78] sm:$0xff]
      %v1300 = vld [vmem:[%s1283 + $0x80] sm:$0xff]
      %v1301 = vld [vmem:[%s1283 + $0x88] sm:$0xff]
      %v1302 = vld [vmem:[%s1283 + $0x90] sm:$0xff]
      %v1303 = vld [vmem:[%s1283 + $0x98] sm:$0xff]
      %v1304 = vld [vmem:[%s1283 + $0xa0] sm:$0xff]
      %v1305 = vld [vmem:[%s1283 + $0xa8] sm:$0xff]
      %v1306 = vld [vmem:[%s1283 + $0xb0] sm:$0x3]
      %v1307 = vld [vmem:[%s1283 + $0xb8] sm:$0x3]
      %1308 = vrot.lane.b32.xlu0 %v1198, 125
      %v1309 = vpop.permute.xlu0 %1308
      %1310 = vrot.lane.b32.xlu0 %v1200, 125
      %v1311 = vpop.permute.xlu0 %1310
      %1312 = vrot.lane.b32.xlu0 %v1202, 125
      %v1313 = vpop.permute.xlu0 %1312
      %1314 = vrot.lane.b32.xlu0 %v1201, 125
      %v1315 = vpop.permute.xlu0 %1314
      %v1316 = vsel %vm911, %v1309, 0
      %v1318 = vsel %vm911, %v1311, 0
      %v1320 = vsel %vm911, %v1313, 0
      %v1322 = vsel %vm911, %v1315, 0
      %v1325 = vsel %vm920, %v1306, 0
      %v1328 = vsel %vm920, %v1307, 0
      %1330 = vmatpush.msra.mxu0 0.0
      %1331 = vmatpush.msra.mxu0 0.0
      %1332 = vmatpush.msra.mxu0 0.0
      %1333 = vmatpush.msra.mxu0 0.0
      %1334 = vmatpush.msra.mxu0 %v1325
      %1335 = vmatpush.msra.mxu0 %v1304
      %1336 = vmatpush.msra.mxu0 %v1302
      %1337 = vmatpush.msra.mxu0 %v1300
      %1338 = vmatpush.msra.mxu0 %v1298
      %1339 = vmatpush.msra.mxu0 %v1296
      %1340 = vmatpush.msra.mxu0 %v1294
      %1341 = vmatpush.msra.mxu0 %v1292
      %1342 = vmatpush.msra.mxu0 %v1290
      %1343 = vmatpush.msra.mxu0 %v1288
      %1344 = vmatpush.msra.mxu0 %v1286
      %1345 = vmatpush.msra.mxu0 %v1284
      %1346 = vmatmul.f32.gmra.mxu0 %v1316
      %v1347 = vpop.f32.mrf.mxu0
      %v1348 = vadd.f32 0.0, %v1347
      %1349 = vmatmul.f32.gmra.mxu0 %v1318
      %v1350 = vpop.f32.mrf.mxu0
      %v1351 = vadd.f32 0.0, %v1350
      %1352 = vmatmul.f32.gmra.mxu0 %v1320
      %v1353 = vpop.f32.mrf.mxu0
      %v1354 = vadd.f32 0.0, %v1353
      %1355 = vmatmul.f32.gmra.mxu0 %v1322
      %v1356 = vpop.f32.mrf.mxu0
      %v1357 = vadd.f32 0.0, %v1356
      %1358 = vdwg.mxu0
      %1359 = vmatpush.msra.mxu0 0.0
      %1360 = vmatpush.msra.mxu0 0.0
      %1361 = vmatpush.msra.mxu0 0.0
      %1362 = vmatpush.msra.mxu0 0.0
      %1363 = vmatpush.msra.mxu0 %v1328
      %1364 = vmatpush.msra.mxu0 %v1305
      %1365 = vmatpush.msra.mxu0 %v1303
      %1366 = vmatpush.msra.mxu0 %v1301
      %1367 = vmatpush.msra.mxu0 %v1299
      %1368 = vmatpush.msra.mxu0 %v1297
      %1369 = vmatpush.msra.mxu0 %v1295
      %1370 = vmatpush.msra.mxu0 %v1293
      %1371 = vmatpush.msra.mxu0 %v1291
      %1372 = vmatpush.msra.mxu0 %v1289
      %1373 = vmatpush.msra.mxu0 %v1287
      %1374 = vmatpush.msra.mxu0 %v1285
      %1375 = vmatmul.f32.gmra.mxu0 %v1316
      %v1376 = vpop.f32.mrf.mxu0
      %v1377 = vadd.f32 0.0, %v1376
      %1378 = vmatmul.f32.gmra.mxu0 %v1318
      %v1379 = vpop.f32.mrf.mxu0
      %v1380 = vadd.f32 0.0, %v1379
      %1381 = vmatmul.f32.gmra.mxu0 %v1320
      %v1382 = vpop.f32.mrf.mxu0
      %v1383 = vadd.f32 0.0, %v1382
      %1384 = vmatmul.f32.gmra.mxu0 %v1322
      %v1385 = vpop.f32.mrf.mxu0
      %v1386 = vadd.f32 0.0, %v1385
      %1387 = vdwg.mxu0
      %v1388 = vadd.f32 %v1275, %v1348
      %v1389 = vadd.f32 %v1276, %v1377
      %v1390 = vadd.f32 %v1277, %v1351
      %v1391 = vadd.f32 %v1278, %v1380
      %v1392 = vadd.f32 %v1279, %v1354
      %v1393 = vadd.f32 %v1280, %v1383
      %v1394 = vadd.f32 %v1281, %v1357
      %v1395 = vadd.f32 %v1282, %v1386
      %s1396 = scalar_lea.vmem %s1, 960
      %v1397 = vld [vmem:[%s1396] sm:$0xff]
      %v1398 = vld [vmem:[%s1396 + $0x8] sm:$0xff]
      %v1399 = vld [vmem:[%s1396 + $0x10] sm:$0xff]
      %v1400 = vld [vmem:[%s1396 + $0x18] sm:$0xff]
      %v1401 = vld [vmem:[%s1396 + $0x20] sm:$0xff]
      %v1402 = vld [vmem:[%s1396 + $0x28] sm:$0xff]
      %v1403 = vld [vmem:[%s1396 + $0x30] sm:$0xff]
      %v1404 = vld [vmem:[%s1396 + $0x38] sm:$0xff]
      %v1405 = vld [vmem:[%s1396 + $0x40] sm:$0xff]
      %v1406 = vld [vmem:[%s1396 + $0x48] sm:$0xff]
      %v1407 = vld [vmem:[%s1396 + $0x50] sm:$0xff]
      %v1408 = vld [vmem:[%s1396 + $0x58] sm:$0xff]
      %v1409 = vld [vmem:[%s1396 + $0x60] sm:$0xff]
      %v1410 = vld [vmem:[%s1396 + $0x68] sm:$0xff]
      %v1411 = vld [vmem:[%s1396 + $0x70] sm:$0xff]
      %v1412 = vld [vmem:[%s1396 + $0x78] sm:$0xff]
      %v1413 = vld [vmem:[%s1396 + $0x80] sm:$0xff]
      %v1414 = vld [vmem:[%s1396 + $0x88] sm:$0xff]
      %v1415 = vld [vmem:[%s1396 + $0x90] sm:$0xff]
      %v1416 = vld [vmem:[%s1396 + $0x98] sm:$0xff]
      %v1417 = vld [vmem:[%s1396 + $0xa0] sm:$0xff]
      %v1418 = vld [vmem:[%s1396 + $0xa8] sm:$0xff]
      %v1419 = vld [vmem:[%s1396 + $0xb0] sm:$0x3]
      %v1420 = vld [vmem:[%s1396 + $0xb8] sm:$0x3]
      %1421 = vrot.lane.b32.xlu0 %v1198, 122
      %v1422 = vpop.permute.xlu0 %1421
      %1423 = vrot.lane.b32.xlu0 %v1200, 122
      %v1424 = vpop.permute.xlu0 %1423
      %1425 = vrot.lane.b32.xlu0 %v1202, 122
      %v1426 = vpop.permute.xlu0 %1425
      %1427 = vrot.lane.b32.xlu0 %v1201, 122
      %v1428 = vpop.permute.xlu0 %1427
      %v1429 = vsel %vm911, %v1422, 0
      %v1431 = vsel %vm911, %v1424, 0
      %v1433 = vsel %vm911, %v1426, 0
      %v1435 = vsel %vm911, %v1428, 0
      %v1438 = vsel %vm920, %v1419, 0
      %v1441 = vsel %vm920, %v1420, 0
      %1443 = vmatpush.msra.mxu0 0.0
      %1444 = vmatpush.msra.mxu0 0.0
      %1445 = vmatpush.msra.mxu0 0.0
      %1446 = vmatpush.msra.mxu0 0.0
      %1447 = vmatpush.msra.mxu0 %v1438
      %1448 = vmatpush.msra.mxu0 %v1417
      %1449 = vmatpush.msra.mxu0 %v1415
      %1450 = vmatpush.msra.mxu0 %v1413
      %1451 = vmatpush.msra.mxu0 %v1411
      %1452 = vmatpush.msra.mxu0 %v1409
      %1453 = vmatpush.msra.mxu0 %v1407
      %1454 = vmatpush.msra.mxu0 %v1405
      %1455 = vmatpush.msra.mxu0 %v1403
      %1456 = vmatpush.msra.mxu0 %v1401
      %1457 = vmatpush.msra.mxu0 %v1399
      %1458 = vmatpush.msra.mxu0 %v1397
      %1459 = vmatmul.f32.gmra.mxu0 %v1429
      %v1460 = vpop.f32.mrf.mxu0
      %v1461 = vadd.f32 0.0, %v1460
      %1462 = vmatmul.f32.gmra.mxu0 %v1431
      %v1463 = vpop.f32.mrf.mxu0
      %v1464 = vadd.f32 0.0, %v1463
      %1465 = vmatmul.f32.gmra.mxu0 %v1433
      %v1466 = vpop.f32.mrf.mxu0
      %v1467 = vadd.f32 0.0, %v1466
      %1468 = vmatmul.f32.gmra.mxu0 %v1435
      %v1469 = vpop.f32.mrf.mxu0
      %v1470 = vadd.f32 0.0, %v1469
      %1471 = vdwg.mxu0
      %1472 = vmatpush.msra.mxu0 0.0
      %1473 = vmatpush.msra.mxu0 0.0
      %1474 = vmatpush.msra.mxu0 0.0
      %1475 = vmatpush.msra.mxu0 0.0
      %1476 = vmatpush.msra.mxu0 %v1441
      %1477 = vmatpush.msra.mxu0 %v1418
      %1478 = vmatpush.msra.mxu0 %v1416
      %1479 = vmatpush.msra.mxu0 %v1414
      %1480 = vmatpush.msra.mxu0 %v1412
      %1481 = vmatpush.msra.mxu0 %v1410
      %1482 = vmatpush.msra.mxu0 %v1408
      %1483 = vmatpush.msra.mxu0 %v1406
      %1484 = vmatpush.msra.mxu0 %v1404
      %1485 = vmatpush.msra.mxu0 %v1402
      %1486 = vmatpush.msra.mxu0 %v1400
      %1487 = vmatpush.msra.mxu0 %v1398
      %1488 = vmatmul.f32.gmra.mxu0 %v1429
      %v1489 = vpop.f32.mrf.mxu0
      %v1490 = vadd.f32 0.0, %v1489
      %1491 = vmatmul.f32.gmra.mxu0 %v1431
      %v1492 = vpop.f32.mrf.mxu0
      %v1493 = vadd.f32 0.0, %v1492
      %1494 = vmatmul.f32.gmra.mxu0 %v1433
      %v1495 = vpop.f32.mrf.mxu0
      %v1496 = vadd.f32 0.0, %v1495
      %1497 = vmatmul.f32.gmra.mxu0 %v1435
      %v1498 = vpop.f32.mrf.mxu0
      %v1499 = vadd.f32 0.0, %v1498
      %1500 = vdwg.mxu0
      %v1501 = vadd.f32 %v1388, %v1461
      %v1502 = vadd.f32 %v1389, %v1490
      %v1503 = vadd.f32 %v1390, %v1464
      %v1504 = vadd.f32 %v1391, %v1493
      %v1505 = vadd.f32 %v1392, %v1467
      %v1506 = vadd.f32 %v1393, %v1496
      %v1507 = vadd.f32 %v1394, %v1470
      %v1508 = vadd.f32 %v1395, %v1499
      %s1509 = scalar_lea.vmem %s1, 1152
      %v1510 = vld [vmem:[%s1509] sm:$0xff]
      %v1511 = vld [vmem:[%s1509 + $0x8] sm:$0xff]
      %v1512 = vld [vmem:[%s1509 + $0x10] sm:$0xff]
      %v1513 = vld [vmem:[%s1509 + $0x18] sm:$0xff]
      %v1514 = vld [vmem:[%s1509 + $0x20] sm:$0xff]
      %v1515 = vld [vmem:[%s1509 + $0x28] sm:$0xff]
      %v1516 = vld [vmem:[%s1509 + $0x30] sm:$0xff]
      %v1517 = vld [vmem:[%s1509 + $0x38] sm:$0xff]
      %v1518 = vld [vmem:[%s1509 + $0x40] sm:$0xff]
      %v1519 = vld [vmem:[%s1509 + $0x48] sm:$0xff]
      %v1520 = vld [vmem:[%s1509 + $0x50] sm:$0xff]
      %v1521 = vld [vmem:[%s1509 + $0x58] sm:$0xff]
      %v1522 = vld [vmem:[%s1509 + $0x60] sm:$0xff]
      %v1523 = vld [vmem:[%s1509 + $0x68] sm:$0xff]
      %v1524 = vld [vmem:[%s1509 + $0x70] sm:$0xff]
      %v1525 = vld [vmem:[%s1509 + $0x78] sm:$0xff]
      %v1526 = vld [vmem:[%s1509 + $0x80] sm:$0xff]
      %v1527 = vld [vmem:[%s1509 + $0x88] sm:$0xff]
      %v1528 = vld [vmem:[%s1509 + $0x90] sm:$0xff]
      %v1529 = vld [vmem:[%s1509 + $0x98] sm:$0xff]
      %v1530 = vld [vmem:[%s1509 + $0xa0] sm:$0xff]
      %v1531 = vld [vmem:[%s1509 + $0xa8] sm:$0xff]
      %v1532 = vld [vmem:[%s1509 + $0xb0] sm:$0x3]
      %v1533 = vld [vmem:[%s1509 + $0xb8] sm:$0x3]
      %vm1534 = vcmask 1045504
      %v1535 = vrot.slane %v846, 2
      %v1536 = vrot.slane %v847, 2
      %v1537 = vsel %vm1534, %v1535, %v1536
      %v1538 = vrot.slane %v848, 2
      %v1539 = vsel %vm1534, %v1536, %v1538
      %v1540 = vrot.slane %v849, 2
      %v1541 = vsel %vm1534, %v1538, %v1540
      %v1542 = vsel %vm911, %v1537, 0
      %v1544 = vsel %vm911, %v1539, 0
      %v1546 = vsel %vm911, %v1541, 0
      %v1548 = vsel %vm911, %v1540, 0
      %v1551 = vsel %vm920, %v1532, 0
      %v1554 = vsel %vm920, %v1533, 0
      %1556 = vmatpush.msra.mxu0 0.0
      %1557 = vmatpush.msra.mxu0 0.0
      %1558 = vmatpush.msra.mxu0 0.0
      %1559 = vmatpush.msra.mxu0 0.0
      %1560 = vmatpush.msra.mxu0 %v1551
      %1561 = vmatpush.msra.mxu0 %v1530
      %1562 = vmatpush.msra.mxu0 %v1528
      %1563 = vmatpush.msra.mxu0 %v1526
      %1564 = vmatpush.msra.mxu0 %v1524
      %1565 = vmatpush.msra.mxu0 %v1522
      %1566 = vmatpush.msra.mxu0 %v1520
      %1567 = vmatpush.msra.mxu0 %v1518
      %1568 = vmatpush.msra.mxu0 %v1516
      %1569 = vmatpush.msra.mxu0 %v1514
      %1570 = vmatpush.msra.mxu0 %v1512
      %1571 = vmatpush.msra.mxu0 %v1510
      %1572 = vmatmul.f32.gmra.mxu0 %v1542
      %v1573 = vpop.f32.mrf.mxu0
      %v1574 = vadd.f32 0.0, %v1573
      %1575 = vmatmul.f32.gmra.mxu0 %v1544
      %v1576 = vpop.f32.mrf.mxu0
      %v1577 = vadd.f32 0.0, %v1576
      %1578 = vmatmul.f32.gmra.mxu0 %v1546
      %v1579 = vpop.f32.mrf.mxu0
      %v1580 = vadd.f32 0.0, %v1579
      %1581 = vmatmul.f32.gmra.mxu0 %v1548
      %v1582 = vpop.f32.mrf.mxu0
      %v1583 = vadd.f32 0.0, %v1582
      %1584 = vdwg.mxu0
      %1585 = vmatpush.msra.mxu0 0.0
      %1586 = vmatpush.msra.mxu0 0.0
      %1587 = vmatpush.msra.mxu0 0.0
      %1588 = vmatpush.msra.mxu0 0.0
      %1589 = vmatpush.msra.mxu0 %v1554
      %1590 = vmatpush.msra.mxu0 %v1531
      %1591 = vmatpush.msra.mxu0 %v1529
      %1592 = vmatpush.msra.mxu0 %v1527
      %1593 = vmatpush.msra.mxu0 %v1525
      %1594 = vmatpush.msra.mxu0 %v1523
      %1595 = vmatpush.msra.mxu0 %v1521
      %1596 = vmatpush.msra.mxu0 %v1519
      %1597 = vmatpush.msra.mxu0 %v1517
      %1598 = vmatpush.msra.mxu0 %v1515
      %1599 = vmatpush.msra.mxu0 %v1513
      %1600 = vmatpush.msra.mxu0 %v1511
      %1601 = vmatmul.f32.gmra.mxu0 %v1542
      %v1602 = vpop.f32.mrf.mxu0
      %v1603 = vadd.f32 0.0, %v1602
      %1604 = vmatmul.f32.gmra.mxu0 %v1544
      %v1605 = vpop.f32.mrf.mxu0
      %v1606 = vadd.f32 0.0, %v1605
      %1607 = vmatmul.f32.gmra.mxu0 %v1546
      %v1608 = vpop.f32.mrf.mxu0
      %v1609 = vadd.f32 0.0, %v1608
      %1610 = vmatmul.f32.gmra.mxu0 %v1548
      %v1611 = vpop.f32.mrf.mxu0
      %v1612 = vadd.f32 0.0, %v1611
      %1613 = vdwg.mxu0
      %v1614 = vadd.f32 %v1501, %v1574
      %v1615 = vadd.f32 %v1502, %v1603
      %v1616 = vadd.f32 %v1503, %v1577
      %v1617 = vadd.f32 %v1504, %v1606
      %v1618 = vadd.f32 %v1505, %v1580
      %v1619 = vadd.f32 %v1506, %v1609
      %v1620 = vadd.f32 %v1507, %v1583
      %v1621 = vadd.f32 %v1508, %v1612
      %s1622 = scalar_lea.vmem %s1, 1344
      %v1623 = vld [vmem:[%s1622] sm:$0xff]
      %v1624 = vld [vmem:[%s1622 + $0x8] sm:$0xff]
      %v1625 = vld [vmem:[%s1622 + $0x10] sm:$0xff]
      %v1626 = vld [vmem:[%s1622 + $0x18] sm:$0xff]
      %v1627 = vld [vmem:[%s1622 + $0x20] sm:$0xff]
      %v1628 = vld [vmem:[%s1622 + $0x28] sm:$0xff]
      %v1629 = vld [vmem:[%s1622 + $0x30] sm:$0xff]
      %v1630 = vld [vmem:[%s1622 + $0x38] sm:$0xff]
      %v1631 = vld [vmem:[%s1622 + $0x40] sm:$0xff]
      %v1632 = vld [vmem:[%s1622 + $0x48] sm:$0xff]
      %v1633 = vld [vmem:[%s1622 + $0x50] sm:$0xff]
      %v1634 = vld [vmem:[%s1622 + $0x58] sm:$0xff]
      %v1635 = vld [vmem:[%s1622 + $0x60] sm:$0xff]
      %v1636 = vld [vmem:[%s1622 + $0x68] sm:$0xff]
      %v1637 = vld [vmem:[%s1622 + $0x70] sm:$0xff]
      %v1638 = vld [vmem:[%s1622 + $0x78] sm:$0xff]
      %v1639 = vld [vmem:[%s1622 + $0x80] sm:$0xff]
      %v1640 = vld [vmem:[%s1622 + $0x88] sm:$0xff]
      %v1641 = vld [vmem:[%s1622 + $0x90] sm:$0xff]
      %v1642 = vld [vmem:[%s1622 + $0x98] sm:$0xff]
      %v1643 = vld [vmem:[%s1622 + $0xa0] sm:$0xff]
      %v1644 = vld [vmem:[%s1622 + $0xa8] sm:$0xff]
      %v1645 = vld [vmem:[%s1622 + $0xb0] sm:$0x3]
      %v1646 = vld [vmem:[%s1622 + $0xb8] sm:$0x3]
      %1647 = vrot.lane.b32.xlu0 %v1537, 125
      %v1648 = vpop.permute.xlu0 %1647
      %1649 = vrot.lane.b32.xlu0 %v1539, 125
      %v1650 = vpop.permute.xlu0 %1649
      %1651 = vrot.lane.b32.xlu0 %v1541, 125
      %v1652 = vpop.permute.xlu0 %1651
      %1653 = vrot.lane.b32.xlu0 %v1540, 125
      %v1654 = vpop.permute.xlu0 %1653
      %v1655 = vsel %vm911, %v1648, 0
      %v1657 = vsel %vm911, %v1650, 0
      %v1659 = vsel %vm911, %v1652, 0
      %v1661 = vsel %vm911, %v1654, 0
      %v1664 = vsel %vm920, %v1645, 0
      %v1667 = vsel %vm920, %v1646, 0
      %1669 = vmatpush.msra.mxu0 0.0
      %1670 = vmatpush.msra.mxu0 0.0
      %1671 = vmatpush.msra.mxu0 0.0
      %1672 = vmatpush.msra.mxu0 0.0
      %1673 = vmatpush.msra.mxu0 %v1664
      %1674 = vmatpush.msra.mxu0 %v1643
      %1675 = vmatpush.msra.mxu0 %v1641
      %1676 = vmatpush.msra.mxu0 %v1639
      %1677 = vmatpush.msra.mxu0 %v1637
      %1678 = vmatpush.msra.mxu0 %v1635
      %1679 = vmatpush.msra.mxu0 %v1633
      %1680 = vmatpush.msra.mxu0 %v1631
      %1681 = vmatpush.msra.mxu0 %v1629
      %1682 = vmatpush.msra.mxu0 %v1627
      %1683 = vmatpush.msra.mxu0 %v1625
      %1684 = vmatpush.msra.mxu0 %v1623
      %1685 = vmatmul.f32.gmra.mxu0 %v1655
      %v1686 = vpop.f32.mrf.mxu0
      %v1687 = vadd.f32 0.0, %v1686
      %1688 = vmatmul.f32.gmra.mxu0 %v1657
      %v1689 = vpop.f32.mrf.mxu0
      %v1690 = vadd.f32 0.0, %v1689
      %1691 = vmatmul.f32.gmra.mxu0 %v1659
      %v1692 = vpop.f32.mrf.mxu0
      %v1693 = vadd.f32 0.0, %v1692
      %1694 = vmatmul.f32.gmra.mxu0 %v1661
      %v1695 = vpop.f32.mrf.mxu0
      %v1696 = vadd.f32 0.0, %v1695
      %1697 = vdwg.mxu0
      %1698 = vmatpush.msra.mxu0 0.0
      %1699 = vmatpush.msra.mxu0 0.0
      %1700 = vmatpush.msra.mxu0 0.0
      %1701 = vmatpush.msra.mxu0 0.0
      %1702 = vmatpush.msra.mxu0 %v1667
      %1703 = vmatpush.msra.mxu0 %v1644
      %1704 = vmatpush.msra.mxu0 %v1642
      %1705 = vmatpush.msra.mxu0 %v1640
      %1706 = vmatpush.msra.mxu0 %v1638
      %1707 = vmatpush.msra.mxu0 %v1636
      %1708 = vmatpush.msra.mxu0 %v1634
      %1709 = vmatpush.msra.mxu0 %v1632
      %1710 = vmatpush.msra.mxu0 %v1630
      %1711 = vmatpush.msra.mxu0 %v1628
      %1712 = vmatpush.msra.mxu0 %v1626
      %1713 = vmatpush.msra.mxu0 %v1624
      %1714 = vmatmul.f32.gmra.mxu0 %v1655
      %v1715 = vpop.f32.mrf.mxu0
      %v1716 = vadd.f32 0.0, %v1715
      %1717 = vmatmul.f32.gmra.mxu0 %v1657
      %v1718 = vpop.f32.mrf.mxu0
      %v1719 = vadd.f32 0.0, %v1718
      %1720 = vmatmul.f32.gmra.mxu0 %v1659
      %v1721 = vpop.f32.mrf.mxu0
      %v1722 = vadd.f32 0.0, %v1721
      %1723 = vmatmul.f32.gmra.mxu0 %v1661
      %v1724 = vpop.f32.mrf.mxu0
      %v1725 = vadd.f32 0.0, %v1724
      %1726 = vdwg.mxu0
      %v1727 = vadd.f32 %v1614, %v1687
      %v1728 = vadd.f32 %v1615, %v1716
      %v1729 = vadd.f32 %v1616, %v1690
      %v1730 = vadd.f32 %v1617, %v1719
      %v1731 = vadd.f32 %v1618, %v1693
      %v1732 = vadd.f32 %v1619, %v1722
      %v1733 = vadd.f32 %v1620, %v1696
      %v1734 = vadd.f32 %v1621, %v1725
      %s1735 = scalar_lea.vmem %s1, 1536
      %v1736 = vld [vmem:[%s1735] sm:$0xff]
      %v1737 = vld [vmem:[%s1735 + $0x8] sm:$0xff]
      %v1738 = vld [vmem:[%s1735 + $0x10] sm:$0xff]
      %v1739 = vld [vmem:[%s1735 + $0x18] sm:$0xff]
      %v1740 = vld [vmem:[%s1735 + $0x20] sm:$0xff]
      %v1741 = vld [vmem:[%s1735 + $0x28] sm:$0xff]
      %v1742 = vld [vmem:[%s1735 + $0x30] sm:$0xff]
      %v1743 = vld [vmem:[%s1735 + $0x38] sm:$0xff]
      %v1744 = vld [vmem:[%s1735 + $0x40] sm:$0xff]
      %v1745 = vld [vmem:[%s1735 + $0x48] sm:$0xff]
      %v1746 = vld [vmem:[%s1735 + $0x50] sm:$0xff]
      %v1747 = vld [vmem:[%s1735 + $0x58] sm:$0xff]
      %v1748 = vld [vmem:[%s1735 + $0x60] sm:$0xff]
      %v1749 = vld [vmem:[%s1735 + $0x68] sm:$0xff]
      %v1750 = vld [vmem:[%s1735 + $0x70] sm:$0xff]
      %v1751 = vld [vmem:[%s1735 + $0x78] sm:$0xff]
      %v1752 = vld [vmem:[%s1735 + $0x80] sm:$0xff]
      %v1753 = vld [vmem:[%s1735 + $0x88] sm:$0xff]
      %v1754 = vld [vmem:[%s1735 + $0x90] sm:$0xff]
      %v1755 = vld [vmem:[%s1735 + $0x98] sm:$0xff]
      %v1756 = vld [vmem:[%s1735 + $0xa0] sm:$0xff]
      %v1757 = vld [vmem:[%s1735 + $0xa8] sm:$0xff]
      %v1758 = vld [vmem:[%s1735 + $0xb0] sm:$0x3]
      %v1759 = vld [vmem:[%s1735 + $0xb8] sm:$0x3]
      %1760 = vrot.lane.b32.xlu0 %v1537, 122
      %v1761 = vpop.permute.xlu0 %1760
      %1762 = vrot.lane.b32.xlu0 %v1539, 122
      %v1763 = vpop.permute.xlu0 %1762
      %1764 = vrot.lane.b32.xlu0 %v1541, 122
      %v1765 = vpop.permute.xlu0 %1764
      %1766 = vrot.lane.b32.xlu0 %v1540, 122
      %v1767 = vpop.permute.xlu0 %1766
      %v1768 = vsel %vm911, %v1761, 0
      %v1770 = vsel %vm911, %v1763, 0
      %v1772 = vsel %vm911, %v1765, 0
      %v1774 = vsel %vm911, %v1767, 0
      %v1777 = vsel %vm920, %v1758, 0
      %v1780 = vsel %vm920, %v1759, 0
      %1782 = vmatpush.msra.mxu0 0.0
      %1783 = vmatpush.msra.mxu0 0.0
      %1784 = vmatpush.msra.mxu0 0.0
      %1785 = vmatpush.msra.mxu0 0.0
      %1786 = vmatpush.msra.mxu0 %v1777
      %1787 = vmatpush.msra.mxu0 %v1756
      %1788 = vmatpush.msra.mxu0 %v1754
      %1789 = vmatpush.msra.mxu0 %v1752
      %1790 = vmatpush.msra.mxu0 %v1750
      %1791 = vmatpush.msra.mxu0 %v1748
      %1792 = vmatpush.msra.mxu0 %v1746
      %1793 = vmatpush.msra.mxu0 %v1744
      %1794 = vmatpush.msra.mxu0 %v1742
      %1795 = vmatpush.msra.mxu0 %v1740
      %1796 = vmatpush.msra.mxu0 %v1738
      %1797 = vmatpush.msra.mxu0 %v1736
      %1798 = vmatmul.f32.gmra.mxu0 %v1768
      %v1799 = vpop.f32.mrf.mxu0
      %v1800 = vadd.f32 0.0, %v1799
      %1801 = vmatmul.f32.gmra.mxu0 %v1770
      %v1802 = vpop.f32.mrf.mxu0
      %v1803 = vadd.f32 0.0, %v1802
      %1804 = vmatmul.f32.gmra.mxu0 %v1772
      %v1805 = vpop.f32.mrf.mxu0
      %v1806 = vadd.f32 0.0, %v1805
      %1807 = vmatmul.f32.gmra.mxu0 %v1774
      %v1808 = vpop.f32.mrf.mxu0
      %v1809 = vadd.f32 0.0, %v1808
      %1810 = vdwg.mxu0
      %1811 = vmatpush.msra.mxu0 0.0
      %1812 = vmatpush.msra.mxu0 0.0
      %1813 = vmatpush.msra.mxu0 0.0
      %1814 = vmatpush.msra.mxu0 0.0
      %1815 = vmatpush.msra.mxu0 %v1780
      %1816 = vmatpush.msra.mxu0 %v1757
      %1817 = vmatpush.msra.mxu0 %v1755
      %1818 = vmatpush.msra.mxu0 %v1753
      %1819 = vmatpush.msra.mxu0 %v1751
      %1820 = vmatpush.msra.mxu0 %v1749
      %1821 = vmatpush.msra.mxu0 %v1747
      %1822 = vmatpush.msra.mxu0 %v1745
      %1823 = vmatpush.msra.mxu0 %v1743
      %1824 = vmatpush.msra.mxu0 %v1741
      %1825 = vmatpush.msra.mxu0 %v1739
      %1826 = vmatpush.msra.mxu0 %v1737
      %1827 = vmatmul.f32.gmra.mxu0 %v1768
      %v1828 = vpop.f32.mrf.mxu0
      %v1829 = vadd.f32 0.0, %v1828
      %1830 = vmatmul.f32.gmra.mxu0 %v1770
      %v1831 = vpop.f32.mrf.mxu0
      %v1832 = vadd.f32 0.0, %v1831
      %1833 = vmatmul.f32.gmra.mxu0 %v1772
      %v1834 = vpop.f32.mrf.mxu0
      %v1835 = vadd.f32 0.0, %v1834
      %1836 = vmatmul.f32.gmra.mxu0 %v1774
      %v1837 = vpop.f32.mrf.mxu0
      %v1838 = vadd.f32 0.0, %v1837
      %1839 = vdwg.mxu0
      %v1840 = vadd.f32 %v1727, %v1800
      %v1841 = vadd.f32 %v1728, %v1829
      %v1842 = vadd.f32 %v1729, %v1803
      %v1843 = vadd.f32 %v1730, %v1832
      %v1844 = vadd.f32 %v1731, %v1806
      %v1845 = vadd.f32 %v1732, %v1835
      %v1846 = vadd.f32 %v1733, %v1809
      %v1847 = vadd.f32 %v1734, %v1838
      %v1848 = vld [vmem:[%s2] sm:$0x3]
      %v1850 = vperm.slane %v1848, 0
      %v1851 = vperm.slane %v1848, 1
      %v1854 = vadd.f32 %v1840, %v1850
      %v1855 = vadd.f32 %v1841, %v1851
      %v1856 = vadd.f32 %v1842, %v1850
      %v1857 = vadd.f32 %v1843, %v1851
      %v1858 = vadd.f32 %v1844, %v1850
      %v1859 = vadd.f32 %v1845, %v1851
      %v1860 = vadd.f32 %v1846, %v1850
      %v1861 = vadd.f32 %v1847, %v1851
      %v1862 = vmax.f32 %v1854, 0.0
      %v1863 = vmax.f32 %v1855, 0.0
      %v1864 = vmax.f32 %v1856, 0.0
      %v1865 = vmax.f32 %v1857, 0.0
      %v1866 = vmax.f32 %v1858, 0.0
      %v1867 = vmax.f32 %v1859, 0.0
      %v1868 = vmax.f32 %v1860, 0.0
      %v1869 = vmax.f32 %v1861, 0.0
      %v1870 = vld [vmem:[%s3] sm:$0xff]
      %v1871 = vld [vmem:[%s3 + $0x8] sm:$0x7f]
      %vm1872 = vcmask 244736
      %v1874 = vsel %vm1872, %v1870, 0
      %v1877 = vsel %vm1872, %v1871, 0
      %v1880 = vsel %vm1534, %v1868, 0
      %v1883 = vsel %vm1534, %v1869, 0
      %1885 = vmatpush.msra.mxu0 0.0
      %1886 = vmatpush.msra.mxu0 0.0
      %1887 = vmatpush.msra.mxu0 0.0
      %1888 = vmatpush.msra.mxu0 0.0
      %1889 = vmatpush.msra.mxu0 0.0
      %1890 = vmatpush.msra.mxu0 0.0
      %1891 = vmatpush.msra.mxu0 0.0
      %1892 = vmatpush.msra.mxu0 0.0
      %1893 = vmatpush.msra.mxu0 0.0
      %1894 = vmatpush.msra.mxu0 0.0
      %1895 = vmatpush.msra.mxu0 0.0
      %1896 = vmatpush.msra.mxu0 0.0
      %1897 = vmatpush.msra.mxu0 %v1880
      %1898 = vmatpush.msra.mxu0 %v1866
      %1899 = vmatpush.msra.mxu0 %v1864
      %1900 = vmatpush.msra.mxu0 %v1862
      %1901 = vmatmul.f32.gmra.mxu0 %v1874
      %v1902 = vpop.f32.mrf.mxu0
      %v1903 = vadd.f32 0.0, %v1902
      %1904 = vmatmul.f32.gmra.mxu0 %v1877
      %v1905 = vpop.f32.mrf.mxu0
      %v1906 = vadd.f32 0.0, %v1905
      %1907 = vdwg.mxu0
      %1908 = vmatpush.msra.mxu0 0.0
      %1909 = vmatpush.msra.mxu0 0.0
      %1910 = vmatpush.msra.mxu0 0.0
      %1911 = vmatpush.msra.mxu0 0.0
      %1912 = vmatpush.msra.mxu0 0.0
      %1913 = vmatpush.msra.mxu0 0.0
      %1914 = vmatpush.msra.mxu0 0.0
      %1915 = vmatpush.msra.mxu0 0.0
      %1916 = vmatpush.msra.mxu0 0.0
      %1917 = vmatpush.msra.mxu0 0.0
      %1918 = vmatpush.msra.mxu0 0.0
      %1919 = vmatpush.msra.mxu0 0.0
      %1920 = vmatpush.msra.mxu0 %v1883
      %1921 = vmatpush.msra.mxu0 %v1867
      %1922 = vmatpush.msra.mxu0 %v1865
      %1923 = vmatpush.msra.mxu0 %v1863
      %1924 = vmatmul.f32.gmra.mxu0 %v1874
      %v1925 = vpop.f32.mrf.mxu0
      %v1926 = vadd.f32 0.0, %v1925
      %1927 = vmatmul.f32.gmra.mxu0 %v1877
      %v1928 = vpop.f32.mrf.mxu0
      %v1929 = vadd.f32 0.0, %v1928
      %1930 = vdwg.mxu0
      %v1931 = vld [vmem:[%s4] sm:$0xff]
      %v1932 = vld [vmem:[%s4 + $0x8] sm:$0x7f]
      %v1934 = vsel %vm1872, %v1931, 0
      %v1937 = vsel %vm1872, %v1932, 0
      %1939 = vmatpush.msra.mxu0 0.0
      %1940 = vmatpush.msra.mxu0 0.0
      %1941 = vmatpush.msra.mxu0 0.0
      %1942 = vmatpush.msra.mxu0 0.0
      %1943 = vmatpush.msra.mxu0 0.0
      %1944 = vmatpush.msra.mxu0 0.0
      %1945 = vmatpush.msra.mxu0 0.0
      %1946 = vmatpush.msra.mxu0 0.0
      %1947 = vmatpush.msra.mxu0 0.0
      %1948 = vmatpush.msra.mxu0 0.0
      %1949 = vmatpush.msra.mxu0 0.0
      %1950 = vmatpush.msra.mxu0 0.0
      %1951 = vmatpush.msra.mxu0 %v1880
      %1952 = vmatpush.msra.mxu0 %v1866
      %1953 = vmatpush.msra.mxu0 %v1864
      %1954 = vmatpush.msra.mxu0 %v1862
      %1955 = vmatmul.f32.gmra.mxu0 %v1934
      %v1956 = vpop.f32.mrf.mxu0
      %v1957 = vadd.f32 0.0, %v1956
      %1958 = vmatmul.f32.gmra.mxu0 %v1937
      %v1959 = vpop.f32.mrf.mxu0
      %v1960 = vadd.f32 0.0, %v1959
      %1961 = vdwg.mxu0
      %1962 = vmatpush.msra.mxu0 0.0
      %1963 = vmatpush.msra.mxu0 0.0
      %1964 = vmatpush.msra.mxu0 0.0
      %1965 = vmatpush.msra.mxu0 0.0
      %1966 = vmatpush.msra.mxu0 0.0
      %1967 = vmatpush.msra.mxu0 0.0
      %1968 = vmatpush.msra.mxu0 0.0
      %1969 = vmatpush.msra.mxu0 0.0
      %1970 = vmatpush.msra.mxu0 0.0
      %1971 = vmatpush.msra.mxu0 0.0
      %1972 = vmatpush.msra.mxu0 0.0
      %1973 = vmatpush.msra.mxu0 0.0
      %1974 = vmatpush.msra.mxu0 %v1883
      %1975 = vmatpush.msra.mxu0 %v1867
      %1976 = vmatpush.msra.mxu0 %v1865
      %1977 = vmatpush.msra.mxu0 %v1863
      %1978 = vmatmul.f32.gmra.mxu0 %v1934
      %v1979 = vpop.f32.mrf.mxu0
      %v1980 = vadd.f32 0.0, %v1979
      %1981 = vmatmul.f32.gmra.mxu0 %v1937
      %v1982 = vpop.f32.mrf.mxu0
      %v1983 = vadd.f32 0.0, %v1982
      %1984 = vdwg.mxu0
      %v1985 = vmax.f32 %v1903, %v1957
      %v1986 = vmax.f32 %v1926, %v1980
      %v1987 = vmax.f32 %v1906, %v1960
      %v1988 = vmax.f32 %v1929, %v1983
      %v1989 = vld [vmem:[%s5] sm:$0xff]
      %v1990 = vld [vmem:[%s5 + $0x8] sm:$0xff]
      %v1991 = vld [vmem:[%s5 + $0x10] sm:$0xff]
      %v1992 = vld [vmem:[%s5 + $0x18] sm:$0xff]
      %v1993 = vld [vmem:[%s5 + $0x20] sm:$0xff]
      %v1994 = vld [vmem:[%s5 + $0x28] sm:$0xff]
      %v1995 = vld [vmem:[%s5 + $0x30] sm:$0xff]
      %v1996 = vld [vmem:[%s5 + $0x38] sm:$0xff]
      %v1997 = vld [vmem:[%s5 + $0x40] sm:$0xff]
      %v1998 = vld [vmem:[%s5 + $0x48] sm:$0xff]
      %v1999 = vld [vmem:[%s5 + $0x50] sm:$0xff]
      %v2000 = vld [vmem:[%s5 + $0x58] sm:$0xff]
      %v2001 = vld [vmem:[%s5 + $0x60] sm:$0xff]
      %v2002 = vld [vmem:[%s5 + $0x68] sm:$0xff]
      %v2003 = vld [vmem:[%s5 + $0x70] sm:$0xff]
      %v2004 = vld [vmem:[%s5 + $0x78] sm:$0xff]
      %v2005 = vld [vmem:[%s5 + $0x80] sm:$0xff]
      %v2006 = vld [vmem:[%s5 + $0x88] sm:$0xff]
      %v2007 = vld [vmem:[%s5 + $0x90] sm:$0xff]
      %v2008 = vld [vmem:[%s5 + $0x98] sm:$0xff]
      %v2009 = vld [vmem:[%s5 + $0xa0] sm:$0xff]
      %v2010 = vld [vmem:[%s5 + $0xa8] sm:$0xff]
      %v2011 = vld [vmem:[%s5 + $0xb0] sm:$0xf]
      %vm2012 = vcmask 424960
      %v2014 = vsel %vm2012, %v1986, 0
      %v2017 = vsel %vm2012, %v1988, 0
      %vm2019 = vcmask 1043456
      %v2021 = vsel %vm2019, %v2011, 0
      %2023 = vmatpush.msra.mxu0 %v2004
      %2024 = vmatpush.msra.mxu0 %v2003
      %2025 = vmatpush.msra.mxu0 %v2002
      %2026 = vmatpush.msra.mxu0 %v2001
      %2027 = vmatpush.msra.mxu0 %v2000
      %2028 = vmatpush.msra.mxu0 %v1999
      %2029 = vmatpush.msra.mxu0 %v1998
      %2030 = vmatpush.msra.mxu0 %v1997
      %2031 = vmatpush.msra.mxu0 %v1996
      %2032 = vmatpush.msra.mxu0 %v1995
      %2033 = vmatpush.msra.mxu0 %v1994
      %2034 = vmatpush.msra.mxu0 %v1993
      %2035 = vmatpush.msra.mxu0 %v1992
      %2036 = vmatpush.msra.mxu0 %v1991
      %2037 = vmatpush.msra.mxu0 %v1990
      %2038 = vmatpush.msra.mxu0 %v1989
      %2039 = vmatmul.f32.gmra.mxu0 %v1985
      %v2040 = vpop.f32.mrf.mxu0
      %v2041 = vadd.f32 0.0, %v2040
      %2042 = vmatmul.f32.gmra.mxu0 %v1987
      %v2043 = vpop.f32.mrf.mxu0
      %v2044 = vadd.f32 0.0, %v2043
      %2045 = vdwg.mxu0
      %2046 = vmatpush.msra.mxu0 0.0
      %2047 = vmatpush.msra.mxu0 0.0
      %2048 = vmatpush.msra.mxu0 0.0
      %2049 = vmatpush.msra.mxu0 0.0
      %2050 = vmatpush.msra.mxu0 0.0
      %2051 = vmatpush.msra.mxu0 0.0
      %2052 = vmatpush.msra.mxu0 0.0
      %2053 = vmatpush.msra.mxu0 0.0
      %2054 = vmatpush.msra.mxu0 0.0
      %2055 = vmatpush.msra.mxu0 %v2021
      %2056 = vmatpush.msra.mxu0 %v2010
      %2057 = vmatpush.msra.mxu0 %v2009
      %2058 = vmatpush.msra.mxu0 %v2008
      %2059 = vmatpush.msra.mxu0 %v2007
      %2060 = vmatpush.msra.mxu0 %v2006
      %2061 = vmatpush.msra.mxu0 %v2005
      %2062 = vmatmul.f32.gmra.mxu0 %v2014
      %v2063 = vpop.f32.mrf.mxu0
      %v2064 = vadd.f32 %v2041, %v2063
      %2065 = vmatmul.f32.gmra.mxu0 %v2017
      %v2066 = vpop.f32.mrf.mxu0
      %v2067 = vadd.f32 %v2044, %v2066
      %2068 = vdwg.mxu0
      %v2069 = vld [vmem:[%s6] sm:$0xff]
      %v2070 = vld [vmem:[%s6 + $0x8] sm:$0xff]
      %v2071 = vld [vmem:[%s6 + $0x10] sm:$0xff]
      %v2072 = vld [vmem:[%s6 + $0x18] sm:$0xff]
      %v2073 = vld [vmem:[%s6 + $0x20] sm:$0xff]
      %v2074 = vld [vmem:[%s6 + $0x28] sm:$0xff]
      %v2075 = vld [vmem:[%s6 + $0x30] sm:$0xff]
      %v2076 = vld [vmem:[%s6 + $0x38] sm:$0xff]
      %v2077 = vld [vmem:[%s6 + $0x40] sm:$0xff]
      %v2078 = vld [vmem:[%s6 + $0x48] sm:$0xff]
      %v2079 = vld [vmem:[%s6 + $0x50] sm:$0xff]
      %v2080 = vld [vmem:[%s6 + $0x58] sm:$0xff]
      %v2081 = vld [vmem:[%s6 + $0x60] sm:$0xff]
      %v2082 = vld [vmem:[%s6 + $0x68] sm:$0xff]
      %v2083 = vld [vmem:[%s6 + $0x70] sm:$0xff]
      %v2084 = vld [vmem:[%s6 + $0x78] sm:$0xff]
      %v2085 = vld [vmem:[%s6 + $0x80] sm:$0xff]
      %v2086 = vld [vmem:[%s6 + $0x88] sm:$0xff]
      %v2087 = vld [vmem:[%s6 + $0x90] sm:$0xff]
      %v2088 = vld [vmem:[%s6 + $0x98] sm:$0xff]
      %v2089 = vld [vmem:[%s6 + $0xa0] sm:$0xff]
      %v2090 = vld [vmem:[%s6 + $0xa8] sm:$0xff]
      %v2091 = vld [vmem:[%s6 + $0xb0] sm:$0xf]
      %v2093 = vsel %vm2019, %v2091, 0
      %2095 = vmatpush.msra.mxu0 %v2084
      %2096 = vmatpush.msra.mxu0 %v2083
      %2097 = vmatpush.msra.mxu0 %v2082
      %2098 = vmatpush.msra.mxu0 %v2081
      %2099 = vmatpush.msra.mxu0 %v2080
      %2100 = vmatpush.msra.mxu0 %v2079
      %2101 = vmatpush.msra.mxu0 %v2078
      %2102 = vmatpush.msra.mxu0 %v2077
      %2103 = vmatpush.msra.mxu0 %v2076
      %2104 = vmatpush.msra.mxu0 %v2075
      %2105 = vmatpush.msra.mxu0 %v2074
      %2106 = vmatpush.msra.mxu0 %v2073
      %2107 = vmatpush.msra.mxu0 %v2072
      %2108 = vmatpush.msra.mxu0 %v2071
      %2109 = vmatpush.msra.mxu0 %v2070
      %2110 = vmatpush.msra.mxu0 %v2069
      %2111 = vmatmul.f32.gmra.mxu0 %v1985
      %v2112 = vpop.f32.mrf.mxu0
      %v2113 = vadd.f32 0.0, %v2112
      %2114 = vmatmul.f32.gmra.mxu0 %v1987
      %v2115 = vpop.f32.mrf.mxu0
      %v2116 = vadd.f32 0.0, %v2115
      %2117 = vdwg.mxu0
      %2118 = vmatpush.msra.mxu0 0.0
      %2119 = vmatpush.msra.mxu0 0.0
      %2120 = vmatpush.msra.mxu0 0.0
      %2121 = vmatpush.msra.mxu0 0.0
      %2122 = vmatpush.msra.mxu0 0.0
      %2123 = vmatpush.msra.mxu0 0.0
      %2124 = vmatpush.msra.mxu0 0.0
      %2125 = vmatpush.msra.mxu0 0.0
      %2126 = vmatpush.msra.mxu0 0.0
      %2127 = vmatpush.msra.mxu0 %v2093
      %2128 = vmatpush.msra.mxu0 %v2090
      %2129 = vmatpush.msra.mxu0 %v2089
      %2130 = vmatpush.msra.mxu0 %v2088
      %2131 = vmatpush.msra.mxu0 %v2087
      %2132 = vmatpush.msra.mxu0 %v2086
      %2133 = vmatpush.msra.mxu0 %v2085
      %2134 = vmatmul.f32.gmra.mxu0 %v2014
      %v2135 = vpop.f32.mrf.mxu0
      %v2136 = vadd.f32 %v2113, %v2135
      %2137 = vmatmul.f32.gmra.mxu0 %v2017
      %v2138 = vpop.f32.mrf.mxu0
      %v2139 = vadd.f32 %v2116, %v2138
      %2140 = vdwg.mxu0
      %v2141 = vmax.f32 %v2064, %v2136
      %v2142 = vmax.f32 %v2067, %v2139
      %v2143 = vld [vmem:[%s7] sm:$0xff]
      %v2144 = vld [vmem:[%s7 + $0x8] sm:$0xff]
      %v2145 = vld [vmem:[%s7 + $0x10] sm:$0x7]
      %v2146 = vld [vmem:[%s8] sm:$0xff]
      %v2147 = vld [vmem:[%s8 + $0x8] sm:$0xff]
      %v2148 = vld [vmem:[%s8 + $0x10] sm:$0xff]
      %v2149 = vld [vmem:[%s8 + $0x18] sm:$0xff]
      %v2150 = vld [vmem:[%s8 + $0x20] sm:$0xff]
      %v2151 = vld [vmem:[%s8 + $0x28] sm:$0xff]
      %v2152 = vld [vmem:[%s8 + $0x30] sm:$0xff]
      %v2153 = vld [vmem:[%s8 + $0x38] sm:$0xff]
      %v2154 = vld [vmem:[%s8 + $0x40] sm:$0xff]
      %v2155 = vld [vmem:[%s8 + $0x48] sm:$0xff]
      %v2156 = vld [vmem:[%s8 + $0x50] sm:$0xff]
      %v2157 = vld [vmem:[%s8 + $0x58] sm:$0x3]
      %v2159 = vsel %vm911, %v2141, 0
      %v2162 = vsel %vm911, %v2142, 0
      %v2165 = vsel %vm920, %v2157, 0
      %2167 = vmatpush.msra.mxu0 0.0
      %2168 = vmatpush.msra.mxu0 0.0
      %2169 = vmatpush.msra.mxu0 0.0
      %2170 = vmatpush.msra.mxu0 0.0
      %2171 = vmatpush.msra.mxu0 %v2165
      %2172 = vmatpush.msra.mxu0 %v2156
      %2173 = vmatpush.msra.mxu0 %v2155
      %2174 = vmatpush.msra.mxu0 %v2154
      %2175 = vmatpush.msra.mxu0 %v2153
      %2176 = vmatpush.msra.mxu0 %v2152
      %2177 = vmatpush.msra.mxu0 %v2151
      %2178 = vmatpush.msra.mxu0 %v2150
      %2179 = vmatpush.msra.mxu0 %v2149
      %2180 = vmatpush.msra.mxu0 %v2148
      %2181 = vmatpush.msra.mxu0 %v2147
      %2182 = vmatpush.msra.mxu0 %v2146
      %2183 = vmatmul.f32.gmra.mxu0 %v2159
      %v2184 = vpop.f32.mrf.mxu0
      %v2185 = vadd.f32 0.0, %v2184
      %2186 = vmatmul.f32.gmra.mxu0 %v2162
      %v2187 = vpop.f32.mrf.mxu0
      %v2188 = vadd.f32 0.0, %v2187
      %2189 = vdwg.mxu0
      %vm2190 = vcmask 121856
      %v2192 = vsel %vm2190, %v2143, 0
      %v2195 = vsel %vm2190, %v2144, 0
      %v2198 = vsel %vm2190, %v2145, 0
      %v2201 = vsel %vm1195, %v2188, 0
      %2203 = vmatpush.msra.mxu0 0.0
      %2204 = vmatpush.msra.mxu0 0.0
      %2205 = vmatpush.msra.mxu0 0.0
      %2206 = vmatpush.msra.mxu0 0.0
      %2207 = vmatpush.msra.mxu0 0.0
      %2208 = vmatpush.msra.mxu0 0.0
      %2209 = vmatpush.msra.mxu0 0.0
      %2210 = vmatpush.msra.mxu0 0.0
      %2211 = vmatpush.msra.mxu0 0.0
      %2212 = vmatpush.msra.mxu0 0.0
      %2213 = vmatpush.msra.mxu0 0.0
      %2214 = vmatpush.msra.mxu0 0.0
      %2215 = vmatpush.msra.mxu0 0.0
      %2216 = vmatpush.msra.mxu0 0.0
      %2217 = vmatpush.msra.mxu0 %v2201
      %2218 = vmatpush.msra.mxu0 %v2185
      %2219 = vmatmul.f32.gmra.mxu0 %v2192
      %v2220 = vpop.f32.mrf.mxu0
      %v2221 = vadd.f32 0.0, %v2220
      %2222 = vmatmul.f32.gmra.mxu0 %v2195
      %v2223 = vpop.f32.mrf.mxu0
      %v2224 = vadd.f32 0.0, %v2223
      %2225 = vmatmul.f32.gmra.mxu0 %v2198
      %v2226 = vpop.f32.mrf.mxu0
      %v2227 = vadd.f32 0.0, %v2226
      %2228 = vdwg.mxu0
      %v2229 = vld [vmem:[%s9] sm:$0xff]
      %v2230 = vld [vmem:[%s9 + $0x8] sm:$0xff]
      %v2231 = vld [vmem:[%s9 + $0x10] sm:$0xff]
      %v2232 = vld [vmem:[%s9 + $0x18] sm:$0xff]
      %v2233 = vld [vmem:[%s9 + $0x20] sm:$0xff]
      %v2234 = vld [vmem:[%s9 + $0x28] sm:$0xff]
      %v2235 = vld [vmem:[%s9 + $0x30] sm:$0xff]
      %v2236 = vld [vmem:[%s9 + $0x38] sm:$0xff]
      %v2237 = vld [vmem:[%s9 + $0x40] sm:$0xff]
      %v2238 = vld [vmem:[%s9 + $0x48] sm:$0xff]
      %v2239 = vld [vmem:[%s9 + $0x50] sm:$0xff]
      %v2240 = vld [vmem:[%s9 + $0x58] sm:$0xff]
      %v2241 = vld [vmem:[%s9 + $0x60] sm:$0xff]
      %v2242 = vld [vmem:[%s9 + $0x68] sm:$0xff]
      %v2243 = vld [vmem:[%s9 + $0x70] sm:$0xff]
      %v2244 = vld [vmem:[%s9 + $0x78] sm:$0xff]
      %v2245 = vld [vmem:[%s9 + $0x80] sm:$0xff]
      %v2246 = vld [vmem:[%s9 + $0x88] sm:$0xff]
      %v2247 = vld [vmem:[%s9 + $0x90] sm:$0xff]
      %v2248 = vld [vmem:[%s9 + $0x98] sm:$0xff]
      %v2249 = vld [vmem:[%s9 + $0xa0] sm:$0xff]
      %v2250 = vld [vmem:[%s9 + $0xa8] sm:$0xff]
      %v2251 = vld [vmem:[%s9 + $0xb0] sm:$0x3]
      %v2252 = vld [vmem:[%s9 + $0xb8] sm:$0x3]
      %s2253 = scalar_lea.vmem %s9, 192
      %v2254 = vld [vmem:[%s2253] sm:$0xff]
      %v2255 = vld [vmem:[%s2253 + $0x8] sm:$0xff]
      %v2256 = vld [vmem:[%s2253 + $0x10] sm:$0xff]
      %v2257 = vld [vmem:[%s2253 + $0x18] sm:$0xff]
      %v2258 = vld [vmem:[%s2253 + $0x20] sm:$0xff]
      %v2259 = vld [vmem:[%s2253 + $0x28] sm:$0xff]
      %v2260 = vld [vmem:[%s2253 + $0x30] sm:$0xff]
      %v2261 = vld [vmem:[%s2253 + $0x38] sm:$0xff]
      %v2262 = vld [vmem:[%s2253 + $0x40] sm:$0xff]
      %v2263 = vld [vmem:[%s2253 + $0x48] sm:$0xff]
      %v2264 = vld [vmem:[%s2253 + $0x50] sm:$0xff]
      %v2265 = vld [vmem:[%s2253 + $0x58] sm:$0xff]
      %v2266 = vld [vmem:[%s2253 + $0x60] sm:$0xff]
      %v2267 = vld [vmem:[%s2253 + $0x68] sm:$0xff]
      %v2268 = vld [vmem:[%s2253 + $0x70] sm:$0xff]
      %v2269 = vld [vmem:[%s2253 + $0x78] sm:$0xff]
      %v2270 = vld [vmem:[%s2253 + $0x80] sm:$0xff]
      %v2271 = vld [vmem:[%s2253 + $0x88] sm:$0xff]
      %v2272 = vld [vmem:[%s2253 + $0x90] sm:$0xff]
      %v2273 = vld [vmem:[%s2253 + $0x98] sm:$0xff]
      %v2274 = vld [vmem:[%s2253 + $0xa0] sm:$0xff]
      %v2275 = vld [vmem:[%s2253 + $0xa8] sm:$0xff]
      %v2276 = vld [vmem:[%s2253 + $0xb0] sm:$0x3]
      %v2277 = vld [vmem:[%s2253 + $0xb8] sm:$0x3]
      %2280 = vrot.lane.b32.xlu0 %v2221, 122
      %v2281 = vpop.permute.xlu0 %2280
      %2282 = vrot.lane.b32.xlu0 %v2224, 122
      %v2283 = vpop.permute.xlu0 %2282
      %v2284 = vsel %vm911, %v2281, 0
      %v2286 = vsel %vm911, %v2283, 0
      %v2289 = vsel %vm920, %v2276, 0
      %v2292 = vsel %vm920, %v2277, 0
      %2294 = vmatpush.msra.mxu0 0.0
      %2295 = vmatpush.msra.mxu0 0.0
      %2296 = vmatpush.msra.mxu0 0.0
      %2297 = vmatpush.msra.mxu0 0.0
      %2298 = vmatpush.msra.mxu0 %v2289
      %2299 = vmatpush.msra.mxu0 %v2274
      %2300 = vmatpush.msra.mxu0 %v2272
      %2301 = vmatpush.msra.mxu0 %v2270
      %2302 = vmatpush.msra.mxu0 %v2268
      %2303 = vmatpush.msra.mxu0 %v2266
      %2304 = vmatpush.msra.mxu0 %v2264
      %2305 = vmatpush.msra.mxu0 %v2262
      %2306 = vmatpush.msra.mxu0 %v2260
      %2307 = vmatpush.msra.mxu0 %v2258
      %2308 = vmatpush.msra.mxu0 %v2256
      %2309 = vmatpush.msra.mxu0 %v2254
      %2310 = vmatmul.f32.gmra.mxu0 %v2284
      %v2311 = vpop.f32.mrf.mxu0
      %v2312 = vadd.f32 0.0, %v2311
      %2313 = vmatmul.f32.gmra.mxu0 %v2286
      %v2314 = vpop.f32.mrf.mxu0
      %v2315 = vadd.f32 0.0, %v2314
      %2316 = vdwg.mxu0
      %2317 = vmatpush.msra.mxu0 0.0
      %2318 = vmatpush.msra.mxu0 0.0
      %2319 = vmatpush.msra.mxu0 0.0
      %2320 = vmatpush.msra.mxu0 0.0
      %2321 = vmatpush.msra.mxu0 %v2292
      %2322 = vmatpush.msra.mxu0 %v2275
      %2323 = vmatpush.msra.mxu0 %v2273
      %2324 = vmatpush.msra.mxu0 %v2271
      %2325 = vmatpush.msra.mxu0 %v2269
      %2326 = vmatpush.msra.mxu0 %v2267
      %2327 = vmatpush.msra.mxu0 %v2265
      %2328 = vmatpush.msra.mxu0 %v2263
      %2329 = vmatpush.msra.mxu0 %v2261
      %2330 = vmatpush.msra.mxu0 %v2259
      %2331 = vmatpush.msra.mxu0 %v2257
      %2332 = vmatpush.msra.mxu0 %v2255
      %2333 = vmatmul.f32.gmra.mxu0 %v2284
      %v2334 = vpop.f32.mrf.mxu0
      %v2335 = vadd.f32 0.0, %v2334
      %2336 = vmatmul.f32.gmra.mxu0 %v2286
      %v2337 = vpop.f32.mrf.mxu0
      %v2338 = vadd.f32 0.0, %v2337
      %2339 = vdwg.mxu0
      %v2340 = vsel %vm911, %v2221, 0
      %v2342 = vsel %vm911, %v2224, 0
      %v2345 = vsel %vm920, %v2251, 0
      %v2348 = vsel %vm920, %v2252, 0
      %2350 = vmatpush.msra.mxu0 0.0
      %2351 = vmatpush.msra.mxu0 0.0
      %2352 = vmatpush.msra.mxu0 0.0
      %2353 = vmatpush.msra.mxu0 0.0
      %2354 = vmatpush.msra.mxu0 %v2345
      %2355 = vmatpush.msra.mxu0 %v2249
      %2356 = vmatpush.msra.mxu0 %v2247
      %2357 = vmatpush.msra.mxu0 %v2245
      %2358 = vmatpush.msra.mxu0 %v2243
      %2359 = vmatpush.msra.mxu0 %v2241
      %2360 = vmatpush.msra.mxu0 %v2239
      %2361 = vmatpush.msra.mxu0 %v2237
      %2362 = vmatpush.msra.mxu0 %v2235
      %2363 = vmatpush.msra.mxu0 %v2233
      %2364 = vmatpush.msra.mxu0 %v2231
      %2365 = vmatpush.msra.mxu0 %v2229
      %2366 = vmatmul.f32.gmra.mxu0 %v2340
      %v2367 = vpop.f32.mrf.mxu0
      %v2368 = vadd.f32 %v2312, %v2367
      %2369 = vmatmul.f32.gmra.mxu0 %v2342
      %v2370 = vpop.f32.mrf.mxu0
      %v2371 = vadd.f32 %v2315, %v2370
      %2372 = vdwg.mxu0
      %2373 = vmatpush.msra.mxu0 0.0
      %2374 = vmatpush.msra.mxu0 0.0
      %2375 = vmatpush.msra.mxu0 0.0
      %2376 = vmatpush.msra.mxu0 0.0
      %2377 = vmatpush.msra.mxu0 %v2348
      %2378 = vmatpush.msra.mxu0 %v2250
      %2379 = vmatpush.msra.mxu0 %v2248
      %2380 = vmatpush.msra.mxu0 %v2246
      %2381 = vmatpush.msra.mxu0 %v2244
      %2382 = vmatpush.msra.mxu0 %v2242
      %2383 = vmatpush.msra.mxu0 %v2240
      %2384 = vmatpush.msra.mxu0 %v2238
      %2385 = vmatpush.msra.mxu0 %v2236
      %2386 = vmatpush.msra.mxu0 %v2234
      %2387 = vmatpush.msra.mxu0 %v2232
      %2388 = vmatpush.msra.mxu0 %v2230
      %2389 = vmatmul.f32.gmra.mxu0 %v2340
      %v2390 = vpop.f32.mrf.mxu0
      %v2391 = vadd.f32 %v2335, %v2390
      %2392 = vmatmul.f32.gmra.mxu0 %v2342
      %v2393 = vpop.f32.mrf.mxu0
      %v2394 = vadd.f32 %v2338, %v2393
      %2395 = vdwg.mxu0
      %s2396 = scalar_lea.vmem %s9, 384
      %v2397 = vld [vmem:[%s2396] sm:$0xff]
      %v2398 = vld [vmem:[%s2396 + $0x8] sm:$0xff]
      %v2399 = vld [vmem:[%s2396 + $0x10] sm:$0xff]
      %v2400 = vld [vmem:[%s2396 + $0x18] sm:$0xff]
      %v2401 = vld [vmem:[%s2396 + $0x20] sm:$0xff]
      %v2402 = vld [vmem:[%s2396 + $0x28] sm:$0xff]
      %v2403 = vld [vmem:[%s2396 + $0x30] sm:$0xff]
      %v2404 = vld [vmem:[%s2396 + $0x38] sm:$0xff]
      %v2405 = vld [vmem:[%s2396 + $0x40] sm:$0xff]
      %v2406 = vld [vmem:[%s2396 + $0x48] sm:$0xff]
      %v2407 = vld [vmem:[%s2396 + $0x50] sm:$0xff]
      %v2408 = vld [vmem:[%s2396 + $0x58] sm:$0xff]
      %v2409 = vld [vmem:[%s2396 + $0x60] sm:$0xff]
      %v2410 = vld [vmem:[%s2396 + $0x68] sm:$0xff]
      %v2411 = vld [vmem:[%s2396 + $0x70] sm:$0xff]
      %v2412 = vld [vmem:[%s2396 + $0x78] sm:$0xff]
      %v2413 = vld [vmem:[%s2396 + $0x80] sm:$0xff]
      %v2414 = vld [vmem:[%s2396 + $0x88] sm:$0xff]
      %v2415 = vld [vmem:[%s2396 + $0x90] sm:$0xff]
      %v2416 = vld [vmem:[%s2396 + $0x98] sm:$0xff]
      %v2417 = vld [vmem:[%s2396 + $0xa0] sm:$0xff]
      %v2418 = vld [vmem:[%s2396 + $0xa8] sm:$0xff]
      %v2419 = vld [vmem:[%s2396 + $0xb0] sm:$0x3]
      %v2420 = vld [vmem:[%s2396 + $0xb8] sm:$0x3]
      %2421 = vrot.lane.b32.xlu0 %v2221, 116
      %v2422 = vpop.permute.xlu0 %2421
      %2423 = vrot.lane.b32.xlu0 %v2224, 116
      %v2424 = vpop.permute.xlu0 %2423
      %v2425 = vsel %vm911, %v2422, 0
      %v2427 = vsel %vm911, %v2424, 0
      %v2430 = vsel %vm920, %v2419, 0
      %v2433 = vsel %vm920, %v2420, 0
      %2435 = vmatpush.msra.mxu0 0.0
      %2436 = vmatpush.msra.mxu0 0.0
      %2437 = vmatpush.msra.mxu0 0.0
      %2438 = vmatpush.msra.mxu0 0.0
      %2439 = vmatpush.msra.mxu0 %v2430
      %2440 = vmatpush.msra.mxu0 %v2417
      %2441 = vmatpush.msra.mxu0 %v2415
      %2442 = vmatpush.msra.mxu0 %v2413
      %2443 = vmatpush.msra.mxu0 %v2411
      %2444 = vmatpush.msra.mxu0 %v2409
      %2445 = vmatpush.msra.mxu0 %v2407
      %2446 = vmatpush.msra.mxu0 %v2405
      %2447 = vmatpush.msra.mxu0 %v2403
      %2448 = vmatpush.msra.mxu0 %v2401
      %2449 = vmatpush.msra.mxu0 %v2399
      %2450 = vmatpush.msra.mxu0 %v2397
      %2451 = vmatmul.f32.gmra.mxu0 %v2425
      %v2452 = vpop.f32.mrf.mxu0
      %v2453 = vadd.f32 0.0, %v2452
      %2454 = vmatmul.f32.gmra.mxu0 %v2427
      %v2455 = vpop.f32.mrf.mxu0
      %v2456 = vadd.f32 0.0, %v2455
      %2457 = vdwg.mxu0
      %2458 = vmatpush.msra.mxu0 0.0
      %2459 = vmatpush.msra.mxu0 0.0
      %2460 = vmatpush.msra.mxu0 0.0
      %2461 = vmatpush.msra.mxu0 0.0
      %2462 = vmatpush.msra.mxu0 %v2433
      %2463 = vmatpush.msra.mxu0 %v2418
      %2464 = vmatpush.msra.mxu0 %v2416
      %2465 = vmatpush.msra.mxu0 %v2414
      %2466 = vmatpush.msra.mxu0 %v2412
      %2467 = vmatpush.msra.mxu0 %v2410
      %2468 = vmatpush.msra.mxu0 %v2408
      %2469 = vmatpush.msra.mxu0 %v2406
      %2470 = vmatpush.msra.mxu0 %v2404
      %2471 = vmatpush.msra.mxu0 %v2402
      %2472 = vmatpush.msra.mxu0 %v2400
      %2473 = vmatpush.msra.mxu0 %v2398
      %2474 = vmatmul.f32.gmra.mxu0 %v2425
      %v2475 = vpop.f32.mrf.mxu0
      %v2476 = vadd.f32 0.0, %v2475
      %2477 = vmatmul.f32.gmra.mxu0 %v2427
      %v2478 = vpop.f32.mrf.mxu0
      %v2479 = vadd.f32 0.0, %v2478
      %2480 = vdwg.mxu0
      %v2481 = vadd.f32 %v2368, %v2453
      %v2482 = vadd.f32 %v2391, %v2476
      %v2483 = vadd.f32 %v2371, %v2456
      %v2484 = vadd.f32 %v2394, %v2479
      %s2485 = scalar_lea.vmem %s9, 576
      %v2486 = vld [vmem:[%s2485] sm:$0xff]
      %v2487 = vld [vmem:[%s2485 + $0x8] sm:$0xff]
      %v2488 = vld [vmem:[%s2485 + $0x10] sm:$0xff]
      %v2489 = vld [vmem:[%s2485 + $0x18] sm:$0xff]
      %v2490 = vld [vmem:[%s2485 + $0x20] sm:$0xff]
      %v2491 = vld [vmem:[%s2485 + $0x28] sm:$0xff]
      %v2492 = vld [vmem:[%s2485 + $0x30] sm:$0xff]
      %v2493 = vld [vmem:[%s2485 + $0x38] sm:$0xff]
      %v2494 = vld [vmem:[%s2485 + $0x40] sm:$0xff]
      %v2495 = vld [vmem:[%s2485 + $0x48] sm:$0xff]
      %v2496 = vld [vmem:[%s2485 + $0x50] sm:$0xff]
      %v2497 = vld [vmem:[%s2485 + $0x58] sm:$0xff]
      %v2498 = vld [vmem:[%s2485 + $0x60] sm:$0xff]
      %v2499 = vld [vmem:[%s2485 + $0x68] sm:$0xff]
      %v2500 = vld [vmem:[%s2485 + $0x70] sm:$0xff]
      %v2501 = vld [vmem:[%s2485 + $0x78] sm:$0xff]
      %v2502 = vld [vmem:[%s2485 + $0x80] sm:$0xff]
      %v2503 = vld [vmem:[%s2485 + $0x88] sm:$0xff]
      %v2504 = vld [vmem:[%s2485 + $0x90] sm:$0xff]
      %v2505 = vld [vmem:[%s2485 + $0x98] sm:$0xff]
      %v2506 = vld [vmem:[%s2485 + $0xa0] sm:$0xff]
      %v2507 = vld [vmem:[%s2485 + $0xa8] sm:$0xff]
      %v2508 = vld [vmem:[%s2485 + $0xb0] sm:$0x3]
      %v2509 = vld [vmem:[%s2485 + $0xb8] sm:$0x3]
      %2510 = vrot.lane.b32.xlu0 %v2221, 110
      %v2511 = vpop.permute.xlu0 %2510
      %2512 = vrot.lane.b32.xlu0 %v2224, 110
      %v2513 = vpop.permute.xlu0 %2512
      %v2514 = vsel %vm911, %v2511, 0
      %v2516 = vsel %vm911, %v2513, 0
      %v2519 = vsel %vm920, %v2508, 0
      %v2522 = vsel %vm920, %v2509, 0
      %2524 = vmatpush.msra.mxu0 0.0
      %2525 = vmatpush.msra.mxu0 0.0
      %2526 = vmatpush.msra.mxu0 0.0
      %2527 = vmatpush.msra.mxu0 0.0
      %2528 = vmatpush.msra.mxu0 %v2519
      %2529 = vmatpush.msra.mxu0 %v2506
      %2530 = vmatpush.msra.mxu0 %v2504
      %2531 = vmatpush.msra.mxu0 %v2502
      %2532 = vmatpush.msra.mxu0 %v2500
      %2533 = vmatpush.msra.mxu0 %v2498
      %2534 = vmatpush.msra.mxu0 %v2496
      %2535 = vmatpush.msra.mxu0 %v2494
      %2536 = vmatpush.msra.mxu0 %v2492
      %2537 = vmatpush.msra.mxu0 %v2490
      %2538 = vmatpush.msra.mxu0 %v2488
      %2539 = vmatpush.msra.mxu0 %v2486
      %2540 = vmatmul.f32.gmra.mxu0 %v2514
      %v2541 = vpop.f32.mrf.mxu0
      %v2542 = vadd.f32 0.0, %v2541
      %2543 = vmatmul.f32.gmra.mxu0 %v2516
      %v2544 = vpop.f32.mrf.mxu0
      %v2545 = vadd.f32 0.0, %v2544
      %2546 = vdwg.mxu0
      %2547 = vmatpush.msra.mxu0 0.0
      %2548 = vmatpush.msra.mxu0 0.0
      %2549 = vmatpush.msra.mxu0 0.0
      %2550 = vmatpush.msra.mxu0 0.0
      %2551 = vmatpush.msra.mxu0 %v2522
      %2552 = vmatpush.msra.mxu0 %v2507
      %2553 = vmatpush.msra.mxu0 %v2505
      %2554 = vmatpush.msra.mxu0 %v2503
      %2555 = vmatpush.msra.mxu0 %v2501
      %2556 = vmatpush.msra.mxu0 %v2499
      %2557 = vmatpush.msra.mxu0 %v2497
      %2558 = vmatpush.msra.mxu0 %v2495
      %2559 = vmatpush.msra.mxu0 %v2493
      %2560 = vmatpush.msra.mxu0 %v2491
      %2561 = vmatpush.msra.mxu0 %v2489
      %2562 = vmatpush.msra.mxu0 %v2487
      %2563 = vmatmul.f32.gmra.mxu0 %v2514
      %v2564 = vpop.f32.mrf.mxu0
      %v2565 = vadd.f32 0.0, %v2564
      %2566 = vmatmul.f32.gmra.mxu0 %v2516
      %v2567 = vpop.f32.mrf.mxu0
      %v2568 = vadd.f32 0.0, %v2567
      %2569 = vdwg.mxu0
      %v2570 = vadd.f32 %v2481, %v2542
      %v2571 = vadd.f32 %v2482, %v2565
      %v2572 = vadd.f32 %v2483, %v2545
      %v2573 = vadd.f32 %v2484, %v2568
      %s2574 = scalar_lea.vmem %s9, 768
      %v2575 = vld [vmem:[%s2574] sm:$0xff]
      %v2576 = vld [vmem:[%s2574 + $0x8] sm:$0xff]
      %v2577 = vld [vmem:[%s2574 + $0x10] sm:$0xff]
      %v2578 = vld [vmem:[%s2574 + $0x18] sm:$0xff]
      %v2579 = vld [vmem:[%s2574 + $0x20] sm:$0xff]
      %v2580 = vld [vmem:[%s2574 + $0x28] sm:$0xff]
      %v2581 = vld [vmem:[%s2574 + $0x30] sm:$0xff]
      %v2582 = vld [vmem:[%s2574 + $0x38] sm:$0xff]
      %v2583 = vld [vmem:[%s2574 + $0x40] sm:$0xff]
      %v2584 = vld [vmem:[%s2574 + $0x48] sm:$0xff]
      %v2585 = vld [vmem:[%s2574 + $0x50] sm:$0xff]
      %v2586 = vld [vmem:[%s2574 + $0x58] sm:$0xff]
      %v2587 = vld [vmem:[%s2574 + $0x60] sm:$0xff]
      %v2588 = vld [vmem:[%s2574 + $0x68] sm:$0xff]
      %v2589 = vld [vmem:[%s2574 + $0x70] sm:$0xff]
      %v2590 = vld [vmem:[%s2574 + $0x78] sm:$0xff]
      %v2591 = vld [vmem:[%s2574 + $0x80] sm:$0xff]
      %v2592 = vld [vmem:[%s2574 + $0x88] sm:$0xff]
      %v2593 = vld [vmem:[%s2574 + $0x90] sm:$0xff]
      %v2594 = vld [vmem:[%s2574 + $0x98] sm:$0xff]
      %v2595 = vld [vmem:[%s2574 + $0xa0] sm:$0xff]
      %v2596 = vld [vmem:[%s2574 + $0xa8] sm:$0xff]
      %v2597 = vld [vmem:[%s2574 + $0xb0] sm:$0x3]
      %v2598 = vld [vmem:[%s2574 + $0xb8] sm:$0x3]
      %2599 = vrot.lane.b32.xlu0 %v2221, 104
      %v2600 = vpop.permute.xlu0 %2599
      %2601 = vrot.lane.b32.xlu0 %v2224, 104
      %v2602 = vpop.permute.xlu0 %2601
      %v2603 = vsel %vm911, %v2600, 0
      %v2605 = vsel %vm911, %v2602, 0
      %v2608 = vsel %vm920, %v2597, 0
      %v2611 = vsel %vm920, %v2598, 0
      %2613 = vmatpush.msra.mxu0 0.0
      %2614 = vmatpush.msra.mxu0 0.0
      %2615 = vmatpush.msra.mxu0 0.0
      %2616 = vmatpush.msra.mxu0 0.0
      %2617 = vmatpush.msra.mxu0 %v2608
      %2618 = vmatpush.msra.mxu0 %v2595
      %2619 = vmatpush.msra.mxu0 %v2593
      %2620 = vmatpush.msra.mxu0 %v2591
      %2621 = vmatpush.msra.mxu0 %v2589
      %2622 = vmatpush.msra.mxu0 %v2587
      %2623 = vmatpush.msra.mxu0 %v2585
      %2624 = vmatpush.msra.mxu0 %v2583
      %2625 = vmatpush.msra.mxu0 %v2581
      %2626 = vmatpush.msra.mxu0 %v2579
      %2627 = vmatpush.msra.mxu0 %v2577
      %2628 = vmatpush.msra.mxu0 %v2575
      %2629 = vmatmul.f32.gmra.mxu0 %v2603
      %v2630 = vpop.f32.mrf.mxu0
      %v2631 = vadd.f32 0.0, %v2630
      %2632 = vmatmul.f32.gmra.mxu0 %v2605
      %v2633 = vpop.f32.mrf.mxu0
      %v2634 = vadd.f32 0.0, %v2633
      %2635 = vdwg.mxu0
      %2636 = vmatpush.msra.mxu0 0.0
      %2637 = vmatpush.msra.mxu0 0.0
      %2638 = vmatpush.msra.mxu0 0.0
      %2639 = vmatpush.msra.mxu0 0.0
      %2640 = vmatpush.msra.mxu0 %v2611
      %2641 = vmatpush.msra.mxu0 %v2596
      %2642 = vmatpush.msra.mxu0 %v2594
      %2643 = vmatpush.msra.mxu0 %v2592
      %2644 = vmatpush.msra.mxu0 %v2590
      %2645 = vmatpush.msra.mxu0 %v2588
      %2646 = vmatpush.msra.mxu0 %v2586
      %2647 = vmatpush.msra.mxu0 %v2584
      %2648 = vmatpush.msra.mxu0 %v2582
      %2649 = vmatpush.msra.mxu0 %v2580
      %2650 = vmatpush.msra.mxu0 %v2578
      %2651 = vmatpush.msra.mxu0 %v2576
      %2652 = vmatmul.f32.gmra.mxu0 %v2603
      %v2653 = vpop.f32.mrf.mxu0
      %v2654 = vadd.f32 0.0, %v2653
      %2655 = vmatmul.f32.gmra.mxu0 %v2605
      %v2656 = vpop.f32.mrf.mxu0
      %v2657 = vadd.f32 0.0, %v2656
      %2658 = vdwg.mxu0
      %v2659 = vadd.f32 %v2570, %v2631
      %v2660 = vadd.f32 %v2571, %v2654
      %v2661 = vadd.f32 %v2572, %v2634
      %v2662 = vadd.f32 %v2573, %v2657
      %s2663 = scalar_lea.vmem %s9, 960
      %v2664 = vld [vmem:[%s2663] sm:$0xff]
      %v2665 = vld [vmem:[%s2663 + $0x8] sm:$0xff]
      %v2666 = vld [vmem:[%s2663 + $0x10] sm:$0xff]
      %v2667 = vld [vmem:[%s2663 + $0x18] sm:$0xff]
      %v2668 = vld [vmem:[%s2663 + $0x20] sm:$0xff]
      %v2669 = vld [vmem:[%s2663 + $0x28] sm:$0xff]
      %v2670 = vld [vmem:[%s2663 + $0x30] sm:$0xff]
      %v2671 = vld [vmem:[%s2663 + $0x38] sm:$0xff]
      %v2672 = vld [vmem:[%s2663 + $0x40] sm:$0xff]
      %v2673 = vld [vmem:[%s2663 + $0x48] sm:$0xff]
      %v2674 = vld [vmem:[%s2663 + $0x50] sm:$0xff]
      %v2675 = vld [vmem:[%s2663 + $0x58] sm:$0xff]
      %v2676 = vld [vmem:[%s2663 + $0x60] sm:$0xff]
      %v2677 = vld [vmem:[%s2663 + $0x68] sm:$0xff]
      %v2678 = vld [vmem:[%s2663 + $0x70] sm:$0xff]
      %v2679 = vld [vmem:[%s2663 + $0x78] sm:$0xff]
      %v2680 = vld [vmem:[%s2663 + $0x80] sm:$0xff]
      %v2681 = vld [vmem:[%s2663 + $0x88] sm:$0xff]
      %v2682 = vld [vmem:[%s2663 + $0x90] sm:$0xff]
      %v2683 = vld [vmem:[%s2663 + $0x98] sm:$0xff]
      %v2684 = vld [vmem:[%s2663 + $0xa0] sm:$0xff]
      %v2685 = vld [vmem:[%s2663 + $0xa8] sm:$0xff]
      %v2686 = vld [vmem:[%s2663 + $0xb0] sm:$0x3]
      %v2687 = vld [vmem:[%s2663 + $0xb8] sm:$0x3]
      %v2688 = vrot.slane %v2221, 1
      %v2689 = vrot.slane %v2224, 1
      %v2690 = vsel %vm1195, %v2688, %v2689
      %v2691 = vsel %vm911, %v2690, 0
      %v2693 = vsel %vm911, %v2689, 0
      %v2696 = vsel %vm920, %v2686, 0
      %v2699 = vsel %vm920, %v2687, 0
      %2701 = vmatpush.msra.mxu0 0.0
      %2702 = vmatpush.msra.mxu0 0.0
      %2703 = vmatpush.msra.mxu0 0.0
      %2704 = vmatpush.msra.mxu0 0.0
      %2705 = vmatpush.msra.mxu0 %v2696
      %2706 = vmatpush.msra.mxu0 %v2684
      %2707 = vmatpush.msra.mxu0 %v2682
      %2708 = vmatpush.msra.mxu0 %v2680
      %2709 = vmatpush.msra.mxu0 %v2678
      %2710 = vmatpush.msra.mxu0 %v2676
      %2711 = vmatpush.msra.mxu0 %v2674
      %2712 = vmatpush.msra.mxu0 %v2672
      %2713 = vmatpush.msra.mxu0 %v2670
      %2714 = vmatpush.msra.mxu0 %v2668
      %2715 = vmatpush.msra.mxu0 %v2666
      %2716 = vmatpush.msra.mxu0 %v2664
      %2717 = vmatmul.f32.gmra.mxu0 %v2691
      %v2718 = vpop.f32.mrf.mxu0
      %v2719 = vadd.f32 0.0, %v2718
      %2720 = vmatmul.f32.gmra.mxu0 %v2693
      %v2721 = vpop.f32.mrf.mxu0
      %v2722 = vadd.f32 0.0, %v2721
      %2723 = vdwg.mxu0
      %2724 = vmatpush.msra.mxu0 0.0
      %2725 = vmatpush.msra.mxu0 0.0
      %2726 = vmatpush.msra.mxu0 0.0
      %2727 = vmatpush.msra.mxu0 0.0
      %2728 = vmatpush.msra.mxu0 %v2699
      %2729 = vmatpush.msra.mxu0 %v2685
      %2730 = vmatpush.msra.mxu0 %v2683
      %2731 = vmatpush.msra.mxu0 %v2681
      %2732 = vmatpush.msra.mxu0 %v2679
      %2733 = vmatpush.msra.mxu0 %v2677
      %2734 = vmatpush.msra.mxu0 %v2675
      %2735 = vmatpush.msra.mxu0 %v2673
      %2736 = vmatpush.msra.mxu0 %v2671
      %2737 = vmatpush.msra.mxu0 %v2669
      %2738 = vmatpush.msra.mxu0 %v2667
      %2739 = vmatpush.msra.mxu0 %v2665
      %2740 = vmatmul.f32.gmra.mxu0 %v2691
      %v2741 = vpop.f32.mrf.mxu0
      %v2742 = vadd.f32 0.0, %v2741
      %2743 = vmatmul.f32.gmra.mxu0 %v2693
      %v2744 = vpop.f32.mrf.mxu0
      %v2745 = vadd.f32 0.0, %v2744
      %2746 = vdwg.mxu0
      %v2747 = vadd.f32 %v2659, %v2719
      %v2748 = vadd.f32 %v2660, %v2742
      %v2749 = vadd.f32 %v2661, %v2722
      %v2750 = vadd.f32 %v2662, %v2745
      %s2751 = scalar_lea.vmem %s9, 1152
      %v2752 = vld [vmem:[%s2751] sm:$0xff]
      %v2753 = vld [vmem:[%s2751 + $0x8] sm:$0xff]
      %v2754 = vld [vmem:[%s2751 + $0x10] sm:$0xff]
      %v2755 = vld [vmem:[%s2751 + $0x18] sm:$0xff]
      %v2756 = vld [vmem:[%s2751 + $0x20] sm:$0xff]
      %v2757 = vld [vmem:[%s2751 + $0x28] sm:$0xff]
      %v2758 = vld [vmem:[%s2751 + $0x30] sm:$0xff]
      %v2759 = vld [vmem:[%s2751 + $0x38] sm:$0xff]
      %v2760 = vld [vmem:[%s2751 + $0x40] sm:$0xff]
      %v2761 = vld [vmem:[%s2751 + $0x48] sm:$0xff]
      %v2762 = vld [vmem:[%s2751 + $0x50] sm:$0xff]
      %v2763 = vld [vmem:[%s2751 + $0x58] sm:$0xff]
      %v2764 = vld [vmem:[%s2751 + $0x60] sm:$0xff]
      %v2765 = vld [vmem:[%s2751 + $0x68] sm:$0xff]
      %v2766 = vld [vmem:[%s2751 + $0x70] sm:$0xff]
      %v2767 = vld [vmem:[%s2751 + $0x78] sm:$0xff]
      %v2768 = vld [vmem:[%s2751 + $0x80] sm:$0xff]
      %v2769 = vld [vmem:[%s2751 + $0x88] sm:$0xff]
      %v2770 = vld [vmem:[%s2751 + $0x90] sm:$0xff]
      %v2771 = vld [vmem:[%s2751 + $0x98] sm:$0xff]
      %v2772 = vld [vmem:[%s2751 + $0xa0] sm:$0xff]
      %v2773 = vld [vmem:[%s2751 + $0xa8] sm:$0xff]
      %v2774 = vld [vmem:[%s2751 + $0xb0] sm:$0x3]
      %v2775 = vld [vmem:[%s2751 + $0xb8] sm:$0x3]
      %2776 = vrot.lane.b32.xlu0 %v2690, 122
      %v2777 = vpop.permute.xlu0 %2776
      %2778 = vrot.lane.b32.xlu0 %v2689, 122
      %v2779 = vpop.permute.xlu0 %2778
      %v2780 = vsel %vm911, %v2777, 0
      %v2782 = vsel %vm911, %v2779, 0
      %v2785 = vsel %vm920, %v2774, 0
      %v2788 = vsel %vm920, %v2775, 0
      %2790 = vmatpush.msra.mxu0 0.0
      %2791 = vmatpush.msra.mxu0 0.0
      %2792 = vmatpush.msra.mxu0 0.0
      %2793 = vmatpush.msra.mxu0 0.0
      %2794 = vmatpush.msra.mxu0 %v2785
      %2795 = vmatpush.msra.mxu0 %v2772
      %2796 = vmatpush.msra.mxu0 %v2770
      %2797 = vmatpush.msra.mxu0 %v2768
      %2798 = vmatpush.msra.mxu0 %v2766
      %2799 = vmatpush.msra.mxu0 %v2764
      %2800 = vmatpush.msra.mxu0 %v2762
      %2801 = vmatpush.msra.mxu0 %v2760
      %2802 = vmatpush.msra.mxu0 %v2758
      %2803 = vmatpush.msra.mxu0 %v2756
      %2804 = vmatpush.msra.mxu0 %v2754
      %2805 = vmatpush.msra.mxu0 %v2752
      %2806 = vmatmul.f32.gmra.mxu0 %v2780
      %v2807 = vpop.f32.mrf.mxu0
      %v2808 = vadd.f32 0.0, %v2807
      %2809 = vmatmul.f32.gmra.mxu0 %v2782
      %v2810 = vpop.f32.mrf.mxu0
      %v2811 = vadd.f32 0.0, %v2810
      %2812 = vdwg.mxu0
      %2813 = vmatpush.msra.mxu0 0.0
      %2814 = vmatpush.msra.mxu0 0.0
      %2815 = vmatpush.msra.mxu0 0.0
      %2816 = vmatpush.msra.mxu0 0.0
      %2817 = vmatpush.msra.mxu0 %v2788
      %2818 = vmatpush.msra.mxu0 %v2773
      %2819 = vmatpush.msra.mxu0 %v2771
      %2820 = vmatpush.msra.mxu0 %v2769
      %2821 = vmatpush.msra.mxu0 %v2767
      %2822 = vmatpush.msra.mxu0 %v2765
      %2823 = vmatpush.msra.mxu0 %v2763
      %2824 = vmatpush.msra.mxu0 %v2761
      %2825 = vmatpush.msra.mxu0 %v2759
      %2826 = vmatpush.msra.mxu0 %v2757
      %2827 = vmatpush.msra.mxu0 %v2755
      %2828 = vmatpush.msra.mxu0 %v2753
      %2829 = vmatmul.f32.gmra.mxu0 %v2780
      %v2830 = vpop.f32.mrf.mxu0
      %v2831 = vadd.f32 0.0, %v2830
      %2832 = vmatmul.f32.gmra.mxu0 %v2782
      %v2833 = vpop.f32.mrf.mxu0
      %v2834 = vadd.f32 0.0, %v2833
      %2835 = vdwg.mxu0
      %v2836 = vadd.f32 %v2747, %v2808
      %v2837 = vadd.f32 %v2748, %v2831
      %v2838 = vadd.f32 %v2749, %v2811
      %v2839 = vadd.f32 %v2750, %v2834
      %s2840 = scalar_lea.vmem %s9, 1344
      %v2841 = vld [vmem:[%s2840] sm:$0xff]
      %v2842 = vld [vmem:[%s2840 + $0x8] sm:$0xff]
      %v2843 = vld [vmem:[%s2840 + $0x10] sm:$0xff]
      %v2844 = vld [vmem:[%s2840 + $0x18] sm:$0xff]
      %v2845 = vld [vmem:[%s2840 + $0x20] sm:$0xff]
      %v2846 = vld [vmem:[%s2840 + $0x28] sm:$0xff]
      %v2847 = vld [vmem:[%s2840 + $0x30] sm:$0xff]
      %v2848 = vld [vmem:[%s2840 + $0x38] sm:$0xff]
      %v2849 = vld [vmem:[%s2840 + $0x40] sm:$0xff]
      %v2850 = vld [vmem:[%s2840 + $0x48] sm:$0xff]
      %v2851 = vld [vmem:[%s2840 + $0x50] sm:$0xff]
      %v2852 = vld [vmem:[%s2840 + $0x58] sm:$0xff]
      %v2853 = vld [vmem:[%s2840 + $0x60] sm:$0xff]
      %v2854 = vld [vmem:[%s2840 + $0x68] sm:$0xff]
      %v2855 = vld [vmem:[%s2840 + $0x70] sm:$0xff]
      %v2856 = vld [vmem:[%s2840 + $0x78] sm:$0xff]
      %v2857 = vld [vmem:[%s2840 + $0x80] sm:$0xff]
      %v2858 = vld [vmem:[%s2840 + $0x88] sm:$0xff]
      %v2859 = vld [vmem:[%s2840 + $0x90] sm:$0xff]
      %v2860 = vld [vmem:[%s2840 + $0x98] sm:$0xff]
      %v2861 = vld [vmem:[%s2840 + $0xa0] sm:$0xff]
      %v2862 = vld [vmem:[%s2840 + $0xa8] sm:$0xff]
      %v2863 = vld [vmem:[%s2840 + $0xb0] sm:$0x3]
      %v2864 = vld [vmem:[%s2840 + $0xb8] sm:$0x3]
      %2865 = vrot.lane.b32.xlu0 %v2690, 116
      %v2866 = vpop.permute.xlu0 %2865
      %2867 = vrot.lane.b32.xlu0 %v2689, 116
      %v2868 = vpop.permute.xlu0 %2867
      %v2869 = vsel %vm911, %v2866, 0
      %v2871 = vsel %vm911, %v2868, 0
      %v2874 = vsel %vm920, %v2863, 0
      %v2877 = vsel %vm920, %v2864, 0
      %2879 = vmatpush.msra.mxu0 0.0
      %2880 = vmatpush.msra.mxu0 0.0
      %2881 = vmatpush.msra.mxu0 0.0
      %2882 = vmatpush.msra.mxu0 0.0
      %2883 = vmatpush.msra.mxu0 %v2874
      %2884 = vmatpush.msra.mxu0 %v2861
      %2885 = vmatpush.msra.mxu0 %v2859
      %2886 = vmatpush.msra.mxu0 %v2857
      %2887 = vmatpush.msra.mxu0 %v2855
      %2888 = vmatpush.msra.mxu0 %v2853
      %2889 = vmatpush.msra.mxu0 %v2851
      %2890 = vmatpush.msra.mxu0 %v2849
      %2891 = vmatpush.msra.mxu0 %v2847
      %2892 = vmatpush.msra.mxu0 %v2845
      %2893 = vmatpush.msra.mxu0 %v2843
      %2894 = vmatpush.msra.mxu0 %v2841
      %2895 = vmatmul.f32.gmra.mxu0 %v2869
      %v2896 = vpop.f32.mrf.mxu0
      %v2897 = vadd.f32 0.0, %v2896
      %2898 = vmatmul.f32.gmra.mxu0 %v2871
      %v2899 = vpop.f32.mrf.mxu0
      %v2900 = vadd.f32 0.0, %v2899
      %2901 = vdwg.mxu0
      %2902 = vmatpush.msra.mxu0 0.0
      %2903 = vmatpush.msra.mxu0 0.0
      %2904 = vmatpush.msra.mxu0 0.0
      %2905 = vmatpush.msra.mxu0 0.0
      %2906 = vmatpush.msra.mxu0 %v2877
      %2907 = vmatpush.msra.mxu0 %v2862
      %2908 = vmatpush.msra.mxu0 %v2860
      %2909 = vmatpush.msra.mxu0 %v2858
      %2910 = vmatpush.msra.mxu0 %v2856
      %2911 = vmatpush.msra.mxu0 %v2854
      %2912 = vmatpush.msra.mxu0 %v2852
      %2913 = vmatpush.msra.mxu0 %v2850
      %2914 = vmatpush.msra.mxu0 %v2848
      %2915 = vmatpush.msra.mxu0 %v2846
      %2916 = vmatpush.msra.mxu0 %v2844
      %2917 = vmatpush.msra.mxu0 %v2842
      %2918 = vmatmul.f32.gmra.mxu0 %v2869
      %v2919 = vpop.f32.mrf.mxu0
      %v2920 = vadd.f32 0.0, %v2919
      %2921 = vmatmul.f32.gmra.mxu0 %v2871
      %v2922 = vpop.f32.mrf.mxu0
      %v2923 = vadd.f32 0.0, %v2922
      %2924 = vdwg.mxu0
      %v2925 = vadd.f32 %v2836, %v2897
      %v2926 = vadd.f32 %v2837, %v2920
      %v2927 = vadd.f32 %v2838, %v2900
      %v2928 = vadd.f32 %v2839, %v2923
      %s2929 = scalar_lea.vmem %s9, 1536
      %v2930 = vld [vmem:[%s2929] sm:$0xff]
      %v2931 = vld [vmem:[%s2929 + $0x8] sm:$0xff]
      %v2932 = vld [vmem:[%s2929 + $0x10] sm:$0xff]
      %v2933 = vld [vmem:[%s2929 + $0x18] sm:$0xff]
      %v2934 = vld [vmem:[%s2929 + $0x20] sm:$0xff]
      %v2935 = vld [vmem:[%s2929 + $0x28] sm:$0xff]
      %v2936 = vld [vmem:[%s2929 + $0x30] sm:$0xff]
      %v2937 = vld [vmem:[%s2929 + $0x38] sm:$0xff]
      %v2938 = vld [vmem:[%s2929 + $0x40] sm:$0xff]
      %v2939 = vld [vmem:[%s2929 + $0x48] sm:$0xff]
      %v2940 = vld [vmem:[%s2929 + $0x50] sm:$0xff]
      %v2941 = vld [vmem:[%s2929 + $0x58] sm:$0xff]
      %v2942 = vld [vmem:[%s2929 + $0x60] sm:$0xff]
      %v2943 = vld [vmem:[%s2929 + $0x68] sm:$0xff]
      %v2944 = vld [vmem:[%s2929 + $0x70] sm:$0xff]
      %v2945 = vld [vmem:[%s2929 + $0x78] sm:$0xff]
      %v2946 = vld [vmem:[%s2929 + $0x80] sm:$0xff]
      %v2947 = vld [vmem:[%s2929 + $0x88] sm:$0xff]
      %v2948 = vld [vmem:[%s2929 + $0x90] sm:$0xff]
      %v2949 = vld [vmem:[%s2929 + $0x98] sm:$0xff]
      %v2950 = vld [vmem:[%s2929 + $0xa0] sm:$0xff]
      %v2951 = vld [vmem:[%s2929 + $0xa8] sm:$0xff]
      %v2952 = vld [vmem:[%s2929 + $0xb0] sm:$0x3]
      %v2953 = vld [vmem:[%s2929 + $0xb8] sm:$0x3]
      %2954 = vrot.lane.b32.xlu0 %v2690, 110
      %v2955 = vpop.permute.xlu0 %2954
      %2956 = vrot.lane.b32.xlu0 %v2689, 110
      %v2957 = vpop.permute.xlu0 %2956
      %v2958 = vsel %vm911, %v2955, 0
      %v2960 = vsel %vm911, %v2957, 0
      %v2963 = vsel %vm920, %v2952, 0
      %v2966 = vsel %vm920, %v2953, 0
      %2968 = vmatpush.msra.mxu0 0.0
      %2969 = vmatpush.msra.mxu0 0.0
      %2970 = vmatpush.msra.mxu0 0.0
      %2971 = vmatpush.msra.mxu0 0.0
      %2972 = vmatpush.msra.mxu0 %v2963
      %2973 = vmatpush.msra.mxu0 %v2950
      %2974 = vmatpush.msra.mxu0 %v2948
      %2975 = vmatpush.msra.mxu0 %v2946
      %2976 = vmatpush.msra.mxu0 %v2944
      %2977 = vmatpush.msra.mxu0 %v2942
      %2978 = vmatpush.msra.mxu0 %v2940
      %2979 = vmatpush.msra.mxu0 %v2938
      %2980 = vmatpush.msra.mxu0 %v2936
      %2981 = vmatpush.msra.mxu0 %v2934
      %2982 = vmatpush.msra.mxu0 %v2932
      %2983 = vmatpush.msra.mxu0 %v2930
      %2984 = vmatmul.f32.gmra.mxu0 %v2958
      %v2985 = vpop.f32.mrf.mxu0
      %v2986 = vadd.f32 0.0, %v2985
      %2987 = vmatmul.f32.gmra.mxu0 %v2960
      %v2988 = vpop.f32.mrf.mxu0
      %v2989 = vadd.f32 0.0, %v2988
      %2990 = vdwg.mxu0
      %2991 = vmatpush.msra.mxu0 0.0
      %2992 = vmatpush.msra.mxu0 0.0
      %2993 = vmatpush.msra.mxu0 0.0
      %2994 = vmatpush.msra.mxu0 0.0
      %2995 = vmatpush.msra.mxu0 %v2966
      %2996 = vmatpush.msra.mxu0 %v2951
      %2997 = vmatpush.msra.mxu0 %v2949
      %2998 = vmatpush.msra.mxu0 %v2947
      %2999 = vmatpush.msra.mxu0 %v2945
      %3000 = vmatpush.msra.mxu0 %v2943
      %3001 = vmatpush.msra.mxu0 %v2941
      %3002 = vmatpush.msra.mxu0 %v2939
      %3003 = vmatpush.msra.mxu0 %v2937
      %3004 = vmatpush.msra.mxu0 %v2935
      %3005 = vmatpush.msra.mxu0 %v2933
      %3006 = vmatpush.msra.mxu0 %v2931
      %3007 = vmatmul.f32.gmra.mxu0 %v2958
      %v3008 = vpop.f32.mrf.mxu0
      %v3009 = vadd.f32 0.0, %v3008
      %3010 = vmatmul.f32.gmra.mxu0 %v2960
      %v3011 = vpop.f32.mrf.mxu0
      %v3012 = vadd.f32 0.0, %v3011
      %3013 = vdwg.mxu0
      %v3014 = vadd.f32 %v2925, %v2986
      %v3015 = vadd.f32 %v2926, %v3009
      %v3016 = vadd.f32 %v2927, %v2989
      %v3017 = vadd.f32 %v2928, %v3012
      %s3018 = scalar_lea.vmem %s9, 1728
      %v3019 = vld [vmem:[%s3018] sm:$0xff]
      %v3020 = vld [vmem:[%s3018 + $0x8] sm:$0xff]
      %v3021 = vld [vmem:[%s3018 + $0x10] sm:$0xff]
      %v3022 = vld [vmem:[%s3018 + $0x18] sm:$0xff]
      %v3023 = vld [vmem:[%s3018 + $0x20] sm:$0xff]
      %v3024 = vld [vmem:[%s3018 + $0x28] sm:$0xff]
      %v3025 = vld [vmem:[%s3018 + $0x30] sm:$0xff]
      %v3026 = vld [vmem:[%s3018 + $0x38] sm:$0xff]
      %v3027 = vld [vmem:[%s3018 + $0x40] sm:$0xff]
      %v3028 = vld [vmem:[%s3018 + $0x48] sm:$0xff]
      %v3029 = vld [vmem:[%s3018 + $0x50] sm:$0xff]
      %v3030 = vld [vmem:[%s3018 + $0x58] sm:$0xff]
      %v3031 = vld [vmem:[%s3018 + $0x60] sm:$0xff]
      %v3032 = vld [vmem:[%s3018 + $0x68] sm:$0xff]
      %v3033 = vld [vmem:[%s3018 + $0x70] sm:$0xff]
      %v3034 = vld [vmem:[%s3018 + $0x78] sm:$0xff]
      %v3035 = vld [vmem:[%s3018 + $0x80] sm:$0xff]
      %v3036 = vld [vmem:[%s3018 + $0x88] sm:$0xff]
      %v3037 = vld [vmem:[%s3018 + $0x90] sm:$0xff]
      %v3038 = vld [vmem:[%s3018 + $0x98] sm:$0xff]
      %v3039 = vld [vmem:[%s3018 + $0xa0] sm:$0xff]
      %v3040 = vld [vmem:[%s3018 + $0xa8] sm:$0xff]
      %v3041 = vld [vmem:[%s3018 + $0xb0] sm:$0x3]
      %v3042 = vld [vmem:[%s3018 + $0xb8] sm:$0x3]
      %3043 = vrot.lane.b32.xlu0 %v2690, 104
      %v3044 = vpop.permute.xlu0 %3043
      %3045 = vrot.lane.b32.xlu0 %v2689, 104
      %v3046 = vpop.permute.xlu0 %3045
      %v3047 = vsel %vm911, %v3044, 0
      %v3049 = vsel %vm911, %v3046, 0
      %v3052 = vsel %vm920, %v3041, 0
      %v3055 = vsel %vm920, %v3042, 0
      %3057 = vmatpush.msra.mxu0 0.0
      %3058 = vmatpush.msra.mxu0 0.0
      %3059 = vmatpush.msra.mxu0 0.0
      %3060 = vmatpush.msra.mxu0 0.0
      %3061 = vmatpush.msra.mxu0 %v3052
      %3062 = vmatpush.msra.mxu0 %v3039
      %3063 = vmatpush.msra.mxu0 %v3037
      %3064 = vmatpush.msra.mxu0 %v3035
      %3065 = vmatpush.msra.mxu0 %v3033
      %3066 = vmatpush.msra.mxu0 %v3031
      %3067 = vmatpush.msra.mxu0 %v3029
      %3068 = vmatpush.msra.mxu0 %v3027
      %3069 = vmatpush.msra.mxu0 %v3025
      %3070 = vmatpush.msra.mxu0 %v3023
      %3071 = vmatpush.msra.mxu0 %v3021
      %3072 = vmatpush.msra.mxu0 %v3019
      %3073 = vmatmul.f32.gmra.mxu0 %v3047
      %v3074 = vpop.f32.mrf.mxu0
      %v3075 = vadd.f32 0.0, %v3074
      %3076 = vmatmul.f32.gmra.mxu0 %v3049
      %v3077 = vpop.f32.mrf.mxu0
      %v3078 = vadd.f32 0.0, %v3077
      %3079 = vdwg.mxu0
      %3080 = vmatpush.msra.mxu0 0.0
      %3081 = vmatpush.msra.mxu0 0.0
      %3082 = vmatpush.msra.mxu0 0.0
      %3083 = vmatpush.msra.mxu0 0.0
      %3084 = vmatpush.msra.mxu0 %v3055
      %3085 = vmatpush.msra.mxu0 %v3040
      %3086 = vmatpush.msra.mxu0 %v3038
      %3087 = vmatpush.msra.mxu0 %v3036
      %3088 = vmatpush.msra.mxu0 %v3034
      %3089 = vmatpush.msra.mxu0 %v3032
      %3090 = vmatpush.msra.mxu0 %v3030
      %3091 = vmatpush.msra.mxu0 %v3028
      %3092 = vmatpush.msra.mxu0 %v3026
      %3093 = vmatpush.msra.mxu0 %v3024
      %3094 = vmatpush.msra.mxu0 %v3022
      %3095 = vmatpush.msra.mxu0 %v3020
      %3096 = vmatmul.f32.gmra.mxu0 %v3047
      %v3097 = vpop.f32.mrf.mxu0
      %v3098 = vadd.f32 0.0, %v3097
      %3099 = vmatmul.f32.gmra.mxu0 %v3049
      %v3100 = vpop.f32.mrf.mxu0
      %v3101 = vadd.f32 0.0, %v3100
      %3102 = vdwg.mxu0
      %v3103 = vadd.f32 %v3014, %v3075
      %v3104 = vadd.f32 %v3015, %v3098
      %v3105 = vadd.f32 %v3016, %v3078
      %v3106 = vadd.f32 %v3017, %v3101
      %s3107 = scalar_lea.vmem %s9, 1920
      %v3108 = vld [vmem:[%s3107] sm:$0xff]
      %v3109 = vld [vmem:[%s3107 + $0x8] sm:$0xff]
      %v3110 = vld [vmem:[%s3107 + $0x10] sm:$0xff]
      %v3111 = vld [vmem:[%s3107 + $0x18] sm:$0xff]
      %v3112 = vld [vmem:[%s3107 + $0x20] sm:$0xff]
      %v3113 = vld [vmem:[%s3107 + $0x28] sm:$0xff]
      %v3114 = vld [vmem:[%s3107 + $0x30] sm:$0xff]
      %v3115 = vld [vmem:[%s3107 + $0x38] sm:$0xff]
      %v3116 = vld [vmem:[%s3107 + $0x40] sm:$0xff]
      %v3117 = vld [vmem:[%s3107 + $0x48] sm:$0xff]
      %v3118 = vld [vmem:[%s3107 + $0x50] sm:$0xff]
      %v3119 = vld [vmem:[%s3107 + $0x58] sm:$0xff]
      %v3120 = vld [vmem:[%s3107 + $0x60] sm:$0xff]
      %v3121 = vld [vmem:[%s3107 + $0x68] sm:$0xff]
      %v3122 = vld [vmem:[%s3107 + $0x70] sm:$0xff]
      %v3123 = vld [vmem:[%s3107 + $0x78] sm:$0xff]
      %v3124 = vld [vmem:[%s3107 + $0x80] sm:$0xff]
      %v3125 = vld [vmem:[%s3107 + $0x88] sm:$0xff]
      %v3126 = vld [vmem:[%s3107 + $0x90] sm:$0xff]
      %v3127 = vld [vmem:[%s3107 + $0x98] sm:$0xff]
      %v3128 = vld [vmem:[%s3107 + $0xa0] sm:$0xff]
      %v3129 = vld [vmem:[%s3107 + $0xa8] sm:$0xff]
      %v3130 = vld [vmem:[%s3107 + $0xb0] sm:$0x3]
      %v3131 = vld [vmem:[%s3107 + $0xb8] sm:$0x3]
      %v3133 = vrot.slane %v2221, 2
      %v3134 = vrot.slane %v2224, 2
      %v3135 = vsel %vm1534, %v3133, %v3134
      %v3136 = vrot.slane %v2227, 2
      %v3137 = vsel %vm1534, %v3134, %v3136
      %v3138 = vsel %vm911, %v3135, 0
      %v3140 = vsel %vm911, %v3137, 0
      %v3143 = vsel %vm920, %v3130, 0
      %v3146 = vsel %vm920, %v3131, 0
      %3148 = vmatpush.msra.mxu0 0.0
      %3149 = vmatpush.msra.mxu0 0.0
      %3150 = vmatpush.msra.mxu0 0.0
      %3151 = vmatpush.msra.mxu0 0.0
      %3152 = vmatpush.msra.mxu0 %v3143
      %3153 = vmatpush.msra.mxu0 %v3128
      %3154 = vmatpush.msra.mxu0 %v3126
      %3155 = vmatpush.msra.mxu0 %v3124
      %3156 = vmatpush.msra.mxu0 %v3122
      %3157 = vmatpush.msra.mxu0 %v3120
      %3158 = vmatpush.msra.mxu0 %v3118
      %3159 = vmatpush.msra.mxu0 %v3116
      %3160 = vmatpush.msra.mxu0 %v3114
      %3161 = vmatpush.msra.mxu0 %v3112
      %3162 = vmatpush.msra.mxu0 %v3110
      %3163 = vmatpush.msra.mxu0 %v3108
      %3164 = vmatmul.f32.gmra.mxu0 %v3138
      %v3165 = vpop.f32.mrf.mxu0
      %v3166 = vadd.f32 0.0, %v3165
      %3167 = vmatmul.f32.gmra.mxu0 %v3140
      %v3168 = vpop.f32.mrf.mxu0
      %v3169 = vadd.f32 0.0, %v3168
      %3170 = vdwg.mxu0
      %3171 = vmatpush.msra.mxu0 0.0
      %3172 = vmatpush.msra.mxu0 0.0
      %3173 = vmatpush.msra.mxu0 0.0
      %3174 = vmatpush.msra.mxu0 0.0
      %3175 = vmatpush.msra.mxu0 %v3146
      %3176 = vmatpush.msra.mxu0 %v3129
      %3177 = vmatpush.msra.mxu0 %v3127
      %3178 = vmatpush.msra.mxu0 %v3125
      %3179 = vmatpush.msra.mxu0 %v3123
      %3180 = vmatpush.msra.mxu0 %v3121
      %3181 = vmatpush.msra.mxu0 %v3119
      %3182 = vmatpush.msra.mxu0 %v3117
      %3183 = vmatpush.msra.mxu0 %v3115
      %3184 = vmatpush.msra.mxu0 %v3113
      %3185 = vmatpush.msra.mxu0 %v3111
      %3186 = vmatpush.msra.mxu0 %v3109
      %3187 = vmatmul.f32.gmra.mxu0 %v3138
      %v3188 = vpop.f32.mrf.mxu0
      %v3189 = vadd.f32 0.0, %v3188
      %3190 = vmatmul.f32.gmra.mxu0 %v3140
      %v3191 = vpop.f32.mrf.mxu0
      %v3192 = vadd.f32 0.0, %v3191
      %3193 = vdwg.mxu0
      %v3194 = vadd.f32 %v3103, %v3166
      %v3195 = vadd.f32 %v3104, %v3189
      %v3196 = vadd.f32 %v3105, %v3169
      %v3197 = vadd.f32 %v3106, %v3192
      %s3198 = scalar_lea.vmem %s9, 2112
      %v3199 = vld [vmem:[%s3198] sm:$0xff]
      %v3200 = vld [vmem:[%s3198 + $0x8] sm:$0xff]
      %v3201 = vld [vmem:[%s3198 + $0x10] sm:$0xff]
      %v3202 = vld [vmem:[%s3198 + $0x18] sm:$0xff]
      %v3203 = vld [vmem:[%s3198 + $0x20] sm:$0xff]
      %v3204 = vld [vmem:[%s3198 + $0x28] sm:$0xff]
      %v3205 = vld [vmem:[%s3198 + $0x30] sm:$0xff]
      %v3206 = vld [vmem:[%s3198 + $0x38] sm:$0xff]
      %v3207 = vld [vmem:[%s3198 + $0x40] sm:$0xff]
      %v3208 = vld [vmem:[%s3198 + $0x48] sm:$0xff]
      %v3209 = vld [vmem:[%s3198 + $0x50] sm:$0xff]
      %v3210 = vld [vmem:[%s3198 + $0x58] sm:$0xff]
      %v3211 = vld [vmem:[%s3198 + $0x60] sm:$0xff]
      %v3212 = vld [vmem:[%s3198 + $0x68] sm:$0xff]
      %v3213 = vld [vmem:[%s3198 + $0x70] sm:$0xff]
      %v3214 = vld [vmem:[%s3198 + $0x78] sm:$0xff]
      %v3215 = vld [vmem:[%s3198 + $0x80] sm:$0xff]
      %v3216 = vld [vmem:[%s3198 + $0x88] sm:$0xff]
      %v3217 = vld [vmem:[%s3198 + $0x90] sm:$0xff]
      %v3218 = vld [vmem:[%s3198 + $0x98] sm:$0xff]
      %v3219 = vld [vmem:[%s3198 + $0xa0] sm:$0xff]
      %v3220 = vld [vmem:[%s3198 + $0xa8] sm:$0xff]
      %v3221 = vld [vmem:[%s3198 + $0xb0] sm:$0x3]
      %v3222 = vld [vmem:[%s3198 + $0xb8] sm:$0x3]
      %3223 = vrot.lane.b32.xlu0 %v3135, 122
      %v3224 = vpop.permute.xlu0 %3223
      %3225 = vrot.lane.b32.xlu0 %v3137, 122
      %v3226 = vpop.permute.xlu0 %3225
      %v3227 = vsel %vm911, %v3224, 0
      %v3229 = vsel %vm911, %v3226, 0
      %v3232 = vsel %vm920, %v3221, 0
      %v3235 = vsel %vm920, %v3222, 0
      %3237 = vmatpush.msra.mxu0 0.0
      %3238 = vmatpush.msra.mxu0 0.0
      %3239 = vmatpush.msra.mxu0 0.0
      %3240 = vmatpush.msra.mxu0 0.0
      %3241 = vmatpush.msra.mxu0 %v3232
      %3242 = vmatpush.msra.mxu0 %v3219
      %3243 = vmatpush.msra.mxu0 %v3217
      %3244 = vmatpush.msra.mxu0 %v3215
      %3245 = vmatpush.msra.mxu0 %v3213
      %3246 = vmatpush.msra.mxu0 %v3211
      %3247 = vmatpush.msra.mxu0 %v3209
      %3248 = vmatpush.msra.mxu0 %v3207
      %3249 = vmatpush.msra.mxu0 %v3205
      %3250 = vmatpush.msra.mxu0 %v3203
      %3251 = vmatpush.msra.mxu0 %v3201
      %3252 = vmatpush.msra.mxu0 %v3199
      %3253 = vmatmul.f32.gmra.mxu0 %v3227
      %v3254 = vpop.f32.mrf.mxu0
      %v3255 = vadd.f32 0.0, %v3254
      %3256 = vmatmul.f32.gmra.mxu0 %v3229
      %v3257 = vpop.f32.mrf.mxu0
      %v3258 = vadd.f32 0.0, %v3257
      %3259 = vdwg.mxu0
      %3260 = vmatpush.msra.mxu0 0.0
      %3261 = vmatpush.msra.mxu0 0.0
      %3262 = vmatpush.msra.mxu0 0.0
      %3263 = vmatpush.msra.mxu0 0.0
      %3264 = vmatpush.msra.mxu0 %v3235
      %3265 = vmatpush.msra.mxu0 %v3220
      %3266 = vmatpush.msra.mxu0 %v3218
      %3267 = vmatpush.msra.mxu0 %v3216
      %3268 = vmatpush.msra.mxu0 %v3214
      %3269 = vmatpush.msra.mxu0 %v3212
      %3270 = vmatpush.msra.mxu0 %v3210
      %3271 = vmatpush.msra.mxu0 %v3208
      %3272 = vmatpush.msra.mxu0 %v3206
      %3273 = vmatpush.msra.mxu0 %v3204
      %3274 = vmatpush.msra.mxu0 %v3202
      %3275 = vmatpush.msra.mxu0 %v3200
      %3276 = vmatmul.f32.gmra.mxu0 %v3227
      %v3277 = vpop.f32.mrf.mxu0
      %v3278 = vadd.f32 0.0, %v3277
      %3279 = vmatmul.f32.gmra.mxu0 %v3229
      %v3280 = vpop.f32.mrf.mxu0
      %v3281 = vadd.f32 0.0, %v3280
      %3282 = vdwg.mxu0
      %v3283 = vadd.f32 %v3194, %v3255
      %v3284 = vadd.f32 %v3195, %v3278
      %v3285 = vadd.f32 %v3196, %v3258
      %v3286 = vadd.f32 %v3197, %v3281
      %s3287 = scalar_lea.vmem %s9, 2304
      %v3288 = vld [vmem:[%s3287] sm:$0xff]
      %v3289 = vld [vmem:[%s3287 + $0x8] sm:$0xff]
      %v3290 = vld [vmem:[%s3287 + $0x10] sm:$0xff]
      %v3291 = vld [vmem:[%s3287 + $0x18] sm:$0xff]
      %v3292 = vld [vmem:[%s3287 + $0x20] sm:$0xff]
      %v3293 = vld [vmem:[%s3287 + $0x28] sm:$0xff]
      %v3294 = vld [vmem:[%s3287 + $0x30] sm:$0xff]
      %v3295 = vld [vmem:[%s3287 + $0x38] sm:$0xff]
      %v3296 = vld [vmem:[%s3287 + $0x40] sm:$0xff]
      %v3297 = vld [vmem:[%s3287 + $0x48] sm:$0xff]
      %v3298 = vld [vmem:[%s3287 + $0x50] sm:$0xff]
      %v3299 = vld [vmem:[%s3287 + $0x58] sm:$0xff]
      %v3300 = vld [vmem:[%s3287 + $0x60] sm:$0xff]
      %v3301 = vld [vmem:[%s3287 + $0x68] sm:$0xff]
      %v3302 = vld [vmem:[%s3287 + $0x70] sm:$0xff]
      %v3303 = vld [vmem:[%s3287 + $0x78] sm:$0xff]
      %v3304 = vld [vmem:[%s3287 + $0x80] sm:$0xff]
      %v3305 = vld [vmem:[%s3287 + $0x88] sm:$0xff]
      %v3306 = vld [vmem:[%s3287 + $0x90] sm:$0xff]
      %v3307 = vld [vmem:[%s3287 + $0x98] sm:$0xff]
      %v3308 = vld [vmem:[%s3287 + $0xa0] sm:$0xff]
      %v3309 = vld [vmem:[%s3287 + $0xa8] sm:$0xff]
      %v3310 = vld [vmem:[%s3287 + $0xb0] sm:$0x3]
      %v3311 = vld [vmem:[%s3287 + $0xb8] sm:$0x3]
      %3312 = vrot.lane.b32.xlu0 %v3135, 116
      %v3313 = vpop.permute.xlu0 %3312
      %3314 = vrot.lane.b32.xlu0 %v3137, 116
      %v3315 = vpop.permute.xlu0 %3314
      %v3316 = vsel %vm911, %v3313, 0
      %v3318 = vsel %vm911, %v3315, 0
      %v3321 = vsel %vm920, %v3310, 0
      %v3324 = vsel %vm920, %v3311, 0
      %3326 = vmatpush.msra.mxu0 0.0
      %3327 = vmatpush.msra.mxu0 0.0
      %3328 = vmatpush.msra.mxu0 0.0
      %3329 = vmatpush.msra.mxu0 0.0
      %3330 = vmatpush.msra.mxu0 %v3321
      %3331 = vmatpush.msra.mxu0 %v3308
      %3332 = vmatpush.msra.mxu0 %v3306
      %3333 = vmatpush.msra.mxu0 %v3304
      %3334 = vmatpush.msra.mxu0 %v3302
      %3335 = vmatpush.msra.mxu0 %v3300
      %3336 = vmatpush.msra.mxu0 %v3298
      %3337 = vmatpush.msra.mxu0 %v3296
      %3338 = vmatpush.msra.mxu0 %v3294
      %3339 = vmatpush.msra.mxu0 %v3292
      %3340 = vmatpush.msra.mxu0 %v3290
      %3341 = vmatpush.msra.mxu0 %v3288
      %3342 = vmatmul.f32.gmra.mxu0 %v3316
      %v3343 = vpop.f32.mrf.mxu0
      %v3344 = vadd.f32 0.0, %v3343
      %3345 = vmatmul.f32.gmra.mxu0 %v3318
      %v3346 = vpop.f32.mrf.mxu0
      %v3347 = vadd.f32 0.0, %v3346
      %3348 = vdwg.mxu0
      %3349 = vmatpush.msra.mxu0 0.0
      %3350 = vmatpush.msra.mxu0 0.0
      %3351 = vmatpush.msra.mxu0 0.0
      %3352 = vmatpush.msra.mxu0 0.0
      %3353 = vmatpush.msra.mxu0 %v3324
      %3354 = vmatpush.msra.mxu0 %v3309
      %3355 = vmatpush.msra.mxu0 %v3307
      %3356 = vmatpush.msra.mxu0 %v3305
      %3357 = vmatpush.msra.mxu0 %v3303
      %3358 = vmatpush.msra.mxu0 %v3301
      %3359 = vmatpush.msra.mxu0 %v3299
      %3360 = vmatpush.msra.mxu0 %v3297
      %3361 = vmatpush.msra.mxu0 %v3295
      %3362 = vmatpush.msra.mxu0 %v3293
      %3363 = vmatpush.msra.mxu0 %v3291
      %3364 = vmatpush.msra.mxu0 %v3289
      %3365 = vmatmul.f32.gmra.mxu0 %v3316
      %v3366 = vpop.f32.mrf.mxu0
      %v3367 = vadd.f32 0.0, %v3366
      %3368 = vmatmul.f32.gmra.mxu0 %v3318
      %v3369 = vpop.f32.mrf.mxu0
      %v3370 = vadd.f32 0.0, %v3369
      %3371 = vdwg.mxu0
      %v3372 = vadd.f32 %v3283, %v3344
      %v3373 = vadd.f32 %v3284, %v3367
      %v3374 = vadd.f32 %v3285, %v3347
      %v3375 = vadd.f32 %v3286, %v3370
      %s3376 = scalar_lea.vmem %s9, 2496
      %v3377 = vld [vmem:[%s3376] sm:$0xff]
      %v3378 = vld [vmem:[%s3376 + $0x8] sm:$0xff]
      %v3379 = vld [vmem:[%s3376 + $0x10] sm:$0xff]
      %v3380 = vld [vmem:[%s3376 + $0x18] sm:$0xff]
      %v3381 = vld [vmem:[%s3376 + $0x20] sm:$0xff]
      %v3382 = vld [vmem:[%s3376 + $0x28] sm:$0xff]
      %v3383 = vld [vmem:[%s3376 + $0x30] sm:$0xff]
      %v3384 = vld [vmem:[%s3376 + $0x38] sm:$0xff]
      %v3385 = vld [vmem:[%s3376 + $0x40] sm:$0xff]
      %v3386 = vld [vmem:[%s3376 + $0x48] sm:$0xff]
      %v3387 = vld [vmem:[%s3376 + $0x50] sm:$0xff]
      %v3388 = vld [vmem:[%s3376 + $0x58] sm:$0xff]
      %v3389 = vld [vmem:[%s3376 + $0x60] sm:$0xff]
      %v3390 = vld [vmem:[%s3376 + $0x68] sm:$0xff]
      %v3391 = vld [vmem:[%s3376 + $0x70] sm:$0xff]
      %v3392 = vld [vmem:[%s3376 + $0x78] sm:$0xff]
      %v3393 = vld [vmem:[%s3376 + $0x80] sm:$0xff]
      %v3394 = vld [vmem:[%s3376 + $0x88] sm:$0xff]
      %v3395 = vld [vmem:[%s3376 + $0x90] sm:$0xff]
      %v3396 = vld [vmem:[%s3376 + $0x98] sm:$0xff]
      %v3397 = vld [vmem:[%s3376 + $0xa0] sm:$0xff]
      %v3398 = vld [vmem:[%s3376 + $0xa8] sm:$0xff]
      %v3399 = vld [vmem:[%s3376 + $0xb0] sm:$0x3]
      %v3400 = vld [vmem:[%s3376 + $0xb8] sm:$0x3]
      %3401 = vrot.lane.b32.xlu0 %v3135, 110
      %v3402 = vpop.permute.xlu0 %3401
      %3403 = vrot.lane.b32.xlu0 %v3137, 110
      %v3404 = vpop.permute.xlu0 %3403
      %v3405 = vsel %vm911, %v3402, 0
      %v3407 = vsel %vm911, %v3404, 0
      %v3410 = vsel %vm920, %v3399, 0
      %v3413 = vsel %vm920, %v3400, 0
      %3415 = vmatpush.msra.mxu0 0.0
      %3416 = vmatpush.msra.mxu0 0.0
      %3417 = vmatpush.msra.mxu0 0.0
      %3418 = vmatpush.msra.mxu0 0.0
      %3419 = vmatpush.msra.mxu0 %v3410
      %3420 = vmatpush.msra.mxu0 %v3397
      %3421 = vmatpush.msra.mxu0 %v3395
      %3422 = vmatpush.msra.mxu0 %v3393
      %3423 = vmatpush.msra.mxu0 %v3391
      %3424 = vmatpush.msra.mxu0 %v3389
      %3425 = vmatpush.msra.mxu0 %v3387
      %3426 = vmatpush.msra.mxu0 %v3385
      %3427 = vmatpush.msra.mxu0 %v3383
      %3428 = vmatpush.msra.mxu0 %v3381
      %3429 = vmatpush.msra.mxu0 %v3379
      %3430 = vmatpush.msra.mxu0 %v3377
      %3431 = vmatmul.f32.gmra.mxu0 %v3405
      %v3432 = vpop.f32.mrf.mxu0
      %v3433 = vadd.f32 0.0, %v3432
      %3434 = vmatmul.f32.gmra.mxu0 %v3407
      %v3435 = vpop.f32.mrf.mxu0
      %v3436 = vadd.f32 0.0, %v3435
      %3437 = vdwg.mxu0
      %3438 = vmatpush.msra.mxu0 0.0
      %3439 = vmatpush.msra.mxu0 0.0
      %3440 = vmatpush.msra.mxu0 0.0
      %3441 = vmatpush.msra.mxu0 0.0
      %3442 = vmatpush.msra.mxu0 %v3413
      %3443 = vmatpush.msra.mxu0 %v3398
      %3444 = vmatpush.msra.mxu0 %v3396
      %3445 = vmatpush.msra.mxu0 %v3394
      %3446 = vmatpush.msra.mxu0 %v3392
      %3447 = vmatpush.msra.mxu0 %v3390
      %3448 = vmatpush.msra.mxu0 %v3388
      %3449 = vmatpush.msra.mxu0 %v3386
      %3450 = vmatpush.msra.mxu0 %v3384
      %3451 = vmatpush.msra.mxu0 %v3382
      %3452 = vmatpush.msra.mxu0 %v3380
      %3453 = vmatpush.msra.mxu0 %v3378
      %3454 = vmatmul.f32.gmra.mxu0 %v3405
      %v3455 = vpop.f32.mrf.mxu0
      %v3456 = vadd.f32 0.0, %v3455
      %3457 = vmatmul.f32.gmra.mxu0 %v3407
      %v3458 = vpop.f32.mrf.mxu0
      %v3459 = vadd.f32 0.0, %v3458
      %3460 = vdwg.mxu0
      %v3461 = vadd.f32 %v3372, %v3433
      %v3462 = vadd.f32 %v3373, %v3456
      %v3463 = vadd.f32 %v3374, %v3436
      %v3464 = vadd.f32 %v3375, %v3459
      %s3465 = scalar_lea.vmem %s9, 2688
      %v3466 = vld [vmem:[%s3465] sm:$0xff]
      %v3467 = vld [vmem:[%s3465 + $0x8] sm:$0xff]
      %v3468 = vld [vmem:[%s3465 + $0x10] sm:$0xff]
      %v3469 = vld [vmem:[%s3465 + $0x18] sm:$0xff]
      %v3470 = vld [vmem:[%s3465 + $0x20] sm:$0xff]
      %v3471 = vld [vmem:[%s3465 + $0x28] sm:$0xff]
      %v3472 = vld [vmem:[%s3465 + $0x30] sm:$0xff]
      %v3473 = vld [vmem:[%s3465 + $0x38] sm:$0xff]
      %v3474 = vld [vmem:[%s3465 + $0x40] sm:$0xff]
      %v3475 = vld [vmem:[%s3465 + $0x48] sm:$0xff]
      %v3476 = vld [vmem:[%s3465 + $0x50] sm:$0xff]
      %v3477 = vld [vmem:[%s3465 + $0x58] sm:$0xff]
      %v3478 = vld [vmem:[%s3465 + $0x60] sm:$0xff]
      %v3479 = vld [vmem:[%s3465 + $0x68] sm:$0xff]
      %v3480 = vld [vmem:[%s3465 + $0x70] sm:$0xff]
      %v3481 = vld [vmem:[%s3465 + $0x78] sm:$0xff]
      %v3482 = vld [vmem:[%s3465 + $0x80] sm:$0xff]
      %v3483 = vld [vmem:[%s3465 + $0x88] sm:$0xff]
      %v3484 = vld [vmem:[%s3465 + $0x90] sm:$0xff]
      %v3485 = vld [vmem:[%s3465 + $0x98] sm:$0xff]
      %v3486 = vld [vmem:[%s3465 + $0xa0] sm:$0xff]
      %v3487 = vld [vmem:[%s3465 + $0xa8] sm:$0xff]
      %v3488 = vld [vmem:[%s3465 + $0xb0] sm:$0x3]
      %v3489 = vld [vmem:[%s3465 + $0xb8] sm:$0x3]
      %3490 = vrot.lane.b32.xlu0 %v3135, 104
      %v3491 = vpop.permute.xlu0 %3490
      %3492 = vrot.lane.b32.xlu0 %v3137, 104
      %v3493 = vpop.permute.xlu0 %3492
      %v3494 = vsel %vm911, %v3491, 0
      %v3496 = vsel %vm911, %v3493, 0
      %v3499 = vsel %vm920, %v3488, 0
      %v3502 = vsel %vm920, %v3489, 0
      %3504 = vmatpush.msra.mxu0 0.0
      %3505 = vmatpush.msra.mxu0 0.0
      %3506 = vmatpush.msra.mxu0 0.0
      %3507 = vmatpush.msra.mxu0 0.0
      %3508 = vmatpush.msra.mxu0 %v3499
      %3509 = vmatpush.msra.mxu0 %v3486
      %3510 = vmatpush.msra.mxu0 %v3484
      %3511 = vmatpush.msra.mxu0 %v3482
      %3512 = vmatpush.msra.mxu0 %v3480
      %3513 = vmatpush.msra.mxu0 %v3478
      %3514 = vmatpush.msra.mxu0 %v3476
      %3515 = vmatpush.msra.mxu0 %v3474
      %3516 = vmatpush.msra.mxu0 %v3472
      %3517 = vmatpush.msra.mxu0 %v3470
      %3518 = vmatpush.msra.mxu0 %v3468
      %3519 = vmatpush.msra.mxu0 %v3466
      %3520 = vmatmul.f32.gmra.mxu0 %v3494
      %v3521 = vpop.f32.mrf.mxu0
      %v3522 = vadd.f32 0.0, %v3521
      %3523 = vmatmul.f32.gmra.mxu0 %v3496
      %v3524 = vpop.f32.mrf.mxu0
      %v3525 = vadd.f32 0.0, %v3524
      %3526 = vdwg.mxu0
      %3527 = vmatpush.msra.mxu0 0.0
      %3528 = vmatpush.msra.mxu0 0.0
      %3529 = vmatpush.msra.mxu0 0.0
      %3530 = vmatpush.msra.mxu0 0.0
      %3531 = vmatpush.msra.mxu0 %v3502
      %3532 = vmatpush.msra.mxu0 %v3487
      %3533 = vmatpush.msra.mxu0 %v3485
      %3534 = vmatpush.msra.mxu0 %v3483
      %3535 = vmatpush.msra.mxu0 %v3481
      %3536 = vmatpush.msra.mxu0 %v3479
      %3537 = vmatpush.msra.mxu0 %v3477
      %3538 = vmatpush.msra.mxu0 %v3475
      %3539 = vmatpush.msra.mxu0 %v3473
      %3540 = vmatpush.msra.mxu0 %v3471
      %3541 = vmatpush.msra.mxu0 %v3469
      %3542 = vmatpush.msra.mxu0 %v3467
      %3543 = vmatmul.f32.gmra.mxu0 %v3494
      %v3544 = vpop.f32.mrf.mxu0
      %v3545 = vadd.f32 0.0, %v3544
      %3546 = vmatmul.f32.gmra.mxu0 %v3496
      %v3547 = vpop.f32.mrf.mxu0
      %v3548 = vadd.f32 0.0, %v3547
      %3549 = vdwg.mxu0
      %v3550 = vadd.f32 %v3461, %v3522
      %v3551 = vadd.f32 %v3462, %v3545
      %v3552 = vadd.f32 %v3463, %v3525
      %v3553 = vadd.f32 %v3464, %v3548
      %s3554 = scalar_lea.vmem %s9, 2880
      %v3555 = vld [vmem:[%s3554] sm:$0xff]
      %v3556 = vld [vmem:[%s3554 + $0x8] sm:$0xff]
      %v3557 = vld [vmem:[%s3554 + $0x10] sm:$0xff]
      %v3558 = vld [vmem:[%s3554 + $0x18] sm:$0xff]
      %v3559 = vld [vmem:[%s3554 + $0x20] sm:$0xff]
      %v3560 = vld [vmem:[%s3554 + $0x28] sm:$0xff]
      %v3561 = vld [vmem:[%s3554 + $0x30] sm:$0xff]
      %v3562 = vld [vmem:[%s3554 + $0x38] sm:$0xff]
      %v3563 = vld [vmem:[%s3554 + $0x40] sm:$0xff]
      %v3564 = vld [vmem:[%s3554 + $0x48] sm:$0xff]
      %v3565 = vld [vmem:[%s3554 + $0x50] sm:$0xff]
      %v3566 = vld [vmem:[%s3554 + $0x58] sm:$0xff]
      %v3567 = vld [vmem:[%s3554 + $0x60] sm:$0xff]
      %v3568 = vld [vmem:[%s3554 + $0x68] sm:$0xff]
      %v3569 = vld [vmem:[%s3554 + $0x70] sm:$0xff]
      %v3570 = vld [vmem:[%s3554 + $0x78] sm:$0xff]
      %v3571 = vld [vmem:[%s3554 + $0x80] sm:$0xff]
      %v3572 = vld [vmem:[%s3554 + $0x88] sm:$0xff]
      %v3573 = vld [vmem:[%s3554 + $0x90] sm:$0xff]
      %v3574 = vld [vmem:[%s3554 + $0x98] sm:$0xff]
      %v3575 = vld [vmem:[%s3554 + $0xa0] sm:$0xff]
      %v3576 = vld [vmem:[%s3554 + $0xa8] sm:$0xff]
      %v3577 = vld [vmem:[%s3554 + $0xb0] sm:$0x3]
      %v3578 = vld [vmem:[%s3554 + $0xb8] sm:$0x3]
      %vm3579 = vcmask 1044480
      %v3580 = vrot.slane %v2221, 3
      %v3581 = vrot.slane %v2224, 3
      %v3582 = vsel %vm3579, %v3580, %v3581
      %v3583 = vrot.slane %v2227, 3
      %v3584 = vsel %vm3579, %v3581, %v3583
      %v3585 = vsel %vm911, %v3582, 0
      %v3587 = vsel %vm911, %v3584, 0
      %v3590 = vsel %vm920, %v3577, 0
      %v3593 = vsel %vm920, %v3578, 0
      %3595 = vmatpush.msra.mxu0 0.0
      %3596 = vmatpush.msra.mxu0 0.0
      %3597 = vmatpush.msra.mxu0 0.0
      %3598 = vmatpush.msra.mxu0 0.0
      %3599 = vmatpush.msra.mxu0 %v3590
      %3600 = vmatpush.msra.mxu0 %v3575
      %3601 = vmatpush.msra.mxu0 %v3573
      %3602 = vmatpush.msra.mxu0 %v3571
      %3603 = vmatpush.msra.mxu0 %v3569
      %3604 = vmatpush.msra.mxu0 %v3567
      %3605 = vmatpush.msra.mxu0 %v3565
      %3606 = vmatpush.msra.mxu0 %v3563
      %3607 = vmatpush.msra.mxu0 %v3561
      %3608 = vmatpush.msra.mxu0 %v3559
      %3609 = vmatpush.msra.mxu0 %v3557
      %3610 = vmatpush.msra.mxu0 %v3555
      %3611 = vmatmul.f32.gmra.mxu0 %v3585
      %v3612 = vpop.f32.mrf.mxu0
      %v3613 = vadd.f32 0.0, %v3612
      %3614 = vmatmul.f32.gmra.mxu0 %v3587
      %v3615 = vpop.f32.mrf.mxu0
      %v3616 = vadd.f32 0.0, %v3615
      %3617 = vdwg.mxu0
      %3618 = vmatpush.msra.mxu0 0.0
      %3619 = vmatpush.msra.mxu0 0.0
      %3620 = vmatpush.msra.mxu0 0.0
      %3621 = vmatpush.msra.mxu0 0.0
      %3622 = vmatpush.msra.mxu0 %v3593
      %3623 = vmatpush.msra.mxu0 %v3576
      %3624 = vmatpush.msra.mxu0 %v3574
      %3625 = vmatpush.msra.mxu0 %v3572
      %3626 = vmatpush.msra.mxu0 %v3570
      %3627 = vmatpush.msra.mxu0 %v3568
      %3628 = vmatpush.msra.mxu0 %v3566
      %3629 = vmatpush.msra.mxu0 %v3564
      %3630 = vmatpush.msra.mxu0 %v3562
      %3631 = vmatpush.msra.mxu0 %v3560
      %3632 = vmatpush.msra.mxu0 %v3558
      %3633 = vmatpush.msra.mxu0 %v3556
      %3634 = vmatmul.f32.gmra.mxu0 %v3585
      %v3635 = vpop.f32.mrf.mxu0
      %v3636 = vadd.f32 0.0, %v3635
      %3637 = vmatmul.f32.gmra.mxu0 %v3587
      %v3638 = vpop.f32.mrf.mxu0
      %v3639 = vadd.f32 0.0, %v3638
      %3640 = vdwg.mxu0
      %v3641 = vadd.f32 %v3550, %v3613
      %v3642 = vadd.f32 %v3551, %v3636
      %v3643 = vadd.f32 %v3552, %v3616
      %v3644 = vadd.f32 %v3553, %v3639
      %s3645 = scalar_lea.vmem %s9, 3072
      %v3646 = vld [vmem:[%s3645] sm:$0xff]
      %v3647 = vld [vmem:[%s3645 + $0x8] sm:$0xff]
      %v3648 = vld [vmem:[%s3645 + $0x10] sm:$0xff]
      %v3649 = vld [vmem:[%s3645 + $0x18] sm:$0xff]
      %v3650 = vld [vmem:[%s3645 + $0x20] sm:$0xff]
      %v3651 = vld [vmem:[%s3645 + $0x28] sm:$0xff]
      %v3652 = vld [vmem:[%s3645 + $0x30] sm:$0xff]
      %v3653 = vld [vmem:[%s3645 + $0x38] sm:$0xff]
      %v3654 = vld [vmem:[%s3645 + $0x40] sm:$0xff]
      %v3655 = vld [vmem:[%s3645 + $0x48] sm:$0xff]
      %v3656 = vld [vmem:[%s3645 + $0x50] sm:$0xff]
      %v3657 = vld [vmem:[%s3645 + $0x58] sm:$0xff]
      %v3658 = vld [vmem:[%s3645 + $0x60] sm:$0xff]
      %v3659 = vld [vmem:[%s3645 + $0x68] sm:$0xff]
      %v3660 = vld [vmem:[%s3645 + $0x70] sm:$0xff]
      %v3661 = vld [vmem:[%s3645 + $0x78] sm:$0xff]
      %v3662 = vld [vmem:[%s3645 + $0x80] sm:$0xff]
      %v3663 = vld [vmem:[%s3645 + $0x88] sm:$0xff]
      %v3664 = vld [vmem:[%s3645 + $0x90] sm:$0xff]
      %v3665 = vld [vmem:[%s3645 + $0x98] sm:$0xff]
      %v3666 = vld [vmem:[%s3645 + $0xa0] sm:$0xff]
      %v3667 = vld [vmem:[%s3645 + $0xa8] sm:$0xff]
      %v3668 = vld [vmem:[%s3645 + $0xb0] sm:$0x3]
      %v3669 = vld [vmem:[%s3645 + $0xb8] sm:$0x3]
      %3670 = vrot.lane.b32.xlu0 %v3582, 122
      %v3671 = vpop.permute.xlu0 %3670
      %3672 = vrot.lane.b32.xlu0 %v3584, 122
      %v3673 = vpop.permute.xlu0 %3672
      %v3674 = vsel %vm911, %v3671, 0
      %v3676 = vsel %vm911, %v3673, 0
      %v3679 = vsel %vm920, %v3668, 0
      %v3682 = vsel %vm920, %v3669, 0
      %3684 = vmatpush.msra.mxu0 0.0
      %3685 = vmatpush.msra.mxu0 0.0
      %3686 = vmatpush.msra.mxu0 0.0
      %3687 = vmatpush.msra.mxu0 0.0
      %3688 = vmatpush.msra.mxu0 %v3679
      %3689 = vmatpush.msra.mxu0 %v3666
      %3690 = vmatpush.msra.mxu0 %v3664
      %3691 = vmatpush.msra.mxu0 %v3662
      %3692 = vmatpush.msra.mxu0 %v3660
      %3693 = vmatpush.msra.mxu0 %v3658
      %3694 = vmatpush.msra.mxu0 %v3656
      %3695 = vmatpush.msra.mxu0 %v3654
      %3696 = vmatpush.msra.mxu0 %v3652
      %3697 = vmatpush.msra.mxu0 %v3650
      %3698 = vmatpush.msra.mxu0 %v3648
      %3699 = vmatpush.msra.mxu0 %v3646
      %3700 = vmatmul.f32.gmra.mxu0 %v3674
      %v3701 = vpop.f32.mrf.mxu0
      %v3702 = vadd.f32 0.0, %v3701
      %3703 = vmatmul.f32.gmra.mxu0 %v3676
      %v3704 = vpop.f32.mrf.mxu0
      %v3705 = vadd.f32 0.0, %v3704
      %3706 = vdwg.mxu0
      %3707 = vmatpush.msra.mxu0 0.0
      %3708 = vmatpush.msra.mxu0 0.0
      %3709 = vmatpush.msra.mxu0 0.0
      %3710 = vmatpush.msra.mxu0 0.0
      %3711 = vmatpush.msra.mxu0 %v3682
      %3712 = vmatpush.msra.mxu0 %v3667
      %3713 = vmatpush.msra.mxu0 %v3665
      %3714 = vmatpush.msra.mxu0 %v3663
      %3715 = vmatpush.msra.mxu0 %v3661
      %3716 = vmatpush.msra.mxu0 %v3659
      %3717 = vmatpush.msra.mxu0 %v3657
      %3718 = vmatpush.msra.mxu0 %v3655
      %3719 = vmatpush.msra.mxu0 %v3653
      %3720 = vmatpush.msra.mxu0 %v3651
      %3721 = vmatpush.msra.mxu0 %v3649
      %3722 = vmatpush.msra.mxu0 %v3647
      %3723 = vmatmul.f32.gmra.mxu0 %v3674
      %v3724 = vpop.f32.mrf.mxu0
      %v3725 = vadd.f32 0.0, %v3724
      %3726 = vmatmul.f32.gmra.mxu0 %v3676
      %v3727 = vpop.f32.mrf.mxu0
      %v3728 = vadd.f32 0.0, %v3727
      %3729 = vdwg.mxu0
      %v3730 = vadd.f32 %v3641, %v3702
      %v3731 = vadd.f32 %v3642, %v3725
      %v3732 = vadd.f32 %v3643, %v3705
      %v3733 = vadd.f32 %v3644, %v3728
      %s3734 = scalar_lea.vmem %s9, 3264
      %v3735 = vld [vmem:[%s3734] sm:$0xff]
      %v3736 = vld [vmem:[%s3734 + $0x8] sm:$0xff]
      %v3737 = vld [vmem:[%s3734 + $0x10] sm:$0xff]
      %v3738 = vld [vmem:[%s3734 + $0x18] sm:$0xff]
      %v3739 = vld [vmem:[%s3734 + $0x20] sm:$0xff]
      %v3740 = vld [vmem:[%s3734 + $0x28] sm:$0xff]
      %v3741 = vld [vmem:[%s3734 + $0x30] sm:$0xff]
      %v3742 = vld [vmem:[%s3734 + $0x38] sm:$0xff]
      %v3743 = vld [vmem:[%s3734 + $0x40] sm:$0xff]
      %v3744 = vld [vmem:[%s3734 + $0x48] sm:$0xff]
      %v3745 = vld [vmem:[%s3734 + $0x50] sm:$0xff]
      %v3746 = vld [vmem:[%s3734 + $0x58] sm:$0xff]
      %v3747 = vld [vmem:[%s3734 + $0x60] sm:$0xff]
      %v3748 = vld [vmem:[%s3734 + $0x68] sm:$0xff]
      %v3749 = vld [vmem:[%s3734 + $0x70] sm:$0xff]
      %v3750 = vld [vmem:[%s3734 + $0x78] sm:$0xff]
      %v3751 = vld [vmem:[%s3734 + $0x80] sm:$0xff]
      %v3752 = vld [vmem:[%s3734 + $0x88] sm:$0xff]
      %v3753 = vld [vmem:[%s3734 + $0x90] sm:$0xff]
      %v3754 = vld [vmem:[%s3734 + $0x98] sm:$0xff]
      %v3755 = vld [vmem:[%s3734 + $0xa0] sm:$0xff]
      %v3756 = vld [vmem:[%s3734 + $0xa8] sm:$0xff]
      %v3757 = vld [vmem:[%s3734 + $0xb0] sm:$0x3]
      %v3758 = vld [vmem:[%s3734 + $0xb8] sm:$0x3]
      %3759 = vrot.lane.b32.xlu0 %v3582, 116
      %v3760 = vpop.permute.xlu0 %3759
      %3761 = vrot.lane.b32.xlu0 %v3584, 116
      %v3762 = vpop.permute.xlu0 %3761
      %v3763 = vsel %vm911, %v3760, 0
      %v3765 = vsel %vm911, %v3762, 0
      %v3768 = vsel %vm920, %v3757, 0
      %v3771 = vsel %vm920, %v3758, 0
      %3773 = vmatpush.msra.mxu0 0.0
      %3774 = vmatpush.msra.mxu0 0.0
      %3775 = vmatpush.msra.mxu0 0.0
      %3776 = vmatpush.msra.mxu0 0.0
      %3777 = vmatpush.msra.mxu0 %v3768
      %3778 = vmatpush.msra.mxu0 %v3755
      %3779 = vmatpush.msra.mxu0 %v3753
      %3780 = vmatpush.msra.mxu0 %v3751
      %3781 = vmatpush.msra.mxu0 %v3749
      %3782 = vmatpush.msra.mxu0 %v3747
      %3783 = vmatpush.msra.mxu0 %v3745
      %3784 = vmatpush.msra.mxu0 %v3743
      %3785 = vmatpush.msra.mxu0 %v3741
      %3786 = vmatpush.msra.mxu0 %v3739
      %3787 = vmatpush.msra.mxu0 %v3737
      %3788 = vmatpush.msra.mxu0 %v3735
      %3789 = vmatmul.f32.gmra.mxu0 %v3763
      %v3790 = vpop.f32.mrf.mxu0
      %v3791 = vadd.f32 0.0, %v3790
      %3792 = vmatmul.f32.gmra.mxu0 %v3765
      %v3793 = vpop.f32.mrf.mxu0
      %v3794 = vadd.f32 0.0, %v3793
      %3795 = vdwg.mxu0
      %3796 = vmatpush.msra.mxu0 0.0
      %3797 = vmatpush.msra.mxu0 0.0
      %3798 = vmatpush.msra.mxu0 0.0
      %3799 = vmatpush.msra.mxu0 0.0
      %3800 = vmatpush.msra.mxu0 %v3771
      %3801 = vmatpush.msra.mxu0 %v3756
      %3802 = vmatpush.msra.mxu0 %v3754
      %3803 = vmatpush.msra.mxu0 %v3752
      %3804 = vmatpush.msra.mxu0 %v3750
      %3805 = vmatpush.msra.mxu0 %v3748
      %3806 = vmatpush.msra.mxu0 %v3746
      %3807 = vmatpush.msra.mxu0 %v3744
      %3808 = vmatpush.msra.mxu0 %v3742
      %3809 = vmatpush.msra.mxu0 %v3740
      %3810 = vmatpush.msra.mxu0 %v3738
      %3811 = vmatpush.msra.mxu0 %v3736
      %3812 = vmatmul.f32.gmra.mxu0 %v3763
      %v3813 = vpop.f32.mrf.mxu0
      %v3814 = vadd.f32 0.0, %v3813
      %3815 = vmatmul.f32.gmra.mxu0 %v3765
      %v3816 = vpop.f32.mrf.mxu0
      %v3817 = vadd.f32 0.0, %v3816
      %3818 = vdwg.mxu0
      %v3819 = vadd.f32 %v3730, %v3791
      %v3820 = vadd.f32 %v3731, %v3814
      %v3821 = vadd.f32 %v3732, %v3794
      %v3822 = vadd.f32 %v3733, %v3817
      %s3823 = scalar_lea.vmem %s9, 3456
      %v3824 = vld [vmem:[%s3823] sm:$0xff]
      %v3825 = vld [vmem:[%s3823 + $0x8] sm:$0xff]
      %v3826 = vld [vmem:[%s3823 + $0x10] sm:$0xff]
      %v3827 = vld [vmem:[%s3823 + $0x18] sm:$0xff]
      %v3828 = vld [vmem:[%s3823 + $0x20] sm:$0xff]
      %v3829 = vld [vmem:[%s3823 + $0x28] sm:$0xff]
      %v3830 = vld [vmem:[%s3823 + $0x30] sm:$0xff]
      %v3831 = vld [vmem:[%s3823 + $0x38] sm:$0xff]
      %v3832 = vld [vmem:[%s3823 + $0x40] sm:$0xff]
      %v3833 = vld [vmem:[%s3823 + $0x48] sm:$0xff]
      %v3834 = vld [vmem:[%s3823 + $0x50] sm:$0xff]
      %v3835 = vld [vmem:[%s3823 + $0x58] sm:$0xff]
      %v3836 = vld [vmem:[%s3823 + $0x60] sm:$0xff]
      %v3837 = vld [vmem:[%s3823 + $0x68] sm:$0xff]
      %v3838 = vld [vmem:[%s3823 + $0x70] sm:$0xff]
      %v3839 = vld [vmem:[%s3823 + $0x78] sm:$0xff]
      %v3840 = vld [vmem:[%s3823 + $0x80] sm:$0xff]
      %v3841 = vld [vmem:[%s3823 + $0x88] sm:$0xff]
      %v3842 = vld [vmem:[%s3823 + $0x90] sm:$0xff]
      %v3843 = vld [vmem:[%s3823 + $0x98] sm:$0xff]
      %v3844 = vld [vmem:[%s3823 + $0xa0] sm:$0xff]
      %v3845 = vld [vmem:[%s3823 + $0xa8] sm:$0xff]
      %v3846 = vld [vmem:[%s3823 + $0xb0] sm:$0x3]
      %v3847 = vld [vmem:[%s3823 + $0xb8] sm:$0x3]
      %3848 = vrot.lane.b32.xlu0 %v3582, 110
      %v3849 = vpop.permute.xlu0 %3848
      %3850 = vrot.lane.b32.xlu0 %v3584, 110
      %v3851 = vpop.permute.xlu0 %3850
      %v3852 = vsel %vm911, %v3849, 0
      %v3854 = vsel %vm911, %v3851, 0
      %v3857 = vsel %vm920, %v3846, 0
      %v3860 = vsel %vm920, %v3847, 0
      %3862 = vmatpush.msra.mxu0 0.0
      %3863 = vmatpush.msra.mxu0 0.0
      %3864 = vmatpush.msra.mxu0 0.0
      %3865 = vmatpush.msra.mxu0 0.0
      %3866 = vmatpush.msra.mxu0 %v3857
      %3867 = vmatpush.msra.mxu0 %v3844
      %3868 = vmatpush.msra.mxu0 %v3842
      %3869 = vmatpush.msra.mxu0 %v3840
      %3870 = vmatpush.msra.mxu0 %v3838
      %3871 = vmatpush.msra.mxu0 %v3836
      %3872 = vmatpush.msra.mxu0 %v3834
      %3873 = vmatpush.msra.mxu0 %v3832
      %3874 = vmatpush.msra.mxu0 %v3830
      %3875 = vmatpush.msra.mxu0 %v3828
      %3876 = vmatpush.msra.mxu0 %v3826
      %3877 = vmatpush.msra.mxu0 %v3824
      %3878 = vmatmul.f32.gmra.mxu0 %v3852
      %v3879 = vpop.f32.mrf.mxu0
      %v3880 = vadd.f32 0.0, %v3879
      %3881 = vmatmul.f32.gmra.mxu0 %v3854
      %v3882 = vpop.f32.mrf.mxu0
      %v3883 = vadd.f32 0.0, %v3882
      %3884 = vdwg.mxu0
      %3885 = vmatpush.msra.mxu0 0.0
      %3886 = vmatpush.msra.mxu0 0.0
      %3887 = vmatpush.msra.mxu0 0.0
      %3888 = vmatpush.msra.mxu0 0.0
      %3889 = vmatpush.msra.mxu0 %v3860
      %3890 = vmatpush.msra.mxu0 %v3845
      %3891 = vmatpush.msra.mxu0 %v3843
      %3892 = vmatpush.msra.mxu0 %v3841
      %3893 = vmatpush.msra.mxu0 %v3839
      %3894 = vmatpush.msra.mxu0 %v3837
      %3895 = vmatpush.msra.mxu0 %v3835
      %3896 = vmatpush.msra.mxu0 %v3833
      %3897 = vmatpush.msra.mxu0 %v3831
      %3898 = vmatpush.msra.mxu0 %v3829
      %3899 = vmatpush.msra.mxu0 %v3827
      %3900 = vmatpush.msra.mxu0 %v3825
      %3901 = vmatmul.f32.gmra.mxu0 %v3852
      %v3902 = vpop.f32.mrf.mxu0
      %v3903 = vadd.f32 0.0, %v3902
      %3904 = vmatmul.f32.gmra.mxu0 %v3854
      %v3905 = vpop.f32.mrf.mxu0
      %v3906 = vadd.f32 0.0, %v3905
      %3907 = vdwg.mxu0
      %v3908 = vadd.f32 %v3819, %v3880
      %v3909 = vadd.f32 %v3820, %v3903
      %v3910 = vadd.f32 %v3821, %v3883
      %v3911 = vadd.f32 %v3822, %v3906
      %s3912 = scalar_lea.vmem %s9, 3648
      %v3913 = vld [vmem:[%s3912] sm:$0xff]
      %v3914 = vld [vmem:[%s3912 + $0x8] sm:$0xff]
      %v3915 = vld [vmem:[%s3912 + $0x10] sm:$0xff]
      %v3916 = vld [vmem:[%s3912 + $0x18] sm:$0xff]
      %v3917 = vld [vmem:[%s3912 + $0x20] sm:$0xff]
      %v3918 = vld [vmem:[%s3912 + $0x28] sm:$0xff]
      %v3919 = vld [vmem:[%s3912 + $0x30] sm:$0xff]
      %v3920 = vld [vmem:[%s3912 + $0x38] sm:$0xff]
      %v3921 = vld [vmem:[%s3912 + $0x40] sm:$0xff]
      %v3922 = vld [vmem:[%s3912 + $0x48] sm:$0xff]
      %v3923 = vld [vmem:[%s3912 + $0x50] sm:$0xff]
      %v3924 = vld [vmem:[%s3912 + $0x58] sm:$0xff]
      %v3925 = vld [vmem:[%s3912 + $0x60] sm:$0xff]
      %v3926 = vld [vmem:[%s3912 + $0x68] sm:$0xff]
      %v3927 = vld [vmem:[%s3912 + $0x70] sm:$0xff]
      %v3928 = vld [vmem:[%s3912 + $0x78] sm:$0xff]
      %v3929 = vld [vmem:[%s3912 + $0x80] sm:$0xff]
      %v3930 = vld [vmem:[%s3912 + $0x88] sm:$0xff]
      %v3931 = vld [vmem:[%s3912 + $0x90] sm:$0xff]
      %v3932 = vld [vmem:[%s3912 + $0x98] sm:$0xff]
      %v3933 = vld [vmem:[%s3912 + $0xa0] sm:$0xff]
      %v3934 = vld [vmem:[%s3912 + $0xa8] sm:$0xff]
      %v3935 = vld [vmem:[%s3912 + $0xb0] sm:$0x3]
      %v3936 = vld [vmem:[%s3912 + $0xb8] sm:$0x3]
      %3937 = vrot.lane.b32.xlu0 %v3582, 104
      %v3938 = vpop.permute.xlu0 %3937
      %3939 = vrot.lane.b32.xlu0 %v3584, 104
      %v3940 = vpop.permute.xlu0 %3939
      %v3941 = vsel %vm911, %v3938, 0
      %v3943 = vsel %vm911, %v3940, 0
      %v3946 = vsel %vm920, %v3935, 0
      %v3949 = vsel %vm920, %v3936, 0
      %3951 = vmatpush.msra.mxu0 0.0
      %3952 = vmatpush.msra.mxu0 0.0
      %3953 = vmatpush.msra.mxu0 0.0
      %3954 = vmatpush.msra.mxu0 0.0
      %3955 = vmatpush.msra.mxu0 %v3946
      %3956 = vmatpush.msra.mxu0 %v3933
      %3957 = vmatpush.msra.mxu0 %v3931
      %3958 = vmatpush.msra.mxu0 %v3929
      %3959 = vmatpush.msra.mxu0 %v3927
      %3960 = vmatpush.msra.mxu0 %v3925
      %3961 = vmatpush.msra.mxu0 %v3923
      %3962 = vmatpush.msra.mxu0 %v3921
      %3963 = vmatpush.msra.mxu0 %v3919
      %3964 = vmatpush.msra.mxu0 %v3917
      %3965 = vmatpush.msra.mxu0 %v3915
      %3966 = vmatpush.msra.mxu0 %v3913
      %3967 = vmatmul.f32.gmra.mxu0 %v3941
      %v3968 = vpop.f32.mrf.mxu0
      %v3969 = vadd.f32 0.0, %v3968
      %3970 = vmatmul.f32.gmra.mxu0 %v3943
      %v3971 = vpop.f32.mrf.mxu0
      %v3972 = vadd.f32 0.0, %v3971
      %3973 = vdwg.mxu0
      %3974 = vmatpush.msra.mxu0 0.0
      %3975 = vmatpush.msra.mxu0 0.0
      %3976 = vmatpush.msra.mxu0 0.0
      %3977 = vmatpush.msra.mxu0 0.0
      %3978 = vmatpush.msra.mxu0 %v3949
      %3979 = vmatpush.msra.mxu0 %v3934
      %3980 = vmatpush.msra.mxu0 %v3932
      %3981 = vmatpush.msra.mxu0 %v3930
      %3982 = vmatpush.msra.mxu0 %v3928
      %3983 = vmatpush.msra.mxu0 %v3926
      %3984 = vmatpush.msra.mxu0 %v3924
      %3985 = vmatpush.msra.mxu0 %v3922
      %3986 = vmatpush.msra.mxu0 %v3920
      %3987 = vmatpush.msra.mxu0 %v3918
      %3988 = vmatpush.msra.mxu0 %v3916
      %3989 = vmatpush.msra.mxu0 %v3914
      %3990 = vmatmul.f32.gmra.mxu0 %v3941
      %v3991 = vpop.f32.mrf.mxu0
      %v3992 = vadd.f32 0.0, %v3991
      %3993 = vmatmul.f32.gmra.mxu0 %v3943
      %v3994 = vpop.f32.mrf.mxu0
      %v3995 = vadd.f32 0.0, %v3994
      %3996 = vdwg.mxu0
      %v3997 = vadd.f32 %v3908, %v3969
      %v3998 = vadd.f32 %v3909, %v3992
      %v3999 = vadd.f32 %v3910, %v3972
      %v4000 = vadd.f32 %v3911, %v3995
      %s4001 = scalar_lea.vmem %s9, 3840
      %v4002 = vld [vmem:[%s4001] sm:$0xff]
      %v4003 = vld [vmem:[%s4001 + $0x8] sm:$0xff]
      %v4004 = vld [vmem:[%s4001 + $0x10] sm:$0xff]
      %v4005 = vld [vmem:[%s4001 + $0x18] sm:$0xff]
      %v4006 = vld [vmem:[%s4001 + $0x20] sm:$0xff]
      %v4007 = vld [vmem:[%s4001 + $0x28] sm:$0xff]
      %v4008 = vld [vmem:[%s4001 + $0x30] sm:$0xff]
      %v4009 = vld [vmem:[%s4001 + $0x38] sm:$0xff]
      %v4010 = vld [vmem:[%s4001 + $0x40] sm:$0xff]
      %v4011 = vld [vmem:[%s4001 + $0x48] sm:$0xff]
      %v4012 = vld [vmem:[%s4001 + $0x50] sm:$0xff]
      %v4013 = vld [vmem:[%s4001 + $0x58] sm:$0xff]
      %v4014 = vld [vmem:[%s4001 + $0x60] sm:$0xff]
      %v4015 = vld [vmem:[%s4001 + $0x68] sm:$0xff]
      %v4016 = vld [vmem:[%s4001 + $0x70] sm:$0xff]
      %v4017 = vld [vmem:[%s4001 + $0x78] sm:$0xff]
      %v4018 = vld [vmem:[%s4001 + $0x80] sm:$0xff]
      %v4019 = vld [vmem:[%s4001 + $0x88] sm:$0xff]
      %v4020 = vld [vmem:[%s4001 + $0x90] sm:$0xff]
      %v4021 = vld [vmem:[%s4001 + $0x98] sm:$0xff]
      %v4022 = vld [vmem:[%s4001 + $0xa0] sm:$0xff]
      %v4023 = vld [vmem:[%s4001 + $0xa8] sm:$0xff]
      %v4024 = vld [vmem:[%s4001 + $0xb0] sm:$0x3]
      %v4025 = vld [vmem:[%s4001 + $0xb8] sm:$0x3]
      %v4026 = vrot.slane %v2221, 4
      %v4027 = vrot.slane %v2224, 4
      %v4028 = vsel %vm2019, %v4026, %v4027
      %v4029 = vrot.slane %v2227, 4
      %v4030 = vsel %vm2019, %v4027, %v4029
      %v4031 = vsel %vm911, %v4028, 0
      %v4033 = vsel %vm911, %v4030, 0
      %v4036 = vsel %vm920, %v4024, 0
      %v4039 = vsel %vm920, %v4025, 0
      %4041 = vmatpush.msra.mxu0 0.0
      %4042 = vmatpush.msra.mxu0 0.0
      %4043 = vmatpush.msra.mxu0 0.0
      %4044 = vmatpush.msra.mxu0 0.0
      %4045 = vmatpush.msra.mxu0 %v4036
      %4046 = vmatpush.msra.mxu0 %v4022
      %4047 = vmatpush.msra.mxu0 %v4020
      %4048 = vmatpush.msra.mxu0 %v4018
      %4049 = vmatpush.msra.mxu0 %v4016
      %4050 = vmatpush.msra.mxu0 %v4014
      %4051 = vmatpush.msra.mxu0 %v4012
      %4052 = vmatpush.msra.mxu0 %v4010
      %4053 = vmatpush.msra.mxu0 %v4008
      %4054 = vmatpush.msra.mxu0 %v4006
      %4055 = vmatpush.msra.mxu0 %v4004
      %4056 = vmatpush.msra.mxu0 %v4002
      %4057 = vmatmul.f32.gmra.mxu0 %v4031
      %v4058 = vpop.f32.mrf.mxu0
      %v4059 = vadd.f32 0.0, %v4058
      %4060 = vmatmul.f32.gmra.mxu0 %v4033
      %v4061 = vpop.f32.mrf.mxu0
      %v4062 = vadd.f32 0.0, %v4061
      %4063 = vdwg.mxu0
      %4064 = vmatpush.msra.mxu0 0.0
      %4065 = vmatpush.msra.mxu0 0.0
      %4066 = vmatpush.msra.mxu0 0.0
      %4067 = vmatpush.msra.mxu0 0.0
      %4068 = vmatpush.msra.mxu0 %v4039
      %4069 = vmatpush.msra.mxu0 %v4023
      %4070 = vmatpush.msra.mxu0 %v4021
      %4071 = vmatpush.msra.mxu0 %v4019
      %4072 = vmatpush.msra.mxu0 %v4017
      %4073 = vmatpush.msra.mxu0 %v4015
      %4074 = vmatpush.msra.mxu0 %v4013
      %4075 = vmatpush.msra.mxu0 %v4011
      %4076 = vmatpush.msra.mxu0 %v4009
      %4077 = vmatpush.msra.mxu0 %v4007
      %4078 = vmatpush.msra.mxu0 %v4005
      %4079 = vmatpush.msra.mxu0 %v4003
      %4080 = vmatmul.f32.gmra.mxu0 %v4031
      %v4081 = vpop.f32.mrf.mxu0
      %v4082 = vadd.f32 0.0, %v4081
      %4083 = vmatmul.f32.gmra.mxu0 %v4033
      %v4084 = vpop.f32.mrf.mxu0
      %v4085 = vadd.f32 0.0, %v4084
      %4086 = vdwg.mxu0
      %v4087 = vadd.f32 %v3997, %v4059
      %v4088 = vadd.f32 %v3998, %v4082
      %v4089 = vadd.f32 %v3999, %v4062
      %v4090 = vadd.f32 %v4000, %v4085
      %s4091 = scalar_lea.vmem %s9, 4032
      %v4092 = vld [vmem:[%s4091] sm:$0xff]
      %v4093 = vld [vmem:[%s4091 + $0x8] sm:$0xff]
      %v4094 = vld [vmem:[%s4091 + $0x10] sm:$0xff]
      %v4095 = vld [vmem:[%s4091 + $0x18] sm:$0xff]
      %v4096 = vld [vmem:[%s4091 + $0x20] sm:$0xff]
      %v4097 = vld [vmem:[%s4091 + $0x28] sm:$0xff]
      %v4098 = vld [vmem:[%s4091 + $0x30] sm:$0xff]
      %v4099 = vld [vmem:[%s4091 + $0x38] sm:$0xff]
      %v4100 = vld [vmem:[%s4091 + $0x40] sm:$0xff]
      %v4101 = vld [vmem:[%s4091 + $0x48] sm:$0xff]
      %v4102 = vld [vmem:[%s4091 + $0x50] sm:$0xff]
      %v4103 = vld [vmem:[%s4091 + $0x58] sm:$0xff]
      %v4104 = vld [vmem:[%s4091 + $0x60] sm:$0xff]
      %v4105 = vld [vmem:[%s4091 + $0x68] sm:$0xff]
      %v4106 = vld [vmem:[%s4091 + $0x70] sm:$0xff]
      %v4107 = vld [vmem:[%s4091 + $0x78] sm:$0xff]
      %v4108 = vld [vmem:[%s4091 + $0x80] sm:$0xff]
      %v4109 = vld [vmem:[%s4091 + $0x88] sm:$0xff]
      %v4110 = vld [vmem:[%s4091 + $0x90] sm:$0xff]
      %v4111 = vld [vmem:[%s4091 + $0x98] sm:$0xff]
      %v4112 = vld [vmem:[%s4091 + $0xa0] sm:$0xff]
      %v4113 = vld [vmem:[%s4091 + $0xa8] sm:$0xff]
      %v4114 = vld [vmem:[%s4091 + $0xb0] sm:$0x3]
      %v4115 = vld [vmem:[%s4091 + $0xb8] sm:$0x3]
      %4116 = vrot.lane.b32.xlu0 %v4028, 122
      %v4117 = vpop.permute.xlu0 %4116
      %4118 = vrot.lane.b32.xlu0 %v4030, 122
      %v4119 = vpop.permute.xlu0 %4118
      %v4120 = vsel %vm911, %v4117, 0
      %v4122 = vsel %vm911, %v4119, 0
      %v4125 = vsel %vm920, %v4114, 0
      %v4128 = vsel %vm920, %v4115, 0
      %4130 = vmatpush.msra.mxu0 0.0
      %4131 = vmatpush.msra.mxu0 0.0
      %4132 = vmatpush.msra.mxu0 0.0
      %4133 = vmatpush.msra.mxu0 0.0
      %4134 = vmatpush.msra.mxu0 %v4125
      %4135 = vmatpush.msra.mxu0 %v4112
      %4136 = vmatpush.msra.mxu0 %v4110
      %4137 = vmatpush.msra.mxu0 %v4108
      %4138 = vmatpush.msra.mxu0 %v4106
      %4139 = vmatpush.msra.mxu0 %v4104
      %4140 = vmatpush.msra.mxu0 %v4102
      %4141 = vmatpush.msra.mxu0 %v4100
      %4142 = vmatpush.msra.mxu0 %v4098
      %4143 = vmatpush.msra.mxu0 %v4096
      %4144 = vmatpush.msra.mxu0 %v4094
      %4145 = vmatpush.msra.mxu0 %v4092
      %4146 = vmatmul.f32.gmra.mxu0 %v4120
      %v4147 = vpop.f32.mrf.mxu0
      %v4148 = vadd.f32 0.0, %v4147
      %4149 = vmatmul.f32.gmra.mxu0 %v4122
      %v4150 = vpop.f32.mrf.mxu0
      %v4151 = vadd.f32 0.0, %v4150
      %4152 = vdwg.mxu0
      %4153 = vmatpush.msra.mxu0 0.0
      %4154 = vmatpush.msra.mxu0 0.0
      %4155 = vmatpush.msra.mxu0 0.0
      %4156 = vmatpush.msra.mxu0 0.0
      %4157 = vmatpush.msra.mxu0 %v4128
      %4158 = vmatpush.msra.mxu0 %v4113
      %4159 = vmatpush.msra.mxu0 %v4111
      %4160 = vmatpush.msra.mxu0 %v4109
      %4161 = vmatpush.msra.mxu0 %v4107
      %4162 = vmatpush.msra.mxu0 %v4105
      %4163 = vmatpush.msra.mxu0 %v4103
      %4164 = vmatpush.msra.mxu0 %v4101
      %4165 = vmatpush.msra.mxu0 %v4099
      %4166 = vmatpush.msra.mxu0 %v4097
      %4167 = vmatpush.msra.mxu0 %v4095
      %4168 = vmatpush.msra.mxu0 %v4093
      %4169 = vmatmul.f32.gmra.mxu0 %v4120
      %v4170 = vpop.f32.mrf.mxu0
      %v4171 = vadd.f32 0.0, %v4170
      %4172 = vmatmul.f32.gmra.mxu0 %v4122
      %v4173 = vpop.f32.mrf.mxu0
      %v4174 = vadd.f32 0.0, %v4173
      %4175 = vdwg.mxu0
      %v4176 = vadd.f32 %v4087, %v4148
      %v4177 = vadd.f32 %v4088, %v4171
      %v4178 = vadd.f32 %v4089, %v4151
      %v4179 = vadd.f32 %v4090, %v4174
      %s4180 = scalar_lea.vmem %s9, 4224
      %v4181 = vld [vmem:[%s4180] sm:$0xff]
      %v4182 = vld [vmem:[%s4180 + $0x8] sm:$0xff]
      %v4183 = vld [vmem:[%s4180 + $0x10] sm:$0xff]
      %v4184 = vld [vmem:[%s4180 + $0x18] sm:$0xff]
      %v4185 = vld [vmem:[%s4180 + $0x20] sm:$0xff]
      %v4186 = vld [vmem:[%s4180 + $0x28] sm:$0xff]
      %v4187 = vld [vmem:[%s4180 + $0x30] sm:$0xff]
      %v4188 = vld [vmem:[%s4180 + $0x38] sm:$0xff]
      %v4189 = vld [vmem:[%s4180 + $0x40] sm:$0xff]
      %v4190 = vld [vmem:[%s4180 + $0x48] sm:$0xff]
      %v4191 = vld [vmem:[%s4180 + $0x50] sm:$0xff]
      %v4192 = vld [vmem:[%s4180 + $0x58] sm:$0xff]
      %v4193 = vld [vmem:[%s4180 + $0x60] sm:$0xff]
      %v4194 = vld [vmem:[%s4180 + $0x68] sm:$0xff]
      %v4195 = vld [vmem:[%s4180 + $0x70] sm:$0xff]
      %v4196 = vld [vmem:[%s4180 + $0x78] sm:$0xff]
      %v4197 = vld [vmem:[%s4180 + $0x80] sm:$0xff]
      %v4198 = vld [vmem:[%s4180 + $0x88] sm:$0xff]
      %v4199 = vld [vmem:[%s4180 + $0x90] sm:$0xff]
      %v4200 = vld [vmem:[%s4180 + $0x98] sm:$0xff]
      %v4201 = vld [vmem:[%s4180 + $0xa0] sm:$0xff]
      %v4202 = vld [vmem:[%s4180 + $0xa8] sm:$0xff]
      %v4203 = vld [vmem:[%s4180 + $0xb0] sm:$0x3]
      %v4204 = vld [vmem:[%s4180 + $0xb8] sm:$0x3]
      %4205 = vrot.lane.b32.xlu0 %v4028, 116
      %v4206 = vpop.permute.xlu0 %4205
      %4207 = vrot.lane.b32.xlu0 %v4030, 116
      %v4208 = vpop.permute.xlu0 %4207
      %v4209 = vsel %vm911, %v4206, 0
      %v4211 = vsel %vm911, %v4208, 0
      %v4214 = vsel %vm920, %v4203, 0
      %v4217 = vsel %vm920, %v4204, 0
      %4219 = vmatpush.msra.mxu0 0.0
      %4220 = vmatpush.msra.mxu0 0.0
      %4221 = vmatpush.msra.mxu0 0.0
      %4222 = vmatpush.msra.mxu0 0.0
      %4223 = vmatpush.msra.mxu0 %v4214
      %4224 = vmatpush.msra.mxu0 %v4201
      %4225 = vmatpush.msra.mxu0 %v4199
      %4226 = vmatpush.msra.mxu0 %v4197
      %4227 = vmatpush.msra.mxu0 %v4195
      %4228 = vmatpush.msra.mxu0 %v4193
      %4229 = vmatpush.msra.mxu0 %v4191
      %4230 = vmatpush.msra.mxu0 %v4189
      %4231 = vmatpush.msra.mxu0 %v4187
      %4232 = vmatpush.msra.mxu0 %v4185
      %4233 = vmatpush.msra.mxu0 %v4183
      %4234 = vmatpush.msra.mxu0 %v4181
      %4235 = vmatmul.f32.gmra.mxu0 %v4209
      %v4236 = vpop.f32.mrf.mxu0
      %v4237 = vadd.f32 0.0, %v4236
      %4238 = vmatmul.f32.gmra.mxu0 %v4211
      %v4239 = vpop.f32.mrf.mxu0
      %v4240 = vadd.f32 0.0, %v4239
      %4241 = vdwg.mxu0
      %4242 = vmatpush.msra.mxu0 0.0
      %4243 = vmatpush.msra.mxu0 0.0
      %4244 = vmatpush.msra.mxu0 0.0
      %4245 = vmatpush.msra.mxu0 0.0
      %4246 = vmatpush.msra.mxu0 %v4217
      %4247 = vmatpush.msra.mxu0 %v4202
      %4248 = vmatpush.msra.mxu0 %v4200
      %4249 = vmatpush.msra.mxu0 %v4198
      %4250 = vmatpush.msra.mxu0 %v4196
      %4251 = vmatpush.msra.mxu0 %v4194
      %4252 = vmatpush.msra.mxu0 %v4192
      %4253 = vmatpush.msra.mxu0 %v4190
      %4254 = vmatpush.msra.mxu0 %v4188
      %4255 = vmatpush.msra.mxu0 %v4186
      %4256 = vmatpush.msra.mxu0 %v4184
      %4257 = vmatpush.msra.mxu0 %v4182
      %4258 = vmatmul.f32.gmra.mxu0 %v4209
      %v4259 = vpop.f32.mrf.mxu0
      %v4260 = vadd.f32 0.0, %v4259
      %4261 = vmatmul.f32.gmra.mxu0 %v4211
      %v4262 = vpop.f32.mrf.mxu0
      %v4263 = vadd.f32 0.0, %v4262
      %4264 = vdwg.mxu0
      %v4265 = vadd.f32 %v4176, %v4237
      %v4266 = vadd.f32 %v4177, %v4260
      %v4267 = vadd.f32 %v4178, %v4240
      %v4268 = vadd.f32 %v4179, %v4263
      %s4269 = scalar_lea.vmem %s9, 4416
      %v4270 = vld [vmem:[%s4269] sm:$0xff]
      %v4271 = vld [vmem:[%s4269 + $0x8] sm:$0xff]
      %v4272 = vld [vmem:[%s4269 + $0x10] sm:$0xff]
      %v4273 = vld [vmem:[%s4269 + $0x18] sm:$0xff]
      %v4274 = vld [vmem:[%s4269 + $0x20] sm:$0xff]
      %v4275 = vld [vmem:[%s4269 + $0x28] sm:$0xff]
      %v4276 = vld [vmem:[%s4269 + $0x30] sm:$0xff]
      %v4277 = vld [vmem:[%s4269 + $0x38] sm:$0xff]
      %v4278 = vld [vmem:[%s4269 + $0x40] sm:$0xff]
      %v4279 = vld [vmem:[%s4269 + $0x48] sm:$0xff]
      %v4280 = vld [vmem:[%s4269 + $0x50] sm:$0xff]
      %v4281 = vld [vmem:[%s4269 + $0x58] sm:$0xff]
      %v4282 = vld [vmem:[%s4269 + $0x60] sm:$0xff]
      %v4283 = vld [vmem:[%s4269 + $0x68] sm:$0xff]
      %v4284 = vld [vmem:[%s4269 + $0x70] sm:$0xff]
      %v4285 = vld [vmem:[%s4269 + $0x78] sm:$0xff]
      %v4286 = vld [vmem:[%s4269 + $0x80] sm:$0xff]
      %v4287 = vld [vmem:[%s4269 + $0x88] sm:$0xff]
      %v4288 = vld [vmem:[%s4269 + $0x90] sm:$0xff]
      %v4289 = vld [vmem:[%s4269 + $0x98] sm:$0xff]
      %v4290 = vld [vmem:[%s4269 + $0xa0] sm:$0xff]
      %v4291 = vld [vmem:[%s4269 + $0xa8] sm:$0xff]
      %v4292 = vld [vmem:[%s4269 + $0xb0] sm:$0x3]
      %v4293 = vld [vmem:[%s4269 + $0xb8] sm:$0x3]
      %4294 = vrot.lane.b32.xlu0 %v4028, 110
      %v4295 = vpop.permute.xlu0 %4294
      %4296 = vrot.lane.b32.xlu0 %v4030, 110
      %v4297 = vpop.permute.xlu0 %4296
      %v4298 = vsel %vm911, %v4295, 0
      %v4300 = vsel %vm911, %v4297, 0
      %v4303 = vsel %vm920, %v4292, 0
      %v4306 = vsel %vm920, %v4293, 0
      %4308 = vmatpush.msra.mxu0 0.0
      %4309 = vmatpush.msra.mxu0 0.0
      %4310 = vmatpush.msra.mxu0 0.0
      %4311 = vmatpush.msra.mxu0 0.0
      %4312 = vmatpush.msra.mxu0 %v4303
      %4313 = vmatpush.msra.mxu0 %v4290
      %4314 = vmatpush.msra.mxu0 %v4288
      %4315 = vmatpush.msra.mxu0 %v4286
      %4316 = vmatpush.msra.mxu0 %v4284
      %4317 = vmatpush.msra.mxu0 %v4282
      %4318 = vmatpush.msra.mxu0 %v4280
      %4319 = vmatpush.msra.mxu0 %v4278
      %4320 = vmatpush.msra.mxu0 %v4276
      %4321 = vmatpush.msra.mxu0 %v4274
      %4322 = vmatpush.msra.mxu0 %v4272
      %4323 = vmatpush.msra.mxu0 %v4270
      %4324 = vmatmul.f32.gmra.mxu0 %v4298
      %v4325 = vpop.f32.mrf.mxu0
      %v4326 = vadd.f32 0.0, %v4325
      %4327 = vmatmul.f32.gmra.mxu0 %v4300
      %v4328 = vpop.f32.mrf.mxu0
      %v4329 = vadd.f32 0.0, %v4328
      %4330 = vdwg.mxu0
      %4331 = vmatpush.msra.mxu0 0.0
      %4332 = vmatpush.msra.mxu0 0.0
      %4333 = vmatpush.msra.mxu0 0.0
      %4334 = vmatpush.msra.mxu0 0.0
      %4335 = vmatpush.msra.mxu0 %v4306
      %4336 = vmatpush.msra.mxu0 %v4291
      %4337 = vmatpush.msra.mxu0 %v4289
      %4338 = vmatpush.msra.mxu0 %v4287
      %4339 = vmatpush.msra.mxu0 %v4285
      %4340 = vmatpush.msra.mxu0 %v4283
      %4341 = vmatpush.msra.mxu0 %v4281
      %4342 = vmatpush.msra.mxu0 %v4279
      %4343 = vmatpush.msra.mxu0 %v4277
      %4344 = vmatpush.msra.mxu0 %v4275
      %4345 = vmatpush.msra.mxu0 %v4273
      %4346 = vmatpush.msra.mxu0 %v4271
      %4347 = vmatmul.f32.gmra.mxu0 %v4298
      %v4348 = vpop.f32.mrf.mxu0
      %v4349 = vadd.f32 0.0, %v4348
      %4350 = vmatmul.f32.gmra.mxu0 %v4300
      %v4351 = vpop.f32.mrf.mxu0
      %v4352 = vadd.f32 0.0, %v4351
      %4353 = vdwg.mxu0
      %v4354 = vadd.f32 %v4265, %v4326
      %v4355 = vadd.f32 %v4266, %v4349
      %v4356 = vadd.f32 %v4267, %v4329
      %v4357 = vadd.f32 %v4268, %v4352
      %s4358 = scalar_lea.vmem %s9, 4608
      %v4359 = vld [vmem:[%s4358] sm:$0xff]
      %v4360 = vld [vmem:[%s4358 + $0x8] sm:$0xff]
      %v4361 = vld [vmem:[%s4358 + $0x10] sm:$0xff]
      %v4362 = vld [vmem:[%s4358 + $0x18] sm:$0xff]
      %v4363 = vld [vmem:[%s4358 + $0x20] sm:$0xff]
      %v4364 = vld [vmem:[%s4358 + $0x28] sm:$0xff]
      %v4365 = vld [vmem:[%s4358 + $0x30] sm:$0xff]
      %v4366 = vld [vmem:[%s4358 + $0x38] sm:$0xff]
      %v4367 = vld [vmem:[%s4358 + $0x40] sm:$0xff]
      %v4368 = vld [vmem:[%s4358 + $0x48] sm:$0xff]
      %v4369 = vld [vmem:[%s4358 + $0x50] sm:$0xff]
      %v4370 = vld [vmem:[%s4358 + $0x58] sm:$0xff]
      %v4371 = vld [vmem:[%s4358 + $0x60] sm:$0xff]
      %v4372 = vld [vmem:[%s4358 + $0x68] sm:$0xff]
      %v4373 = vld [vmem:[%s4358 + $0x70] sm:$0xff]
      %v4374 = vld [vmem:[%s4358 + $0x78] sm:$0xff]
      %v4375 = vld [vmem:[%s4358 + $0x80] sm:$0xff]
      %v4376 = vld [vmem:[%s4358 + $0x88] sm:$0xff]
      %v4377 = vld [vmem:[%s4358 + $0x90] sm:$0xff]
      %v4378 = vld [vmem:[%s4358 + $0x98] sm:$0xff]
      %v4379 = vld [vmem:[%s4358 + $0xa0] sm:$0xff]
      %v4380 = vld [vmem:[%s4358 + $0xa8] sm:$0xff]
      %v4381 = vld [vmem:[%s4358 + $0xb0] sm:$0x3]
      %v4382 = vld [vmem:[%s4358 + $0xb8] sm:$0x3]
      %4383 = vrot.lane.b32.xlu0 %v4028, 104
      %v4384 = vpop.permute.xlu0 %4383
      %4385 = vrot.lane.b32.xlu0 %v4030, 104
      %v4386 = vpop.permute.xlu0 %4385
      %v4387 = vsel %vm911, %v4384, 0
      %v4389 = vsel %vm911, %v4386, 0
      %v4392 = vsel %vm920, %v4381, 0
      %v4395 = vsel %vm920, %v4382, 0
      %4397 = vmatpush.msra.mxu0 0.0
      %4398 = vmatpush.msra.mxu0 0.0
      %4399 = vmatpush.msra.mxu0 0.0
      %4400 = vmatpush.msra.mxu0 0.0
      %4401 = vmatpush.msra.mxu0 %v4392
      %4402 = vmatpush.msra.mxu0 %v4379
      %4403 = vmatpush.msra.mxu0 %v4377
      %4404 = vmatpush.msra.mxu0 %v4375
      %4405 = vmatpush.msra.mxu0 %v4373
      %4406 = vmatpush.msra.mxu0 %v4371
      %4407 = vmatpush.msra.mxu0 %v4369
      %4408 = vmatpush.msra.mxu0 %v4367
      %4409 = vmatpush.msra.mxu0 %v4365
      %4410 = vmatpush.msra.mxu0 %v4363
      %4411 = vmatpush.msra.mxu0 %v4361
      %4412 = vmatpush.msra.mxu0 %v4359
      %4413 = vmatmul.f32.gmra.mxu0 %v4387
      %v4414 = vpop.f32.mrf.mxu0
      %v4415 = vadd.f32 0.0, %v4414
      %4416 = vmatmul.f32.gmra.mxu0 %v4389
      %v4417 = vpop.f32.mrf.mxu0
      %v4418 = vadd.f32 0.0, %v4417
      %4419 = vdwg.mxu0
      %4420 = vmatpush.msra.mxu0 0.0
      %4421 = vmatpush.msra.mxu0 0.0
      %4422 = vmatpush.msra.mxu0 0.0
      %4423 = vmatpush.msra.mxu0 0.0
      %4424 = vmatpush.msra.mxu0 %v4395
      %4425 = vmatpush.msra.mxu0 %v4380
      %4426 = vmatpush.msra.mxu0 %v4378
      %4427 = vmatpush.msra.mxu0 %v4376
      %4428 = vmatpush.msra.mxu0 %v4374
      %4429 = vmatpush.msra.mxu0 %v4372
      %4430 = vmatpush.msra.mxu0 %v4370
      %4431 = vmatpush.msra.mxu0 %v4368
      %4432 = vmatpush.msra.mxu0 %v4366
      %4433 = vmatpush.msra.mxu0 %v4364
      %4434 = vmatpush.msra.mxu0 %v4362
      %4435 = vmatpush.msra.mxu0 %v4360
      %4436 = vmatmul.f32.gmra.mxu0 %v4387
      %v4437 = vpop.f32.mrf.mxu0
      %v4438 = vadd.f32 0.0, %v4437
      %4439 = vmatmul.f32.gmra.mxu0 %v4389
      %v4440 = vpop.f32.mrf.mxu0
      %v4441 = vadd.f32 0.0, %v4440
      %4442 = vdwg.mxu0
      %v4443 = vadd.f32 %v4354, %v4415
      %v4444 = vadd.f32 %v4355, %v4438
      %v4445 = vadd.f32 %v4356, %v4418
      %v4446 = vadd.f32 %v4357, %v4441
      %v4447 = vld [vmem:[%s10] sm:$0x3]
      %v4449 = vperm.slane %v4447, 0
      %v4450 = vperm.slane %v4447, 1
      %v4453 = vadd.f32 %v4443, %v4449
      %v4454 = vadd.f32 %v4444, %v4450
      %v4455 = vadd.f32 %v4445, %v4449
      %v4456 = vadd.f32 %v4446, %v4450
      %v4457 = vmax.f32 %v4453, 0.0
      %v4458 = vmax.f32 %v4454, 0.0
      %v4459 = vmax.f32 %v4455, 0.0
      %v4460 = vmax.f32 %v4456, 0.0
      %v4461 = vld [vmem:[%s11] sm:$0x7f]
      %v4463 = vsel %vm2190, %v4461, 0
      %v4466 = vsel %vm1195, %v4459, 0
      %v4469 = vsel %vm1195, %v4460, 0
      %4471 = vmatpush.msra.mxu0 0.0
      %4472 = vmatpush.msra.mxu0 0.0
      %4473 = vmatpush.msra.mxu0 0.0
      %4474 = vmatpush.msra.mxu0 0.0
      %4475 = vmatpush.msra.mxu0 0.0
      %4476 = vmatpush.msra.mxu0 0.0
      %4477 = vmatpush.msra.mxu0 0.0
      %4478 = vmatpush.msra.mxu0 0.0
      %4479 = vmatpush.msra.mxu0 0.0
      %4480 = vmatpush.msra.mxu0 0.0
      %4481 = vmatpush.msra.mxu0 0.0
      %4482 = vmatpush.msra.mxu0 0.0
      %4483 = vmatpush.msra.mxu0 0.0
      %4484 = vmatpush.msra.mxu0 0.0
      %4485 = vmatpush.msra.mxu0 %v4466
      %4486 = vmatpush.msra.mxu0 %v4457
      %4487 = vmatmul.f32.gmra.mxu0 %v4463
      %v4488 = vpop.f32.mrf.mxu0
      %v4489 = vadd.f32 0.0, %v4488
      %4490 = vdwg.mxu0
      %4491 = vmatpush.msra.mxu0 0.0
      %4492 = vmatpush.msra.mxu0 0.0
      %4493 = vmatpush.msra.mxu0 0.0
      %4494 = vmatpush.msra.mxu0 0.0
      %4495 = vmatpush.msra.mxu0 0.0
      %4496 = vmatpush.msra.mxu0 0.0
      %4497 = vmatpush.msra.mxu0 0.0
      %4498 = vmatpush.msra.mxu0 0.0
      %4499 = vmatpush.msra.mxu0 0.0
      %4500 = vmatpush.msra.mxu0 0.0
      %4501 = vmatpush.msra.mxu0 0.0
      %4502 = vmatpush.msra.mxu0 0.0
      %4503 = vmatpush.msra.mxu0 0.0
      %4504 = vmatpush.msra.mxu0 0.0
      %4505 = vmatpush.msra.mxu0 %v4469
      %4506 = vmatpush.msra.mxu0 %v4458
      %4507 = vmatmul.f32.gmra.mxu0 %v4463
      %v4508 = vpop.f32.mrf.mxu0
      %v4509 = vadd.f32 0.0, %v4508
      %4510 = vdwg.mxu0
      %v4511 = vld [vmem:[%s12] sm:$0x7f]
      %v4513 = vsel %vm2190, %v4511, 0
      %4515 = vmatpush.msra.mxu0 0.0
      %4516 = vmatpush.msra.mxu0 0.0
      %4517 = vmatpush.msra.mxu0 0.0
      %4518 = vmatpush.msra.mxu0 0.0
      %4519 = vmatpush.msra.mxu0 0.0
      %4520 = vmatpush.msra.mxu0 0.0
      %4521 = vmatpush.msra.mxu0 0.0
      %4522 = vmatpush.msra.mxu0 0.0
      %4523 = vmatpush.msra.mxu0 0.0
      %4524 = vmatpush.msra.mxu0 0.0
      %4525 = vmatpush.msra.mxu0 0.0
      %4526 = vmatpush.msra.mxu0 0.0
      %4527 = vmatpush.msra.mxu0 0.0
      %4528 = vmatpush.msra.mxu0 0.0
      %4529 = vmatpush.msra.mxu0 %v4466
      %4530 = vmatpush.msra.mxu0 %v4457
      %4531 = vmatmul.f32.gmra.mxu0 %v4513
      %v4532 = vpop.f32.mrf.mxu0
      %v4533 = vadd.f32 0.0, %v4532
      %4534 = vdwg.mxu0
      %4535 = vmatpush.msra.mxu0 0.0
      %4536 = vmatpush.msra.mxu0 0.0
      %4537 = vmatpush.msra.mxu0 0.0
      %4538 = vmatpush.msra.mxu0 0.0
      %4539 = vmatpush.msra.mxu0 0.0
      %4540 = vmatpush.msra.mxu0 0.0
      %4541 = vmatpush.msra.mxu0 0.0
      %4542 = vmatpush.msra.mxu0 0.0
      %4543 = vmatpush.msra.mxu0 0.0
      %4544 = vmatpush.msra.mxu0 0.0
      %4545 = vmatpush.msra.mxu0 0.0
      %4546 = vmatpush.msra.mxu0 0.0
      %4547 = vmatpush.msra.mxu0 0.0
      %4548 = vmatpush.msra.mxu0 0.0
      %4549 = vmatpush.msra.mxu0 %v4469
      %4550 = vmatpush.msra.mxu0 %v4458
      %4551 = vmatmul.f32.gmra.mxu0 %v4513
      %v4552 = vpop.f32.mrf.mxu0
      %v4553 = vadd.f32 0.0, %v4552
      %4554 = vdwg.mxu0
      %v4555 = vmax.f32 %v4489, %v4533
      %v4556 = vmax.f32 %v4509, %v4553
      %v4557 = vld [vmem:[%s13] sm:$0xff]
      %v4558 = vld [vmem:[%s13 + $0x8] sm:$0xff]
      %v4559 = vld [vmem:[%s13 + $0x10] sm:$0xff]
      %v4560 = vld [vmem:[%s13 + $0x18] sm:$0xff]
      %v4561 = vld [vmem:[%s13 + $0x20] sm:$0xff]
      %v4562 = vld [vmem:[%s13 + $0x28] sm:$0xff]
      %v4563 = vld [vmem:[%s13 + $0x30] sm:$0xff]
      %v4564 = vld [vmem:[%s13 + $0x38] sm:$0xff]
      %v4565 = vld [vmem:[%s13 + $0x40] sm:$0xff]
      %v4566 = vld [vmem:[%s13 + $0x48] sm:$0xff]
      %v4567 = vld [vmem:[%s13 + $0x50] sm:$0xff]
      %v4568 = vld [vmem:[%s13 + $0x58] sm:$0xff]
      %v4569 = vld [vmem:[%s13 + $0x60] sm:$0xff]
      %v4570 = vld [vmem:[%s13 + $0x68] sm:$0xff]
      %v4571 = vld [vmem:[%s13 + $0x70] sm:$0xff]
      %v4572 = vld [vmem:[%s13 + $0x78] sm:$0xff]
      %v4573 = vld [vmem:[%s13 + $0x80] sm:$0xff]
      %v4574 = vld [vmem:[%s13 + $0x88] sm:$0xff]
      %v4575 = vld [vmem:[%s13 + $0x90] sm:$0xff]
      %v4576 = vld [vmem:[%s13 + $0x98] sm:$0xff]
      %v4577 = vld [vmem:[%s13 + $0xa0] sm:$0xff]
      %v4578 = vld [vmem:[%s13 + $0xa8] sm:$0xff]
      %v4579 = vld [vmem:[%s13 + $0xb0] sm:$0xff]
      %v4580 = vld [vmem:[%s13 + $0xb8] sm:$0xff]
      %v4581 = vld [vmem:[%s13 + $0xc0] sm:$0xff]
      %v4582 = vld [vmem:[%s13 + $0xc8] sm:$0xff]
      %v4583 = vld [vmem:[%s13 + $0xd0] sm:$0xff]
      %v4584 = vld [vmem:[%s13 + $0xd8] sm:$0xff]
      %v4585 = vld [vmem:[%s13 + $0xe0] sm:$0xff]
      %v4586 = vld [vmem:[%s13 + $0xe8] sm:$0xff]
      %vm4587 = vcmask 916480
      %v4589 = vsel %vm4587, %v4556, 0
      %4591 = vmatpush.msra.mxu0 %v4572
      %4592 = vmatpush.msra.mxu0 %v4571
      %4593 = vmatpush.msra.mxu0 %v4570
      %4594 = vmatpush.msra.mxu0 %v4569
      %4595 = vmatpush.msra.mxu0 %v4568
      %4596 = vmatpush.msra.mxu0 %v4567
      %4597 = vmatpush.msra.mxu0 %v4566
      %4598 = vmatpush.msra.mxu0 %v4565
      %4599 = vmatpush.msra.mxu0 %v4564
      %4600 = vmatpush.msra.mxu0 %v4563
      %4601 = vmatpush.msra.mxu0 %v4562
      %4602 = vmatpush.msra.mxu0 %v4561
      %4603 = vmatpush.msra.mxu0 %v4560
      %4604 = vmatpush.msra.mxu0 %v4559
      %4605 = vmatpush.msra.mxu0 %v4558
      %4606 = vmatpush.msra.mxu0 %v4557
      %4607 = vmatmul.f32.gmra.mxu0 %v4555
      %v4608 = vpop.f32.mrf.mxu0
      %v4609 = vadd.f32 0.0, %v4608
      %4610 = vdwg.mxu0
      %4611 = vmatpush.msra.mxu0 0.0
      %4612 = vmatpush.msra.mxu0 0.0
      %4613 = vmatpush.msra.mxu0 %v4586
      %4614 = vmatpush.msra.mxu0 %v4585
      %4615 = vmatpush.msra.mxu0 %v4584
      %4616 = vmatpush.msra.mxu0 %v4583
      %4617 = vmatpush.msra.mxu0 %v4582
      %4618 = vmatpush.msra.mxu0 %v4581
      %4619 = vmatpush.msra.mxu0 %v4580
      %4620 = vmatpush.msra.mxu0 %v4579
      %4621 = vmatpush.msra.mxu0 %v4578
      %4622 = vmatpush.msra.mxu0 %v4577
      %4623 = vmatpush.msra.mxu0 %v4576
      %4624 = vmatpush.msra.mxu0 %v4575
      %4625 = vmatpush.msra.mxu0 %v4574
      %4626 = vmatpush.msra.mxu0 %v4573
      %4627 = vmatmul.f32.gmra.mxu0 %v4589
      %v4628 = vpop.f32.mrf.mxu0
      %v4629 = vadd.f32 %v4609, %v4628
      %4630 = vdwg.mxu0
      %v4631 = vld [vmem:[%s14] sm:$0xff]
      %v4632 = vld [vmem:[%s14 + $0x8] sm:$0xff]
      %v4633 = vld [vmem:[%s14 + $0x10] sm:$0xff]
      %v4634 = vld [vmem:[%s14 + $0x18] sm:$0xff]
      %v4635 = vld [vmem:[%s14 + $0x20] sm:$0xff]
      %v4636 = vld [vmem:[%s14 + $0x28] sm:$0xff]
      %v4637 = vld [vmem:[%s14 + $0x30] sm:$0xff]
      %v4638 = vld [vmem:[%s14 + $0x38] sm:$0xff]
      %v4639 = vld [vmem:[%s14 + $0x40] sm:$0xff]
      %v4640 = vld [vmem:[%s14 + $0x48] sm:$0xff]
      %v4641 = vld [vmem:[%s14 + $0x50] sm:$0xff]
      %v4642 = vld [vmem:[%s14 + $0x58] sm:$0xff]
      %v4643 = vld [vmem:[%s14 + $0x60] sm:$0xff]
      %v4644 = vld [vmem:[%s14 + $0x68] sm:$0xff]
      %v4645 = vld [vmem:[%s14 + $0x70] sm:$0xff]
      %v4646 = vld [vmem:[%s14 + $0x78] sm:$0xff]
      %v4647 = vld [vmem:[%s14 + $0x80] sm:$0xff]
      %v4648 = vld [vmem:[%s14 + $0x88] sm:$0xff]
      %v4649 = vld [vmem:[%s14 + $0x90] sm:$0xff]
      %v4650 = vld [vmem:[%s14 + $0x98] sm:$0xff]
      %v4651 = vld [vmem:[%s14 + $0xa0] sm:$0xff]
      %v4652 = vld [vmem:[%s14 + $0xa8] sm:$0xff]
      %v4653 = vld [vmem:[%s14 + $0xb0] sm:$0xff]
      %v4654 = vld [vmem:[%s14 + $0xb8] sm:$0xff]
      %v4655 = vld [vmem:[%s14 + $0xc0] sm:$0xff]
      %v4656 = vld [vmem:[%s14 + $0xc8] sm:$0xff]
      %v4657 = vld [vmem:[%s14 + $0xd0] sm:$0xff]
      %v4658 = vld [vmem:[%s14 + $0xd8] sm:$0xff]
      %v4659 = vld [vmem:[%s14 + $0xe0] sm:$0xff]
      %v4660 = vld [vmem:[%s14 + $0xe8] sm:$0xff]
      %4661 = vmatpush.msra.mxu0 %v4646
      %4662 = vmatpush.msra.mxu0 %v4645
      %4663 = vmatpush.msra.mxu0 %v4644
      %4664 = vmatpush.msra.mxu0 %v4643
      %4665 = vmatpush.msra.mxu0 %v4642
      %4666 = vmatpush.msra.mxu0 %v4641
      %4667 = vmatpush.msra.mxu0 %v4640
      %4668 = vmatpush.msra.mxu0 %v4639
      %4669 = vmatpush.msra.mxu0 %v4638
      %4670 = vmatpush.msra.mxu0 %v4637
      %4671 = vmatpush.msra.mxu0 %v4636
      %4672 = vmatpush.msra.mxu0 %v4635
      %4673 = vmatpush.msra.mxu0 %v4634
      %4674 = vmatpush.msra.mxu0 %v4633
      %4675 = vmatpush.msra.mxu0 %v4632
      %4676 = vmatpush.msra.mxu0 %v4631
      %4677 = vmatmul.f32.gmra.mxu0 %v4555
      %v4678 = vpop.f32.mrf.mxu0
      %v4679 = vadd.f32 0.0, %v4678
      %4680 = vdwg.mxu0
      %4681 = vmatpush.msra.mxu0 0.0
      %4682 = vmatpush.msra.mxu0 0.0
      %4683 = vmatpush.msra.mxu0 %v4660
      %4684 = vmatpush.msra.mxu0 %v4659
      %4685 = vmatpush.msra.mxu0 %v4658
      %4686 = vmatpush.msra.mxu0 %v4657
      %4687 = vmatpush.msra.mxu0 %v4656
      %4688 = vmatpush.msra.mxu0 %v4655
      %4689 = vmatpush.msra.mxu0 %v4654
      %4690 = vmatpush.msra.mxu0 %v4653
      %4691 = vmatpush.msra.mxu0 %v4652
      %4692 = vmatpush.msra.mxu0 %v4651
      %4693 = vmatpush.msra.mxu0 %v4650
      %4694 = vmatpush.msra.mxu0 %v4649
      %4695 = vmatpush.msra.mxu0 %v4648
      %4696 = vmatpush.msra.mxu0 %v4647
      %4697 = vmatmul.f32.gmra.mxu0 %v4589
      %v4698 = vpop.f32.mrf.mxu0
      %v4699 = vadd.f32 %v4679, %v4698
      %4700 = vdwg.mxu0
      %v4701 = vmax.f32 %v4629, %v4699
      %v4702 = vld [vmem:[%s15] sm:$0xff]
      %v4703 = vld [vmem:[%s15 + $0x8] sm:$0xff]
      %v4704 = vld [vmem:[%s15 + $0x10] sm:$0xff]
      %v4705 = vld [vmem:[%s15 + $0x18] sm:$0xff]
      %v4706 = vld [vmem:[%s15 + $0x20] sm:$0xff]
      %v4707 = vld [vmem:[%s15 + $0x28] sm:$0xff]
      %v4708 = vld [vmem:[%s15 + $0x30] sm:$0xff]
      %v4709 = vld [vmem:[%s15 + $0x38] sm:$0xff]
      %v4710 = vld [vmem:[%s15 + $0x40] sm:$0xff]
      %v4711 = vld [vmem:[%s15 + $0x48] sm:$0xff]
      %v4712 = vld [vmem:[%s15 + $0x50] sm:$0xff]
      %v4713 = vld [vmem:[%s15 + $0x58] sm:$0xff]
      %v4714 = vld [vmem:[%s15 + $0x60] sm:$0xff]
      %v4715 = vld [vmem:[%s15 + $0x68] sm:$0xff]
      %s4716 = scalar_lea.vmem %s15, 112
      %v4717 = vld [vmem:[%s4716] sm:$0xff]
      %v4718 = vld [vmem:[%s4716 + $0x8] sm:$0xff]
      %v4719 = vld [vmem:[%s4716 + $0x10] sm:$0xff]
      %v4720 = vld [vmem:[%s4716 + $0x18] sm:$0xff]
      %v4721 = vld [vmem:[%s4716 + $0x20] sm:$0xff]
      %v4722 = vld [vmem:[%s4716 + $0x28] sm:$0xff]
      %v4723 = vld [vmem:[%s4716 + $0x30] sm:$0xff]
      %v4724 = vld [vmem:[%s4716 + $0x38] sm:$0xff]
      %v4725 = vld [vmem:[%s4716 + $0x40] sm:$0xff]
      %v4726 = vld [vmem:[%s4716 + $0x48] sm:$0xff]
      %v4727 = vld [vmem:[%s4716 + $0x50] sm:$0xff]
      %v4728 = vld [vmem:[%s4716 + $0x58] sm:$0xff]
      %v4729 = vld [vmem:[%s4716 + $0x60] sm:$0xff]
      %v4730 = vld [vmem:[%s4716 + $0x68] sm:$0xff]
      %v4732 = vrot.slane %v4701, 1
      %v4733 = vsel %vm4587, %v4732, 0
      %4735 = vmatpush.msra.mxu0 0.0
      %4736 = vmatpush.msra.mxu0 0.0
      %4737 = vmatpush.msra.mxu0 %v4730
      %4738 = vmatpush.msra.mxu0 %v4729
      %4739 = vmatpush.msra.mxu0 %v4728
      %4740 = vmatpush.msra.mxu0 %v4727
      %4741 = vmatpush.msra.mxu0 %v4726
      %4742 = vmatpush.msra.mxu0 %v4725
      %4743 = vmatpush.msra.mxu0 %v4724
      %4744 = vmatpush.msra.mxu0 %v4723
      %4745 = vmatpush.msra.mxu0 %v4722
      %4746 = vmatpush.msra.mxu0 %v4721
      %4747 = vmatpush.msra.mxu0 %v4720
      %4748 = vmatpush.msra.mxu0 %v4719
      %4749 = vmatpush.msra.mxu0 %v4718
      %4750 = vmatpush.msra.mxu0 %v4717
      %4751 = vmatmul.f32.gmra.mxu0 %v4733
      %v4752 = vpop.f32.mrf.mxu0
      %v4753 = vadd.f32 0.0, %v4752
      %4754 = vdwg.mxu0
      %v4755 = vsel %vm4587, %v4701, 0
      %4757 = vmatpush.msra.mxu0 0.0
      %4758 = vmatpush.msra.mxu0 0.0
      %4759 = vmatpush.msra.mxu0 %v4715
      %4760 = vmatpush.msra.mxu0 %v4714
      %4761 = vmatpush.msra.mxu0 %v4713
      %4762 = vmatpush.msra.mxu0 %v4712
      %4763 = vmatpush.msra.mxu0 %v4711
      %4764 = vmatpush.msra.mxu0 %v4710
      %4765 = vmatpush.msra.mxu0 %v4709
      %4766 = vmatpush.msra.mxu0 %v4708
      %4767 = vmatpush.msra.mxu0 %v4707
      %4768 = vmatpush.msra.mxu0 %v4706
      %4769 = vmatpush.msra.mxu0 %v4705
      %4770 = vmatpush.msra.mxu0 %v4704
      %4771 = vmatpush.msra.mxu0 %v4703
      %4772 = vmatpush.msra.mxu0 %v4702
      %4773 = vmatmul.f32.gmra.mxu0 %v4755
      %v4774 = vpop.f32.mrf.mxu0
      %v4775 = vadd.f32 %v4753, %v4774
      %4776 = vdwg.mxu0
      %s4777 = scalar_lea.vmem %s15, 224
      %v4778 = vld [vmem:[%s4777] sm:$0xff]
      %v4779 = vld [vmem:[%s4777 + $0x8] sm:$0xff]
      %v4780 = vld [vmem:[%s4777 + $0x10] sm:$0xff]
      %v4781 = vld [vmem:[%s4777 + $0x18] sm:$0xff]
      %v4782 = vld [vmem:[%s4777 + $0x20] sm:$0xff]
      %v4783 = vld [vmem:[%s4777 + $0x28] sm:$0xff]
      %v4784 = vld [vmem:[%s4777 + $0x30] sm:$0xff]
      %v4785 = vld [vmem:[%s4777 + $0x38] sm:$0xff]
      %v4786 = vld [vmem:[%s4777 + $0x40] sm:$0xff]
      %v4787 = vld [vmem:[%s4777 + $0x48] sm:$0xff]
      %v4788 = vld [vmem:[%s4777 + $0x50] sm:$0xff]
      %v4789 = vld [vmem:[%s4777 + $0x58] sm:$0xff]
      %v4790 = vld [vmem:[%s4777 + $0x60] sm:$0xff]
      %v4791 = vld [vmem:[%s4777 + $0x68] sm:$0xff]
      %v4792 = vrot.slane %v4701, 2
      %v4793 = vsel %vm4587, %v4792, 0
      %4795 = vmatpush.msra.mxu0 0.0
      %4796 = vmatpush.msra.mxu0 0.0
      %4797 = vmatpush.msra.mxu0 %v4791
      %4798 = vmatpush.msra.mxu0 %v4790
      %4799 = vmatpush.msra.mxu0 %v4789
      %4800 = vmatpush.msra.mxu0 %v4788
      %4801 = vmatpush.msra.mxu0 %v4787
      %4802 = vmatpush.msra.mxu0 %v4786
      %4803 = vmatpush.msra.mxu0 %v4785
      %4804 = vmatpush.msra.mxu0 %v4784
      %4805 = vmatpush.msra.mxu0 %v4783
      %4806 = vmatpush.msra.mxu0 %v4782
      %4807 = vmatpush.msra.mxu0 %v4781
      %4808 = vmatpush.msra.mxu0 %v4780
      %4809 = vmatpush.msra.mxu0 %v4779
      %4810 = vmatpush.msra.mxu0 %v4778
      %4811 = vmatmul.f32.gmra.mxu0 %v4793
      %v4812 = vpop.f32.mrf.mxu0
      %v4813 = vadd.f32 0.0, %v4812
      %4814 = vdwg.mxu0
      %v4815 = vadd.f32 %v4775, %v4813
      %s4816 = scalar_lea.vmem %s15, 336
      %v4817 = vld [vmem:[%s4816] sm:$0xff]
      %v4818 = vld [vmem:[%s4816 + $0x8] sm:$0xff]
      %v4819 = vld [vmem:[%s4816 + $0x10] sm:$0xff]
      %v4820 = vld [vmem:[%s4816 + $0x18] sm:$0xff]
      %v4821 = vld [vmem:[%s4816 + $0x20] sm:$0xff]
      %v4822 = vld [vmem:[%s4816 + $0x28] sm:$0xff]
      %v4823 = vld [vmem:[%s4816 + $0x30] sm:$0xff]
      %v4824 = vld [vmem:[%s4816 + $0x38] sm:$0xff]
      %v4825 = vld [vmem:[%s4816 + $0x40] sm:$0xff]
      %v4826 = vld [vmem:[%s4816 + $0x48] sm:$0xff]
      %v4827 = vld [vmem:[%s4816 + $0x50] sm:$0xff]
      %v4828 = vld [vmem:[%s4816 + $0x58] sm:$0xff]
      %v4829 = vld [vmem:[%s4816 + $0x60] sm:$0xff]
      %v4830 = vld [vmem:[%s4816 + $0x68] sm:$0xff]
      %v4831 = vrot.slane %v4701, 3
      %v4832 = vsel %vm4587, %v4831, 0
      %4834 = vmatpush.msra.mxu0 0.0
      %4835 = vmatpush.msra.mxu0 0.0
      %4836 = vmatpush.msra.mxu0 %v4830
      %4837 = vmatpush.msra.mxu0 %v4829
      %4838 = vmatpush.msra.mxu0 %v4828
      %4839 = vmatpush.msra.mxu0 %v4827
      %4840 = vmatpush.msra.mxu0 %v4826
      %4841 = vmatpush.msra.mxu0 %v4825
      %4842 = vmatpush.msra.mxu0 %v4824
      %4843 = vmatpush.msra.mxu0 %v4823
      %4844 = vmatpush.msra.mxu0 %v4822
      %4845 = vmatpush.msra.mxu0 %v4821
      %4846 = vmatpush.msra.mxu0 %v4820
      %4847 = vmatpush.msra.mxu0 %v4819
      %4848 = vmatpush.msra.mxu0 %v4818
      %4849 = vmatpush.msra.mxu0 %v4817
      %4850 = vmatmul.f32.gmra.mxu0 %v4832
      %v4851 = vpop.f32.mrf.mxu0
      %v4852 = vadd.f32 0.0, %v4851
      %4853 = vdwg.mxu0
      %v4854 = vadd.f32 %v4815, %v4852
      %s4855 = scalar_lea.vmem %s15, 448
      %v4856 = vld [vmem:[%s4855] sm:$0xff]
      %v4857 = vld [vmem:[%s4855 + $0x8] sm:$0xff]
      %v4858 = vld [vmem:[%s4855 + $0x10] sm:$0xff]
      %v4859 = vld [vmem:[%s4855 + $0x18] sm:$0xff]
      %v4860 = vld [vmem:[%s4855 + $0x20] sm:$0xff]
      %v4861 = vld [vmem:[%s4855 + $0x28] sm:$0xff]
      %v4862 = vld [vmem:[%s4855 + $0x30] sm:$0xff]
      %v4863 = vld [vmem:[%s4855 + $0x38] sm:$0xff]
      %v4864 = vld [vmem:[%s4855 + $0x40] sm:$0xff]
      %v4865 = vld [vmem:[%s4855 + $0x48] sm:$0xff]
      %v4866 = vld [vmem:[%s4855 + $0x50] sm:$0xff]
      %v4867 = vld [vmem:[%s4855 + $0x58] sm:$0xff]
      %v4868 = vld [vmem:[%s4855 + $0x60] sm:$0xff]
      %v4869 = vld [vmem:[%s4855 + $0x68] sm:$0xff]
      %v4870 = vrot.slane %v4701, 4
      %v4871 = vsel %vm4587, %v4870, 0
      %4873 = vmatpush.msra.mxu0 0.0
      %4874 = vmatpush.msra.mxu0 0.0
      %4875 = vmatpush.msra.mxu0 %v4869
      %4876 = vmatpush.msra.mxu0 %v4868
      %4877 = vmatpush.msra.mxu0 %v4867
      %4878 = vmatpush.msra.mxu0 %v4866
      %4879 = vmatpush.msra.mxu0 %v4865
      %4880 = vmatpush.msra.mxu0 %v4864
      %4881 = vmatpush.msra.mxu0 %v4863
      %4882 = vmatpush.msra.mxu0 %v4862
      %4883 = vmatpush.msra.mxu0 %v4861
      %4884 = vmatpush.msra.mxu0 %v4860
      %4885 = vmatpush.msra.mxu0 %v4859
      %4886 = vmatpush.msra.mxu0 %v4858
      %4887 = vmatpush.msra.mxu0 %v4857
      %4888 = vmatpush.msra.mxu0 %v4856
      %4889 = vmatmul.f32.gmra.mxu0 %v4871
      %v4890 = vpop.f32.mrf.mxu0
      %v4891 = vadd.f32 0.0, %v4890
      %4892 = vdwg.mxu0
      %v4893 = vadd.f32 %v4854, %v4891
      %s4894 = scalar_lea.vmem %s15, 560
      %v4895 = vld [vmem:[%s4894] sm:$0xff]
      %v4896 = vld [vmem:[%s4894 + $0x8] sm:$0xff]
      %v4897 = vld [vmem:[%s4894 + $0x10] sm:$0xff]
      %v4898 = vld [vmem:[%s4894 + $0x18] sm:$0xff]
      %v4899 = vld [vmem:[%s4894 + $0x20] sm:$0xff]
      %v4900 = vld [vmem:[%s4894 + $0x28] sm:$0xff]
      %v4901 = vld [vmem:[%s4894 + $0x30] sm:$0xff]
      %v4902 = vld [vmem:[%s4894 + $0x38] sm:$0xff]
      %v4903 = vld [vmem:[%s4894 + $0x40] sm:$0xff]
      %v4904 = vld [vmem:[%s4894 + $0x48] sm:$0xff]
      %v4905 = vld [vmem:[%s4894 + $0x50] sm:$0xff]
      %v4906 = vld [vmem:[%s4894 + $0x58] sm:$0xff]
      %v4907 = vld [vmem:[%s4894 + $0x60] sm:$0xff]
      %v4908 = vld [vmem:[%s4894 + $0x68] sm:$0xff]
      %v4909 = vrot.slane %v4701, 5
      %v4910 = vsel %vm4587, %v4909, 0
      %4912 = vmatpush.msra.mxu0 0.0
      %4913 = vmatpush.msra.mxu0 0.0
      %4914 = vmatpush.msra.mxu0 %v4908
      %4915 = vmatpush.msra.mxu0 %v4907
      %4916 = vmatpush.msra.mxu0 %v4906
      %4917 = vmatpush.msra.mxu0 %v4905
      %4918 = vmatpush.msra.mxu0 %v4904
      %4919 = vmatpush.msra.mxu0 %v4903
      %4920 = vmatpush.msra.mxu0 %v4902
      %4921 = vmatpush.msra.mxu0 %v4901
      %4922 = vmatpush.msra.mxu0 %v4900
      %4923 = vmatpush.msra.mxu0 %v4899
      %4924 = vmatpush.msra.mxu0 %v4898
      %4925 = vmatpush.msra.mxu0 %v4897
      %4926 = vmatpush.msra.mxu0 %v4896
      %4927 = vmatpush.msra.mxu0 %v4895
      %4928 = vmatmul.f32.gmra.mxu0 %v4910
      %v4929 = vpop.f32.mrf.mxu0
      %v4930 = vadd.f32 0.0, %v4929
      %4931 = vdwg.mxu0
      %v4932 = vadd.f32 %v4893, %v4930
      %s4933 = scalar_lea.vmem %s15, 672
      %v4934 = vld [vmem:[%s4933] sm:$0xff]
      %v4935 = vld [vmem:[%s4933 + $0x8] sm:$0xff]
      %v4936 = vld [vmem:[%s4933 + $0x10] sm:$0xff]
      %v4937 = vld [vmem:[%s4933 + $0x18] sm:$0xff]
      %v4938 = vld [vmem:[%s4933 + $0x20] sm:$0xff]
      %v4939 = vld [vmem:[%s4933 + $0x28] sm:$0xff]
      %v4940 = vld [vmem:[%s4933 + $0x30] sm:$0xff]
      %v4941 = vld [vmem:[%s4933 + $0x38] sm:$0xff]
      %v4942 = vld [vmem:[%s4933 + $0x40] sm:$0xff]
      %v4943 = vld [vmem:[%s4933 + $0x48] sm:$0xff]
      %v4944 = vld [vmem:[%s4933 + $0x50] sm:$0xff]
      %v4945 = vld [vmem:[%s4933 + $0x58] sm:$0xff]
      %v4946 = vld [vmem:[%s4933 + $0x60] sm:$0xff]
      %v4947 = vld [vmem:[%s4933 + $0x68] sm:$0xff]
      %v4948 = vrot.slane %v4701, 6
      %v4949 = vsel %vm4587, %v4948, 0
      %4951 = vmatpush.msra.mxu0 0.0
      %4952 = vmatpush.msra.mxu0 0.0
      %4953 = vmatpush.msra.mxu0 %v4947
      %4954 = vmatpush.msra.mxu0 %v4946
      %4955 = vmatpush.msra.mxu0 %v4945
      %4956 = vmatpush.msra.mxu0 %v4944
      %4957 = vmatpush.msra.mxu0 %v4943
      %4958 = vmatpush.msra.mxu0 %v4942
      %4959 = vmatpush.msra.mxu0 %v4941
      %4960 = vmatpush.msra.mxu0 %v4940
      %4961 = vmatpush.msra.mxu0 %v4939
      %4962 = vmatpush.msra.mxu0 %v4938
      %4963 = vmatpush.msra.mxu0 %v4937
      %4964 = vmatpush.msra.mxu0 %v4936
      %4965 = vmatpush.msra.mxu0 %v4935
      %4966 = vmatpush.msra.mxu0 %v4934
      %4967 = vmatmul.f32.gmra.mxu0 %v4949
      %v4968 = vpop.f32.mrf.mxu0
      %v4969 = vadd.f32 0.0, %v4968
      %4970 = vdwg.mxu0
      %v4971 = vadd.f32 %v4932, %v4969
      %v4972 = vld [vmem:[%s16] sm:$0x1]
      %v4973 = vadd.f32 %v4971, %v4972
      %v4974 = vmax.f32 %v4973, 0.0
      %v4975 = vld [vmem:[%s17] sm:$0x7f]
      %v4976 = vld [vmem:[%s18] sm:$0xff]
      %v4977 = vld [vmem:[%s18 + $0x8] sm:$0xff]
      %v4978 = vld [vmem:[%s18 + $0x10] sm:$0xff]
      %v4979 = vld [vmem:[%s18 + $0x18] sm:$0xff]
      %v4980 = vld [vmem:[%s18 + $0x20] sm:$0xff]
      %v4981 = vld [vmem:[%s18 + $0x28] sm:$0xff]
      %v4982 = vld [vmem:[%s18 + $0x30] sm:$0xff]
      %v4983 = vld [vmem:[%s18 + $0x38] sm:$0xff]
      %v4984 = vld [vmem:[%s18 + $0x40] sm:$0xff]
      %v4985 = vld [vmem:[%s18 + $0x48] sm:$0xff]
      %v4986 = vld [vmem:[%s18 + $0x50] sm:$0xff]
      %v4987 = vld [vmem:[%s18 + $0x58] sm:$0xff]
      %v4988 = vld [vmem:[%s18 + $0x60] sm:$0xff]
      %v4989 = vld [vmem:[%s18 + $0x68] sm:$0xff]
      %v4990 = vld [vmem:[%s18 + $0x70] sm:$0xff]
      %v4991 = vld [vmem:[%s18 + $0x78] sm:$0xff]
      %4992 = vmatpush.msra.mxu0 %v4991
      %4993 = vmatpush.msra.mxu0 %v4990
      %4994 = vmatpush.msra.mxu0 %v4989
      %4995 = vmatpush.msra.mxu0 %v4988
      %4996 = vmatpush.msra.mxu0 %v4987
      %4997 = vmatpush.msra.mxu0 %v4986
      %4998 = vmatpush.msra.mxu0 %v4985
      %4999 = vmatpush.msra.mxu0 %v4984
      %5000 = vmatpush.msra.mxu0 %v4983
      %5001 = vmatpush.msra.mxu0 %v4982
      %5002 = vmatpush.msra.mxu0 %v4981
      %5003 = vmatpush.msra.mxu0 %v4980
      %5004 = vmatpush.msra.mxu0 %v4979
      %5005 = vmatpush.msra.mxu0 %v4978
      %5006 = vmatpush.msra.mxu0 %v4977
      %5007 = vmatpush.msra.mxu0 %v4976
      %5008 = vmatmul.f32.gmra.mxu0 %v4974
      %v5009 = vpop.f32.mrf.mxu0
      %v5010 = vadd.f32 0.0, %v5009
      %5011 = vdwg.mxu0
      %5013 = vset.pattern.permute.xlu0 0
      %5014 = vperm.xlu0 %5013, %v4975
      %v5015 = vpop.permute.xlu0 %5014
      %v5017 = vperm.slane %v5010, 0
      %v5018 = vmul.f32 %v5015, %v5017
      %v5019 = vadd.f32 %v5018, 0.0
      %s5020 = scalar_lea.vmem %s18, 128
      %v5021 = vld [vmem:[%s5020] sm:$0xff]
      %v5022 = vld [vmem:[%s5020 + $0x8] sm:$0xff]
      %v5023 = vld [vmem:[%s5020 + $0x10] sm:$0xff]
      %v5024 = vld [vmem:[%s5020 + $0x18] sm:$0xff]
      %v5025 = vld [vmem:[%s5020 + $0x20] sm:$0xff]
      %v5026 = vld [vmem:[%s5020 + $0x28] sm:$0xff]
      %v5027 = vld [vmem:[%s5020 + $0x30] sm:$0xff]
      %v5028 = vld [vmem:[%s5020 + $0x38] sm:$0xff]
      %v5029 = vld [vmem:[%s5020 + $0x40] sm:$0xff]
      %v5030 = vld [vmem:[%s5020 + $0x48] sm:$0xff]
      %v5031 = vld [vmem:[%s5020 + $0x50] sm:$0xff]
      %v5032 = vld [vmem:[%s5020 + $0x58] sm:$0xff]
      %v5033 = vld [vmem:[%s5020 + $0x60] sm:$0xff]
      %v5034 = vld [vmem:[%s5020 + $0x68] sm:$0xff]
      %v5035 = vld [vmem:[%s5020 + $0x70] sm:$0xff]
      %v5036 = vld [vmem:[%s5020 + $0x78] sm:$0xff]
      %5037 = vmatpush.msra.mxu0 %v5036
      %5038 = vmatpush.msra.mxu0 %v5035
      %5039 = vmatpush.msra.mxu0 %v5034
      %5040 = vmatpush.msra.mxu0 %v5033
      %5041 = vmatpush.msra.mxu0 %v5032
      %5042 = vmatpush.msra.mxu0 %v5031
      %5043 = vmatpush.msra.mxu0 %v5030
      %5044 = vmatpush.msra.mxu0 %v5029
      %5045 = vmatpush.msra.mxu0 %v5028
      %5046 = vmatpush.msra.mxu0 %v5027
      %5047 = vmatpush.msra.mxu0 %v5026
      %5048 = vmatpush.msra.mxu0 %v5025
      %5049 = vmatpush.msra.mxu0 %v5024
      %5050 = vmatpush.msra.mxu0 %v5023
      %5051 = vmatpush.msra.mxu0 %v5022
      %5052 = vmatpush.msra.mxu0 %v5021
      %5053 = vmatmul.f32.gmra.mxu0 %v4974
      %v5054 = vpop.f32.mrf.mxu0
      %v5055 = vadd.f32 0.0, %v5054
      %5056 = vdwg.mxu0
      %5057 = vset.pattern.permute.xlu0 1
      %5058 = vperm.xlu0 %5057, %v4975
      %v5059 = vpop.permute.xlu0 %5058
      %v5061 = vperm.slane %v5055, 0
      %v5062 = vmul.f32 %v5059, %v5061
      %v5063 = vadd.f32 %v5019, %v5062
      %s5064 = scalar_lea.vmem %s18, 256
      %v5065 = vld [vmem:[%s5064] sm:$0xff]
      %v5066 = vld [vmem:[%s5064 + $0x8] sm:$0xff]
      %v5067 = vld [vmem:[%s5064 + $0x10] sm:$0xff]
      %v5068 = vld [vmem:[%s5064 + $0x18] sm:$0xff]
      %v5069 = vld [vmem:[%s5064 + $0x20] sm:$0xff]
      %v5070 = vld [vmem:[%s5064 + $0x28] sm:$0xff]
      %v5071 = vld [vmem:[%s5064 + $0x30] sm:$0xff]
      %v5072 = vld [vmem:[%s5064 + $0x38] sm:$0xff]
      %v5073 = vld [vmem:[%s5064 + $0x40] sm:$0xff]
      %v5074 = vld [vmem:[%s5064 + $0x48] sm:$0xff]
      %v5075 = vld [vmem:[%s5064 + $0x50] sm:$0xff]
      %v5076 = vld [vmem:[%s5064 + $0x58] sm:$0xff]
      %v5077 = vld [vmem:[%s5064 + $0x60] sm:$0xff]
      %v5078 = vld [vmem:[%s5064 + $0x68] sm:$0xff]
      %v5079 = vld [vmem:[%s5064 + $0x70] sm:$0xff]
      %v5080 = vld [vmem:[%s5064 + $0x78] sm:$0xff]
      %5081 = vmatpush.msra.mxu0 %v5080
      %5082 = vmatpush.msra.mxu0 %v5079
      %5083 = vmatpush.msra.mxu0 %v5078
      %5084 = vmatpush.msra.mxu0 %v5077
      %5085 = vmatpush.msra.mxu0 %v5076
      %5086 = vmatpush.msra.mxu0 %v5075
      %5087 = vmatpush.msra.mxu0 %v5074
      %5088 = vmatpush.msra.mxu0 %v5073
      %5089 = vmatpush.msra.mxu0 %v5072
      %5090 = vmatpush.msra.mxu0 %v5071
      %5091 = vmatpush.msra.mxu0 %v5070
      %5092 = vmatpush.msra.mxu0 %v5069
      %5093 = vmatpush.msra.mxu0 %v5068
      %5094 = vmatpush.msra.mxu0 %v5067
      %5095 = vmatpush.msra.mxu0 %v5066
      %5096 = vmatpush.msra.mxu0 %v5065
      %5097 = vmatmul.f32.gmra.mxu0 %v4974
      %v5098 = vpop.f32.mrf.mxu0
      %v5099 = vadd.f32 0.0, %v5098
      %5100 = vdwg.mxu0
      %5101 = vset.pattern.permute.xlu0 2
      %5102 = vperm.xlu0 %5101, %v4975
      %v5103 = vpop.permute.xlu0 %5102
      %v5105 = vperm.slane %v5099, 0
      %v5106 = vmul.f32 %v5103, %v5105
      %v5107 = vadd.f32 %v5063, %v5106
      %s5108 = scalar_lea.vmem %s18, 384
      %v5109 = vld [vmem:[%s5108] sm:$0xff]
      %v5110 = vld [vmem:[%s5108 + $0x8] sm:$0xff]
      %v5111 = vld [vmem:[%s5108 + $0x10] sm:$0xff]
      %v5112 = vld [vmem:[%s5108 + $0x18] sm:$0xff]
      %v5113 = vld [vmem:[%s5108 + $0x20] sm:$0xff]
      %v5114 = vld [vmem:[%s5108 + $0x28] sm:$0xff]
      %v5115 = vld [vmem:[%s5108 + $0x30] sm:$0xff]
      %v5116 = vld [vmem:[%s5108 + $0x38] sm:$0xff]
      %v5117 = vld [vmem:[%s5108 + $0x40] sm:$0xff]
      %v5118 = vld [vmem:[%s5108 + $0x48] sm:$0xff]
      %v5119 = vld [vmem:[%s5108 + $0x50] sm:$0xff]
      %v5120 = vld [vmem:[%s5108 + $0x58] sm:$0xff]
      %v5121 = vld [vmem:[%s5108 + $0x60] sm:$0xff]
      %v5122 = vld [vmem:[%s5108 + $0x68] sm:$0xff]
      %v5123 = vld [vmem:[%s5108 + $0x70] sm:$0xff]
      %v5124 = vld [vmem:[%s5108 + $0x78] sm:$0xff]
      %5125 = vmatpush.msra.mxu0 %v5124
      %5126 = vmatpush.msra.mxu0 %v5123
      %5127 = vmatpush.msra.mxu0 %v5122
      %5128 = vmatpush.msra.mxu0 %v5121
      %5129 = vmatpush.msra.mxu0 %v5120
      %5130 = vmatpush.msra.mxu0 %v5119
      %5131 = vmatpush.msra.mxu0 %v5118
      %5132 = vmatpush.msra.mxu0 %v5117
      %5133 = vmatpush.msra.mxu0 %v5116
      %5134 = vmatpush.msra.mxu0 %v5115
      %5135 = vmatpush.msra.mxu0 %v5114
      %5136 = vmatpush.msra.mxu0 %v5113
      %5137 = vmatpush.msra.mxu0 %v5112
      %5138 = vmatpush.msra.mxu0 %v5111
      %5139 = vmatpush.msra.mxu0 %v5110
      %5140 = vmatpush.msra.mxu0 %v5109
      %5141 = vmatmul.f32.gmra.mxu0 %v4974
      %v5142 = vpop.f32.mrf.mxu0
      %v5143 = vadd.f32 0.0, %v5142
      %5144 = vdwg.mxu0
      %5145 = vset.pattern.permute.xlu0 3
      %5146 = vperm.xlu0 %5145, %v4975
      %v5147 = vpop.permute.xlu0 %5146
      %v5149 = vperm.slane %v5143, 0
      %v5150 = vmul.f32 %v5147, %v5149
      %v5151 = vadd.f32 %v5107, %v5150
      %s5152 = scalar_lea.vmem %s18, 512
      %v5153 = vld [vmem:[%s5152] sm:$0xff]
      %v5154 = vld [vmem:[%s5152 + $0x8] sm:$0xff]
      %v5155 = vld [vmem:[%s5152 + $0x10] sm:$0xff]
      %v5156 = vld [vmem:[%s5152 + $0x18] sm:$0xff]
      %v5157 = vld [vmem:[%s5152 + $0x20] sm:$0xff]
      %v5158 = vld [vmem:[%s5152 + $0x28] sm:$0xff]
      %v5159 = vld [vmem:[%s5152 + $0x30] sm:$0xff]
      %v5160 = vld [vmem:[%s5152 + $0x38] sm:$0xff]
      %v5161 = vld [vmem:[%s5152 + $0x40] sm:$0xff]
      %v5162 = vld [vmem:[%s5152 + $0x48] sm:$0xff]
      %v5163 = vld [vmem:[%s5152 + $0x50] sm:$0xff]
      %v5164 = vld [vmem:[%s5152 + $0x58] sm:$0xff]
      %v5165 = vld [vmem:[%s5152 + $0x60] sm:$0xff]
      %v5166 = vld [vmem:[%s5152 + $0x68] sm:$0xff]
      %v5167 = vld [vmem:[%s5152 + $0x70] sm:$0xff]
      %v5168 = vld [vmem:[%s5152 + $0x78] sm:$0xff]
      %5169 = vmatpush.msra.mxu0 %v5168
      %5170 = vmatpush.msra.mxu0 %v5167
      %5171 = vmatpush.msra.mxu0 %v5166
      %5172 = vmatpush.msra.mxu0 %v5165
      %5173 = vmatpush.msra.mxu0 %v5164
      %5174 = vmatpush.msra.mxu0 %v5163
      %5175 = vmatpush.msra.mxu0 %v5162
      %5176 = vmatpush.msra.mxu0 %v5161
      %5177 = vmatpush.msra.mxu0 %v5160
      %5178 = vmatpush.msra.mxu0 %v5159
      %5179 = vmatpush.msra.mxu0 %v5158
      %5180 = vmatpush.msra.mxu0 %v5157
      %5181 = vmatpush.msra.mxu0 %v5156
      %5182 = vmatpush.msra.mxu0 %v5155
      %5183 = vmatpush.msra.mxu0 %v5154
      %5184 = vmatpush.msra.mxu0 %v5153
      %5185 = vmatmul.f32.gmra.mxu0 %v4974
      %v5186 = vpop.f32.mrf.mxu0
      %v5187 = vadd.f32 0.0, %v5186
      %5188 = vdwg.mxu0
      %5189 = vset.pattern.permute.xlu0 4
      %5190 = vperm.xlu0 %5189, %v4975
      %v5191 = vpop.permute.xlu0 %5190
      %v5193 = vperm.slane %v5187, 0
      %v5194 = vmul.f32 %v5191, %v5193
      %v5195 = vadd.f32 %v5151, %v5194
      %s5196 = scalar_lea.vmem %s18, 640
      %v5197 = vld [vmem:[%s5196] sm:$0xff]
      %v5198 = vld [vmem:[%s5196 + $0x8] sm:$0xff]
      %v5199 = vld [vmem:[%s5196 + $0x10] sm:$0xff]
      %v5200 = vld [vmem:[%s5196 + $0x18] sm:$0xff]
      %v5201 = vld [vmem:[%s5196 + $0x20] sm:$0xff]
      %v5202 = vld [vmem:[%s5196 + $0x28] sm:$0xff]
      %v5203 = vld [vmem:[%s5196 + $0x30] sm:$0xff]
      %v5204 = vld [vmem:[%s5196 + $0x38] sm:$0xff]
      %v5205 = vld [vmem:[%s5196 + $0x40] sm:$0xff]
      %v5206 = vld [vmem:[%s5196 + $0x48] sm:$0xff]
      %v5207 = vld [vmem:[%s5196 + $0x50] sm:$0xff]
      %v5208 = vld [vmem:[%s5196 + $0x58] sm:$0xff]
      %v5209 = vld [vmem:[%s5196 + $0x60] sm:$0xff]
      %v5210 = vld [vmem:[%s5196 + $0x68] sm:$0xff]
      %v5211 = vld [vmem:[%s5196 + $0x70] sm:$0xff]
      %v5212 = vld [vmem:[%s5196 + $0x78] sm:$0xff]
      %5213 = vmatpush.msra.mxu0 %v5212
      %5214 = vmatpush.msra.mxu0 %v5211
      %5215 = vmatpush.msra.mxu0 %v5210
      %5216 = vmatpush.msra.mxu0 %v5209
      %5217 = vmatpush.msra.mxu0 %v5208
      %5218 = vmatpush.msra.mxu0 %v5207
      %5219 = vmatpush.msra.mxu0 %v5206
      %5220 = vmatpush.msra.mxu0 %v5205
      %5221 = vmatpush.msra.mxu0 %v5204
      %5222 = vmatpush.msra.mxu0 %v5203
      %5223 = vmatpush.msra.mxu0 %v5202
      %5224 = vmatpush.msra.mxu0 %v5201
      %5225 = vmatpush.msra.mxu0 %v5200
      %5226 = vmatpush.msra.mxu0 %v5199
      %5227 = vmatpush.msra.mxu0 %v5198
      %5228 = vmatpush.msra.mxu0 %v5197
      %5229 = vmatmul.f32.gmra.mxu0 %v4974
      %v5230 = vpop.f32.mrf.mxu0
      %v5231 = vadd.f32 0.0, %v5230
      %5232 = vdwg.mxu0
      %5233 = vset.pattern.permute.xlu0 5
      %5234 = vperm.xlu0 %5233, %v4975
      %v5235 = vpop.permute.xlu0 %5234
      %v5237 = vperm.slane %v5231, 0
      %v5238 = vmul.f32 %v5235, %v5237
      %v5239 = vadd.f32 %v5195, %v5238
      %s5240 = scalar_lea.vmem %s18, 768
      %v5241 = vld [vmem:[%s5240] sm:$0xff]
      %v5242 = vld [vmem:[%s5240 + $0x8] sm:$0xff]
      %v5243 = vld [vmem:[%s5240 + $0x10] sm:$0xff]
      %v5244 = vld [vmem:[%s5240 + $0x18] sm:$0xff]
      %v5245 = vld [vmem:[%s5240 + $0x20] sm:$0xff]
      %v5246 = vld [vmem:[%s5240 + $0x28] sm:$0xff]
      %v5247 = vld [vmem:[%s5240 + $0x30] sm:$0xff]
      %v5248 = vld [vmem:[%s5240 + $0x38] sm:$0xff]
      %v5249 = vld [vmem:[%s5240 + $0x40] sm:$0xff]
      %v5250 = vld [vmem:[%s5240 + $0x48] sm:$0xff]
      %v5251 = vld [vmem:[%s5240 + $0x50] sm:$0xff]
      %v5252 = vld [vmem:[%s5240 + $0x58] sm:$0xff]
      %v5253 = vld [vmem:[%s5240 + $0x60] sm:$0xff]
      %v5254 = vld [vmem:[%s5240 + $0x68] sm:$0xff]
      %v5255 = vld [vmem:[%s5240 + $0x70] sm:$0xff]
      %v5256 = vld [vmem:[%s5240 + $0x78] sm:$0xff]
      %5257 = vmatpush.msra.mxu0 %v5256
      %5258 = vmatpush.msra.mxu0 %v5255
      %5259 = vmatpush.msra.mxu0 %v5254
      %5260 = vmatpush.msra.mxu0 %v5253
      %5261 = vmatpush.msra.mxu0 %v5252
      %5262 = vmatpush.msra.mxu0 %v5251
      %5263 = vmatpush.msra.mxu0 %v5250
      %5264 = vmatpush.msra.mxu0 %v5249
      %5265 = vmatpush.msra.mxu0 %v5248
      %5266 = vmatpush.msra.mxu0 %v5247
      %5267 = vmatpush.msra.mxu0 %v5246
      %5268 = vmatpush.msra.mxu0 %v5245
      %5269 = vmatpush.msra.mxu0 %v5244
      %5270 = vmatpush.msra.mxu0 %v5243
      %5271 = vmatpush.msra.mxu0 %v5242
      %5272 = vmatpush.msra.mxu0 %v5241
      %5273 = vmatmul.f32.gmra.mxu0 %v4974
      %v5274 = vpop.f32.mrf.mxu0
      %v5275 = vadd.f32 0.0, %v5274
      %5276 = vdwg.mxu0
      %5277 = vset.pattern.permute.xlu0 6
      %5278 = vperm.xlu0 %5277, %v4975
      %v5279 = vpop.permute.xlu0 %5278
      %v5281 = vperm.slane %v5275, 0
      %v5282 = vmul.f32 %v5279, %v5281
      %v5283 = vadd.f32 %v5239, %v5282
      %v5284 = vld [vmem:[%s19] sm:$0x7f]
      %v5285 = vadd.f32 %v5283, %v5284
      %v5286 = vmax.f32 %v5285, 0.0
      %v5287 = vld [vmem:[%s20] sm:$0xff]
      %v5288 = vld [vmem:[%s20 + $0x8] sm:$0xff]
      %v5289 = vld [vmem:[%s20 + $0x10] sm:$0x1]
      %v5290 = vld [vmem:[%s21] sm:$0xff]
      %v5291 = vld [vmem:[%s21 + $0x8] sm:$0xff]
      %v5292 = vld [vmem:[%s21 + $0x10] sm:$0xff]
      %v5293 = vld [vmem:[%s21 + $0x18] sm:$0xff]
      %v5294 = vld [vmem:[%s21 + $0x20] sm:$0xff]
      %v5295 = vld [vmem:[%s21 + $0x28] sm:$0xff]
      %v5296 = vld [vmem:[%s21 + $0x30] sm:$0xff]
      %v5297 = vld [vmem:[%s21 + $0x38] sm:$0xff]
      %v5298 = vld [vmem:[%s21 + $0x40] sm:$0xff]
      %v5299 = vld [vmem:[%s21 + $0x48] sm:$0xff]
      %v5300 = vld [vmem:[%s21 + $0x50] sm:$0xff]
      %v5301 = vld [vmem:[%s21 + $0x58] sm:$0xff]
      %v5302 = vld [vmem:[%s21 + $0x60] sm:$0xff]
      %v5303 = vld [vmem:[%s21 + $0x68] sm:$0xff]
      %v5304 = vld [vmem:[%s21 + $0x70] sm:$0xff]
      %v5305 = vld [vmem:[%s21 + $0x78] sm:$0xff]
      %v5306 = vld [vmem:[%s21 + $0x80] sm:$0xff]
      %v5307 = vld [vmem:[%s21 + $0x88] sm:$0xff]
      %v5308 = vld [vmem:[%s21 + $0x90] sm:$0xff]
      %v5309 = vld [vmem:[%s21 + $0x98] sm:$0xff]
      %v5310 = vld [vmem:[%s21 + $0xa0] sm:$0xff]
      %v5311 = vld [vmem:[%s21 + $0xa8] sm:$0xff]
      %v5312 = vld [vmem:[%s21 + $0xb0] sm:$0xff]
      %v5313 = vld [vmem:[%s21 + $0xb8] sm:$0xff]
      %v5314 = vld [vmem:[%s21 + $0xc0] sm:$0xff]
      %v5315 = vld [vmem:[%s21 + $0xc8] sm:$0xff]
      %v5316 = vld [vmem:[%s21 + $0xd0] sm:$0xff]
      %v5317 = vld [vmem:[%s21 + $0xd8] sm:$0xff]
      %v5318 = vld [vmem:[%s21 + $0xe0] sm:$0xff]
      %v5319 = vld [vmem:[%s21 + $0xe8] sm:$0xff]
      %v5320 = vld [vmem:[%s21 + $0xf0] sm:$0xff]
      %v5321 = vld [vmem:[%s21 + $0xf8] sm:$0xff]
      %v5322 = vld [vmem:[%s21 + $0x100] sm:$0xff]
      %v5323 = vld [vmem:[%s21 + $0x108] sm:$0xff]
      %v5324 = vld [vmem:[%s21 + $0x110] sm:$0xff]
      %v5325 = vld [vmem:[%s21 + $0x118] sm:$0xff]
      %v5326 = vld [vmem:[%s21 + $0x120] sm:$0xff]
      %v5327 = vld [vmem:[%s21 + $0x128] sm:$0xff]
      %v5328 = vld [vmem:[%s21 + $0x130] sm:$0xff]
      %v5329 = vld [vmem:[%s21 + $0x138] sm:$0xff]
      %v5330 = vld [vmem:[%s21 + $0x140] sm:$0xff]
      %v5331 = vld [vmem:[%s21 + $0x148] sm:$0xff]
      %v5333 = vsel %vm4587, %v5286, 0
      %5335 = vmatpush.msra.mxu0 0.0
      %5336 = vmatpush.msra.mxu0 0.0
      %5337 = vmatpush.msra.mxu0 %v5329
      %5338 = vmatpush.msra.mxu0 %v5326
      %5339 = vmatpush.msra.mxu0 %v5323
      %5340 = vmatpush.msra.mxu0 %v5320
      %5341 = vmatpush.msra.mxu0 %v5317
      %5342 = vmatpush.msra.mxu0 %v5314
      %5343 = vmatpush.msra.mxu0 %v5311
      %5344 = vmatpush.msra.mxu0 %v5308
      %5345 = vmatpush.msra.mxu0 %v5305
      %5346 = vmatpush.msra.mxu0 %v5302
      %5347 = vmatpush.msra.mxu0 %v5299
      %5348 = vmatpush.msra.mxu0 %v5296
      %5349 = vmatpush.msra.mxu0 %v5293
      %5350 = vmatpush.msra.mxu0 %v5290
      %5351 = vmatmul.f32.gmra.mxu0 %v5333
      %v5352 = vpop.f32.mrf.mxu0
      %v5353 = vadd.f32 0.0, %v5352
      %5354 = vdwg.mxu0
      %5355 = vmatpush.msra.mxu0 0.0
      %5356 = vmatpush.msra.mxu0 0.0
      %5357 = vmatpush.msra.mxu0 %v5330
      %5358 = vmatpush.msra.mxu0 %v5327
      %5359 = vmatpush.msra.mxu0 %v5324
      %5360 = vmatpush.msra.mxu0 %v5321
      %5361 = vmatpush.msra.mxu0 %v5318
      %5362 = vmatpush.msra.mxu0 %v5315
      %5363 = vmatpush.msra.mxu0 %v5312
      %5364 = vmatpush.msra.mxu0 %v5309
      %5365 = vmatpush.msra.mxu0 %v5306
      %5366 = vmatpush.msra.mxu0 %v5303
      %5367 = vmatpush.msra.mxu0 %v5300
      %5368 = vmatpush.msra.mxu0 %v5297
      %5369 = vmatpush.msra.mxu0 %v5294
      %5370 = vmatpush.msra.mxu0 %v5291
      %5371 = vmatmul.f32.gmra.mxu0 %v5333
      %v5372 = vpop.f32.mrf.mxu0
      %v5373 = vadd.f32 0.0, %v5372
      %5374 = vdwg.mxu0
      %5375 = vmatpush.msra.mxu0 0.0
      %5376 = vmatpush.msra.mxu0 0.0
      %5377 = vmatpush.msra.mxu0 %v5331
      %5378 = vmatpush.msra.mxu0 %v5328
      %5379 = vmatpush.msra.mxu0 %v5325
      %5380 = vmatpush.msra.mxu0 %v5322
      %5381 = vmatpush.msra.mxu0 %v5319
      %5382 = vmatpush.msra.mxu0 %v5316
      %5383 = vmatpush.msra.mxu0 %v5313
      %5384 = vmatpush.msra.mxu0 %v5310
      %5385 = vmatpush.msra.mxu0 %v5307
      %5386 = vmatpush.msra.mxu0 %v5304
      %5387 = vmatpush.msra.mxu0 %v5301
      %5388 = vmatpush.msra.mxu0 %v5298
      %5389 = vmatpush.msra.mxu0 %v5295
      %5390 = vmatpush.msra.mxu0 %v5292
      %5391 = vmatmul.f32.gmra.mxu0 %v5333
      %v5392 = vpop.f32.mrf.mxu0
      %v5393 = vadd.f32 0.0, %v5392
      %5394 = vdwg.mxu0
      %vm5395 = vcmask 56320
      %v5397 = vsel %vm5395, %v5287, 0
      %v5400 = vsel %vm5395, %v5288, 0
      %v5403 = vsel %vm5395, %v5289, 0
      %v5406 = vsel %vm1195, %v5353, 0
      %v5409 = vsel %vm1195, %v5373, 0
      %v5412 = vsel %vm1195, %v5393, 0
      %5414 = vmatpush.msra.mxu0 0.0
      %5415 = vmatpush.msra.mxu0 0.0
      %5416 = vmatpush.msra.mxu0 0.0
      %5417 = vmatpush.msra.mxu0 0.0
      %5418 = vmatpush.msra.mxu0 0.0
      %5419 = vmatpush.msra.mxu0 0.0
      %5420 = vmatpush.msra.mxu0 0.0
      %5421 = vmatpush.msra.mxu0 0.0
      %5422 = vmatpush.msra.mxu0 0.0
      %5423 = vmatpush.msra.mxu0 0.0
      %5424 = vmatpush.msra.mxu0 0.0
      %5425 = vmatpush.msra.mxu0 0.0
      %5426 = vmatpush.msra.mxu0 0.0
      %5427 = vmatpush.msra.mxu0 0.0
      %5428 = vmatpush.msra.mxu0 0.0
      %5429 = vmatpush.msra.mxu0 %v5406
      %5430 = vmatmul.f32.gmra.mxu0 %v5397
      %v5431 = vpop.f32.mrf.mxu0
      %v5432 = vadd.f32 0.0, %v5431
      %5433 = vmatmul.f32.gmra.mxu0 %v5400
      %v5434 = vpop.f32.mrf.mxu0
      %v5435 = vadd.f32 0.0, %v5434
      %5436 = vmatmul.f32.gmra.mxu0 %v5403
      %v5437 = vpop.f32.mrf.mxu0
      %v5438 = vadd.f32 0.0, %v5437
      %5439 = vdwg.mxu0
      %5440 = vmatpush.msra.mxu0 0.0
      %5441 = vmatpush.msra.mxu0 0.0
      %5442 = vmatpush.msra.mxu0 0.0
      %5443 = vmatpush.msra.mxu0 0.0
      %5444 = vmatpush.msra.mxu0 0.0
      %5445 = vmatpush.msra.mxu0 0.0
      %5446 = vmatpush.msra.mxu0 0.0
      %5447 = vmatpush.msra.mxu0 0.0
      %5448 = vmatpush.msra.mxu0 0.0
      %5449 = vmatpush.msra.mxu0 0.0
      %5450 = vmatpush.msra.mxu0 0.0
      %5451 = vmatpush.msra.mxu0 0.0
      %5452 = vmatpush.msra.mxu0 0.0
      %5453 = vmatpush.msra.mxu0 0.0
      %5454 = vmatpush.msra.mxu0 0.0
      %5455 = vmatpush.msra.mxu0 %v5409
      %5456 = vmatmul.f32.gmra.mxu0 %v5397
      %v5457 = vpop.f32.mrf.mxu0
      %v5458 = vadd.f32 0.0, %v5457
      %5459 = vmatmul.f32.gmra.mxu0 %v5400
      %v5460 = vpop.f32.mrf.mxu0
      %v5461 = vadd.f32 0.0, %v5460
      %5462 = vmatmul.f32.gmra.mxu0 %v5403
      %v5463 = vpop.f32.mrf.mxu0
      %v5464 = vadd.f32 0.0, %v5463
      %5465 = vdwg.mxu0
      %5466 = vmatpush.msra.mxu0 0.0
      %5467 = vmatpush.msra.mxu0 0.0
      %5468 = vmatpush.msra.mxu0 0.0
      %5469 = vmatpush.msra.mxu0 0.0
      %5470 = vmatpush.msra.mxu0 0.0
      %5471 = vmatpush.msra.mxu0 0.0
      %5472 = vmatpush.msra.mxu0 0.0
      %5473 = vmatpush.msra.mxu0 0.0
      %5474 = vmatpush.msra.mxu0 0.0
      %5475 = vmatpush.msra.mxu0 0.0
      %5476 = vmatpush.msra.mxu0 0.0
      %5477 = vmatpush.msra.mxu0 0.0
      %5478 = vmatpush.msra.mxu0 0.0
      %5479 = vmatpush.msra.mxu0 0.0
      %5480 = vmatpush.msra.mxu0 0.0
      %5481 = vmatpush.msra.mxu0 %v5412
      %5482 = vmatmul.f32.gmra.mxu0 %v5397
      %v5483 = vpop.f32.mrf.mxu0
      %v5484 = vadd.f32 0.0, %v5483
      %5485 = vmatmul.f32.gmra.mxu0 %v5400
      %v5486 = vpop.f32.mrf.mxu0
      %v5487 = vadd.f32 0.0, %v5486
      %5488 = vmatmul.f32.gmra.mxu0 %v5403
      %v5489 = vpop.f32.mrf.mxu0
      %v5490 = vadd.f32 0.0, %v5489
      %5491 = vdwg.mxu0
      %v5492 = vld [vmem:[%s22] sm:$0xff]
      %v5493 = vld [vmem:[%s22 + $0x8] sm:$0xff]
      %v5494 = vld [vmem:[%s22 + $0x10] sm:$0xff]
      %v5495 = vld [vmem:[%s22 + $0x18] sm:$0xff]
      %v5496 = vld [vmem:[%s22 + $0x20] sm:$0xff]
      %v5497 = vld [vmem:[%s22 + $0x28] sm:$0xff]
      %v5498 = vld [vmem:[%s22 + $0x30] sm:$0xff]
      %v5499 = vld [vmem:[%s22 + $0x38] sm:$0xff]
      %v5500 = vld [vmem:[%s22 + $0x40] sm:$0xff]
      %v5501 = vld [vmem:[%s22 + $0x48] sm:$0xff]
      %v5502 = vld [vmem:[%s22 + $0x50] sm:$0xff]
      %v5503 = vld [vmem:[%s22 + $0x58] sm:$0xff]
      %v5504 = vld [vmem:[%s22 + $0x60] sm:$0xff]
      %v5505 = vld [vmem:[%s22 + $0x68] sm:$0xff]
      %v5506 = vld [vmem:[%s22 + $0x70] sm:$0xff]
      %v5507 = vld [vmem:[%s22 + $0x78] sm:$0xff]
      %v5508 = vld [vmem:[%s22 + $0x80] sm:$0xff]
      %v5509 = vld [vmem:[%s22 + $0x88] sm:$0xff]
      %v5510 = vld [vmem:[%s22 + $0x90] sm:$0xff]
      %v5511 = vld [vmem:[%s22 + $0x98] sm:$0xff]
      %v5512 = vld [vmem:[%s22 + $0xa0] sm:$0xff]
      %v5513 = vld [vmem:[%s22 + $0xa8] sm:$0xff]
      %v5514 = vld [vmem:[%s22 + $0xb0] sm:$0xff]
      %v5515 = vld [vmem:[%s22 + $0xb8] sm:$0xff]
      %v5516 = vld [vmem:[%s22 + $0xc0] sm:$0xff]
      %v5517 = vld [vmem:[%s22 + $0xc8] sm:$0xff]
      %s5518 = scalar_lea.vmem %s22, 208
      %v5519 = vld [vmem:[%s5518] sm:$0xff]
      %v5520 = vld [vmem:[%s5518 + $0x8] sm:$0xff]
      %v5521 = vld [vmem:[%s5518 + $0x10] sm:$0xff]
      %v5522 = vld [vmem:[%s5518 + $0x18] sm:$0xff]
      %v5523 = vld [vmem:[%s5518 + $0x20] sm:$0xff]
      %v5524 = vld [vmem:[%s5518 + $0x28] sm:$0xff]
      %v5525 = vld [vmem:[%s5518 + $0x30] sm:$0xff]
      %v5526 = vld [vmem:[%s5518 + $0x38] sm:$0xff]
      %v5527 = vld [vmem:[%s5518 + $0x40] sm:$0xff]
      %v5528 = vld [vmem:[%s5518 + $0x48] sm:$0xff]
      %v5529 = vld [vmem:[%s5518 + $0x50] sm:$0xff]
      %v5530 = vld [vmem:[%s5518 + $0x58] sm:$0xff]
      %v5531 = vld [vmem:[%s5518 + $0x60] sm:$0xff]
      %v5532 = vld [vmem:[%s5518 + $0x68] sm:$0xff]
      %v5533 = vld [vmem:[%s5518 + $0x70] sm:$0xff]
      %v5534 = vld [vmem:[%s5518 + $0x78] sm:$0xff]
      %v5535 = vld [vmem:[%s5518 + $0x80] sm:$0xff]
      %v5536 = vld [vmem:[%s5518 + $0x88] sm:$0xff]
      %v5537 = vld [vmem:[%s5518 + $0x90] sm:$0xff]
      %v5538 = vld [vmem:[%s5518 + $0x98] sm:$0xff]
      %v5539 = vld [vmem:[%s5518 + $0xa0] sm:$0xff]
      %v5540 = vld [vmem:[%s5518 + $0xa8] sm:$0xff]
      %v5541 = vld [vmem:[%s5518 + $0xb0] sm:$0xff]
      %v5542 = vld [vmem:[%s5518 + $0xb8] sm:$0xff]
      %v5543 = vld [vmem:[%s5518 + $0xc0] sm:$0xff]
      %v5544 = vld [vmem:[%s5518 + $0xc8] sm:$0xff]
      %5549 = vrot.lane.b32.xlu0 %v5432, 112
      %v5550 = vpop.permute.xlu0 %5549
      %5551 = vrot.lane.b32.xlu0 %v5458, 112
      %v5552 = vpop.permute.xlu0 %5551
      %5553 = vrot.lane.b32.xlu0 %v5435, 112
      %v5554 = vpop.permute.xlu0 %5553
      %5555 = vrot.lane.b32.xlu0 %v5461, 112
      %v5556 = vpop.permute.xlu0 %5555
      %v5557 = vsel %vm4587, %v5550, %v5552
      %v5558 = vsel %vm4587, %v5554, %v5556
      %vm5561 = vcmask 654336
      %v5562 = vsel %vm5561, %v5552, 0
      %v5564 = vsel %vm5561, %v5556, 0
      %5566 = vmatpush.msra.mxu0 %v5534
      %5567 = vmatpush.msra.mxu0 %v5533
      %5568 = vmatpush.msra.mxu0 %v5532
      %5569 = vmatpush.msra.mxu0 %v5531
      %5570 = vmatpush.msra.mxu0 %v5530
      %5571 = vmatpush.msra.mxu0 %v5529
      %5572 = vmatpush.msra.mxu0 %v5528
      %5573 = vmatpush.msra.mxu0 %v5527
      %5574 = vmatpush.msra.mxu0 %v5526
      %5575 = vmatpush.msra.mxu0 %v5525
      %5576 = vmatpush.msra.mxu0 %v5524
      %5577 = vmatpush.msra.mxu0 %v5523
      %5578 = vmatpush.msra.mxu0 %v5522
      %5579 = vmatpush.msra.mxu0 %v5521
      %5580 = vmatpush.msra.mxu0 %v5520
      %5581 = vmatpush.msra.mxu0 %v5519
      %5582 = vmatmul.f32.gmra.mxu0 %v5557
      %v5583 = vpop.f32.mrf.mxu0
      %v5584 = vadd.f32 0.0, %v5583
      %5585 = vmatmul.f32.gmra.mxu0 %v5558
      %v5586 = vpop.f32.mrf.mxu0
      %v5587 = vadd.f32 0.0, %v5586
      %5588 = vdwg.mxu0
      %5589 = vmatpush.msra.mxu0 0.0
      %5590 = vmatpush.msra.mxu0 0.0
      %5591 = vmatpush.msra.mxu0 0.0
      %5592 = vmatpush.msra.mxu0 0.0
      %5593 = vmatpush.msra.mxu0 0.0
      %5594 = vmatpush.msra.mxu0 0.0
      %5595 = vmatpush.msra.mxu0 %v5544
      %5596 = vmatpush.msra.mxu0 %v5543
      %5597 = vmatpush.msra.mxu0 %v5542
      %5598 = vmatpush.msra.mxu0 %v5541
      %5599 = vmatpush.msra.mxu0 %v5540
      %5600 = vmatpush.msra.mxu0 %v5539
      %5601 = vmatpush.msra.mxu0 %v5538
      %5602 = vmatpush.msra.mxu0 %v5537
      %5603 = vmatpush.msra.mxu0 %v5536
      %5604 = vmatpush.msra.mxu0 %v5535
      %5605 = vmatmul.f32.gmra.mxu0 %v5562
      %v5606 = vpop.f32.mrf.mxu0
      %v5607 = vadd.f32 %v5584, %v5606
      %5608 = vmatmul.f32.gmra.mxu0 %v5564
      %v5609 = vpop.f32.mrf.mxu0
      %v5610 = vadd.f32 %v5587, %v5609
      %5611 = vdwg.mxu0
      %v5612 = vsel %vm5561, %v5458, 0
      %v5614 = vsel %vm5561, %v5461, 0
      %5616 = vmatpush.msra.mxu0 %v5507
      %5617 = vmatpush.msra.mxu0 %v5506
      %5618 = vmatpush.msra.mxu0 %v5505
      %5619 = vmatpush.msra.mxu0 %v5504
      %5620 = vmatpush.msra.mxu0 %v5503
      %5621 = vmatpush.msra.mxu0 %v5502
      %5622 = vmatpush.msra.mxu0 %v5501
      %5623 = vmatpush.msra.mxu0 %v5500
      %5624 = vmatpush.msra.mxu0 %v5499
      %5625 = vmatpush.msra.mxu0 %v5498
      %5626 = vmatpush.msra.mxu0 %v5497
      %5627 = vmatpush.msra.mxu0 %v5496
      %5628 = vmatpush.msra.mxu0 %v5495
      %5629 = vmatpush.msra.mxu0 %v5494
      %5630 = vmatpush.msra.mxu0 %v5493
      %5631 = vmatpush.msra.mxu0 %v5492
      %5632 = vmatmul.f32.gmra.mxu0 %v5432
      %v5633 = vpop.f32.mrf.mxu0
      %v5634 = vadd.f32 %v5607, %v5633
      %5635 = vmatmul.f32.gmra.mxu0 %v5435
      %v5636 = vpop.f32.mrf.mxu0
      %v5637 = vadd.f32 %v5610, %v5636
      %5638 = vdwg.mxu0
      %5639 = vmatpush.msra.mxu0 0.0
      %5640 = vmatpush.msra.mxu0 0.0
      %5641 = vmatpush.msra.mxu0 0.0
      %5642 = vmatpush.msra.mxu0 0.0
      %5643 = vmatpush.msra.mxu0 0.0
      %5644 = vmatpush.msra.mxu0 0.0
      %5645 = vmatpush.msra.mxu0 %v5517
      %5646 = vmatpush.msra.mxu0 %v5516
      %5647 = vmatpush.msra.mxu0 %v5515
      %5648 = vmatpush.msra.mxu0 %v5514
      %5649 = vmatpush.msra.mxu0 %v5513
      %5650 = vmatpush.msra.mxu0 %v5512
      %5651 = vmatpush.msra.mxu0 %v5511
      %5652 = vmatpush.msra.mxu0 %v5510
      %5653 = vmatpush.msra.mxu0 %v5509
      %5654 = vmatpush.msra.mxu0 %v5508
      %5655 = vmatmul.f32.gmra.mxu0 %v5612
      %v5656 = vpop.f32.mrf.mxu0
      %v5657 = vadd.f32 %v5634, %v5656
      %5658 = vmatmul.f32.gmra.mxu0 %v5614
      %v5659 = vpop.f32.mrf.mxu0
      %v5660 = vadd.f32 %v5637, %v5659
      %5661 = vdwg.mxu0
      %s5662 = scalar_lea.vmem %s22, 416
      %v5663 = vld [vmem:[%s5662] sm:$0xff]
      %v5664 = vld [vmem:[%s5662 + $0x8] sm:$0xff]
      %v5665 = vld [vmem:[%s5662 + $0x10] sm:$0xff]
      %v5666 = vld [vmem:[%s5662 + $0x18] sm:$0xff]
      %v5667 = vld [vmem:[%s5662 + $0x20] sm:$0xff]
      %v5668 = vld [vmem:[%s5662 + $0x28] sm:$0xff]
      %v5669 = vld [vmem:[%s5662 + $0x30] sm:$0xff]
      %v5670 = vld [vmem:[%s5662 + $0x38] sm:$0xff]
      %v5671 = vld [vmem:[%s5662 + $0x40] sm:$0xff]
      %v5672 = vld [vmem:[%s5662 + $0x48] sm:$0xff]
      %v5673 = vld [vmem:[%s5662 + $0x50] sm:$0xff]
      %v5674 = vld [vmem:[%s5662 + $0x58] sm:$0xff]
      %v5675 = vld [vmem:[%s5662 + $0x60] sm:$0xff]
      %v5676 = vld [vmem:[%s5662 + $0x68] sm:$0xff]
      %v5677 = vld [vmem:[%s5662 + $0x70] sm:$0xff]
      %v5678 = vld [vmem:[%s5662 + $0x78] sm:$0xff]
      %v5679 = vld [vmem:[%s5662 + $0x80] sm:$0xff]
      %v5680 = vld [vmem:[%s5662 + $0x88] sm:$0xff]
      %v5681 = vld [vmem:[%s5662 + $0x90] sm:$0xff]
      %v5682 = vld [vmem:[%s5662 + $0x98] sm:$0xff]
      %v5683 = vld [vmem:[%s5662 + $0xa0] sm:$0xff]
      %v5684 = vld [vmem:[%s5662 + $0xa8] sm:$0xff]
      %v5685 = vld [vmem:[%s5662 + $0xb0] sm:$0xff]
      %v5686 = vld [vmem:[%s5662 + $0xb8] sm:$0xff]
      %v5687 = vld [vmem:[%s5662 + $0xc0] sm:$0xff]
      %v5688 = vld [vmem:[%s5662 + $0xc8] sm:$0xff]
      %5689 = vrot.lane.b32.xlu0 %v5432, 96
      %v5690 = vpop.permute.xlu0 %5689
      %5691 = vrot.lane.b32.xlu0 %v5458, 96
      %v5692 = vpop.permute.xlu0 %5691
      %5693 = vrot.lane.b32.xlu0 %v5435, 96
      %v5694 = vpop.permute.xlu0 %5693
      %5695 = vrot.lane.b32.xlu0 %v5461, 96
      %v5696 = vpop.permute.xlu0 %5695
      %vm5697 = vcmask 785408
      %v5698 = vsel %vm5697, %v5690, %v5692
      %v5699 = vsel %vm5697, %v5694, %v5696
      %v5702 = vsel %vm5561, %v5692, 0
      %v5704 = vsel %vm5561, %v5696, 0
      %5706 = vmatpush.msra.mxu0 %v5678
      %5707 = vmatpush.msra.mxu0 %v5677
      %5708 = vmatpush.msra.mxu0 %v5676
      %5709 = vmatpush.msra.mxu0 %v5675
      %5710 = vmatpush.msra.mxu0 %v5674
      %5711 = vmatpush.msra.mxu0 %v5673
      %5712 = vmatpush.msra.mxu0 %v5672
      %5713 = vmatpush.msra.mxu0 %v5671
      %5714 = vmatpush.msra.mxu0 %v5670
      %5715 = vmatpush.msra.mxu0 %v5669
      %5716 = vmatpush.msra.mxu0 %v5668
      %5717 = vmatpush.msra.mxu0 %v5667
      %5718 = vmatpush.msra.mxu0 %v5666
      %5719 = vmatpush.msra.mxu0 %v5665
      %5720 = vmatpush.msra.mxu0 %v5664
      %5721 = vmatpush.msra.mxu0 %v5663
      %5722 = vmatmul.f32.gmra.mxu0 %v5698
      %v5723 = vpop.f32.mrf.mxu0
      %v5724 = vadd.f32 0.0, %v5723
      %5725 = vmatmul.f32.gmra.mxu0 %v5699
      %v5726 = vpop.f32.mrf.mxu0
      %v5727 = vadd.f32 0.0, %v5726
      %5728 = vdwg.mxu0
      %5729 = vmatpush.msra.mxu0 0.0
      %5730 = vmatpush.msra.mxu0 0.0
      %5731 = vmatpush.msra.mxu0 0.0
      %5732 = vmatpush.msra.mxu0 0.0
      %5733 = vmatpush.msra.mxu0 0.0
      %5734 = vmatpush.msra.mxu0 0.0
      %5735 = vmatpush.msra.mxu0 %v5688
      %5736 = vmatpush.msra.mxu0 %v5687
      %5737 = vmatpush.msra.mxu0 %v5686
      %5738 = vmatpush.msra.mxu0 %v5685
      %5739 = vmatpush.msra.mxu0 %v5684
      %5740 = vmatpush.msra.mxu0 %v5683
      %5741 = vmatpush.msra.mxu0 %v5682
      %5742 = vmatpush.msra.mxu0 %v5681
      %5743 = vmatpush.msra.mxu0 %v5680
      %5744 = vmatpush.msra.mxu0 %v5679
      %5745 = vmatmul.f32.gmra.mxu0 %v5702
      %v5746 = vpop.f32.mrf.mxu0
      %v5747 = vadd.f32 %v5724, %v5746
      %5748 = vmatmul.f32.gmra.mxu0 %v5704
      %v5749 = vpop.f32.mrf.mxu0
      %v5750 = vadd.f32 %v5727, %v5749
      %5751 = vdwg.mxu0
      %v5752 = vadd.f32 %v5657, %v5747
      %v5753 = vadd.f32 %v5660, %v5750
      %s5754 = scalar_lea.vmem %s22, 624
      %v5755 = vld [vmem:[%s5754] sm:$0xff]
      %v5756 = vld [vmem:[%s5754 + $0x8] sm:$0xff]
      %v5757 = vld [vmem:[%s5754 + $0x10] sm:$0xff]
      %v5758 = vld [vmem:[%s5754 + $0x18] sm:$0xff]
      %v5759 = vld [vmem:[%s5754 + $0x20] sm:$0xff]
      %v5760 = vld [vmem:[%s5754 + $0x28] sm:$0xff]
      %v5761 = vld [vmem:[%s5754 + $0x30] sm:$0xff]
      %v5762 = vld [vmem:[%s5754 + $0x38] sm:$0xff]
      %v5763 = vld [vmem:[%s5754 + $0x40] sm:$0xff]
      %v5764 = vld [vmem:[%s5754 + $0x48] sm:$0xff]
      %v5765 = vld [vmem:[%s5754 + $0x50] sm:$0xff]
      %v5766 = vld [vmem:[%s5754 + $0x58] sm:$0xff]
      %v5767 = vld [vmem:[%s5754 + $0x60] sm:$0xff]
      %v5768 = vld [vmem:[%s5754 + $0x68] sm:$0xff]
      %v5769 = vld [vmem:[%s5754 + $0x70] sm:$0xff]
      %v5770 = vld [vmem:[%s5754 + $0x78] sm:$0xff]
      %v5771 = vld [vmem:[%s5754 + $0x80] sm:$0xff]
      %v5772 = vld [vmem:[%s5754 + $0x88] sm:$0xff]
      %v5773 = vld [vmem:[%s5754 + $0x90] sm:$0xff]
      %v5774 = vld [vmem:[%s5754 + $0x98] sm:$0xff]
      %v5775 = vld [vmem:[%s5754 + $0xa0] sm:$0xff]
      %v5776 = vld [vmem:[%s5754 + $0xa8] sm:$0xff]
      %v5777 = vld [vmem:[%s5754 + $0xb0] sm:$0xff]
      %v5778 = vld [vmem:[%s5754 + $0xb8] sm:$0xff]
      %v5779 = vld [vmem:[%s5754 + $0xc0] sm:$0xff]
      %v5780 = vld [vmem:[%s5754 + $0xc8] sm:$0xff]
      %5781 = vrot.lane.b32.xlu0 %v5432, 80
      %v5782 = vpop.permute.xlu0 %5781
      %5783 = vrot.lane.b32.xlu0 %v5458, 80
      %v5784 = vpop.permute.xlu0 %5783
      %5785 = vrot.lane.b32.xlu0 %v5435, 80
      %v5786 = vpop.permute.xlu0 %5785
      %5787 = vrot.lane.b32.xlu0 %v5461, 80
      %v5788 = vpop.permute.xlu0 %5787
      %v5789 = vsel %vm5561, %v5782, %v5784
      %v5790 = vsel %vm5561, %v5786, %v5788
      %v5793 = vsel %vm5561, %v5784, 0
      %v5795 = vsel %vm5561, %v5788, 0
      %5797 = vmatpush.msra.mxu0 %v5770
      %5798 = vmatpush.msra.mxu0 %v5769
      %5799 = vmatpush.msra.mxu0 %v5768
      %5800 = vmatpush.msra.mxu0 %v5767
      %5801 = vmatpush.msra.mxu0 %v5766
      %5802 = vmatpush.msra.mxu0 %v5765
      %5803 = vmatpush.msra.mxu0 %v5764
      %5804 = vmatpush.msra.mxu0 %v5763
      %5805 = vmatpush.msra.mxu0 %v5762
      %5806 = vmatpush.msra.mxu0 %v5761
      %5807 = vmatpush.msra.mxu0 %v5760
      %5808 = vmatpush.msra.mxu0 %v5759
      %5809 = vmatpush.msra.mxu0 %v5758
      %5810 = vmatpush.msra.mxu0 %v5757
      %5811 = vmatpush.msra.mxu0 %v5756
      %5812 = vmatpush.msra.mxu0 %v5755
      %5813 = vmatmul.f32.gmra.mxu0 %v5789
      %v5814 = vpop.f32.mrf.mxu0
      %v5815 = vadd.f32 0.0, %v5814
      %5816 = vmatmul.f32.gmra.mxu0 %v5790
      %v5817 = vpop.f32.mrf.mxu0
      %v5818 = vadd.f32 0.0, %v5817
      %5819 = vdwg.mxu0
      %5820 = vmatpush.msra.mxu0 0.0
      %5821 = vmatpush.msra.mxu0 0.0
      %5822 = vmatpush.msra.mxu0 0.0
      %5823 = vmatpush.msra.mxu0 0.0
      %5824 = vmatpush.msra.mxu0 0.0
      %5825 = vmatpush.msra.mxu0 0.0
      %5826 = vmatpush.msra.mxu0 %v5780
      %5827 = vmatpush.msra.mxu0 %v5779
      %5828 = vmatpush.msra.mxu0 %v5778
      %5829 = vmatpush.msra.mxu0 %v5777
      %5830 = vmatpush.msra.mxu0 %v5776
      %5831 = vmatpush.msra.mxu0 %v5775
      %5832 = vmatpush.msra.mxu0 %v5774
      %5833 = vmatpush.msra.mxu0 %v5773
      %5834 = vmatpush.msra.mxu0 %v5772
      %5835 = vmatpush.msra.mxu0 %v5771
      %5836 = vmatmul.f32.gmra.mxu0 %v5793
      %v5837 = vpop.f32.mrf.mxu0
      %v5838 = vadd.f32 %v5815, %v5837
      %5839 = vmatmul.f32.gmra.mxu0 %v5795
      %v5840 = vpop.f32.mrf.mxu0
      %v5841 = vadd.f32 %v5818, %v5840
      %5842 = vdwg.mxu0
      %v5843 = vadd.f32 %v5752, %v5838
      %v5844 = vadd.f32 %v5753, %v5841
      %s5845 = scalar_lea.vmem %s22, 832
      %v5846 = vld [vmem:[%s5845] sm:$0xff]
      %v5847 = vld [vmem:[%s5845 + $0x8] sm:$0xff]
      %v5848 = vld [vmem:[%s5845 + $0x10] sm:$0xff]
      %v5849 = vld [vmem:[%s5845 + $0x18] sm:$0xff]
      %v5850 = vld [vmem:[%s5845 + $0x20] sm:$0xff]
      %v5851 = vld [vmem:[%s5845 + $0x28] sm:$0xff]
      %v5852 = vld [vmem:[%s5845 + $0x30] sm:$0xff]
      %v5853 = vld [vmem:[%s5845 + $0x38] sm:$0xff]
      %v5854 = vld [vmem:[%s5845 + $0x40] sm:$0xff]
      %v5855 = vld [vmem:[%s5845 + $0x48] sm:$0xff]
      %v5856 = vld [vmem:[%s5845 + $0x50] sm:$0xff]
      %v5857 = vld [vmem:[%s5845 + $0x58] sm:$0xff]
      %v5858 = vld [vmem:[%s5845 + $0x60] sm:$0xff]
      %v5859 = vld [vmem:[%s5845 + $0x68] sm:$0xff]
      %v5860 = vld [vmem:[%s5845 + $0x70] sm:$0xff]
      %v5861 = vld [vmem:[%s5845 + $0x78] sm:$0xff]
      %v5862 = vld [vmem:[%s5845 + $0x80] sm:$0xff]
      %v5863 = vld [vmem:[%s5845 + $0x88] sm:$0xff]
      %v5864 = vld [vmem:[%s5845 + $0x90] sm:$0xff]
      %v5865 = vld [vmem:[%s5845 + $0x98] sm:$0xff]
      %v5866 = vld [vmem:[%s5845 + $0xa0] sm:$0xff]
      %v5867 = vld [vmem:[%s5845 + $0xa8] sm:$0xff]
      %v5868 = vld [vmem:[%s5845 + $0xb0] sm:$0xff]
      %v5869 = vld [vmem:[%s5845 + $0xb8] sm:$0xff]
      %v5870 = vld [vmem:[%s5845 + $0xc0] sm:$0xff]
      %v5871 = vld [vmem:[%s5845 + $0xc8] sm:$0xff]
      %5874 = vrot.lane.b32.xlu0 %v5432, 64
      %v5875 = vpop.permute.xlu0 %5874
      %5876 = vrot.lane.b32.xlu0 %v5458, 64
      %v5877 = vpop.permute.xlu0 %5876
      %5878 = vrot.lane.b32.xlu0 %v5484, 64
      %v5879 = vpop.permute.xlu0 %5878
      %5880 = vrot.lane.b32.xlu0 %v5435, 64
      %v5881 = vpop.permute.xlu0 %5880
      %5882 = vrot.lane.b32.xlu0 %v5461, 64
      %v5883 = vpop.permute.xlu0 %5882
      %5884 = vrot.lane.b32.xlu0 %v5487, 64
      %v5885 = vpop.permute.xlu0 %5884
      %vm5886 = vcmask 523264
      %v5887 = vsel %vm5886, %v5875, %v5877
      %v5888 = vsel %vm5886, %v5877, %v5879
      %v5889 = vsel %vm5886, %v5881, %v5883
      %v5890 = vsel %vm5886, %v5883, %v5885
      %v5893 = vsel %vm5561, %v5888, 0
      %v5895 = vsel %vm5561, %v5890, 0
      %5897 = vmatpush.msra.mxu0 %v5861
      %5898 = vmatpush.msra.mxu0 %v5860
      %5899 = vmatpush.msra.mxu0 %v5859
      %5900 = vmatpush.msra.mxu0 %v5858
      %5901 = vmatpush.msra.mxu0 %v5857
      %5902 = vmatpush.msra.mxu0 %v5856
      %5903 = vmatpush.msra.mxu0 %v5855
      %5904 = vmatpush.msra.mxu0 %v5854
      %5905 = vmatpush.msra.mxu0 %v5853
      %5906 = vmatpush.msra.mxu0 %v5852
      %5907 = vmatpush.msra.mxu0 %v5851
      %5908 = vmatpush.msra.mxu0 %v5850
      %5909 = vmatpush.msra.mxu0 %v5849
      %5910 = vmatpush.msra.mxu0 %v5848
      %5911 = vmatpush.msra.mxu0 %v5847
      %5912 = vmatpush.msra.mxu0 %v5846
      %5913 = vmatmul.f32.gmra.mxu0 %v5887
      %v5914 = vpop.f32.mrf.mxu0
      %v5915 = vadd.f32 0.0, %v5914
      %5916 = vmatmul.f32.gmra.mxu0 %v5889
      %v5917 = vpop.f32.mrf.mxu0
      %v5918 = vadd.f32 0.0, %v5917
      %5919 = vdwg.mxu0
      %5920 = vmatpush.msra.mxu0 0.0
      %5921 = vmatpush.msra.mxu0 0.0
      %5922 = vmatpush.msra.mxu0 0.0
      %5923 = vmatpush.msra.mxu0 0.0
      %5924 = vmatpush.msra.mxu0 0.0
      %5925 = vmatpush.msra.mxu0 0.0
      %5926 = vmatpush.msra.mxu0 %v5871
      %5927 = vmatpush.msra.mxu0 %v5870
      %5928 = vmatpush.msra.mxu0 %v5869
      %5929 = vmatpush.msra.mxu0 %v5868
      %5930 = vmatpush.msra.mxu0 %v5867
      %5931 = vmatpush.msra.mxu0 %v5866
      %5932 = vmatpush.msra.mxu0 %v5865
      %5933 = vmatpush.msra.mxu0 %v5864
      %5934 = vmatpush.msra.mxu0 %v5863
      %5935 = vmatpush.msra.mxu0 %v5862
      %5936 = vmatmul.f32.gmra.mxu0 %v5893
      %v5937 = vpop.f32.mrf.mxu0
      %v5938 = vadd.f32 %v5915, %v5937
      %5939 = vmatmul.f32.gmra.mxu0 %v5895
      %v5940 = vpop.f32.mrf.mxu0
      %v5941 = vadd.f32 %v5918, %v5940
      %5942 = vdwg.mxu0
      %v5943 = vadd.f32 %v5843, %v5938
      %v5944 = vadd.f32 %v5844, %v5941
      %s5945 = scalar_lea.vmem %s22, 1040
      %v5946 = vld [vmem:[%s5945] sm:$0xff]
      %v5947 = vld [vmem:[%s5945 + $0x8] sm:$0xff]
      %v5948 = vld [vmem:[%s5945 + $0x10] sm:$0xff]
      %v5949 = vld [vmem:[%s5945 + $0x18] sm:$0xff]
      %v5950 = vld [vmem:[%s5945 + $0x20] sm:$0xff]
      %v5951 = vld [vmem:[%s5945 + $0x28] sm:$0xff]
      %v5952 = vld [vmem:[%s5945 + $0x30] sm:$0xff]
      %v5953 = vld [vmem:[%s5945 + $0x38] sm:$0xff]
      %v5954 = vld [vmem:[%s5945 + $0x40] sm:$0xff]
      %v5955 = vld [vmem:[%s5945 + $0x48] sm:$0xff]
      %v5956 = vld [vmem:[%s5945 + $0x50] sm:$0xff]
      %v5957 = vld [vmem:[%s5945 + $0x58] sm:$0xff]
      %v5958 = vld [vmem:[%s5945 + $0x60] sm:$0xff]
      %v5959 = vld [vmem:[%s5945 + $0x68] sm:$0xff]
      %v5960 = vld [vmem:[%s5945 + $0x70] sm:$0xff]
      %v5961 = vld [vmem:[%s5945 + $0x78] sm:$0xff]
      %v5962 = vld [vmem:[%s5945 + $0x80] sm:$0xff]
      %v5963 = vld [vmem:[%s5945 + $0x88] sm:$0xff]
      %v5964 = vld [vmem:[%s5945 + $0x90] sm:$0xff]
      %v5965 = vld [vmem:[%s5945 + $0x98] sm:$0xff]
      %v5966 = vld [vmem:[%s5945 + $0xa0] sm:$0xff]
      %v5967 = vld [vmem:[%s5945 + $0xa8] sm:$0xff]
      %v5968 = vld [vmem:[%s5945 + $0xb0] sm:$0xff]
      %v5969 = vld [vmem:[%s5945 + $0xb8] sm:$0xff]
      %v5970 = vld [vmem:[%s5945 + $0xc0] sm:$0xff]
      %v5971 = vld [vmem:[%s5945 + $0xc8] sm:$0xff]
      %v5972 = vrot.slane %v5432, 1
      %v5973 = vrot.slane %v5435, 1
      %v5974 = vsel %vm1195, %v5972, %v5973
      %v5975 = vrot.slane %v5458, 1
      %v5976 = vrot.slane %v5461, 1
      %v5977 = vsel %vm1195, %v5975, %v5976
      %v5980 = vsel %vm5561, %v5977, 0
      %v5982 = vsel %vm5561, %v5976, 0
      %5984 = vmatpush.msra.mxu0 %v5961
      %5985 = vmatpush.msra.mxu0 %v5960
      %5986 = vmatpush.msra.mxu0 %v5959
      %5987 = vmatpush.msra.mxu0 %v5958
      %5988 = vmatpush.msra.mxu0 %v5957
      %5989 = vmatpush.msra.mxu0 %v5956
      %5990 = vmatpush.msra.mxu0 %v5955
      %5991 = vmatpush.msra.mxu0 %v5954
      %5992 = vmatpush.msra.mxu0 %v5953
      %5993 = vmatpush.msra.mxu0 %v5952
      %5994 = vmatpush.msra.mxu0 %v5951
      %5995 = vmatpush.msra.mxu0 %v5950
      %5996 = vmatpush.msra.mxu0 %v5949
      %5997 = vmatpush.msra.mxu0 %v5948
      %5998 = vmatpush.msra.mxu0 %v5947
      %5999 = vmatpush.msra.mxu0 %v5946
      %6000 = vmatmul.f32.gmra.mxu0 %v5974
      %v6001 = vpop.f32.mrf.mxu0
      %v6002 = vadd.f32 0.0, %v6001
      %6003 = vmatmul.f32.gmra.mxu0 %v5973
      %v6004 = vpop.f32.mrf.mxu0
      %v6005 = vadd.f32 0.0, %v6004
      %6006 = vdwg.mxu0
      %6007 = vmatpush.msra.mxu0 0.0
      %6008 = vmatpush.msra.mxu0 0.0
      %6009 = vmatpush.msra.mxu0 0.0
      %6010 = vmatpush.msra.mxu0 0.0
      %6011 = vmatpush.msra.mxu0 0.0
      %6012 = vmatpush.msra.mxu0 0.0
      %6013 = vmatpush.msra.mxu0 %v5971
      %6014 = vmatpush.msra.mxu0 %v5970
      %6015 = vmatpush.msra.mxu0 %v5969
      %6016 = vmatpush.msra.mxu0 %v5968
      %6017 = vmatpush.msra.mxu0 %v5967
      %6018 = vmatpush.msra.mxu0 %v5966
      %6019 = vmatpush.msra.mxu0 %v5965
      %6020 = vmatpush.msra.mxu0 %v5964
      %6021 = vmatpush.msra.mxu0 %v5963
      %6022 = vmatpush.msra.mxu0 %v5962
      %6023 = vmatmul.f32.gmra.mxu0 %v5980
      %v6024 = vpop.f32.mrf.mxu0
      %v6025 = vadd.f32 %v6002, %v6024
      %6026 = vmatmul.f32.gmra.mxu0 %v5982
      %v6027 = vpop.f32.mrf.mxu0
      %v6028 = vadd.f32 %v6005, %v6027
      %6029 = vdwg.mxu0
      %v6030 = vadd.f32 %v5943, %v6025
      %v6031 = vadd.f32 %v5944, %v6028
      %s6032 = scalar_lea.vmem %s22, 1248
      %v6033 = vld [vmem:[%s6032] sm:$0xff]
      %v6034 = vld [vmem:[%s6032 + $0x8] sm:$0xff]
      %v6035 = vld [vmem:[%s6032 + $0x10] sm:$0xff]
      %v6036 = vld [vmem:[%s6032 + $0x18] sm:$0xff]
      %v6037 = vld [vmem:[%s6032 + $0x20] sm:$0xff]
      %v6038 = vld [vmem:[%s6032 + $0x28] sm:$0xff]
      %v6039 = vld [vmem:[%s6032 + $0x30] sm:$0xff]
      %v6040 = vld [vmem:[%s6032 + $0x38] sm:$0xff]
      %v6041 = vld [vmem:[%s6032 + $0x40] sm:$0xff]
      %v6042 = vld [vmem:[%s6032 + $0x48] sm:$0xff]
      %v6043 = vld [vmem:[%s6032 + $0x50] sm:$0xff]
      %v6044 = vld [vmem:[%s6032 + $0x58] sm:$0xff]
      %v6045 = vld [vmem:[%s6032 + $0x60] sm:$0xff]
      %v6046 = vld [vmem:[%s6032 + $0x68] sm:$0xff]
      %v6047 = vld [vmem:[%s6032 + $0x70] sm:$0xff]
      %v6048 = vld [vmem:[%s6032 + $0x78] sm:$0xff]
      %v6049 = vld [vmem:[%s6032 + $0x80] sm:$0xff]
      %v6050 = vld [vmem:[%s6032 + $0x88] sm:$0xff]
      %v6051 = vld [vmem:[%s6032 + $0x90] sm:$0xff]
      %v6052 = vld [vmem:[%s6032 + $0x98] sm:$0xff]
      %v6053 = vld [vmem:[%s6032 + $0xa0] sm:$0xff]
      %v6054 = vld [vmem:[%s6032 + $0xa8] sm:$0xff]
      %v6055 = vld [vmem:[%s6032 + $0xb0] sm:$0xff]
      %v6056 = vld [vmem:[%s6032 + $0xb8] sm:$0xff]
      %v6057 = vld [vmem:[%s6032 + $0xc0] sm:$0xff]
      %v6058 = vld [vmem:[%s6032 + $0xc8] sm:$0xff]
      %6059 = vrot.lane.b32.xlu0 %v5974, 112
      %v6060 = vpop.permute.xlu0 %6059
      %6061 = vrot.lane.b32.xlu0 %v5977, 112
      %v6062 = vpop.permute.xlu0 %6061
      %6063 = vrot.lane.b32.xlu0 %v5973, 112
      %v6064 = vpop.permute.xlu0 %6063
      %6065 = vrot.lane.b32.xlu0 %v5976, 112
      %v6066 = vpop.permute.xlu0 %6065
      %v6067 = vsel %vm4587, %v6060, %v6062
      %v6068 = vsel %vm4587, %v6064, %v6066
      %v6071 = vsel %vm5561, %v6062, 0
      %v6073 = vsel %vm5561, %v6066, 0
      %6075 = vmatpush.msra.mxu0 %v6048
      %6076 = vmatpush.msra.mxu0 %v6047
      %6077 = vmatpush.msra.mxu0 %v6046
      %6078 = vmatpush.msra.mxu0 %v6045
      %6079 = vmatpush.msra.mxu0 %v6044
      %6080 = vmatpush.msra.mxu0 %v6043
      %6081 = vmatpush.msra.mxu0 %v6042
      %6082 = vmatpush.msra.mxu0 %v6041
      %6083 = vmatpush.msra.mxu0 %v6040
      %6084 = vmatpush.msra.mxu0 %v6039
      %6085 = vmatpush.msra.mxu0 %v6038
      %6086 = vmatpush.msra.mxu0 %v6037
      %6087 = vmatpush.msra.mxu0 %v6036
      %6088 = vmatpush.msra.mxu0 %v6035
      %6089 = vmatpush.msra.mxu0 %v6034
      %6090 = vmatpush.msra.mxu0 %v6033
      %6091 = vmatmul.f32.gmra.mxu0 %v6067
      %v6092 = vpop.f32.mrf.mxu0
      %v6093 = vadd.f32 0.0, %v6092
      %6094 = vmatmul.f32.gmra.mxu0 %v6068
      %v6095 = vpop.f32.mrf.mxu0
      %v6096 = vadd.f32 0.0, %v6095
      %6097 = vdwg.mxu0
      %6098 = vmatpush.msra.mxu0 0.0
      %6099 = vmatpush.msra.mxu0 0.0
      %6100 = vmatpush.msra.mxu0 0.0
      %6101 = vmatpush.msra.mxu0 0.0
      %6102 = vmatpush.msra.mxu0 0.0
      %6103 = vmatpush.msra.mxu0 0.0
      %6104 = vmatpush.msra.mxu0 %v6058
      %6105 = vmatpush.msra.mxu0 %v6057
      %6106 = vmatpush.msra.mxu0 %v6056
      %6107 = vmatpush.msra.mxu0 %v6055
      %6108 = vmatpush.msra.mxu0 %v6054
      %6109 = vmatpush.msra.mxu0 %v6053
      %6110 = vmatpush.msra.mxu0 %v6052
      %6111 = vmatpush.msra.mxu0 %v6051
      %6112 = vmatpush.msra.mxu0 %v6050
      %6113 = vmatpush.msra.mxu0 %v6049
      %6114 = vmatmul.f32.gmra.mxu0 %v6071
      %v6115 = vpop.f32.mrf.mxu0
      %v6116 = vadd.f32 %v6093, %v6115
      %6117 = vmatmul.f32.gmra.mxu0 %v6073
      %v6118 = vpop.f32.mrf.mxu0
      %v6119 = vadd.f32 %v6096, %v6118
      %6120 = vdwg.mxu0
      %v6121 = vadd.f32 %v6030, %v6116
      %v6122 = vadd.f32 %v6031, %v6119
      %s6123 = scalar_lea.vmem %s22, 1456
      %v6124 = vld [vmem:[%s6123] sm:$0xff]
      %v6125 = vld [vmem:[%s6123 + $0x8] sm:$0xff]
      %v6126 = vld [vmem:[%s6123 + $0x10] sm:$0xff]
      %v6127 = vld [vmem:[%s6123 + $0x18] sm:$0xff]
      %v6128 = vld [vmem:[%s6123 + $0x20] sm:$0xff]
      %v6129 = vld [vmem:[%s6123 + $0x28] sm:$0xff]
      %v6130 = vld [vmem:[%s6123 + $0x30] sm:$0xff]
      %v6131 = vld [vmem:[%s6123 + $0x38] sm:$0xff]
      %v6132 = vld [vmem:[%s6123 + $0x40] sm:$0xff]
      %v6133 = vld [vmem:[%s6123 + $0x48] sm:$0xff]
      %v6134 = vld [vmem:[%s6123 + $0x50] sm:$0xff]
      %v6135 = vld [vmem:[%s6123 + $0x58] sm:$0xff]
      %v6136 = vld [vmem:[%s6123 + $0x60] sm:$0xff]
      %v6137 = vld [vmem:[%s6123 + $0x68] sm:$0xff]
      %v6138 = vld [vmem:[%s6123 + $0x70] sm:$0xff]
      %v6139 = vld [vmem:[%s6123 + $0x78] sm:$0xff]
      %v6140 = vld [vmem:[%s6123 + $0x80] sm:$0xff]
      %v6141 = vld [vmem:[%s6123 + $0x88] sm:$0xff]
      %v6142 = vld [vmem:[%s6123 + $0x90] sm:$0xff]
      %v6143 = vld [vmem:[%s6123 + $0x98] sm:$0xff]
      %v6144 = vld [vmem:[%s6123 + $0xa0] sm:$0xff]
      %v6145 = vld [vmem:[%s6123 + $0xa8] sm:$0xff]
      %v6146 = vld [vmem:[%s6123 + $0xb0] sm:$0xff]
      %v6147 = vld [vmem:[%s6123 + $0xb8] sm:$0xff]
      %v6148 = vld [vmem:[%s6123 + $0xc0] sm:$0xff]
      %v6149 = vld [vmem:[%s6123 + $0xc8] sm:$0xff]
      %6150 = vrot.lane.b32.xlu0 %v5974, 96
      %v6151 = vpop.permute.xlu0 %6150
      %6152 = vrot.lane.b32.xlu0 %v5977, 96
      %v6153 = vpop.permute.xlu0 %6152
      %6154 = vrot.lane.b32.xlu0 %v5973, 96
      %v6155 = vpop.permute.xlu0 %6154
      %6156 = vrot.lane.b32.xlu0 %v5976, 96
      %v6157 = vpop.permute.xlu0 %6156
      %v6158 = vsel %vm5697, %v6151, %v6153
      %v6159 = vsel %vm5697, %v6155, %v6157
      %v6162 = vsel %vm5561, %v6153, 0
      %v6164 = vsel %vm5561, %v6157, 0
      %6166 = vmatpush.msra.mxu0 %v6139
      %6167 = vmatpush.msra.mxu0 %v6138
      %6168 = vmatpush.msra.mxu0 %v6137
      %6169 = vmatpush.msra.mxu0 %v6136
      %6170 = vmatpush.msra.mxu0 %v6135
      %6171 = vmatpush.msra.mxu0 %v6134
      %6172 = vmatpush.msra.mxu0 %v6133
      %6173 = vmatpush.msra.mxu0 %v6132
      %6174 = vmatpush.msra.mxu0 %v6131
      %6175 = vmatpush.msra.mxu0 %v6130
      %6176 = vmatpush.msra.mxu0 %v6129
      %6177 = vmatpush.msra.mxu0 %v6128
      %6178 = vmatpush.msra.mxu0 %v6127
      %6179 = vmatpush.msra.mxu0 %v6126
      %6180 = vmatpush.msra.mxu0 %v6125
      %6181 = vmatpush.msra.mxu0 %v6124
      %6182 = vmatmul.f32.gmra.mxu0 %v6158
      %v6183 = vpop.f32.mrf.mxu0
      %v6184 = vadd.f32 0.0, %v6183
      %6185 = vmatmul.f32.gmra.mxu0 %v6159
      %v6186 = vpop.f32.mrf.mxu0
      %v6187 = vadd.f32 0.0, %v6186
      %6188 = vdwg.mxu0
      %6189 = vmatpush.msra.mxu0 0.0
      %6190 = vmatpush.msra.mxu0 0.0
      %6191 = vmatpush.msra.mxu0 0.0
      %6192 = vmatpush.msra.mxu0 0.0
      %6193 = vmatpush.msra.mxu0 0.0
      %6194 = vmatpush.msra.mxu0 0.0
      %6195 = vmatpush.msra.mxu0 %v6149
      %6196 = vmatpush.msra.mxu0 %v6148
      %6197 = vmatpush.msra.mxu0 %v6147
      %6198 = vmatpush.msra.mxu0 %v6146
      %6199 = vmatpush.msra.mxu0 %v6145
      %6200 = vmatpush.msra.mxu0 %v6144
      %6201 = vmatpush.msra.mxu0 %v6143
      %6202 = vmatpush.msra.mxu0 %v6142
      %6203 = vmatpush.msra.mxu0 %v6141
      %6204 = vmatpush.msra.mxu0 %v6140
      %6205 = vmatmul.f32.gmra.mxu0 %v6162
      %v6206 = vpop.f32.mrf.mxu0
      %v6207 = vadd.f32 %v6184, %v6206
      %6208 = vmatmul.f32.gmra.mxu0 %v6164
      %v6209 = vpop.f32.mrf.mxu0
      %v6210 = vadd.f32 %v6187, %v6209
      %6211 = vdwg.mxu0
      %v6212 = vadd.f32 %v6121, %v6207
      %v6213 = vadd.f32 %v6122, %v6210
      %s6214 = scalar_lea.vmem %s22, 1664
      %v6215 = vld [vmem:[%s6214] sm:$0xff]
      %v6216 = vld [vmem:[%s6214 + $0x8] sm:$0xff]
      %v6217 = vld [vmem:[%s6214 + $0x10] sm:$0xff]
      %v6218 = vld [vmem:[%s6214 + $0x18] sm:$0xff]
      %v6219 = vld [vmem:[%s6214 + $0x20] sm:$0xff]
      %v6220 = vld [vmem:[%s6214 + $0x28] sm:$0xff]
      %v6221 = vld [vmem:[%s6214 + $0x30] sm:$0xff]
      %v6222 = vld [vmem:[%s6214 + $0x38] sm:$0xff]
      %v6223 = vld [vmem:[%s6214 + $0x40] sm:$0xff]
      %v6224 = vld [vmem:[%s6214 + $0x48] sm:$0xff]
      %v6225 = vld [vmem:[%s6214 + $0x50] sm:$0xff]
      %v6226 = vld [vmem:[%s6214 + $0x58] sm:$0xff]
      %v6227 = vld [vmem:[%s6214 + $0x60] sm:$0xff]
      %v6228 = vld [vmem:[%s6214 + $0x68] sm:$0xff]
      %v6229 = vld [vmem:[%s6214 + $0x70] sm:$0xff]
      %v6230 = vld [vmem:[%s6214 + $0x78] sm:$0xff]
      %v6231 = vld [vmem:[%s6214 + $0x80] sm:$0xff]
      %v6232 = vld [vmem:[%s6214 + $0x88] sm:$0xff]
      %v6233 = vld [vmem:[%s6214 + $0x90] sm:$0xff]
      %v6234 = vld [vmem:[%s6214 + $0x98] sm:$0xff]
      %v6235 = vld [vmem:[%s6214 + $0xa0] sm:$0xff]
      %v6236 = vld [vmem:[%s6214 + $0xa8] sm:$0xff]
      %v6237 = vld [vmem:[%s6214 + $0xb0] sm:$0xff]
      %v6238 = vld [vmem:[%s6214 + $0xb8] sm:$0xff]
      %v6239 = vld [vmem:[%s6214 + $0xc0] sm:$0xff]
      %v6240 = vld [vmem:[%s6214 + $0xc8] sm:$0xff]
      %6241 = vrot.lane.b32.xlu0 %v5974, 80
      %v6242 = vpop.permute.xlu0 %6241
      %6243 = vrot.lane.b32.xlu0 %v5977, 80
      %v6244 = vpop.permute.xlu0 %6243
      %6245 = vrot.lane.b32.xlu0 %v5973, 80
      %v6246 = vpop.permute.xlu0 %6245
      %6247 = vrot.lane.b32.xlu0 %v5976, 80
      %v6248 = vpop.permute.xlu0 %6247
      %v6249 = vsel %vm5561, %v6242, %v6244
      %v6250 = vsel %vm5561, %v6246, %v6248
      %v6253 = vsel %vm5561, %v6244, 0
      %v6255 = vsel %vm5561, %v6248, 0
      %6257 = vmatpush.msra.mxu0 %v6230
      %6258 = vmatpush.msra.mxu0 %v6229
      %6259 = vmatpush.msra.mxu0 %v6228
      %6260 = vmatpush.msra.mxu0 %v6227
      %6261 = vmatpush.msra.mxu0 %v6226
      %6262 = vmatpush.msra.mxu0 %v6225
      %6263 = vmatpush.msra.mxu0 %v6224
      %6264 = vmatpush.msra.mxu0 %v6223
      %6265 = vmatpush.msra.mxu0 %v6222
      %6266 = vmatpush.msra.mxu0 %v6221
      %6267 = vmatpush.msra.mxu0 %v6220
      %6268 = vmatpush.msra.mxu0 %v6219
      %6269 = vmatpush.msra.mxu0 %v6218
      %6270 = vmatpush.msra.mxu0 %v6217
      %6271 = vmatpush.msra.mxu0 %v6216
      %6272 = vmatpush.msra.mxu0 %v6215
      %6273 = vmatmul.f32.gmra.mxu0 %v6249
      %v6274 = vpop.f32.mrf.mxu0
      %v6275 = vadd.f32 0.0, %v6274
      %6276 = vmatmul.f32.gmra.mxu0 %v6250
      %v6277 = vpop.f32.mrf.mxu0
      %v6278 = vadd.f32 0.0, %v6277
      %6279 = vdwg.mxu0
      %6280 = vmatpush.msra.mxu0 0.0
      %6281 = vmatpush.msra.mxu0 0.0
      %6282 = vmatpush.msra.mxu0 0.0
      %6283 = vmatpush.msra.mxu0 0.0
      %6284 = vmatpush.msra.mxu0 0.0
      %6285 = vmatpush.msra.mxu0 0.0
      %6286 = vmatpush.msra.mxu0 %v6240
      %6287 = vmatpush.msra.mxu0 %v6239
      %6288 = vmatpush.msra.mxu0 %v6238
      %6289 = vmatpush.msra.mxu0 %v6237
      %6290 = vmatpush.msra.mxu0 %v6236
      %6291 = vmatpush.msra.mxu0 %v6235
      %6292 = vmatpush.msra.mxu0 %v6234
      %6293 = vmatpush.msra.mxu0 %v6233
      %6294 = vmatpush.msra.mxu0 %v6232
      %6295 = vmatpush.msra.mxu0 %v6231
      %6296 = vmatmul.f32.gmra.mxu0 %v6253
      %v6297 = vpop.f32.mrf.mxu0
      %v6298 = vadd.f32 %v6275, %v6297
      %6299 = vmatmul.f32.gmra.mxu0 %v6255
      %v6300 = vpop.f32.mrf.mxu0
      %v6301 = vadd.f32 %v6278, %v6300
      %6302 = vdwg.mxu0
      %v6303 = vadd.f32 %v6212, %v6298
      %v6304 = vadd.f32 %v6213, %v6301
      %s6305 = scalar_lea.vmem %s22, 1872
      %v6306 = vld [vmem:[%s6305] sm:$0xff]
      %v6307 = vld [vmem:[%s6305 + $0x8] sm:$0xff]
      %v6308 = vld [vmem:[%s6305 + $0x10] sm:$0xff]
      %v6309 = vld [vmem:[%s6305 + $0x18] sm:$0xff]
      %v6310 = vld [vmem:[%s6305 + $0x20] sm:$0xff]
      %v6311 = vld [vmem:[%s6305 + $0x28] sm:$0xff]
      %v6312 = vld [vmem:[%s6305 + $0x30] sm:$0xff]
      %v6313 = vld [vmem:[%s6305 + $0x38] sm:$0xff]
      %v6314 = vld [vmem:[%s6305 + $0x40] sm:$0xff]
      %v6315 = vld [vmem:[%s6305 + $0x48] sm:$0xff]
      %v6316 = vld [vmem:[%s6305 + $0x50] sm:$0xff]
      %v6317 = vld [vmem:[%s6305 + $0x58] sm:$0xff]
      %v6318 = vld [vmem:[%s6305 + $0x60] sm:$0xff]
      %v6319 = vld [vmem:[%s6305 + $0x68] sm:$0xff]
      %v6320 = vld [vmem:[%s6305 + $0x70] sm:$0xff]
      %v6321 = vld [vmem:[%s6305 + $0x78] sm:$0xff]
      %v6322 = vld [vmem:[%s6305 + $0x80] sm:$0xff]
      %v6323 = vld [vmem:[%s6305 + $0x88] sm:$0xff]
      %v6324 = vld [vmem:[%s6305 + $0x90] sm:$0xff]
      %v6325 = vld [vmem:[%s6305 + $0x98] sm:$0xff]
      %v6326 = vld [vmem:[%s6305 + $0xa0] sm:$0xff]
      %v6327 = vld [vmem:[%s6305 + $0xa8] sm:$0xff]
      %v6328 = vld [vmem:[%s6305 + $0xb0] sm:$0xff]
      %v6329 = vld [vmem:[%s6305 + $0xb8] sm:$0xff]
      %v6330 = vld [vmem:[%s6305 + $0xc0] sm:$0xff]
      %v6331 = vld [vmem:[%s6305 + $0xc8] sm:$0xff]
      %v6332 = vrot.slane %v5484, 1
      %v6333 = vrot.slane %v5487, 1
      %v6334 = vsel %vm1195, %v6332, %v6333
      %6335 = vrot.lane.b32.xlu0 %v5974, 64
      %v6336 = vpop.permute.xlu0 %6335
      %6337 = vrot.lane.b32.xlu0 %v5977, 64
      %v6338 = vpop.permute.xlu0 %6337
      %6339 = vrot.lane.b32.xlu0 %v6334, 64
      %v6340 = vpop.permute.xlu0 %6339
      %6341 = vrot.lane.b32.xlu0 %v5973, 64
      %v6342 = vpop.permute.xlu0 %6341
      %6343 = vrot.lane.b32.xlu0 %v5976, 64
      %v6344 = vpop.permute.xlu0 %6343
      %6345 = vrot.lane.b32.xlu0 %v6333, 64
      %v6346 = vpop.permute.xlu0 %6345
      %v6347 = vsel %vm5886, %v6336, %v6338
      %v6348 = vsel %vm5886, %v6338, %v6340
      %v6349 = vsel %vm5886, %v6342, %v6344
      %v6350 = vsel %vm5886, %v6344, %v6346
      %v6353 = vsel %vm5561, %v6348, 0
      %v6355 = vsel %vm5561, %v6350, 0
      %6357 = vmatpush.msra.mxu0 %v6321
      %6358 = vmatpush.msra.mxu0 %v6320
      %6359 = vmatpush.msra.mxu0 %v6319
      %6360 = vmatpush.msra.mxu0 %v6318
      %6361 = vmatpush.msra.mxu0 %v6317
      %6362 = vmatpush.msra.mxu0 %v6316
      %6363 = vmatpush.msra.mxu0 %v6315
      %6364 = vmatpush.msra.mxu0 %v6314
      %6365 = vmatpush.msra.mxu0 %v6313
      %6366 = vmatpush.msra.mxu0 %v6312
      %6367 = vmatpush.msra.mxu0 %v6311
      %6368 = vmatpush.msra.mxu0 %v6310
      %6369 = vmatpush.msra.mxu0 %v6309
      %6370 = vmatpush.msra.mxu0 %v6308
      %6371 = vmatpush.msra.mxu0 %v6307
      %6372 = vmatpush.msra.mxu0 %v6306
      %6373 = vmatmul.f32.gmra.mxu0 %v6347
      %v6374 = vpop.f32.mrf.mxu0
      %v6375 = vadd.f32 0.0, %v6374
      %6376 = vmatmul.f32.gmra.mxu0 %v6349
      %v6377 = vpop.f32.mrf.mxu0
      %v6378 = vadd.f32 0.0, %v6377
      %6379 = vdwg.mxu0
      %6380 = vmatpush.msra.mxu0 0.0
      %6381 = vmatpush.msra.mxu0 0.0
      %6382 = vmatpush.msra.mxu0 0.0
      %6383 = vmatpush.msra.mxu0 0.0
      %6384 = vmatpush.msra.mxu0 0.0
      %6385 = vmatpush.msra.mxu0 0.0
      %6386 = vmatpush.msra.mxu0 %v6331
      %6387 = vmatpush.msra.mxu0 %v6330
      %6388 = vmatpush.msra.mxu0 %v6329
      %6389 = vmatpush.msra.mxu0 %v6328
      %6390 = vmatpush.msra.mxu0 %v6327
      %6391 = vmatpush.msra.mxu0 %v6326
      %6392 = vmatpush.msra.mxu0 %v6325
      %6393 = vmatpush.msra.mxu0 %v6324
      %6394 = vmatpush.msra.mxu0 %v6323
      %6395 = vmatpush.msra.mxu0 %v6322
      %6396 = vmatmul.f32.gmra.mxu0 %v6353
      %v6397 = vpop.f32.mrf.mxu0
      %v6398 = vadd.f32 %v6375, %v6397
      %6399 = vmatmul.f32.gmra.mxu0 %v6355
      %v6400 = vpop.f32.mrf.mxu0
      %v6401 = vadd.f32 %v6378, %v6400
      %6402 = vdwg.mxu0
      %v6403 = vadd.f32 %v6303, %v6398
      %v6404 = vadd.f32 %v6304, %v6401
      %s6405 = scalar_lea.vmem %s22, 2080
      %v6406 = vld [vmem:[%s6405] sm:$0xff]
      %v6407 = vld [vmem:[%s6405 + $0x8] sm:$0xff]
      %v6408 = vld [vmem:[%s6405 + $0x10] sm:$0xff]
      %v6409 = vld [vmem:[%s6405 + $0x18] sm:$0xff]
      %v6410 = vld [vmem:[%s6405 + $0x20] sm:$0xff]
      %v6411 = vld [vmem:[%s6405 + $0x28] sm:$0xff]
      %v6412 = vld [vmem:[%s6405 + $0x30] sm:$0xff]
      %v6413 = vld [vmem:[%s6405 + $0x38] sm:$0xff]
      %v6414 = vld [vmem:[%s6405 + $0x40] sm:$0xff]
      %v6415 = vld [vmem:[%s6405 + $0x48] sm:$0xff]
      %v6416 = vld [vmem:[%s6405 + $0x50] sm:$0xff]
      %v6417 = vld [vmem:[%s6405 + $0x58] sm:$0xff]
      %v6418 = vld [vmem:[%s6405 + $0x60] sm:$0xff]
      %v6419 = vld [vmem:[%s6405 + $0x68] sm:$0xff]
      %v6420 = vld [vmem:[%s6405 + $0x70] sm:$0xff]
      %v6421 = vld [vmem:[%s6405 + $0x78] sm:$0xff]
      %v6422 = vld [vmem:[%s6405 + $0x80] sm:$0xff]
      %v6423 = vld [vmem:[%s6405 + $0x88] sm:$0xff]
      %v6424 = vld [vmem:[%s6405 + $0x90] sm:$0xff]
      %v6425 = vld [vmem:[%s6405 + $0x98] sm:$0xff]
      %v6426 = vld [vmem:[%s6405 + $0xa0] sm:$0xff]
      %v6427 = vld [vmem:[%s6405 + $0xa8] sm:$0xff]
      %v6428 = vld [vmem:[%s6405 + $0xb0] sm:$0xff]
      %v6429 = vld [vmem:[%s6405 + $0xb8] sm:$0xff]
      %v6430 = vld [vmem:[%s6405 + $0xc0] sm:$0xff]
      %v6431 = vld [vmem:[%s6405 + $0xc8] sm:$0xff]
      %v6432 = vrot.slane %v5432, 2
      %v6433 = vrot.slane %v5435, 2
      %v6434 = vsel %vm1534, %v6432, %v6433
      %v6435 = vrot.slane %v5458, 2
      %v6436 = vrot.slane %v5461, 2
      %v6437 = vsel %vm1534, %v6435, %v6436
      %v6440 = vsel %vm5561, %v6437, 0
      %v6442 = vsel %vm5561, %v6436, 0
      %6444 = vmatpush.msra.mxu0 %v6421
      %6445 = vmatpush.msra.mxu0 %v6420
      %6446 = vmatpush.msra.mxu0 %v6419
      %6447 = vmatpush.msra.mxu0 %v6418
      %6448 = vmatpush.msra.mxu0 %v6417
      %6449 = vmatpush.msra.mxu0 %v6416
      %6450 = vmatpush.msra.mxu0 %v6415
      %6451 = vmatpush.msra.mxu0 %v6414
      %6452 = vmatpush.msra.mxu0 %v6413
      %6453 = vmatpush.msra.mxu0 %v6412
      %6454 = vmatpush.msra.mxu0 %v6411
      %6455 = vmatpush.msra.mxu0 %v6410
      %6456 = vmatpush.msra.mxu0 %v6409
      %6457 = vmatpush.msra.mxu0 %v6408
      %6458 = vmatpush.msra.mxu0 %v6407
      %6459 = vmatpush.msra.mxu0 %v6406
      %6460 = vmatmul.f32.gmra.mxu0 %v6434
      %v6461 = vpop.f32.mrf.mxu0
      %v6462 = vadd.f32 0.0, %v6461
      %6463 = vmatmul.f32.gmra.mxu0 %v6433
      %v6464 = vpop.f32.mrf.mxu0
      %v6465 = vadd.f32 0.0, %v6464
      %6466 = vdwg.mxu0
      %6467 = vmatpush.msra.mxu0 0.0
      %6468 = vmatpush.msra.mxu0 0.0
      %6469 = vmatpush.msra.mxu0 0.0
      %6470 = vmatpush.msra.mxu0 0.0
      %6471 = vmatpush.msra.mxu0 0.0
      %6472 = vmatpush.msra.mxu0 0.0
      %6473 = vmatpush.msra.mxu0 %v6431
      %6474 = vmatpush.msra.mxu0 %v6430
      %6475 = vmatpush.msra.mxu0 %v6429
      %6476 = vmatpush.msra.mxu0 %v6428
      %6477 = vmatpush.msra.mxu0 %v6427
      %6478 = vmatpush.msra.mxu0 %v6426
      %6479 = vmatpush.msra.mxu0 %v6425
      %6480 = vmatpush.msra.mxu0 %v6424
      %6481 = vmatpush.msra.mxu0 %v6423
      %6482 = vmatpush.msra.mxu0 %v6422
      %6483 = vmatmul.f32.gmra.mxu0 %v6440
      %v6484 = vpop.f32.mrf.mxu0
      %v6485 = vadd.f32 %v6462, %v6484
      %6486 = vmatmul.f32.gmra.mxu0 %v6442
      %v6487 = vpop.f32.mrf.mxu0
      %v6488 = vadd.f32 %v6465, %v6487
      %6489 = vdwg.mxu0
      %v6490 = vadd.f32 %v6403, %v6485
      %v6491 = vadd.f32 %v6404, %v6488
      %s6492 = scalar_lea.vmem %s22, 2288
      %v6493 = vld [vmem:[%s6492] sm:$0xff]
      %v6494 = vld [vmem:[%s6492 + $0x8] sm:$0xff]
      %v6495 = vld [vmem:[%s6492 + $0x10] sm:$0xff]
      %v6496 = vld [vmem:[%s6492 + $0x18] sm:$0xff]
      %v6497 = vld [vmem:[%s6492 + $0x20] sm:$0xff]
      %v6498 = vld [vmem:[%s6492 + $0x28] sm:$0xff]
      %v6499 = vld [vmem:[%s6492 + $0x30] sm:$0xff]
      %v6500 = vld [vmem:[%s6492 + $0x38] sm:$0xff]
      %v6501 = vld [vmem:[%s6492 + $0x40] sm:$0xff]
      %v6502 = vld [vmem:[%s6492 + $0x48] sm:$0xff]
      %v6503 = vld [vmem:[%s6492 + $0x50] sm:$0xff]
      %v6504 = vld [vmem:[%s6492 + $0x58] sm:$0xff]
      %v6505 = vld [vmem:[%s6492 + $0x60] sm:$0xff]
      %v6506 = vld [vmem:[%s6492 + $0x68] sm:$0xff]
      %v6507 = vld [vmem:[%s6492 + $0x70] sm:$0xff]
      %v6508 = vld [vmem:[%s6492 + $0x78] sm:$0xff]
      %v6509 = vld [vmem:[%s6492 + $0x80] sm:$0xff]
      %v6510 = vld [vmem:[%s6492 + $0x88] sm:$0xff]
      %v6511 = vld [vmem:[%s6492 + $0x90] sm:$0xff]
      %v6512 = vld [vmem:[%s6492 + $0x98] sm:$0xff]
      %v6513 = vld [vmem:[%s6492 + $0xa0] sm:$0xff]
      %v6514 = vld [vmem:[%s6492 + $0xa8] sm:$0xff]
      %v6515 = vld [vmem:[%s6492 + $0xb0] sm:$0xff]
      %v6516 = vld [vmem:[%s6492 + $0xb8] sm:$0xff]
      %v6517 = vld [vmem:[%s6492 + $0xc0] sm:$0xff]
      %v6518 = vld [vmem:[%s6492 + $0xc8] sm:$0xff]
      %6519 = vrot.lane.b32.xlu0 %v6434, 112
      %v6520 = vpop.permute.xlu0 %6519
      %6521 = vrot.lane.b32.xlu0 %v6437, 112
      %v6522 = vpop.permute.xlu0 %6521
      %6523 = vrot.lane.b32.xlu0 %v6433, 112
      %v6524 = vpop.permute.xlu0 %6523
      %6525 = vrot.lane.b32.xlu0 %v6436, 112
      %v6526 = vpop.permute.xlu0 %6525
      %v6527 = vsel %vm4587, %v6520, %v6522
      %v6528 = vsel %vm4587, %v6524, %v6526
      %v6531 = vsel %vm5561, %v6522, 0
      %v6533 = vsel %vm5561, %v6526, 0
      %6535 = vmatpush.msra.mxu0 %v6508
      %6536 = vmatpush.msra.mxu0 %v6507
      %6537 = vmatpush.msra.mxu0 %v6506
      %6538 = vmatpush.msra.mxu0 %v6505
      %6539 = vmatpush.msra.mxu0 %v6504
      %6540 = vmatpush.msra.mxu0 %v6503
      %6541 = vmatpush.msra.mxu0 %v6502
      %6542 = vmatpush.msra.mxu0 %v6501
      %6543 = vmatpush.msra.mxu0 %v6500
      %6544 = vmatpush.msra.mxu0 %v6499
      %6545 = vmatpush.msra.mxu0 %v6498
      %6546 = vmatpush.msra.mxu0 %v6497
      %6547 = vmatpush.msra.mxu0 %v6496
      %6548 = vmatpush.msra.mxu0 %v6495
      %6549 = vmatpush.msra.mxu0 %v6494
      %6550 = vmatpush.msra.mxu0 %v6493
      %6551 = vmatmul.f32.gmra.mxu0 %v6527
      %v6552 = vpop.f32.mrf.mxu0
      %v6553 = vadd.f32 0.0, %v6552
      %6554 = vmatmul.f32.gmra.mxu0 %v6528
      %v6555 = vpop.f32.mrf.mxu0
      %v6556 = vadd.f32 0.0, %v6555
      %6557 = vdwg.mxu0
      %6558 = vmatpush.msra.mxu0 0.0
      %6559 = vmatpush.msra.mxu0 0.0
      %6560 = vmatpush.msra.mxu0 0.0
      %6561 = vmatpush.msra.mxu0 0.0
      %6562 = vmatpush.msra.mxu0 0.0
      %6563 = vmatpush.msra.mxu0 0.0
      %6564 = vmatpush.msra.mxu0 %v6518
      %6565 = vmatpush.msra.mxu0 %v6517
      %6566 = vmatpush.msra.mxu0 %v6516
      %6567 = vmatpush.msra.mxu0 %v6515
      %6568 = vmatpush.msra.mxu0 %v6514
      %6569 = vmatpush.msra.mxu0 %v6513
      %6570 = vmatpush.msra.mxu0 %v6512
      %6571 = vmatpush.msra.mxu0 %v6511
      %6572 = vmatpush.msra.mxu0 %v6510
      %6573 = vmatpush.msra.mxu0 %v6509
      %6574 = vmatmul.f32.gmra.mxu0 %v6531
      %v6575 = vpop.f32.mrf.mxu0
      %v6576 = vadd.f32 %v6553, %v6575
      %6577 = vmatmul.f32.gmra.mxu0 %v6533
      %v6578 = vpop.f32.mrf.mxu0
      %v6579 = vadd.f32 %v6556, %v6578
      %6580 = vdwg.mxu0
      %v6581 = vadd.f32 %v6490, %v6576
      %v6582 = vadd.f32 %v6491, %v6579
      %s6583 = scalar_lea.vmem %s22, 2496
      %v6584 = vld [vmem:[%s6583] sm:$0xff]
      %v6585 = vld [vmem:[%s6583 + $0x8] sm:$0xff]
      %v6586 = vld [vmem:[%s6583 + $0x10] sm:$0xff]
      %v6587 = vld [vmem:[%s6583 + $0x18] sm:$0xff]
      %v6588 = vld [vmem:[%s6583 + $0x20] sm:$0xff]
      %v6589 = vld [vmem:[%s6583 + $0x28] sm:$0xff]
      %v6590 = vld [vmem:[%s6583 + $0x30] sm:$0xff]
      %v6591 = vld [vmem:[%s6583 + $0x38] sm:$0xff]
      %v6592 = vld [vmem:[%s6583 + $0x40] sm:$0xff]
      %v6593 = vld [vmem:[%s6583 + $0x48] sm:$0xff]
      %v6594 = vld [vmem:[%s6583 + $0x50] sm:$0xff]
      %v6595 = vld [vmem:[%s6583 + $0x58] sm:$0xff]
      %v6596 = vld [vmem:[%s6583 + $0x60] sm:$0xff]
      %v6597 = vld [vmem:[%s6583 + $0x68] sm:$0xff]
      %v6598 = vld [vmem:[%s6583 + $0x70] sm:$0xff]
      %v6599 = vld [vmem:[%s6583 + $0x78] sm:$0xff]
      %v6600 = vld [vmem:[%s6583 + $0x80] sm:$0xff]
      %v6601 = vld [vmem:[%s6583 + $0x88] sm:$0xff]
      %v6602 = vld [vmem:[%s6583 + $0x90] sm:$0xff]
      %v6603 = vld [vmem:[%s6583 + $0x98] sm:$0xff]
      %v6604 = vld [vmem:[%s6583 + $0xa0] sm:$0xff]
      %v6605 = vld [vmem:[%s6583 + $0xa8] sm:$0xff]
      %v6606 = vld [vmem:[%s6583 + $0xb0] sm:$0xff]
      %v6607 = vld [vmem:[%s6583 + $0xb8] sm:$0xff]
      %v6608 = vld [vmem:[%s6583 + $0xc0] sm:$0xff]
      %v6609 = vld [vmem:[%s6583 + $0xc8] sm:$0xff]
      %6610 = vrot.lane.b32.xlu0 %v6434, 96
      %v6611 = vpop.permute.xlu0 %6610
      %6612 = vrot.lane.b32.xlu0 %v6437, 96
      %v6613 = vpop.permute.xlu0 %6612
      %6614 = vrot.lane.b32.xlu0 %v6433, 96
      %v6615 = vpop.permute.xlu0 %6614
      %6616 = vrot.lane.b32.xlu0 %v6436, 96
      %v6617 = vpop.permute.xlu0 %6616
      %v6618 = vsel %vm5697, %v6611, %v6613
      %v6619 = vsel %vm5697, %v6615, %v6617
      %v6622 = vsel %vm5561, %v6613, 0
      %v6624 = vsel %vm5561, %v6617, 0
      %6626 = vmatpush.msra.mxu0 %v6599
      %6627 = vmatpush.msra.mxu0 %v6598
      %6628 = vmatpush.msra.mxu0 %v6597
      %6629 = vmatpush.msra.mxu0 %v6596
      %6630 = vmatpush.msra.mxu0 %v6595
      %6631 = vmatpush.msra.mxu0 %v6594
      %6632 = vmatpush.msra.mxu0 %v6593
      %6633 = vmatpush.msra.mxu0 %v6592
      %6634 = vmatpush.msra.mxu0 %v6591
      %6635 = vmatpush.msra.mxu0 %v6590
      %6636 = vmatpush.msra.mxu0 %v6589
      %6637 = vmatpush.msra.mxu0 %v6588
      %6638 = vmatpush.msra.mxu0 %v6587
      %6639 = vmatpush.msra.mxu0 %v6586
      %6640 = vmatpush.msra.mxu0 %v6585
      %6641 = vmatpush.msra.mxu0 %v6584
      %6642 = vmatmul.f32.gmra.mxu0 %v6618
      %v6643 = vpop.f32.mrf.mxu0
      %v6644 = vadd.f32 0.0, %v6643
      %6645 = vmatmul.f32.gmra.mxu0 %v6619
      %v6646 = vpop.f32.mrf.mxu0
      %v6647 = vadd.f32 0.0, %v6646
      %6648 = vdwg.mxu0
      %6649 = vmatpush.msra.mxu0 0.0
      %6650 = vmatpush.msra.mxu0 0.0
      %6651 = vmatpush.msra.mxu0 0.0
      %6652 = vmatpush.msra.mxu0 0.0
      %6653 = vmatpush.msra.mxu0 0.0
      %6654 = vmatpush.msra.mxu0 0.0
      %6655 = vmatpush.msra.mxu0 %v6609
      %6656 = vmatpush.msra.mxu0 %v6608
      %6657 = vmatpush.msra.mxu0 %v6607
      %6658 = vmatpush.msra.mxu0 %v6606
      %6659 = vmatpush.msra.mxu0 %v6605
      %6660 = vmatpush.msra.mxu0 %v6604
      %6661 = vmatpush.msra.mxu0 %v6603
      %6662 = vmatpush.msra.mxu0 %v6602
      %6663 = vmatpush.msra.mxu0 %v6601
      %6664 = vmatpush.msra.mxu0 %v6600
      %6665 = vmatmul.f32.gmra.mxu0 %v6622
      %v6666 = vpop.f32.mrf.mxu0
      %v6667 = vadd.f32 %v6644, %v6666
      %6668 = vmatmul.f32.gmra.mxu0 %v6624
      %v6669 = vpop.f32.mrf.mxu0
      %v6670 = vadd.f32 %v6647, %v6669
      %6671 = vdwg.mxu0
      %v6672 = vadd.f32 %v6581, %v6667
      %v6673 = vadd.f32 %v6582, %v6670
      %s6674 = scalar_lea.vmem %s22, 2704
      %v6675 = vld [vmem:[%s6674] sm:$0xff]
      %v6676 = vld [vmem:[%s6674 + $0x8] sm:$0xff]
      %v6677 = vld [vmem:[%s6674 + $0x10] sm:$0xff]
      %v6678 = vld [vmem:[%s6674 + $0x18] sm:$0xff]
      %v6679 = vld [vmem:[%s6674 + $0x20] sm:$0xff]
      %v6680 = vld [vmem:[%s6674 + $0x28] sm:$0xff]
      %v6681 = vld [vmem:[%s6674 + $0x30] sm:$0xff]
      %v6682 = vld [vmem:[%s6674 + $0x38] sm:$0xff]
      %v6683 = vld [vmem:[%s6674 + $0x40] sm:$0xff]
      %v6684 = vld [vmem:[%s6674 + $0x48] sm:$0xff]
      %v6685 = vld [vmem:[%s6674 + $0x50] sm:$0xff]
      %v6686 = vld [vmem:[%s6674 + $0x58] sm:$0xff]
      %v6687 = vld [vmem:[%s6674 + $0x60] sm:$0xff]
      %v6688 = vld [vmem:[%s6674 + $0x68] sm:$0xff]
      %v6689 = vld [vmem:[%s6674 + $0x70] sm:$0xff]
      %v6690 = vld [vmem:[%s6674 + $0x78] sm:$0xff]
      %v6691 = vld [vmem:[%s6674 + $0x80] sm:$0xff]
      %v6692 = vld [vmem:[%s6674 + $0x88] sm:$0xff]
      %v6693 = vld [vmem:[%s6674 + $0x90] sm:$0xff]
      %v6694 = vld [vmem:[%s6674 + $0x98] sm:$0xff]
      %v6695 = vld [vmem:[%s6674 + $0xa0] sm:$0xff]
      %v6696 = vld [vmem:[%s6674 + $0xa8] sm:$0xff]
      %v6697 = vld [vmem:[%s6674 + $0xb0] sm:$0xff]
      %v6698 = vld [vmem:[%s6674 + $0xb8] sm:$0xff]
      %v6699 = vld [vmem:[%s6674 + $0xc0] sm:$0xff]
      %v6700 = vld [vmem:[%s6674 + $0xc8] sm:$0xff]
      %6701 = vrot.lane.b32.xlu0 %v6434, 80
      %v6702 = vpop.permute.xlu0 %6701
      %6703 = vrot.lane.b32.xlu0 %v6437, 80
      %v6704 = vpop.permute.xlu0 %6703
      %6705 = vrot.lane.b32.xlu0 %v6433, 80
      %v6706 = vpop.permute.xlu0 %6705
      %6707 = vrot.lane.b32.xlu0 %v6436, 80
      %v6708 = vpop.permute.xlu0 %6707
      %v6709 = vsel %vm5561, %v6702, %v6704
      %v6710 = vsel %vm5561, %v6706, %v6708
      %v6713 = vsel %vm5561, %v6704, 0
      %v6715 = vsel %vm5561, %v6708, 0
      %6717 = vmatpush.msra.mxu0 %v6690
      %6718 = vmatpush.msra.mxu0 %v6689
      %6719 = vmatpush.msra.mxu0 %v6688
      %6720 = vmatpush.msra.mxu0 %v6687
      %6721 = vmatpush.msra.mxu0 %v6686
      %6722 = vmatpush.msra.mxu0 %v6685
      %6723 = vmatpush.msra.mxu0 %v6684
      %6724 = vmatpush.msra.mxu0 %v6683
      %6725 = vmatpush.msra.mxu0 %v6682
      %6726 = vmatpush.msra.mxu0 %v6681
      %6727 = vmatpush.msra.mxu0 %v6680
      %6728 = vmatpush.msra.mxu0 %v6679
      %6729 = vmatpush.msra.mxu0 %v6678
      %6730 = vmatpush.msra.mxu0 %v6677
      %6731 = vmatpush.msra.mxu0 %v6676
      %6732 = vmatpush.msra.mxu0 %v6675
      %6733 = vmatmul.f32.gmra.mxu0 %v6709
      %v6734 = vpop.f32.mrf.mxu0
      %v6735 = vadd.f32 0.0, %v6734
      %6736 = vmatmul.f32.gmra.mxu0 %v6710
      %v6737 = vpop.f32.mrf.mxu0
      %v6738 = vadd.f32 0.0, %v6737
      %6739 = vdwg.mxu0
      %6740 = vmatpush.msra.mxu0 0.0
      %6741 = vmatpush.msra.mxu0 0.0
      %6742 = vmatpush.msra.mxu0 0.0
      %6743 = vmatpush.msra.mxu0 0.0
      %6744 = vmatpush.msra.mxu0 0.0
      %6745 = vmatpush.msra.mxu0 0.0
      %6746 = vmatpush.msra.mxu0 %v6700
      %6747 = vmatpush.msra.mxu0 %v6699
      %6748 = vmatpush.msra.mxu0 %v6698
      %6749 = vmatpush.msra.mxu0 %v6697
      %6750 = vmatpush.msra.mxu0 %v6696
      %6751 = vmatpush.msra.mxu0 %v6695
      %6752 = vmatpush.msra.mxu0 %v6694
      %6753 = vmatpush.msra.mxu0 %v6693
      %6754 = vmatpush.msra.mxu0 %v6692
      %6755 = vmatpush.msra.mxu0 %v6691
      %6756 = vmatmul.f32.gmra.mxu0 %v6713
      %v6757 = vpop.f32.mrf.mxu0
      %v6758 = vadd.f32 %v6735, %v6757
      %6759 = vmatmul.f32.gmra.mxu0 %v6715
      %v6760 = vpop.f32.mrf.mxu0
      %v6761 = vadd.f32 %v6738, %v6760
      %6762 = vdwg.mxu0
      %v6763 = vadd.f32 %v6672, %v6758
      %v6764 = vadd.f32 %v6673, %v6761
      %s6765 = scalar_lea.vmem %s22, 2912
      %v6766 = vld [vmem:[%s6765] sm:$0xff]
      %v6767 = vld [vmem:[%s6765 + $0x8] sm:$0xff]
      %v6768 = vld [vmem:[%s6765 + $0x10] sm:$0xff]
      %v6769 = vld [vmem:[%s6765 + $0x18] sm:$0xff]
      %v6770 = vld [vmem:[%s6765 + $0x20] sm:$0xff]
      %v6771 = vld [vmem:[%s6765 + $0x28] sm:$0xff]
      %v6772 = vld [vmem:[%s6765 + $0x30] sm:$0xff]
      %v6773 = vld [vmem:[%s6765 + $0x38] sm:$0xff]
      %v6774 = vld [vmem:[%s6765 + $0x40] sm:$0xff]
      %v6775 = vld [vmem:[%s6765 + $0x48] sm:$0xff]
      %v6776 = vld [vmem:[%s6765 + $0x50] sm:$0xff]
      %v6777 = vld [vmem:[%s6765 + $0x58] sm:$0xff]
      %v6778 = vld [vmem:[%s6765 + $0x60] sm:$0xff]
      %v6779 = vld [vmem:[%s6765 + $0x68] sm:$0xff]
      %v6780 = vld [vmem:[%s6765 + $0x70] sm:$0xff]
      %v6781 = vld [vmem:[%s6765 + $0x78] sm:$0xff]
      %v6782 = vld [vmem:[%s6765 + $0x80] sm:$0xff]
      %v6783 = vld [vmem:[%s6765 + $0x88] sm:$0xff]
      %v6784 = vld [vmem:[%s6765 + $0x90] sm:$0xff]
      %v6785 = vld [vmem:[%s6765 + $0x98] sm:$0xff]
      %v6786 = vld [vmem:[%s6765 + $0xa0] sm:$0xff]
      %v6787 = vld [vmem:[%s6765 + $0xa8] sm:$0xff]
      %v6788 = vld [vmem:[%s6765 + $0xb0] sm:$0xff]
      %v6789 = vld [vmem:[%s6765 + $0xb8] sm:$0xff]
      %v6790 = vld [vmem:[%s6765 + $0xc0] sm:$0xff]
      %v6791 = vld [vmem:[%s6765 + $0xc8] sm:$0xff]
      %v6792 = vrot.slane %v5484, 2
      %v6793 = vrot.slane %v5487, 2
      %v6794 = vsel %vm1534, %v6792, %v6793
      %6795 = vrot.lane.b32.xlu0 %v6434, 64
      %v6796 = vpop.permute.xlu0 %6795
      %6797 = vrot.lane.b32.xlu0 %v6437, 64
      %v6798 = vpop.permute.xlu0 %6797
      %6799 = vrot.lane.b32.xlu0 %v6794, 64
      %v6800 = vpop.permute.xlu0 %6799
      %6801 = vrot.lane.b32.xlu0 %v6433, 64
      %v6802 = vpop.permute.xlu0 %6801
      %6803 = vrot.lane.b32.xlu0 %v6436, 64
      %v6804 = vpop.permute.xlu0 %6803
      %6805 = vrot.lane.b32.xlu0 %v6793, 64
      %v6806 = vpop.permute.xlu0 %6805
      %v6807 = vsel %vm5886, %v6796, %v6798
      %v6808 = vsel %vm5886, %v6798, %v6800
      %v6809 = vsel %vm5886, %v6802, %v6804
      %v6810 = vsel %vm5886, %v6804, %v6806
      %v6813 = vsel %vm5561, %v6808, 0
      %v6815 = vsel %vm5561, %v6810, 0
      %6817 = vmatpush.msra.mxu0 %v6781
      %6818 = vmatpush.msra.mxu0 %v6780
      %6819 = vmatpush.msra.mxu0 %v6779
      %6820 = vmatpush.msra.mxu0 %v6778
      %6821 = vmatpush.msra.mxu0 %v6777
      %6822 = vmatpush.msra.mxu0 %v6776
      %6823 = vmatpush.msra.mxu0 %v6775
      %6824 = vmatpush.msra.mxu0 %v6774
      %6825 = vmatpush.msra.mxu0 %v6773
      %6826 = vmatpush.msra.mxu0 %v6772
      %6827 = vmatpush.msra.mxu0 %v6771
      %6828 = vmatpush.msra.mxu0 %v6770
      %6829 = vmatpush.msra.mxu0 %v6769
      %6830 = vmatpush.msra.mxu0 %v6768
      %6831 = vmatpush.msra.mxu0 %v6767
      %6832 = vmatpush.msra.mxu0 %v6766
      %6833 = vmatmul.f32.gmra.mxu0 %v6807
      %v6834 = vpop.f32.mrf.mxu0
      %v6835 = vadd.f32 0.0, %v6834
      %6836 = vmatmul.f32.gmra.mxu0 %v6809
      %v6837 = vpop.f32.mrf.mxu0
      %v6838 = vadd.f32 0.0, %v6837
      %6839 = vdwg.mxu0
      %6840 = vmatpush.msra.mxu0 0.0
      %6841 = vmatpush.msra.mxu0 0.0
      %6842 = vmatpush.msra.mxu0 0.0
      %6843 = vmatpush.msra.mxu0 0.0
      %6844 = vmatpush.msra.mxu0 0.0
      %6845 = vmatpush.msra.mxu0 0.0
      %6846 = vmatpush.msra.mxu0 %v6791
      %6847 = vmatpush.msra.mxu0 %v6790
      %6848 = vmatpush.msra.mxu0 %v6789
      %6849 = vmatpush.msra.mxu0 %v6788
      %6850 = vmatpush.msra.mxu0 %v6787
      %6851 = vmatpush.msra.mxu0 %v6786
      %6852 = vmatpush.msra.mxu0 %v6785
      %6853 = vmatpush.msra.mxu0 %v6784
      %6854 = vmatpush.msra.mxu0 %v6783
      %6855 = vmatpush.msra.mxu0 %v6782
      %6856 = vmatmul.f32.gmra.mxu0 %v6813
      %v6857 = vpop.f32.mrf.mxu0
      %v6858 = vadd.f32 %v6835, %v6857
      %6859 = vmatmul.f32.gmra.mxu0 %v6815
      %v6860 = vpop.f32.mrf.mxu0
      %v6861 = vadd.f32 %v6838, %v6860
      %6862 = vdwg.mxu0
      %v6863 = vadd.f32 %v6763, %v6858
      %v6864 = vadd.f32 %v6764, %v6861
      %s6865 = scalar_lea.vmem %s22, 3120
      %v6866 = vld [vmem:[%s6865] sm:$0xff]
      %v6867 = vld [vmem:[%s6865 + $0x8] sm:$0xff]
      %v6868 = vld [vmem:[%s6865 + $0x10] sm:$0xff]
      %v6869 = vld [vmem:[%s6865 + $0x18] sm:$0xff]
      %v6870 = vld [vmem:[%s6865 + $0x20] sm:$0xff]
      %v6871 = vld [vmem:[%s6865 + $0x28] sm:$0xff]
      %v6872 = vld [vmem:[%s6865 + $0x30] sm:$0xff]
      %v6873 = vld [vmem:[%s6865 + $0x38] sm:$0xff]
      %v6874 = vld [vmem:[%s6865 + $0x40] sm:$0xff]
      %v6875 = vld [vmem:[%s6865 + $0x48] sm:$0xff]
      %v6876 = vld [vmem:[%s6865 + $0x50] sm:$0xff]
      %v6877 = vld [vmem:[%s6865 + $0x58] sm:$0xff]
      %v6878 = vld [vmem:[%s6865 + $0x60] sm:$0xff]
      %v6879 = vld [vmem:[%s6865 + $0x68] sm:$0xff]
      %v6880 = vld [vmem:[%s6865 + $0x70] sm:$0xff]
      %v6881 = vld [vmem:[%s6865 + $0x78] sm:$0xff]
      %v6882 = vld [vmem:[%s6865 + $0x80] sm:$0xff]
      %v6883 = vld [vmem:[%s6865 + $0x88] sm:$0xff]
      %v6884 = vld [vmem:[%s6865 + $0x90] sm:$0xff]
      %v6885 = vld [vmem:[%s6865 + $0x98] sm:$0xff]
      %v6886 = vld [vmem:[%s6865 + $0xa0] sm:$0xff]
      %v6887 = vld [vmem:[%s6865 + $0xa8] sm:$0xff]
      %v6888 = vld [vmem:[%s6865 + $0xb0] sm:$0xff]
      %v6889 = vld [vmem:[%s6865 + $0xb8] sm:$0xff]
      %v6890 = vld [vmem:[%s6865 + $0xc0] sm:$0xff]
      %v6891 = vld [vmem:[%s6865 + $0xc8] sm:$0xff]
      %v6892 = vrot.slane %v5432, 3
      %v6893 = vrot.slane %v5435, 3
      %v6894 = vsel %vm3579, %v6892, %v6893
      %v6895 = vrot.slane %v5458, 3
      %v6896 = vrot.slane %v5461, 3
      %v6897 = vsel %vm3579, %v6895, %v6896
      %v6900 = vsel %vm5561, %v6897, 0
      %v6902 = vsel %vm5561, %v6896, 0
      %6904 = vmatpush.msra.mxu0 %v6881
      %6905 = vmatpush.msra.mxu0 %v6880
      %6906 = vmatpush.msra.mxu0 %v6879
      %6907 = vmatpush.msra.mxu0 %v6878
      %6908 = vmatpush.msra.mxu0 %v6877
      %6909 = vmatpush.msra.mxu0 %v6876
      %6910 = vmatpush.msra.mxu0 %v6875
      %6911 = vmatpush.msra.mxu0 %v6874
      %6912 = vmatpush.msra.mxu0 %v6873
      %6913 = vmatpush.msra.mxu0 %v6872
      %6914 = vmatpush.msra.mxu0 %v6871
      %6915 = vmatpush.msra.mxu0 %v6870
      %6916 = vmatpush.msra.mxu0 %v6869
      %6917 = vmatpush.msra.mxu0 %v6868
      %6918 = vmatpush.msra.mxu0 %v6867
      %6919 = vmatpush.msra.mxu0 %v6866
      %6920 = vmatmul.f32.gmra.mxu0 %v6894
      %v6921 = vpop.f32.mrf.mxu0
      %v6922 = vadd.f32 0.0, %v6921
      %6923 = vmatmul.f32.gmra.mxu0 %v6893
      %v6924 = vpop.f32.mrf.mxu0
      %v6925 = vadd.f32 0.0, %v6924
      %6926 = vdwg.mxu0
      %6927 = vmatpush.msra.mxu0 0.0
      %6928 = vmatpush.msra.mxu0 0.0
      %6929 = vmatpush.msra.mxu0 0.0
      %6930 = vmatpush.msra.mxu0 0.0
      %6931 = vmatpush.msra.mxu0 0.0
      %6932 = vmatpush.msra.mxu0 0.0
      %6933 = vmatpush.msra.mxu0 %v6891
      %6934 = vmatpush.msra.mxu0 %v6890
      %6935 = vmatpush.msra.mxu0 %v6889
      %6936 = vmatpush.msra.mxu0 %v6888
      %6937 = vmatpush.msra.mxu0 %v6887
      %6938 = vmatpush.msra.mxu0 %v6886
      %6939 = vmatpush.msra.mxu0 %v6885
      %6940 = vmatpush.msra.mxu0 %v6884
      %6941 = vmatpush.msra.mxu0 %v6883
      %6942 = vmatpush.msra.mxu0 %v6882
      %6943 = vmatmul.f32.gmra.mxu0 %v6900
      %v6944 = vpop.f32.mrf.mxu0
      %v6945 = vadd.f32 %v6922, %v6944
      %6946 = vmatmul.f32.gmra.mxu0 %v6902
      %v6947 = vpop.f32.mrf.mxu0
      %v6948 = vadd.f32 %v6925, %v6947
      %6949 = vdwg.mxu0
      %v6950 = vadd.f32 %v6863, %v6945
      %v6951 = vadd.f32 %v6864, %v6948
      %s6952 = scalar_lea.vmem %s22, 3328
      %v6953 = vld [vmem:[%s6952] sm:$0xff]
      %v6954 = vld [vmem:[%s6952 + $0x8] sm:$0xff]
      %v6955 = vld [vmem:[%s6952 + $0x10] sm:$0xff]
      %v6956 = vld [vmem:[%s6952 + $0x18] sm:$0xff]
      %v6957 = vld [vmem:[%s6952 + $0x20] sm:$0xff]
      %v6958 = vld [vmem:[%s6952 + $0x28] sm:$0xff]
      %v6959 = vld [vmem:[%s6952 + $0x30] sm:$0xff]
      %v6960 = vld [vmem:[%s6952 + $0x38] sm:$0xff]
      %v6961 = vld [vmem:[%s6952 + $0x40] sm:$0xff]
      %v6962 = vld [vmem:[%s6952 + $0x48] sm:$0xff]
      %v6963 = vld [vmem:[%s6952 + $0x50] sm:$0xff]
      %v6964 = vld [vmem:[%s6952 + $0x58] sm:$0xff]
      %v6965 = vld [vmem:[%s6952 + $0x60] sm:$0xff]
      %v6966 = vld [vmem:[%s6952 + $0x68] sm:$0xff]
      %v6967 = vld [vmem:[%s6952 + $0x70] sm:$0xff]
      %v6968 = vld [vmem:[%s6952 + $0x78] sm:$0xff]
      %v6969 = vld [vmem:[%s6952 + $0x80] sm:$0xff]
      %v6970 = vld [vmem:[%s6952 + $0x88] sm:$0xff]
      %v6971 = vld [vmem:[%s6952 + $0x90] sm:$0xff]
      %v6972 = vld [vmem:[%s6952 + $0x98] sm:$0xff]
      %v6973 = vld [vmem:[%s6952 + $0xa0] sm:$0xff]
      %v6974 = vld [vmem:[%s6952 + $0xa8] sm:$0xff]
      %v6975 = vld [vmem:[%s6952 + $0xb0] sm:$0xff]
      %v6976 = vld [vmem:[%s6952 + $0xb8] sm:$0xff]
      %v6977 = vld [vmem:[%s6952 + $0xc0] sm:$0xff]
      %v6978 = vld [vmem:[%s6952 + $0xc8] sm:$0xff]
      %6979 = vrot.lane.b32.xlu0 %v6894, 112
      %v6980 = vpop.permute.xlu0 %6979
      %6981 = vrot.lane.b32.xlu0 %v6897, 112
      %v6982 = vpop.permute.xlu0 %6981
      %6983 = vrot.lane.b32.xlu0 %v6893, 112
      %v6984 = vpop.permute.xlu0 %6983
      %6985 = vrot.lane.b32.xlu0 %v6896, 112
      %v6986 = vpop.permute.xlu0 %6985
      %v6987 = vsel %vm4587, %v6980, %v6982
      %v6988 = vsel %vm4587, %v6984, %v6986
      %v6991 = vsel %vm5561, %v6982, 0
      %v6993 = vsel %vm5561, %v6986, 0
      %6995 = vmatpush.msra.mxu0 %v6968
      %6996 = vmatpush.msra.mxu0 %v6967
      %6997 = vmatpush.msra.mxu0 %v6966
      %6998 = vmatpush.msra.mxu0 %v6965
      %6999 = vmatpush.msra.mxu0 %v6964
      %7000 = vmatpush.msra.mxu0 %v6963
      %7001 = vmatpush.msra.mxu0 %v6962
      %7002 = vmatpush.msra.mxu0 %v6961
      %7003 = vmatpush.msra.mxu0 %v6960
      %7004 = vmatpush.msra.mxu0 %v6959
      %7005 = vmatpush.msra.mxu0 %v6958
      %7006 = vmatpush.msra.mxu0 %v6957
      %7007 = vmatpush.msra.mxu0 %v6956
      %7008 = vmatpush.msra.mxu0 %v6955
      %7009 = vmatpush.msra.mxu0 %v6954
      %7010 = vmatpush.msra.mxu0 %v6953
      %7011 = vmatmul.f32.gmra.mxu0 %v6987
      %v7012 = vpop.f32.mrf.mxu0
      %v7013 = vadd.f32 0.0, %v7012
      %7014 = vmatmul.f32.gmra.mxu0 %v6988
      %v7015 = vpop.f32.mrf.mxu0
      %v7016 = vadd.f32 0.0, %v7015
      %7017 = vdwg.mxu0
      %7018 = vmatpush.msra.mxu0 0.0
      %7019 = vmatpush.msra.mxu0 0.0
      %7020 = vmatpush.msra.mxu0 0.0
      %7021 = vmatpush.msra.mxu0 0.0
      %7022 = vmatpush.msra.mxu0 0.0
      %7023 = vmatpush.msra.mxu0 0.0
      %7024 = vmatpush.msra.mxu0 %v6978
      %7025 = vmatpush.msra.mxu0 %v6977
      %7026 = vmatpush.msra.mxu0 %v6976
      %7027 = vmatpush.msra.mxu0 %v6975
      %7028 = vmatpush.msra.mxu0 %v6974
      %7029 = vmatpush.msra.mxu0 %v6973
      %7030 = vmatpush.msra.mxu0 %v6972
      %7031 = vmatpush.msra.mxu0 %v6971
      %7032 = vmatpush.msra.mxu0 %v6970
      %7033 = vmatpush.msra.mxu0 %v6969
      %7034 = vmatmul.f32.gmra.mxu0 %v6991
      %v7035 = vpop.f32.mrf.mxu0
      %v7036 = vadd.f32 %v7013, %v7035
      %7037 = vmatmul.f32.gmra.mxu0 %v6993
      %v7038 = vpop.f32.mrf.mxu0
      %v7039 = vadd.f32 %v7016, %v7038
      %7040 = vdwg.mxu0
      %v7041 = vadd.f32 %v6950, %v7036
      %v7042 = vadd.f32 %v6951, %v7039
      %s7043 = scalar_lea.vmem %s22, 3536
      %v7044 = vld [vmem:[%s7043] sm:$0xff]
      %v7045 = vld [vmem:[%s7043 + $0x8] sm:$0xff]
      %v7046 = vld [vmem:[%s7043 + $0x10] sm:$0xff]
      %v7047 = vld [vmem:[%s7043 + $0x18] sm:$0xff]
      %v7048 = vld [vmem:[%s7043 + $0x20] sm:$0xff]
      %v7049 = vld [vmem:[%s7043 + $0x28] sm:$0xff]
      %v7050 = vld [vmem:[%s7043 + $0x30] sm:$0xff]
      %v7051 = vld [vmem:[%s7043 + $0x38] sm:$0xff]
      %v7052 = vld [vmem:[%s7043 + $0x40] sm:$0xff]
      %v7053 = vld [vmem:[%s7043 + $0x48] sm:$0xff]
      %v7054 = vld [vmem:[%s7043 + $0x50] sm:$0xff]
      %v7055 = vld [vmem:[%s7043 + $0x58] sm:$0xff]
      %v7056 = vld [vmem:[%s7043 + $0x60] sm:$0xff]
      %v7057 = vld [vmem:[%s7043 + $0x68] sm:$0xff]
      %v7058 = vld [vmem:[%s7043 + $0x70] sm:$0xff]
      %v7059 = vld [vmem:[%s7043 + $0x78] sm:$0xff]
      %v7060 = vld [vmem:[%s7043 + $0x80] sm:$0xff]
      %v7061 = vld [vmem:[%s7043 + $0x88] sm:$0xff]
      %v7062 = vld [vmem:[%s7043 + $0x90] sm:$0xff]
      %v7063 = vld [vmem:[%s7043 + $0x98] sm:$0xff]
      %v7064 = vld [vmem:[%s7043 + $0xa0] sm:$0xff]
      %v7065 = vld [vmem:[%s7043 + $0xa8] sm:$0xff]
      %v7066 = vld [vmem:[%s7043 + $0xb0] sm:$0xff]
      %v7067 = vld [vmem:[%s7043 + $0xb8] sm:$0xff]
      %v7068 = vld [vmem:[%s7043 + $0xc0] sm:$0xff]
      %v7069 = vld [vmem:[%s7043 + $0xc8] sm:$0xff]
      %7070 = vrot.lane.b32.xlu0 %v6894, 96
      %v7071 = vpop.permute.xlu0 %7070
      %7072 = vrot.lane.b32.xlu0 %v6897, 96
      %v7073 = vpop.permute.xlu0 %7072
      %7074 = vrot.lane.b32.xlu0 %v6893, 96
      %v7075 = vpop.permute.xlu0 %7074
      %7076 = vrot.lane.b32.xlu0 %v6896, 96
      %v7077 = vpop.permute.xlu0 %7076
      %v7078 = vsel %vm5697, %v7071, %v7073
      %v7079 = vsel %vm5697, %v7075, %v7077
      %v7082 = vsel %vm5561, %v7073, 0
      %v7084 = vsel %vm5561, %v7077, 0
      %7086 = vmatpush.msra.mxu0 %v7059
      %7087 = vmatpush.msra.mxu0 %v7058
      %7088 = vmatpush.msra.mxu0 %v7057
      %7089 = vmatpush.msra.mxu0 %v7056
      %7090 = vmatpush.msra.mxu0 %v7055
      %7091 = vmatpush.msra.mxu0 %v7054
      %7092 = vmatpush.msra.mxu0 %v7053
      %7093 = vmatpush.msra.mxu0 %v7052
      %7094 = vmatpush.msra.mxu0 %v7051
      %7095 = vmatpush.msra.mxu0 %v7050
      %7096 = vmatpush.msra.mxu0 %v7049
      %7097 = vmatpush.msra.mxu0 %v7048
      %7098 = vmatpush.msra.mxu0 %v7047
      %7099 = vmatpush.msra.mxu0 %v7046
      %7100 = vmatpush.msra.mxu0 %v7045
      %7101 = vmatpush.msra.mxu0 %v7044
      %7102 = vmatmul.f32.gmra.mxu0 %v7078
      %v7103 = vpop.f32.mrf.mxu0
      %v7104 = vadd.f32 0.0, %v7103
      %7105 = vmatmul.f32.gmra.mxu0 %v7079
      %v7106 = vpop.f32.mrf.mxu0
      %v7107 = vadd.f32 0.0, %v7106
      %7108 = vdwg.mxu0
      %7109 = vmatpush.msra.mxu0 0.0
      %7110 = vmatpush.msra.mxu0 0.0
      %7111 = vmatpush.msra.mxu0 0.0
      %7112 = vmatpush.msra.mxu0 0.0
      %7113 = vmatpush.msra.mxu0 0.0
      %7114 = vmatpush.msra.mxu0 0.0
      %7115 = vmatpush.msra.mxu0 %v7069
      %7116 = vmatpush.msra.mxu0 %v7068
      %7117 = vmatpush.msra.mxu0 %v7067
      %7118 = vmatpush.msra.mxu0 %v7066
      %7119 = vmatpush.msra.mxu0 %v7065
      %7120 = vmatpush.msra.mxu0 %v7064
      %7121 = vmatpush.msra.mxu0 %v7063
      %7122 = vmatpush.msra.mxu0 %v7062
      %7123 = vmatpush.msra.mxu0 %v7061
      %7124 = vmatpush.msra.mxu0 %v7060
      %7125 = vmatmul.f32.gmra.mxu0 %v7082
      %v7126 = vpop.f32.mrf.mxu0
      %v7127 = vadd.f32 %v7104, %v7126
      %7128 = vmatmul.f32.gmra.mxu0 %v7084
      %v7129 = vpop.f32.mrf.mxu0
      %v7130 = vadd.f32 %v7107, %v7129
      %7131 = vdwg.mxu0
      %v7132 = vadd.f32 %v7041, %v7127
      %v7133 = vadd.f32 %v7042, %v7130
      %s7134 = scalar_lea.vmem %s22, 3744
      %v7135 = vld [vmem:[%s7134] sm:$0xff]
      %v7136 = vld [vmem:[%s7134 + $0x8] sm:$0xff]
      %v7137 = vld [vmem:[%s7134 + $0x10] sm:$0xff]
      %v7138 = vld [vmem:[%s7134 + $0x18] sm:$0xff]
      %v7139 = vld [vmem:[%s7134 + $0x20] sm:$0xff]
      %v7140 = vld [vmem:[%s7134 + $0x28] sm:$0xff]
      %v7141 = vld [vmem:[%s7134 + $0x30] sm:$0xff]
      %v7142 = vld [vmem:[%s7134 + $0x38] sm:$0xff]
      %v7143 = vld [vmem:[%s7134 + $0x40] sm:$0xff]
      %v7144 = vld [vmem:[%s7134 + $0x48] sm:$0xff]
      %v7145 = vld [vmem:[%s7134 + $0x50] sm:$0xff]
      %v7146 = vld [vmem:[%s7134 + $0x58] sm:$0xff]
      %v7147 = vld [vmem:[%s7134 + $0x60] sm:$0xff]
      %v7148 = vld [vmem:[%s7134 + $0x68] sm:$0xff]
      %v7149 = vld [vmem:[%s7134 + $0x70] sm:$0xff]
      %v7150 = vld [vmem:[%s7134 + $0x78] sm:$0xff]
      %v7151 = vld [vmem:[%s7134 + $0x80] sm:$0xff]
      %v7152 = vld [vmem:[%s7134 + $0x88] sm:$0xff]
      %v7153 = vld [vmem:[%s7134 + $0x90] sm:$0xff]
      %v7154 = vld [vmem:[%s7134 + $0x98] sm:$0xff]
      %v7155 = vld [vmem:[%s7134 + $0xa0] sm:$0xff]
      %v7156 = vld [vmem:[%s7134 + $0xa8] sm:$0xff]
      %v7157 = vld [vmem:[%s7134 + $0xb0] sm:$0xff]
      %v7158 = vld [vmem:[%s7134 + $0xb8] sm:$0xff]
      %v7159 = vld [vmem:[%s7134 + $0xc0] sm:$0xff]
      %v7160 = vld [vmem:[%s7134 + $0xc8] sm:$0xff]
      %7161 = vrot.lane.b32.xlu0 %v6894, 80
      %v7162 = vpop.permute.xlu0 %7161
      %7163 = vrot.lane.b32.xlu0 %v6897, 80
      %v7164 = vpop.permute.xlu0 %7163
      %7165 = vrot.lane.b32.xlu0 %v6893, 80
      %v7166 = vpop.permute.xlu0 %7165
      %7167 = vrot.lane.b32.xlu0 %v6896, 80
      %v7168 = vpop.permute.xlu0 %7167
      %v7169 = vsel %vm5561, %v7162, %v7164
      %v7170 = vsel %vm5561, %v7166, %v7168
      %v7173 = vsel %vm5561, %v7164, 0
      %v7175 = vsel %vm5561, %v7168, 0
      %7177 = vmatpush.msra.mxu0 %v7150
      %7178 = vmatpush.msra.mxu0 %v7149
      %7179 = vmatpush.msra.mxu0 %v7148
      %7180 = vmatpush.msra.mxu0 %v7147
      %7181 = vmatpush.msra.mxu0 %v7146
      %7182 = vmatpush.msra.mxu0 %v7145
      %7183 = vmatpush.msra.mxu0 %v7144
      %7184 = vmatpush.msra.mxu0 %v7143
      %7185 = vmatpush.msra.mxu0 %v7142
      %7186 = vmatpush.msra.mxu0 %v7141
      %7187 = vmatpush.msra.mxu0 %v7140
      %7188 = vmatpush.msra.mxu0 %v7139
      %7189 = vmatpush.msra.mxu0 %v7138
      %7190 = vmatpush.msra.mxu0 %v7137
      %7191 = vmatpush.msra.mxu0 %v7136
      %7192 = vmatpush.msra.mxu0 %v7135
      %7193 = vmatmul.f32.gmra.mxu0 %v7169
      %v7194 = vpop.f32.mrf.mxu0
      %v7195 = vadd.f32 0.0, %v7194
      %7196 = vmatmul.f32.gmra.mxu0 %v7170
      %v7197 = vpop.f32.mrf.mxu0
      %v7198 = vadd.f32 0.0, %v7197
      %7199 = vdwg.mxu0
      %7200 = vmatpush.msra.mxu0 0.0
      %7201 = vmatpush.msra.mxu0 0.0
      %7202 = vmatpush.msra.mxu0 0.0
      %7203 = vmatpush.msra.mxu0 0.0
      %7204 = vmatpush.msra.mxu0 0.0
      %7205 = vmatpush.msra.mxu0 0.0
      %7206 = vmatpush.msra.mxu0 %v7160
      %7207 = vmatpush.msra.mxu0 %v7159
      %7208 = vmatpush.msra.mxu0 %v7158
      %7209 = vmatpush.msra.mxu0 %v7157
      %7210 = vmatpush.msra.mxu0 %v7156
      %7211 = vmatpush.msra.mxu0 %v7155
      %7212 = vmatpush.msra.mxu0 %v7154
      %7213 = vmatpush.msra.mxu0 %v7153
      %7214 = vmatpush.msra.mxu0 %v7152
      %7215 = vmatpush.msra.mxu0 %v7151
      %7216 = vmatmul.f32.gmra.mxu0 %v7173
      %v7217 = vpop.f32.mrf.mxu0
      %v7218 = vadd.f32 %v7195, %v7217
      %7219 = vmatmul.f32.gmra.mxu0 %v7175
      %v7220 = vpop.f32.mrf.mxu0
      %v7221 = vadd.f32 %v7198, %v7220
      %7222 = vdwg.mxu0
      %v7223 = vadd.f32 %v7132, %v7218
      %v7224 = vadd.f32 %v7133, %v7221
      %s7225 = scalar_lea.vmem %s22, 3952
      %v7226 = vld [vmem:[%s7225] sm:$0xff]
      %v7227 = vld [vmem:[%s7225 + $0x8] sm:$0xff]
      %v7228 = vld [vmem:[%s7225 + $0x10] sm:$0xff]
      %v7229 = vld [vmem:[%s7225 + $0x18] sm:$0xff]
      %v7230 = vld [vmem:[%s7225 + $0x20] sm:$0xff]
      %v7231 = vld [vmem:[%s7225 + $0x28] sm:$0xff]
      %v7232 = vld [vmem:[%s7225 + $0x30] sm:$0xff]
      %v7233 = vld [vmem:[%s7225 + $0x38] sm:$0xff]
      %v7234 = vld [vmem:[%s7225 + $0x40] sm:$0xff]
      %v7235 = vld [vmem:[%s7225 + $0x48] sm:$0xff]
      %v7236 = vld [vmem:[%s7225 + $0x50] sm:$0xff]
      %v7237 = vld [vmem:[%s7225 + $0x58] sm:$0xff]
      %v7238 = vld [vmem:[%s7225 + $0x60] sm:$0xff]
      %v7239 = vld [vmem:[%s7225 + $0x68] sm:$0xff]
      %v7240 = vld [vmem:[%s7225 + $0x70] sm:$0xff]
      %v7241 = vld [vmem:[%s7225 + $0x78] sm:$0xff]
      %v7242 = vld [vmem:[%s7225 + $0x80] sm:$0xff]
      %v7243 = vld [vmem:[%s7225 + $0x88] sm:$0xff]
      %v7244 = vld [vmem:[%s7225 + $0x90] sm:$0xff]
      %v7245 = vld [vmem:[%s7225 + $0x98] sm:$0xff]
      %v7246 = vld [vmem:[%s7225 + $0xa0] sm:$0xff]
      %v7247 = vld [vmem:[%s7225 + $0xa8] sm:$0xff]
      %v7248 = vld [vmem:[%s7225 + $0xb0] sm:$0xff]
      %v7249 = vld [vmem:[%s7225 + $0xb8] sm:$0xff]
      %v7250 = vld [vmem:[%s7225 + $0xc0] sm:$0xff]
      %v7251 = vld [vmem:[%s7225 + $0xc8] sm:$0xff]
      %v7252 = vrot.slane %v5484, 3
      %v7253 = vrot.slane %v5487, 3
      %v7254 = vsel %vm3579, %v7252, %v7253
      %7255 = vrot.lane.b32.xlu0 %v6894, 64
      %v7256 = vpop.permute.xlu0 %7255
      %7257 = vrot.lane.b32.xlu0 %v6897, 64
      %v7258 = vpop.permute.xlu0 %7257
      %7259 = vrot.lane.b32.xlu0 %v7254, 64
      %v7260 = vpop.permute.xlu0 %7259
      %7261 = vrot.lane.b32.xlu0 %v6893, 64
      %v7262 = vpop.permute.xlu0 %7261
      %7263 = vrot.lane.b32.xlu0 %v6896, 64
      %v7264 = vpop.permute.xlu0 %7263
      %7265 = vrot.lane.b32.xlu0 %v7253, 64
      %v7266 = vpop.permute.xlu0 %7265
      %v7267 = vsel %vm5886, %v7256, %v7258
      %v7268 = vsel %vm5886, %v7258, %v7260
      %v7269 = vsel %vm5886, %v7262, %v7264
      %v7270 = vsel %vm5886, %v7264, %v7266
      %v7273 = vsel %vm5561, %v7268, 0
      %v7275 = vsel %vm5561, %v7270, 0
      %7277 = vmatpush.msra.mxu0 %v7241
      %7278 = vmatpush.msra.mxu0 %v7240
      %7279 = vmatpush.msra.mxu0 %v7239
      %7280 = vmatpush.msra.mxu0 %v7238
      %7281 = vmatpush.msra.mxu0 %v7237
      %7282 = vmatpush.msra.mxu0 %v7236
      %7283 = vmatpush.msra.mxu0 %v7235
      %7284 = vmatpush.msra.mxu0 %v7234
      %7285 = vmatpush.msra.mxu0 %v7233
      %7286 = vmatpush.msra.mxu0 %v7232
      %7287 = vmatpush.msra.mxu0 %v7231
      %7288 = vmatpush.msra.mxu0 %v7230
      %7289 = vmatpush.msra.mxu0 %v7229
      %7290 = vmatpush.msra.mxu0 %v7228
      %7291 = vmatpush.msra.mxu0 %v7227
      %7292 = vmatpush.msra.mxu0 %v7226
      %7293 = vmatmul.f32.gmra.mxu0 %v7267
      %v7294 = vpop.f32.mrf.mxu0
      %v7295 = vadd.f32 0.0, %v7294
      %7296 = vmatmul.f32.gmra.mxu0 %v7269
      %v7297 = vpop.f32.mrf.mxu0
      %v7298 = vadd.f32 0.0, %v7297
      %7299 = vdwg.mxu0
      %7300 = vmatpush.msra.mxu0 0.0
      %7301 = vmatpush.msra.mxu0 0.0
      %7302 = vmatpush.msra.mxu0 0.0
      %7303 = vmatpush.msra.mxu0 0.0
      %7304 = vmatpush.msra.mxu0 0.0
      %7305 = vmatpush.msra.mxu0 0.0
      %7306 = vmatpush.msra.mxu0 %v7251
      %7307 = vmatpush.msra.mxu0 %v7250
      %7308 = vmatpush.msra.mxu0 %v7249
      %7309 = vmatpush.msra.mxu0 %v7248
      %7310 = vmatpush.msra.mxu0 %v7247
      %7311 = vmatpush.msra.mxu0 %v7246
      %7312 = vmatpush.msra.mxu0 %v7245
      %7313 = vmatpush.msra.mxu0 %v7244
      %7314 = vmatpush.msra.mxu0 %v7243
      %7315 = vmatpush.msra.mxu0 %v7242
      %7316 = vmatmul.f32.gmra.mxu0 %v7273
      %v7317 = vpop.f32.mrf.mxu0
      %v7318 = vadd.f32 %v7295, %v7317
      %7319 = vmatmul.f32.gmra.mxu0 %v7275
      %v7320 = vpop.f32.mrf.mxu0
      %v7321 = vadd.f32 %v7298, %v7320
      %7322 = vdwg.mxu0
      %v7323 = vadd.f32 %v7223, %v7318
      %v7324 = vadd.f32 %v7224, %v7321
      %s7325 = scalar_lea.vmem %s22, 4160
      %v7326 = vld [vmem:[%s7325] sm:$0xff]
      %v7327 = vld [vmem:[%s7325 + $0x8] sm:$0xff]
      %v7328 = vld [vmem:[%s7325 + $0x10] sm:$0xff]
      %v7329 = vld [vmem:[%s7325 + $0x18] sm:$0xff]
      %v7330 = vld [vmem:[%s7325 + $0x20] sm:$0xff]
      %v7331 = vld [vmem:[%s7325 + $0x28] sm:$0xff]
      %v7332 = vld [vmem:[%s7325 + $0x30] sm:$0xff]
      %v7333 = vld [vmem:[%s7325 + $0x38] sm:$0xff]
      %v7334 = vld [vmem:[%s7325 + $0x40] sm:$0xff]
      %v7335 = vld [vmem:[%s7325 + $0x48] sm:$0xff]
      %v7336 = vld [vmem:[%s7325 + $0x50] sm:$0xff]
      %v7337 = vld [vmem:[%s7325 + $0x58] sm:$0xff]
      %v7338 = vld [vmem:[%s7325 + $0x60] sm:$0xff]
      %v7339 = vld [vmem:[%s7325 + $0x68] sm:$0xff]
      %v7340 = vld [vmem:[%s7325 + $0x70] sm:$0xff]
      %v7341 = vld [vmem:[%s7325 + $0x78] sm:$0xff]
      %v7342 = vld [vmem:[%s7325 + $0x80] sm:$0xff]
      %v7343 = vld [vmem:[%s7325 + $0x88] sm:$0xff]
      %v7344 = vld [vmem:[%s7325 + $0x90] sm:$0xff]
      %v7345 = vld [vmem:[%s7325 + $0x98] sm:$0xff]
      %v7346 = vld [vmem:[%s7325 + $0xa0] sm:$0xff]
      %v7347 = vld [vmem:[%s7325 + $0xa8] sm:$0xff]
      %v7348 = vld [vmem:[%s7325 + $0xb0] sm:$0xff]
      %v7349 = vld [vmem:[%s7325 + $0xb8] sm:$0xff]
      %v7350 = vld [vmem:[%s7325 + $0xc0] sm:$0xff]
      %v7351 = vld [vmem:[%s7325 + $0xc8] sm:$0xff]
      %v7354 = vrot.slane %v5432, 4
      %v7355 = vrot.slane %v5435, 4
      %v7356 = vsel %vm2019, %v7354, %v7355
      %v7357 = vrot.slane %v5458, 4
      %v7358 = vrot.slane %v5461, 4
      %v7359 = vsel %vm2019, %v7357, %v7358
      %v7360 = vrot.slane %v5438, 4
      %v7361 = vsel %vm2019, %v7355, %v7360
      %v7362 = vrot.slane %v5464, 4
      %v7363 = vsel %vm2019, %v7358, %v7362
      %v7366 = vsel %vm5561, %v7359, 0
      %v7368 = vsel %vm5561, %v7363, 0
      %7370 = vmatpush.msra.mxu0 %v7341
      %7371 = vmatpush.msra.mxu0 %v7340
      %7372 = vmatpush.msra.mxu0 %v7339
      %7373 = vmatpush.msra.mxu0 %v7338
      %7374 = vmatpush.msra.mxu0 %v7337
      %7375 = vmatpush.msra.mxu0 %v7336
      %7376 = vmatpush.msra.mxu0 %v7335
      %7377 = vmatpush.msra.mxu0 %v7334
      %7378 = vmatpush.msra.mxu0 %v7333
      %7379 = vmatpush.msra.mxu0 %v7332
      %7380 = vmatpush.msra.mxu0 %v7331
      %7381 = vmatpush.msra.mxu0 %v7330
      %7382 = vmatpush.msra.mxu0 %v7329
      %7383 = vmatpush.msra.mxu0 %v7328
      %7384 = vmatpush.msra.mxu0 %v7327
      %7385 = vmatpush.msra.mxu0 %v7326
      %7386 = vmatmul.f32.gmra.mxu0 %v7356
      %v7387 = vpop.f32.mrf.mxu0
      %v7388 = vadd.f32 0.0, %v7387
      %7389 = vmatmul.f32.gmra.mxu0 %v7361
      %v7390 = vpop.f32.mrf.mxu0
      %v7391 = vadd.f32 0.0, %v7390
      %7392 = vdwg.mxu0
      %7393 = vmatpush.msra.mxu0 0.0
      %7394 = vmatpush.msra.mxu0 0.0
      %7395 = vmatpush.msra.mxu0 0.0
      %7396 = vmatpush.msra.mxu0 0.0
      %7397 = vmatpush.msra.mxu0 0.0
      %7398 = vmatpush.msra.mxu0 0.0
      %7399 = vmatpush.msra.mxu0 %v7351
      %7400 = vmatpush.msra.mxu0 %v7350
      %7401 = vmatpush.msra.mxu0 %v7349
      %7402 = vmatpush.msra.mxu0 %v7348
      %7403 = vmatpush.msra.mxu0 %v7347
      %7404 = vmatpush.msra.mxu0 %v7346
      %7405 = vmatpush.msra.mxu0 %v7345
      %7406 = vmatpush.msra.mxu0 %v7344
      %7407 = vmatpush.msra.mxu0 %v7343
      %7408 = vmatpush.msra.mxu0 %v7342
      %7409 = vmatmul.f32.gmra.mxu0 %v7366
      %v7410 = vpop.f32.mrf.mxu0
      %v7411 = vadd.f32 %v7388, %v7410
      %7412 = vmatmul.f32.gmra.mxu0 %v7368
      %v7413 = vpop.f32.mrf.mxu0
      %v7414 = vadd.f32 %v7391, %v7413
      %7415 = vdwg.mxu0
      %v7416 = vadd.f32 %v7323, %v7411
      %v7417 = vadd.f32 %v7324, %v7414
      %s7418 = scalar_lea.vmem %s22, 4368
      %v7419 = vld [vmem:[%s7418] sm:$0xff]
      %v7420 = vld [vmem:[%s7418 + $0x8] sm:$0xff]
      %v7421 = vld [vmem:[%s7418 + $0x10] sm:$0xff]
      %v7422 = vld [vmem:[%s7418 + $0x18] sm:$0xff]
      %v7423 = vld [vmem:[%s7418 + $0x20] sm:$0xff]
      %v7424 = vld [vmem:[%s7418 + $0x28] sm:$0xff]
      %v7425 = vld [vmem:[%s7418 + $0x30] sm:$0xff]
      %v7426 = vld [vmem:[%s7418 + $0x38] sm:$0xff]
      %v7427 = vld [vmem:[%s7418 + $0x40] sm:$0xff]
      %v7428 = vld [vmem:[%s7418 + $0x48] sm:$0xff]
      %v7429 = vld [vmem:[%s7418 + $0x50] sm:$0xff]
      %v7430 = vld [vmem:[%s7418 + $0x58] sm:$0xff]
      %v7431 = vld [vmem:[%s7418 + $0x60] sm:$0xff]
      %v7432 = vld [vmem:[%s7418 + $0x68] sm:$0xff]
      %v7433 = vld [vmem:[%s7418 + $0x70] sm:$0xff]
      %v7434 = vld [vmem:[%s7418 + $0x78] sm:$0xff]
      %v7435 = vld [vmem:[%s7418 + $0x80] sm:$0xff]
      %v7436 = vld [vmem:[%s7418 + $0x88] sm:$0xff]
      %v7437 = vld [vmem:[%s7418 + $0x90] sm:$0xff]
      %v7438 = vld [vmem:[%s7418 + $0x98] sm:$0xff]
      %v7439 = vld [vmem:[%s7418 + $0xa0] sm:$0xff]
      %v7440 = vld [vmem:[%s7418 + $0xa8] sm:$0xff]
      %v7441 = vld [vmem:[%s7418 + $0xb0] sm:$0xff]
      %v7442 = vld [vmem:[%s7418 + $0xb8] sm:$0xff]
      %v7443 = vld [vmem:[%s7418 + $0xc0] sm:$0xff]
      %v7444 = vld [vmem:[%s7418 + $0xc8] sm:$0xff]
      %7445 = vrot.lane.b32.xlu0 %v7356, 112
      %v7446 = vpop.permute.xlu0 %7445
      %7447 = vrot.lane.b32.xlu0 %v7359, 112
      %v7448 = vpop.permute.xlu0 %7447
      %7449 = vrot.lane.b32.xlu0 %v7361, 112
      %v7450 = vpop.permute.xlu0 %7449
      %7451 = vrot.lane.b32.xlu0 %v7363, 112
      %v7452 = vpop.permute.xlu0 %7451
      %v7453 = vsel %vm4587, %v7446, %v7448
      %v7454 = vsel %vm4587, %v7450, %v7452
      %v7457 = vsel %vm5561, %v7448, 0
      %v7459 = vsel %vm5561, %v7452, 0
      %7461 = vmatpush.msra.mxu0 %v7434
      %7462 = vmatpush.msra.mxu0 %v7433
      %7463 = vmatpush.msra.mxu0 %v7432
      %7464 = vmatpush.msra.mxu0 %v7431
      %7465 = vmatpush.msra.mxu0 %v7430
      %7466 = vmatpush.msra.mxu0 %v7429
      %7467 = vmatpush.msra.mxu0 %v7428
      %7468 = vmatpush.msra.mxu0 %v7427
      %7469 = vmatpush.msra.mxu0 %v7426
      %7470 = vmatpush.msra.mxu0 %v7425
      %7471 = vmatpush.msra.mxu0 %v7424
      %7472 = vmatpush.msra.mxu0 %v7423
      %7473 = vmatpush.msra.mxu0 %v7422
      %7474 = vmatpush.msra.mxu0 %v7421
      %7475 = vmatpush.msra.mxu0 %v7420
      %7476 = vmatpush.msra.mxu0 %v7419
      %7477 = vmatmul.f32.gmra.mxu0 %v7453
      %v7478 = vpop.f32.mrf.mxu0
      %v7479 = vadd.f32 0.0, %v7478
      %7480 = vmatmul.f32.gmra.mxu0 %v7454
      %v7481 = vpop.f32.mrf.mxu0
      %v7482 = vadd.f32 0.0, %v7481
      %7483 = vdwg.mxu0
      %7484 = vmatpush.msra.mxu0 0.0
      %7485 = vmatpush.msra.mxu0 0.0
      %7486 = vmatpush.msra.mxu0 0.0
      %7487 = vmatpush.msra.mxu0 0.0
      %7488 = vmatpush.msra.mxu0 0.0
      %7489 = vmatpush.msra.mxu0 0.0
      %7490 = vmatpush.msra.mxu0 %v7444
      %7491 = vmatpush.msra.mxu0 %v7443
      %7492 = vmatpush.msra.mxu0 %v7442
      %7493 = vmatpush.msra.mxu0 %v7441
      %7494 = vmatpush.msra.mxu0 %v7440
      %7495 = vmatpush.msra.mxu0 %v7439
      %7496 = vmatpush.msra.mxu0 %v7438
      %7497 = vmatpush.msra.mxu0 %v7437
      %7498 = vmatpush.msra.mxu0 %v7436
      %7499 = vmatpush.msra.mxu0 %v7435
      %7500 = vmatmul.f32.gmra.mxu0 %v7457
      %v7501 = vpop.f32.mrf.mxu0
      %v7502 = vadd.f32 %v7479, %v7501
      %7503 = vmatmul.f32.gmra.mxu0 %v7459
      %v7504 = vpop.f32.mrf.mxu0
      %v7505 = vadd.f32 %v7482, %v7504
      %7506 = vdwg.mxu0
      %v7507 = vadd.f32 %v7416, %v7502
      %v7508 = vadd.f32 %v7417, %v7505
      %s7509 = scalar_lea.vmem %s22, 4576
      %v7510 = vld [vmem:[%s7509] sm:$0xff]
      %v7511 = vld [vmem:[%s7509 + $0x8] sm:$0xff]
      %v7512 = vld [vmem:[%s7509 + $0x10] sm:$0xff]
      %v7513 = vld [vmem:[%s7509 + $0x18] sm:$0xff]
      %v7514 = vld [vmem:[%s7509 + $0x20] sm:$0xff]
      %v7515 = vld [vmem:[%s7509 + $0x28] sm:$0xff]
      %v7516 = vld [vmem:[%s7509 + $0x30] sm:$0xff]
      %v7517 = vld [vmem:[%s7509 + $0x38] sm:$0xff]
      %v7518 = vld [vmem:[%s7509 + $0x40] sm:$0xff]
      %v7519 = vld [vmem:[%s7509 + $0x48] sm:$0xff]
      %v7520 = vld [vmem:[%s7509 + $0x50] sm:$0xff]
      %v7521 = vld [vmem:[%s7509 + $0x58] sm:$0xff]
      %v7522 = vld [vmem:[%s7509 + $0x60] sm:$0xff]
      %v7523 = vld [vmem:[%s7509 + $0x68] sm:$0xff]
      %v7524 = vld [vmem:[%s7509 + $0x70] sm:$0xff]
      %v7525 = vld [vmem:[%s7509 + $0x78] sm:$0xff]
      %v7526 = vld [vmem:[%s7509 + $0x80] sm:$0xff]
      %v7527 = vld [vmem:[%s7509 + $0x88] sm:$0xff]
      %v7528 = vld [vmem:[%s7509 + $0x90] sm:$0xff]
      %v7529 = vld [vmem:[%s7509 + $0x98] sm:$0xff]
      %v7530 = vld [vmem:[%s7509 + $0xa0] sm:$0xff]
      %v7531 = vld [vmem:[%s7509 + $0xa8] sm:$0xff]
      %v7532 = vld [vmem:[%s7509 + $0xb0] sm:$0xff]
      %v7533 = vld [vmem:[%s7509 + $0xb8] sm:$0xff]
      %v7534 = vld [vmem:[%s7509 + $0xc0] sm:$0xff]
      %v7535 = vld [vmem:[%s7509 + $0xc8] sm:$0xff]
      %7536 = vrot.lane.b32.xlu0 %v7356, 96
      %v7537 = vpop.permute.xlu0 %7536
      %7538 = vrot.lane.b32.xlu0 %v7359, 96
      %v7539 = vpop.permute.xlu0 %7538
      %7540 = vrot.lane.b32.xlu0 %v7361, 96
      %v7541 = vpop.permute.xlu0 %7540
      %7542 = vrot.lane.b32.xlu0 %v7363, 96
      %v7543 = vpop.permute.xlu0 %7542
      %v7544 = vsel %vm5697, %v7537, %v7539
      %v7545 = vsel %vm5697, %v7541, %v7543
      %v7548 = vsel %vm5561, %v7539, 0
      %v7550 = vsel %vm5561, %v7543, 0
      %7552 = vmatpush.msra.mxu0 %v7525
      %7553 = vmatpush.msra.mxu0 %v7524
      %7554 = vmatpush.msra.mxu0 %v7523
      %7555 = vmatpush.msra.mxu0 %v7522
      %7556 = vmatpush.msra.mxu0 %v7521
      %7557 = vmatpush.msra.mxu0 %v7520
      %7558 = vmatpush.msra.mxu0 %v7519
      %7559 = vmatpush.msra.mxu0 %v7518
      %7560 = vmatpush.msra.mxu0 %v7517
      %7561 = vmatpush.msra.mxu0 %v7516
      %7562 = vmatpush.msra.mxu0 %v7515
      %7563 = vmatpush.msra.mxu0 %v7514
      %7564 = vmatpush.msra.mxu0 %v7513
      %7565 = vmatpush.msra.mxu0 %v7512
      %7566 = vmatpush.msra.mxu0 %v7511
      %7567 = vmatpush.msra.mxu0 %v7510
      %7568 = vmatmul.f32.gmra.mxu0 %v7544
      %v7569 = vpop.f32.mrf.mxu0
      %v7570 = vadd.f32 0.0, %v7569
      %7571 = vmatmul.f32.gmra.mxu0 %v7545
      %v7572 = vpop.f32.mrf.mxu0
      %v7573 = vadd.f32 0.0, %v7572
      %7574 = vdwg.mxu0
      %7575 = vmatpush.msra.mxu0 0.0
      %7576 = vmatpush.msra.mxu0 0.0
      %7577 = vmatpush.msra.mxu0 0.0
      %7578 = vmatpush.msra.mxu0 0.0
      %7579 = vmatpush.msra.mxu0 0.0
      %7580 = vmatpush.msra.mxu0 0.0
      %7581 = vmatpush.msra.mxu0 %v7535
      %7582 = vmatpush.msra.mxu0 %v7534
      %7583 = vmatpush.msra.mxu0 %v7533
      %7584 = vmatpush.msra.mxu0 %v7532
      %7585 = vmatpush.msra.mxu0 %v7531
      %7586 = vmatpush.msra.mxu0 %v7530
      %7587 = vmatpush.msra.mxu0 %v7529
      %7588 = vmatpush.msra.mxu0 %v7528
      %7589 = vmatpush.msra.mxu0 %v7527
      %7590 = vmatpush.msra.mxu0 %v7526
      %7591 = vmatmul.f32.gmra.mxu0 %v7548
      %v7592 = vpop.f32.mrf.mxu0
      %v7593 = vadd.f32 %v7570, %v7592
      %7594 = vmatmul.f32.gmra.mxu0 %v7550
      %v7595 = vpop.f32.mrf.mxu0
      %v7596 = vadd.f32 %v7573, %v7595
      %7597 = vdwg.mxu0
      %v7598 = vadd.f32 %v7507, %v7593
      %v7599 = vadd.f32 %v7508, %v7596
      %s7600 = scalar_lea.vmem %s22, 4784
      %v7601 = vld [vmem:[%s7600] sm:$0xff]
      %v7602 = vld [vmem:[%s7600 + $0x8] sm:$0xff]
      %v7603 = vld [vmem:[%s7600 + $0x10] sm:$0xff]
      %v7604 = vld [vmem:[%s7600 + $0x18] sm:$0xff]
      %v7605 = vld [vmem:[%s7600 + $0x20] sm:$0xff]
      %v7606 = vld [vmem:[%s7600 + $0x28] sm:$0xff]
      %v7607 = vld [vmem:[%s7600 + $0x30] sm:$0xff]
      %v7608 = vld [vmem:[%s7600 + $0x38] sm:$0xff]
      %v7609 = vld [vmem:[%s7600 + $0x40] sm:$0xff]
      %v7610 = vld [vmem:[%s7600 + $0x48] sm:$0xff]
      %v7611 = vld [vmem:[%s7600 + $0x50] sm:$0xff]
      %v7612 = vld [vmem:[%s7600 + $0x58] sm:$0xff]
      %v7613 = vld [vmem:[%s7600 + $0x60] sm:$0xff]
      %v7614 = vld [vmem:[%s7600 + $0x68] sm:$0xff]
      %v7615 = vld [vmem:[%s7600 + $0x70] sm:$0xff]
      %v7616 = vld [vmem:[%s7600 + $0x78] sm:$0xff]
      %v7617 = vld [vmem:[%s7600 + $0x80] sm:$0xff]
      %v7618 = vld [vmem:[%s7600 + $0x88] sm:$0xff]
      %v7619 = vld [vmem:[%s7600 + $0x90] sm:$0xff]
      %v7620 = vld [vmem:[%s7600 + $0x98] sm:$0xff]
      %v7621 = vld [vmem:[%s7600 + $0xa0] sm:$0xff]
      %v7622 = vld [vmem:[%s7600 + $0xa8] sm:$0xff]
      %v7623 = vld [vmem:[%s7600 + $0xb0] sm:$0xff]
      %v7624 = vld [vmem:[%s7600 + $0xb8] sm:$0xff]
      %v7625 = vld [vmem:[%s7600 + $0xc0] sm:$0xff]
      %v7626 = vld [vmem:[%s7600 + $0xc8] sm:$0xff]
      %7627 = vrot.lane.b32.xlu0 %v7356, 80
      %v7628 = vpop.permute.xlu0 %7627
      %7629 = vrot.lane.b32.xlu0 %v7359, 80
      %v7630 = vpop.permute.xlu0 %7629
      %7631 = vrot.lane.b32.xlu0 %v7361, 80
      %v7632 = vpop.permute.xlu0 %7631
      %7633 = vrot.lane.b32.xlu0 %v7363, 80
      %v7634 = vpop.permute.xlu0 %7633
      %v7635 = vsel %vm5561, %v7628, %v7630
      %v7636 = vsel %vm5561, %v7632, %v7634
      %v7639 = vsel %vm5561, %v7630, 0
      %v7641 = vsel %vm5561, %v7634, 0
      %7643 = vmatpush.msra.mxu0 %v7616
      %7644 = vmatpush.msra.mxu0 %v7615
      %7645 = vmatpush.msra.mxu0 %v7614
      %7646 = vmatpush.msra.mxu0 %v7613
      %7647 = vmatpush.msra.mxu0 %v7612
      %7648 = vmatpush.msra.mxu0 %v7611
      %7649 = vmatpush.msra.mxu0 %v7610
      %7650 = vmatpush.msra.mxu0 %v7609
      %7651 = vmatpush.msra.mxu0 %v7608
      %7652 = vmatpush.msra.mxu0 %v7607
      %7653 = vmatpush.msra.mxu0 %v7606
      %7654 = vmatpush.msra.mxu0 %v7605
      %7655 = vmatpush.msra.mxu0 %v7604
      %7656 = vmatpush.msra.mxu0 %v7603
      %7657 = vmatpush.msra.mxu0 %v7602
      %7658 = vmatpush.msra.mxu0 %v7601
      %7659 = vmatmul.f32.gmra.mxu0 %v7635
      %v7660 = vpop.f32.mrf.mxu0
      %v7661 = vadd.f32 0.0, %v7660
      %7662 = vmatmul.f32.gmra.mxu0 %v7636
      %v7663 = vpop.f32.mrf.mxu0
      %v7664 = vadd.f32 0.0, %v7663
      %7665 = vdwg.mxu0
      %7666 = vmatpush.msra.mxu0 0.0
      %7667 = vmatpush.msra.mxu0 0.0
      %7668 = vmatpush.msra.mxu0 0.0
      %7669 = vmatpush.msra.mxu0 0.0
      %7670 = vmatpush.msra.mxu0 0.0
      %7671 = vmatpush.msra.mxu0 0.0
      %7672 = vmatpush.msra.mxu0 %v7626
      %7673 = vmatpush.msra.mxu0 %v7625
      %7674 = vmatpush.msra.mxu0 %v7624
      %7675 = vmatpush.msra.mxu0 %v7623
      %7676 = vmatpush.msra.mxu0 %v7622
      %7677 = vmatpush.msra.mxu0 %v7621
      %7678 = vmatpush.msra.mxu0 %v7620
      %7679 = vmatpush.msra.mxu0 %v7619
      %7680 = vmatpush.msra.mxu0 %v7618
      %7681 = vmatpush.msra.mxu0 %v7617
      %7682 = vmatmul.f32.gmra.mxu0 %v7639
      %v7683 = vpop.f32.mrf.mxu0
      %v7684 = vadd.f32 %v7661, %v7683
      %7685 = vmatmul.f32.gmra.mxu0 %v7641
      %v7686 = vpop.f32.mrf.mxu0
      %v7687 = vadd.f32 %v7664, %v7686
      %7688 = vdwg.mxu0
      %v7689 = vadd.f32 %v7598, %v7684
      %v7690 = vadd.f32 %v7599, %v7687
      %s7691 = scalar_lea.vmem %s22, 4992
      %v7692 = vld [vmem:[%s7691] sm:$0xff]
      %v7693 = vld [vmem:[%s7691 + $0x8] sm:$0xff]
      %v7694 = vld [vmem:[%s7691 + $0x10] sm:$0xff]
      %v7695 = vld [vmem:[%s7691 + $0x18] sm:$0xff]
      %v7696 = vld [vmem:[%s7691 + $0x20] sm:$0xff]
      %v7697 = vld [vmem:[%s7691 + $0x28] sm:$0xff]
      %v7698 = vld [vmem:[%s7691 + $0x30] sm:$0xff]
      %v7699 = vld [vmem:[%s7691 + $0x38] sm:$0xff]
      %v7700 = vld [vmem:[%s7691 + $0x40] sm:$0xff]
      %v7701 = vld [vmem:[%s7691 + $0x48] sm:$0xff]
      %v7702 = vld [vmem:[%s7691 + $0x50] sm:$0xff]
      %v7703 = vld [vmem:[%s7691 + $0x58] sm:$0xff]
      %v7704 = vld [vmem:[%s7691 + $0x60] sm:$0xff]
      %v7705 = vld [vmem:[%s7691 + $0x68] sm:$0xff]
      %v7706 = vld [vmem:[%s7691 + $0x70] sm:$0xff]
      %v7707 = vld [vmem:[%s7691 + $0x78] sm:$0xff]
      %v7708 = vld [vmem:[%s7691 + $0x80] sm:$0xff]
      %v7709 = vld [vmem:[%s7691 + $0x88] sm:$0xff]
      %v7710 = vld [vmem:[%s7691 + $0x90] sm:$0xff]
      %v7711 = vld [vmem:[%s7691 + $0x98] sm:$0xff]
      %v7712 = vld [vmem:[%s7691 + $0xa0] sm:$0xff]
      %v7713 = vld [vmem:[%s7691 + $0xa8] sm:$0xff]
      %v7714 = vld [vmem:[%s7691 + $0xb0] sm:$0xff]
      %v7715 = vld [vmem:[%s7691 + $0xb8] sm:$0xff]
      %v7716 = vld [vmem:[%s7691 + $0xc0] sm:$0xff]
      %v7717 = vld [vmem:[%s7691 + $0xc8] sm:$0xff]
      %v7719 = vrot.slane %v5484, 4
      %v7720 = vrot.slane %v5487, 4
      %v7721 = vsel %vm2019, %v7719, %v7720
      %v7722 = vrot.slane %v5490, 4
      %v7723 = vsel %vm2019, %v7720, %v7722
      %7724 = vrot.lane.b32.xlu0 %v7356, 64
      %v7725 = vpop.permute.xlu0 %7724
      %7726 = vrot.lane.b32.xlu0 %v7359, 64
      %v7727 = vpop.permute.xlu0 %7726
      %7728 = vrot.lane.b32.xlu0 %v7721, 64
      %v7729 = vpop.permute.xlu0 %7728
      %7730 = vrot.lane.b32.xlu0 %v7361, 64
      %v7731 = vpop.permute.xlu0 %7730
      %7732 = vrot.lane.b32.xlu0 %v7363, 64
      %v7733 = vpop.permute.xlu0 %7732
      %7734 = vrot.lane.b32.xlu0 %v7723, 64
      %v7735 = vpop.permute.xlu0 %7734
      %v7736 = vsel %vm5886, %v7725, %v7727
      %v7737 = vsel %vm5886, %v7727, %v7729
      %v7738 = vsel %vm5886, %v7731, %v7733
      %v7739 = vsel %vm5886, %v7733, %v7735
      %v7742 = vsel %vm5561, %v7737, 0
      %v7744 = vsel %vm5561, %v7739, 0
      %7746 = vmatpush.msra.mxu0 %v7707
      %7747 = vmatpush.msra.mxu0 %v7706
      %7748 = vmatpush.msra.mxu0 %v7705
      %7749 = vmatpush.msra.mxu0 %v7704
      %7750 = vmatpush.msra.mxu0 %v7703
      %7751 = vmatpush.msra.mxu0 %v7702
      %7752 = vmatpush.msra.mxu0 %v7701
      %7753 = vmatpush.msra.mxu0 %v7700
      %7754 = vmatpush.msra.mxu0 %v7699
      %7755 = vmatpush.msra.mxu0 %v7698
      %7756 = vmatpush.msra.mxu0 %v7697
      %7757 = vmatpush.msra.mxu0 %v7696
      %7758 = vmatpush.msra.mxu0 %v7695
      %7759 = vmatpush.msra.mxu0 %v7694
      %7760 = vmatpush.msra.mxu0 %v7693
      %7761 = vmatpush.msra.mxu0 %v7692
      %7762 = vmatmul.f32.gmra.mxu0 %v7736
      %v7763 = vpop.f32.mrf.mxu0
      %v7764 = vadd.f32 0.0, %v7763
      %7765 = vmatmul.f32.gmra.mxu0 %v7738
      %v7766 = vpop.f32.mrf.mxu0
      %v7767 = vadd.f32 0.0, %v7766
      %7768 = vdwg.mxu0
      %7769 = vmatpush.msra.mxu0 0.0
      %7770 = vmatpush.msra.mxu0 0.0
      %7771 = vmatpush.msra.mxu0 0.0
      %7772 = vmatpush.msra.mxu0 0.0
      %7773 = vmatpush.msra.mxu0 0.0
      %7774 = vmatpush.msra.mxu0 0.0
      %7775 = vmatpush.msra.mxu0 %v7717
      %7776 = vmatpush.msra.mxu0 %v7716
      %7777 = vmatpush.msra.mxu0 %v7715
      %7778 = vmatpush.msra.mxu0 %v7714
      %7779 = vmatpush.msra.mxu0 %v7713
      %7780 = vmatpush.msra.mxu0 %v7712
      %7781 = vmatpush.msra.mxu0 %v7711
      %7782 = vmatpush.msra.mxu0 %v7710
      %7783 = vmatpush.msra.mxu0 %v7709
      %7784 = vmatpush.msra.mxu0 %v7708
      %7785 = vmatmul.f32.gmra.mxu0 %v7742
      %v7786 = vpop.f32.mrf.mxu0
      %v7787 = vadd.f32 %v7764, %v7786
      %7788 = vmatmul.f32.gmra.mxu0 %v7744
      %v7789 = vpop.f32.mrf.mxu0
      %v7790 = vadd.f32 %v7767, %v7789
      %7791 = vdwg.mxu0
      %v7792 = vadd.f32 %v7689, %v7787
      %v7793 = vadd.f32 %v7690, %v7790
      %v7794 = vld [vmem:[%s23] sm:$0x1]
      %v7796 = vperm.slane %v7794, 0
      %v7798 = vadd.f32 %v7792, %v7796
      %v7799 = vadd.f32 %v7793, %v7796
      %v7800 = vmax.f32 %v7798, 0.0
      %v7801 = vmax.f32 %v7799, 0.0
      %v7802 = vld [vmem:[%s24] sm:$0xff]
      %v7803 = vld [vmem:[%s24 + $0x8] sm:$0xff]
      %v7804 = vld [vmem:[%s24 + $0x10] sm:$0xff]
      %v7805 = vld [vmem:[%s24 + $0x18] sm:$0xff]
      %v7806 = vld [vmem:[%s24 + $0x20] sm:$0x3f]
      %v7807 = vld [vmem:[%s25] sm:$0xff]
      %v7808 = vld [vmem:[%s25 + $0x8] sm:$0xff]
      %v7809 = vld [vmem:[%s25 + $0x10] sm:$0xff]
      %v7810 = vld [vmem:[%s25 + $0x18] sm:$0xff]
      %v7811 = vld [vmem:[%s25 + $0x20] sm:$0xff]
      %v7812 = vld [vmem:[%s25 + $0x28] sm:$0xff]
      %v7813 = vld [vmem:[%s25 + $0x30] sm:$0xff]
      %v7814 = vld [vmem:[%s25 + $0x38] sm:$0xff]
      %v7815 = vld [vmem:[%s25 + $0x40] sm:$0xff]
      %v7816 = vld [vmem:[%s25 + $0x48] sm:$0xff]
      %v7817 = vld [vmem:[%s25 + $0x50] sm:$0xff]
      %v7818 = vld [vmem:[%s25 + $0x58] sm:$0xff]
      %v7819 = vld [vmem:[%s25 + $0x60] sm:$0xff]
      %v7820 = vld [vmem:[%s25 + $0x68] sm:$0xff]
      %v7821 = vld [vmem:[%s25 + $0x70] sm:$0xff]
      %v7822 = vld [vmem:[%s25 + $0x78] sm:$0xff]
      %v7823 = vld [vmem:[%s25 + $0x80] sm:$0xff]
      %v7824 = vld [vmem:[%s25 + $0x88] sm:$0xff]
      %v7825 = vld [vmem:[%s25 + $0x90] sm:$0x3f]
      %v7826 = vld [vmem:[%s25 + $0x98] sm:$0x3f]
      %vm7827 = vcmask 637952
      %v7829 = vsel %vm7827, %v7800, 0
      %v7832 = vsel %vm7827, %v7801, 0
      %v7835 = vsel %vm1534, %v7825, 0
      %v7838 = vsel %vm1534, %v7826, 0
      %7840 = vmatpush.msra.mxu0 0.0
      %7841 = vmatpush.msra.mxu0 0.0
      %7842 = vmatpush.msra.mxu0 0.0
      %7843 = vmatpush.msra.mxu0 0.0
      %7844 = vmatpush.msra.mxu0 0.0
      %7845 = vmatpush.msra.mxu0 0.0
      %7846 = vmatpush.msra.mxu0 %v7835
      %7847 = vmatpush.msra.mxu0 %v7823
      %7848 = vmatpush.msra.mxu0 %v7821
      %7849 = vmatpush.msra.mxu0 %v7819
      %7850 = vmatpush.msra.mxu0 %v7817
      %7851 = vmatpush.msra.mxu0 %v7815
      %7852 = vmatpush.msra.mxu0 %v7813
      %7853 = vmatpush.msra.mxu0 %v7811
      %7854 = vmatpush.msra.mxu0 %v7809
      %7855 = vmatpush.msra.mxu0 %v7807
      %7856 = vmatmul.f32.gmra.mxu0 %v7829
      %v7857 = vpop.f32.mrf.mxu0
      %v7858 = vadd.f32 0.0, %v7857
      %7859 = vmatmul.f32.gmra.mxu0 %v7832
      %v7860 = vpop.f32.mrf.mxu0
      %v7861 = vadd.f32 0.0, %v7860
      %7862 = vdwg.mxu0
      %7863 = vmatpush.msra.mxu0 0.0
      %7864 = vmatpush.msra.mxu0 0.0
      %7865 = vmatpush.msra.mxu0 0.0
      %7866 = vmatpush.msra.mxu0 0.0
      %7867 = vmatpush.msra.mxu0 0.0
      %7868 = vmatpush.msra.mxu0 0.0
      %7869 = vmatpush.msra.mxu0 %v7838
      %7870 = vmatpush.msra.mxu0 %v7824
      %7871 = vmatpush.msra.mxu0 %v7822
      %7872 = vmatpush.msra.mxu0 %v7820
      %7873 = vmatpush.msra.mxu0 %v7818
      %7874 = vmatpush.msra.mxu0 %v7816
      %7875 = vmatpush.msra.mxu0 %v7814
      %7876 = vmatpush.msra.mxu0 %v7812
      %7877 = vmatpush.msra.mxu0 %v7810
      %7878 = vmatpush.msra.mxu0 %v7808
      %7879 = vmatmul.f32.gmra.mxu0 %v7829
      %v7880 = vpop.f32.mrf.mxu0
      %v7881 = vadd.f32 0.0, %v7880
      %7882 = vmatmul.f32.gmra.mxu0 %v7832
      %v7883 = vpop.f32.mrf.mxu0
      %v7884 = vadd.f32 0.0, %v7883
      %7885 = vdwg.mxu0
      %vm7886 = vcmask 105472
      %v7888 = vsel %vm7886, %v7802, 0
      %v7891 = vsel %vm7886, %v7803, 0
      %v7894 = vsel %vm7886, %v7804, 0
      %v7897 = vsel %vm7886, %v7805, 0
      %v7900 = vsel %vm7886, %v7806, 0
      %v7903 = vsel %vm3579, %v7861, 0
      %v7906 = vsel %vm3579, %v7884, 0
      %7908 = vmatpush.msra.mxu0 0.0
      %7909 = vmatpush.msra.mxu0 0.0
      %7910 = vmatpush.msra.mxu0 0.0
      %7911 = vmatpush.msra.mxu0 0.0
      %7912 = vmatpush.msra.mxu0 0.0
      %7913 = vmatpush.msra.mxu0 0.0
      %7914 = vmatpush.msra.mxu0 0.0
      %7915 = vmatpush.msra.mxu0 0.0
      %7916 = vmatpush.msra.mxu0 0.0
      %7917 = vmatpush.msra.mxu0 0.0
      %7918 = vmatpush.msra.mxu0 0.0
      %7919 = vmatpush.msra.mxu0 0.0
      %7920 = vmatpush.msra.mxu0 0.0
      %7921 = vmatpush.msra.mxu0 0.0
      %7922 = vmatpush.msra.mxu0 %v7903
      %7923 = vmatpush.msra.mxu0 %v7858
      %7924 = vmatmul.f32.gmra.mxu0 %v7888
      %v7925 = vpop.f32.mrf.mxu0
      %v7926 = vadd.f32 0.0, %v7925
      %7927 = vmatmul.f32.gmra.mxu0 %v7891
      %v7928 = vpop.f32.mrf.mxu0
      %v7929 = vadd.f32 0.0, %v7928
      %7930 = vmatmul.f32.gmra.mxu0 %v7894
      %v7931 = vpop.f32.mrf.mxu0
      %v7932 = vadd.f32 0.0, %v7931
      %7933 = vmatmul.f32.gmra.mxu0 %v7897
      %v7934 = vpop.f32.mrf.mxu0
      %v7935 = vadd.f32 0.0, %v7934
      %7936 = vmatmul.f32.gmra.mxu0 %v7900
      %v7937 = vpop.f32.mrf.mxu0
      %v7938 = vadd.f32 0.0, %v7937
      %7939 = vdwg.mxu0
      %7940 = vmatpush.msra.mxu0 0.0
      %7941 = vmatpush.msra.mxu0 0.0
      %7942 = vmatpush.msra.mxu0 0.0
      %7943 = vmatpush.msra.mxu0 0.0
      %7944 = vmatpush.msra.mxu0 0.0
      %7945 = vmatpush.msra.mxu0 0.0
      %7946 = vmatpush.msra.mxu0 0.0
      %7947 = vmatpush.msra.mxu0 0.0
      %7948 = vmatpush.msra.mxu0 0.0
      %7949 = vmatpush.msra.mxu0 0.0
      %7950 = vmatpush.msra.mxu0 0.0
      %7951 = vmatpush.msra.mxu0 0.0
      %7952 = vmatpush.msra.mxu0 0.0
      %7953 = vmatpush.msra.mxu0 0.0
      %7954 = vmatpush.msra.mxu0 %v7906
      %7955 = vmatpush.msra.mxu0 %v7881
      %7956 = vmatmul.f32.gmra.mxu0 %v7888
      %v7957 = vpop.f32.mrf.mxu0
      %v7958 = vadd.f32 0.0, %v7957
      %7959 = vmatmul.f32.gmra.mxu0 %v7891
      %v7960 = vpop.f32.mrf.mxu0
      %v7961 = vadd.f32 0.0, %v7960
      %7962 = vmatmul.f32.gmra.mxu0 %v7894
      %v7963 = vpop.f32.mrf.mxu0
      %v7964 = vadd.f32 0.0, %v7963
      %7965 = vmatmul.f32.gmra.mxu0 %v7897
      %v7966 = vpop.f32.mrf.mxu0
      %v7967 = vadd.f32 0.0, %v7966
      %7968 = vmatmul.f32.gmra.mxu0 %v7900
      %v7969 = vpop.f32.mrf.mxu0
      %v7970 = vadd.f32 0.0, %v7969
      %7971 = vdwg.mxu0
      %v7972 = vld [vmem:[%s26] sm:$0xff]
      %v7973 = vld [vmem:[%s26 + $0x8] sm:$0xff]
      %v7974 = vld [vmem:[%s26 + $0x10] sm:$0xff]
      %v7975 = vld [vmem:[%s26 + $0x18] sm:$0xff]
      %v7976 = vld [vmem:[%s26 + $0x20] sm:$0xff]
      %v7977 = vld [vmem:[%s26 + $0x28] sm:$0xff]
      %v7978 = vld [vmem:[%s26 + $0x30] sm:$0xff]
      %v7979 = vld [vmem:[%s26 + $0x38] sm:$0xff]
      %v7980 = vld [vmem:[%s26 + $0x40] sm:$0xff]
      %v7981 = vld [vmem:[%s26 + $0x48] sm:$0xff]
      %v7982 = vld [vmem:[%s26 + $0x50] sm:$0xff]
      %v7983 = vld [vmem:[%s26 + $0x58] sm:$0xff]
      %v7984 = vld [vmem:[%s26 + $0x60] sm:$0xff]
      %v7985 = vld [vmem:[%s26 + $0x68] sm:$0xff]
      %v7986 = vld [vmem:[%s26 + $0x70] sm:$0xff]
      %v7987 = vld [vmem:[%s26 + $0x78] sm:$0xff]
      %v7988 = vld [vmem:[%s26 + $0x80] sm:$0xff]
      %v7989 = vld [vmem:[%s26 + $0x88] sm:$0xff]
      %v7990 = vld [vmem:[%s26 + $0x90] sm:$0xff]
      %v7991 = vld [vmem:[%s26 + $0x98] sm:$0xff]
      %v7992 = vld [vmem:[%s26 + $0xa0] sm:$0xff]
      %v7993 = vld [vmem:[%s26 + $0xa8] sm:$0xff]
      %v7994 = vld [vmem:[%s26 + $0xb0] sm:$0xff]
      %v7995 = vld [vmem:[%s26 + $0xb8] sm:$0xff]
      %s7996 = scalar_lea.vmem %s26, 192
      %v7997 = vld [vmem:[%s7996] sm:$0xff]
      %v7998 = vld [vmem:[%s7996 + $0x8] sm:$0xff]
      %v7999 = vld [vmem:[%s7996 + $0x10] sm:$0xff]
      %v8000 = vld [vmem:[%s7996 + $0x18] sm:$0xff]
      %v8001 = vld [vmem:[%s7996 + $0x20] sm:$0xff]
      %v8002 = vld [vmem:[%s7996 + $0x28] sm:$0xff]
      %v8003 = vld [vmem:[%s7996 + $0x30] sm:$0xff]
      %v8004 = vld [vmem:[%s7996 + $0x38] sm:$0xff]
      %v8005 = vld [vmem:[%s7996 + $0x40] sm:$0xff]
      %v8006 = vld [vmem:[%s7996 + $0x48] sm:$0xff]
      %v8007 = vld [vmem:[%s7996 + $0x50] sm:$0xff]
      %v8008 = vld [vmem:[%s7996 + $0x58] sm:$0xff]
      %v8009 = vld [vmem:[%s7996 + $0x60] sm:$0xff]
      %v8010 = vld [vmem:[%s7996 + $0x68] sm:$0xff]
      %v8011 = vld [vmem:[%s7996 + $0x70] sm:$0xff]
      %v8012 = vld [vmem:[%s7996 + $0x78] sm:$0xff]
      %v8013 = vld [vmem:[%s7996 + $0x80] sm:$0xff]
      %v8014 = vld [vmem:[%s7996 + $0x88] sm:$0xff]
      %v8015 = vld [vmem:[%s7996 + $0x90] sm:$0xff]
      %v8016 = vld [vmem:[%s7996 + $0x98] sm:$0xff]
      %v8017 = vld [vmem:[%s7996 + $0xa0] sm:$0xff]
      %v8018 = vld [vmem:[%s7996 + $0xa8] sm:$0xff]
      %v8019 = vld [vmem:[%s7996 + $0xb0] sm:$0xff]
      %v8020 = vld [vmem:[%s7996 + $0xb8] sm:$0xff]
      %8029 = vrot.lane.b32.xlu0 %v7926, 110
      %v8030 = vpop.permute.xlu0 %8029
      %8031 = vrot.lane.b32.xlu0 %v7958, 110
      %v8032 = vpop.permute.xlu0 %8031
      %8033 = vrot.lane.b32.xlu0 %v7929, 110
      %v8034 = vpop.permute.xlu0 %8033
      %8035 = vrot.lane.b32.xlu0 %v7961, 110
      %v8036 = vpop.permute.xlu0 %8035
      %8037 = vrot.lane.b32.xlu0 %v7932, 110
      %v8038 = vpop.permute.xlu0 %8037
      %8039 = vrot.lane.b32.xlu0 %v7964, 110
      %v8040 = vpop.permute.xlu0 %8039
      %8041 = vrot.lane.b32.xlu0 %v7935, 110
      %v8042 = vpop.permute.xlu0 %8041
      %8043 = vrot.lane.b32.xlu0 %v7967, 110
      %v8044 = vpop.permute.xlu0 %8043
      %vm8045 = vcmask 900096
      %v8046 = vsel %vm8045, %v8030, %v8032
      %v8047 = vsel %vm8045, %v8034, %v8036
      %v8048 = vsel %vm8045, %v8038, %v8040
      %v8049 = vsel %vm8045, %v8042, %v8044
      %v8054 = vsel %vm5886, %v8032, 0
      %v8056 = vsel %vm5886, %v8036, 0
      %v8058 = vsel %vm5886, %v8040, 0
      %v8060 = vsel %vm5886, %v8044, 0
      %8062 = vmatpush.msra.mxu0 %v8012
      %8063 = vmatpush.msra.mxu0 %v8011
      %8064 = vmatpush.msra.mxu0 %v8010
      %8065 = vmatpush.msra.mxu0 %v8009
      %8066 = vmatpush.msra.mxu0 %v8008
      %8067 = vmatpush.msra.mxu0 %v8007
      %8068 = vmatpush.msra.mxu0 %v8006
      %8069 = vmatpush.msra.mxu0 %v8005
      %8070 = vmatpush.msra.mxu0 %v8004
      %8071 = vmatpush.msra.mxu0 %v8003
      %8072 = vmatpush.msra.mxu0 %v8002
      %8073 = vmatpush.msra.mxu0 %v8001
      %8074 = vmatpush.msra.mxu0 %v8000
      %8075 = vmatpush.msra.mxu0 %v7999
      %8076 = vmatpush.msra.mxu0 %v7998
      %8077 = vmatpush.msra.mxu0 %v7997
      %8078 = vmatmul.f32.gmra.mxu0 %v8046
      %v8079 = vpop.f32.mrf.mxu0
      %v8080 = vadd.f32 0.0, %v8079
      %8081 = vmatmul.f32.gmra.mxu0 %v8047
      %v8082 = vpop.f32.mrf.mxu0
      %v8083 = vadd.f32 0.0, %v8082
      %8084 = vmatmul.f32.gmra.mxu0 %v8048
      %v8085 = vpop.f32.mrf.mxu0
      %v8086 = vadd.f32 0.0, %v8085
      %8087 = vmatmul.f32.gmra.mxu0 %v8049
      %v8088 = vpop.f32.mrf.mxu0
      %v8089 = vadd.f32 0.0, %v8088
      %8090 = vdwg.mxu0
      %8091 = vmatpush.msra.mxu0 0.0
      %8092 = vmatpush.msra.mxu0 0.0
      %8093 = vmatpush.msra.mxu0 0.0
      %8094 = vmatpush.msra.mxu0 0.0
      %8095 = vmatpush.msra.mxu0 0.0
      %8096 = vmatpush.msra.mxu0 0.0
      %8097 = vmatpush.msra.mxu0 0.0
      %8098 = vmatpush.msra.mxu0 0.0
      %8099 = vmatpush.msra.mxu0 %v8020
      %8100 = vmatpush.msra.mxu0 %v8019
      %8101 = vmatpush.msra.mxu0 %v8018
      %8102 = vmatpush.msra.mxu0 %v8017
      %8103 = vmatpush.msra.mxu0 %v8016
      %8104 = vmatpush.msra.mxu0 %v8015
      %8105 = vmatpush.msra.mxu0 %v8014
      %8106 = vmatpush.msra.mxu0 %v8013
      %8107 = vmatmul.f32.gmra.mxu0 %v8054
      %v8108 = vpop.f32.mrf.mxu0
      %v8109 = vadd.f32 %v8080, %v8108
      %8110 = vmatmul.f32.gmra.mxu0 %v8056
      %v8111 = vpop.f32.mrf.mxu0
      %v8112 = vadd.f32 %v8083, %v8111
      %8113 = vmatmul.f32.gmra.mxu0 %v8058
      %v8114 = vpop.f32.mrf.mxu0
      %v8115 = vadd.f32 %v8086, %v8114
      %8116 = vmatmul.f32.gmra.mxu0 %v8060
      %v8117 = vpop.f32.mrf.mxu0
      %v8118 = vadd.f32 %v8089, %v8117
      %8119 = vdwg.mxu0
      %v8120 = vsel %vm5886, %v7958, 0
      %v8122 = vsel %vm5886, %v7961, 0
      %v8124 = vsel %vm5886, %v7964, 0
      %v8126 = vsel %vm5886, %v7967, 0
      %8128 = vmatpush.msra.mxu0 %v7987
      %8129 = vmatpush.msra.mxu0 %v7986
      %8130 = vmatpush.msra.mxu0 %v7985
      %8131 = vmatpush.msra.mxu0 %v7984
      %8132 = vmatpush.msra.mxu0 %v7983
      %8133 = vmatpush.msra.mxu0 %v7982
      %8134 = vmatpush.msra.mxu0 %v7981
      %8135 = vmatpush.msra.mxu0 %v7980
      %8136 = vmatpush.msra.mxu0 %v7979
      %8137 = vmatpush.msra.mxu0 %v7978
      %8138 = vmatpush.msra.mxu0 %v7977
      %8139 = vmatpush.msra.mxu0 %v7976
      %8140 = vmatpush.msra.mxu0 %v7975
      %8141 = vmatpush.msra.mxu0 %v7974
      %8142 = vmatpush.msra.mxu0 %v7973
      %8143 = vmatpush.msra.mxu0 %v7972
      %8144 = vmatmul.f32.gmra.mxu0 %v7926
      %v8145 = vpop.f32.mrf.mxu0
      %v8146 = vadd.f32 %v8109, %v8145
      %8147 = vmatmul.f32.gmra.mxu0 %v7929
      %v8148 = vpop.f32.mrf.mxu0
      %v8149 = vadd.f32 %v8112, %v8148
      %8150 = vmatmul.f32.gmra.mxu0 %v7932
      %v8151 = vpop.f32.mrf.mxu0
      %v8152 = vadd.f32 %v8115, %v8151
      %8153 = vmatmul.f32.gmra.mxu0 %v7935
      %v8154 = vpop.f32.mrf.mxu0
      %v8155 = vadd.f32 %v8118, %v8154
      %8156 = vdwg.mxu0
      %8157 = vmatpush.msra.mxu0 0.0
      %8158 = vmatpush.msra.mxu0 0.0
      %8159 = vmatpush.msra.mxu0 0.0
      %8160 = vmatpush.msra.mxu0 0.0
      %8161 = vmatpush.msra.mxu0 0.0
      %8162 = vmatpush.msra.mxu0 0.0
      %8163 = vmatpush.msra.mxu0 0.0
      %8164 = vmatpush.msra.mxu0 0.0
      %8165 = vmatpush.msra.mxu0 %v7995
      %8166 = vmatpush.msra.mxu0 %v7994
      %8167 = vmatpush.msra.mxu0 %v7993
      %8168 = vmatpush.msra.mxu0 %v7992
      %8169 = vmatpush.msra.mxu0 %v7991
      %8170 = vmatpush.msra.mxu0 %v7990
      %8171 = vmatpush.msra.mxu0 %v7989
      %8172 = vmatpush.msra.mxu0 %v7988
      %8173 = vmatmul.f32.gmra.mxu0 %v8120
      %v8174 = vpop.f32.mrf.mxu0
      %v8175 = vadd.f32 %v8146, %v8174
      %8176 = vmatmul.f32.gmra.mxu0 %v8122
      %v8177 = vpop.f32.mrf.mxu0
      %v8178 = vadd.f32 %v8149, %v8177
      %8179 = vmatmul.f32.gmra.mxu0 %v8124
      %v8180 = vpop.f32.mrf.mxu0
      %v8181 = vadd.f32 %v8152, %v8180
      %8182 = vmatmul.f32.gmra.mxu0 %v8126
      %v8183 = vpop.f32.mrf.mxu0
      %v8184 = vadd.f32 %v8155, %v8183
      %8185 = vdwg.mxu0
      %s8186 = scalar_lea.vmem %s26, 384
      %v8187 = vld [vmem:[%s8186] sm:$0xff]
      %v8188 = vld [vmem:[%s8186 + $0x8] sm:$0xff]
      %v8189 = vld [vmem:[%s8186 + $0x10] sm:$0xff]
      %v8190 = vld [vmem:[%s8186 + $0x18] sm:$0xff]
      %v8191 = vld [vmem:[%s8186 + $0x20] sm:$0xff]
      %v8192 = vld [vmem:[%s8186 + $0x28] sm:$0xff]
      %v8193 = vld [vmem:[%s8186 + $0x30] sm:$0xff]
      %v8194 = vld [vmem:[%s8186 + $0x38] sm:$0xff]
      %v8195 = vld [vmem:[%s8186 + $0x40] sm:$0xff]
      %v8196 = vld [vmem:[%s8186 + $0x48] sm:$0xff]
      %v8197 = vld [vmem:[%s8186 + $0x50] sm:$0xff]
      %v8198 = vld [vmem:[%s8186 + $0x58] sm:$0xff]
      %v8199 = vld [vmem:[%s8186 + $0x60] sm:$0xff]
      %v8200 = vld [vmem:[%s8186 + $0x68] sm:$0xff]
      %v8201 = vld [vmem:[%s8186 + $0x70] sm:$0xff]
      %v8202 = vld [vmem:[%s8186 + $0x78] sm:$0xff]
      %v8203 = vld [vmem:[%s8186 + $0x80] sm:$0xff]
      %v8204 = vld [vmem:[%s8186 + $0x88] sm:$0xff]
      %v8205 = vld [vmem:[%s8186 + $0x90] sm:$0xff]
      %v8206 = vld [vmem:[%s8186 + $0x98] sm:$0xff]
      %v8207 = vld [vmem:[%s8186 + $0xa0] sm:$0xff]
      %v8208 = vld [vmem:[%s8186 + $0xa8] sm:$0xff]
      %v8209 = vld [vmem:[%s8186 + $0xb0] sm:$0xff]
      %v8210 = vld [vmem:[%s8186 + $0xb8] sm:$0xff]
      %8211 = vrot.lane.b32.xlu0 %v7926, 92
      %v8212 = vpop.permute.xlu0 %8211
      %8213 = vrot.lane.b32.xlu0 %v7958, 92
      %v8214 = vpop.permute.xlu0 %8213
      %8215 = vrot.lane.b32.xlu0 %v7929, 92
      %v8216 = vpop.permute.xlu0 %8215
      %8217 = vrot.lane.b32.xlu0 %v7961, 92
      %v8218 = vpop.permute.xlu0 %8217
      %8219 = vrot.lane.b32.xlu0 %v7932, 92
      %v8220 = vpop.permute.xlu0 %8219
      %8221 = vrot.lane.b32.xlu0 %v7964, 92
      %v8222 = vpop.permute.xlu0 %8221
      %8223 = vrot.lane.b32.xlu0 %v7935, 92
      %v8224 = vpop.permute.xlu0 %8223
      %8225 = vrot.lane.b32.xlu0 %v7967, 92
      %v8226 = vpop.permute.xlu0 %8225
      %vm8227 = vcmask 752640
      %v8228 = vsel %vm8227, %v8212, %v8214
      %v8229 = vsel %vm8227, %v8216, %v8218
      %v8230 = vsel %vm8227, %v8220, %v8222
      %v8231 = vsel %vm8227, %v8224, %v8226
      %v8236 = vsel %vm5886, %v8214, 0
      %v8238 = vsel %vm5886, %v8218, 0
      %v8240 = vsel %vm5886, %v8222, 0
      %v8242 = vsel %vm5886, %v8226, 0
      %8244 = vmatpush.msra.mxu0 %v8202
      %8245 = vmatpush.msra.mxu0 %v8201
      %8246 = vmatpush.msra.mxu0 %v8200
      %8247 = vmatpush.msra.mxu0 %v8199
      %8248 = vmatpush.msra.mxu0 %v8198
      %8249 = vmatpush.msra.mxu0 %v8197
      %8250 = vmatpush.msra.mxu0 %v8196
      %8251 = vmatpush.msra.mxu0 %v8195
      %8252 = vmatpush.msra.mxu0 %v8194
      %8253 = vmatpush.msra.mxu0 %v8193
      %8254 = vmatpush.msra.mxu0 %v8192
      %8255 = vmatpush.msra.mxu0 %v8191
      %8256 = vmatpush.msra.mxu0 %v8190
      %8257 = vmatpush.msra.mxu0 %v8189
      %8258 = vmatpush.msra.mxu0 %v8188
      %8259 = vmatpush.msra.mxu0 %v8187
      %8260 = vmatmul.f32.gmra.mxu0 %v8228
      %v8261 = vpop.f32.mrf.mxu0
      %v8262 = vadd.f32 0.0, %v8261
      %8263 = vmatmul.f32.gmra.mxu0 %v8229
      %v8264 = vpop.f32.mrf.mxu0
      %v8265 = vadd.f32 0.0, %v8264
      %8266 = vmatmul.f32.gmra.mxu0 %v8230
      %v8267 = vpop.f32.mrf.mxu0
      %v8268 = vadd.f32 0.0, %v8267
      %8269 = vmatmul.f32.gmra.mxu0 %v8231
      %v8270 = vpop.f32.mrf.mxu0
      %v8271 = vadd.f32 0.0, %v8270
      %8272 = vdwg.mxu0
      %8273 = vmatpush.msra.mxu0 0.0
      %8274 = vmatpush.msra.mxu0 0.0
      %8275 = vmatpush.msra.mxu0 0.0
      %8276 = vmatpush.msra.mxu0 0.0
      %8277 = vmatpush.msra.mxu0 0.0
      %8278 = vmatpush.msra.mxu0 0.0
      %8279 = vmatpush.msra.mxu0 0.0
      %8280 = vmatpush.msra.mxu0 0.0
      %8281 = vmatpush.msra.mxu0 %v8210
      %8282 = vmatpush.msra.mxu0 %v8209
      %8283 = vmatpush.msra.mxu0 %v8208
      %8284 = vmatpush.msra.mxu0 %v8207
      %8285 = vmatpush.msra.mxu0 %v8206
      %8286 = vmatpush.msra.mxu0 %v8205
      %8287 = vmatpush.msra.mxu0 %v8204
      %8288 = vmatpush.msra.mxu0 %v8203
      %8289 = vmatmul.f32.gmra.mxu0 %v8236
      %v8290 = vpop.f32.mrf.mxu0
      %v8291 = vadd.f32 %v8262, %v8290
      %8292 = vmatmul.f32.gmra.mxu0 %v8238
      %v8293 = vpop.f32.mrf.mxu0
      %v8294 = vadd.f32 %v8265, %v8293
      %8295 = vmatmul.f32.gmra.mxu0 %v8240
      %v8296 = vpop.f32.mrf.mxu0
      %v8297 = vadd.f32 %v8268, %v8296
      %8298 = vmatmul.f32.gmra.mxu0 %v8242
      %v8299 = vpop.f32.mrf.mxu0
      %v8300 = vadd.f32 %v8271, %v8299
      %8301 = vdwg.mxu0
      %v8302 = vadd.f32 %v8175, %v8291
      %v8303 = vadd.f32 %v8178, %v8294
      %v8304 = vadd.f32 %v8181, %v8297
      %v8305 = vadd.f32 %v8184, %v8300
      %s8306 = scalar_lea.vmem %s26, 576
      %v8307 = vld [vmem:[%s8306] sm:$0xff]
      %v8308 = vld [vmem:[%s8306 + $0x8] sm:$0xff]
      %v8309 = vld [vmem:[%s8306 + $0x10] sm:$0xff]
      %v8310 = vld [vmem:[%s8306 + $0x18] sm:$0xff]
      %v8311 = vld [vmem:[%s8306 + $0x20] sm:$0xff]
      %v8312 = vld [vmem:[%s8306 + $0x28] sm:$0xff]
      %v8313 = vld [vmem:[%s8306 + $0x30] sm:$0xff]
      %v8314 = vld [vmem:[%s8306 + $0x38] sm:$0xff]
      %v8315 = vld [vmem:[%s8306 + $0x40] sm:$0xff]
      %v8316 = vld [vmem:[%s8306 + $0x48] sm:$0xff]
      %v8317 = vld [vmem:[%s8306 + $0x50] sm:$0xff]
      %v8318 = vld [vmem:[%s8306 + $0x58] sm:$0xff]
      %v8319 = vld [vmem:[%s8306 + $0x60] sm:$0xff]
      %v8320 = vld [vmem:[%s8306 + $0x68] sm:$0xff]
      %v8321 = vld [vmem:[%s8306 + $0x70] sm:$0xff]
      %v8322 = vld [vmem:[%s8306 + $0x78] sm:$0xff]
      %v8323 = vld [vmem:[%s8306 + $0x80] sm:$0xff]
      %v8324 = vld [vmem:[%s8306 + $0x88] sm:$0xff]
      %v8325 = vld [vmem:[%s8306 + $0x90] sm:$0xff]
      %v8326 = vld [vmem:[%s8306 + $0x98] sm:$0xff]
      %v8327 = vld [vmem:[%s8306 + $0xa0] sm:$0xff]
      %v8328 = vld [vmem:[%s8306 + $0xa8] sm:$0xff]
      %v8329 = vld [vmem:[%s8306 + $0xb0] sm:$0xff]
      %v8330 = vld [vmem:[%s8306 + $0xb8] sm:$0xff]
      %v8333 = vrot.slane %v7926, 3
      %v8334 = vrot.slane %v7929, 3
      %v8335 = vsel %vm3579, %v8333, %v8334
      %v8336 = vrot.slane %v7958, 3
      %v8337 = vrot.slane %v7961, 3
      %v8338 = vsel %vm3579, %v8336, %v8337
      %v8339 = vrot.slane %v7932, 3
      %v8340 = vsel %vm3579, %v8334, %v8339
      %v8341 = vrot.slane %v7964, 3
      %v8342 = vsel %vm3579, %v8337, %v8341
      %v8343 = vrot.slane %v7935, 3
      %v8344 = vsel %vm3579, %v8339, %v8343
      %v8345 = vrot.slane %v7967, 3
      %v8346 = vsel %vm3579, %v8341, %v8345
      %v8347 = vrot.slane %v7938, 3
      %v8348 = vsel %vm3579, %v8343, %v8347
      %v8349 = vrot.slane %v7970, 3
      %v8350 = vsel %vm3579, %v8345, %v8349
      %v8355 = vsel %vm5886, %v8338, 0
      %v8357 = vsel %vm5886, %v8342, 0
      %v8359 = vsel %vm5886, %v8346, 0
      %v8361 = vsel %vm5886, %v8350, 0
      %8363 = vmatpush.msra.mxu0 %v8322
      %8364 = vmatpush.msra.mxu0 %v8321
      %8365 = vmatpush.msra.mxu0 %v8320
      %8366 = vmatpush.msra.mxu0 %v8319
      %8367 = vmatpush.msra.mxu0 %v8318
      %8368 = vmatpush.msra.mxu0 %v8317
      %8369 = vmatpush.msra.mxu0 %v8316
      %8370 = vmatpush.msra.mxu0 %v8315
      %8371 = vmatpush.msra.mxu0 %v8314
      %8372 = vmatpush.msra.mxu0 %v8313
      %8373 = vmatpush.msra.mxu0 %v8312
      %8374 = vmatpush.msra.mxu0 %v8311
      %8375 = vmatpush.msra.mxu0 %v8310
      %8376 = vmatpush.msra.mxu0 %v8309
      %8377 = vmatpush.msra.mxu0 %v8308
      %8378 = vmatpush.msra.mxu0 %v8307
      %8379 = vmatmul.f32.gmra.mxu0 %v8335
      %v8380 = vpop.f32.mrf.mxu0
      %v8381 = vadd.f32 0.0, %v8380
      %8382 = vmatmul.f32.gmra.mxu0 %v8340
      %v8383 = vpop.f32.mrf.mxu0
      %v8384 = vadd.f32 0.0, %v8383
      %8385 = vmatmul.f32.gmra.mxu0 %v8344
      %v8386 = vpop.f32.mrf.mxu0
      %v8387 = vadd.f32 0.0, %v8386
      %8388 = vmatmul.f32.gmra.mxu0 %v8348
      %v8389 = vpop.f32.mrf.mxu0
      %v8390 = vadd.f32 0.0, %v8389
      %8391 = vdwg.mxu0
      %8392 = vmatpush.msra.mxu0 0.0
      %8393 = vmatpush.msra.mxu0 0.0
      %8394 = vmatpush.msra.mxu0 0.0
      %8395 = vmatpush.msra.mxu0 0.0
      %8396 = vmatpush.msra.mxu0 0.0
      %8397 = vmatpush.msra.mxu0 0.0
      %8398 = vmatpush.msra.mxu0 0.0
      %8399 = vmatpush.msra.mxu0 0.0
      %8400 = vmatpush.msra.mxu0 %v8330
      %8401 = vmatpush.msra.mxu0 %v8329
      %8402 = vmatpush.msra.mxu0 %v8328
      %8403 = vmatpush.msra.mxu0 %v8327
      %8404 = vmatpush.msra.mxu0 %v8326
      %8405 = vmatpush.msra.mxu0 %v8325
      %8406 = vmatpush.msra.mxu0 %v8324
      %8407 = vmatpush.msra.mxu0 %v8323
      %8408 = vmatmul.f32.gmra.mxu0 %v8355
      %v8409 = vpop.f32.mrf.mxu0
      %v8410 = vadd.f32 %v8381, %v8409
      %8411 = vmatmul.f32.gmra.mxu0 %v8357
      %v8412 = vpop.f32.mrf.mxu0
      %v8413 = vadd.f32 %v8384, %v8412
      %8414 = vmatmul.f32.gmra.mxu0 %v8359
      %v8415 = vpop.f32.mrf.mxu0
      %v8416 = vadd.f32 %v8387, %v8415
      %8417 = vmatmul.f32.gmra.mxu0 %v8361
      %v8418 = vpop.f32.mrf.mxu0
      %v8419 = vadd.f32 %v8390, %v8418
      %8420 = vdwg.mxu0
      %v8421 = vadd.f32 %v8302, %v8410
      %v8422 = vadd.f32 %v8303, %v8413
      %v8423 = vadd.f32 %v8304, %v8416
      %v8424 = vadd.f32 %v8305, %v8419
      %s8425 = scalar_lea.vmem %s26, 768
      %v8426 = vld [vmem:[%s8425] sm:$0xff]
      %v8427 = vld [vmem:[%s8425 + $0x8] sm:$0xff]
      %v8428 = vld [vmem:[%s8425 + $0x10] sm:$0xff]
      %v8429 = vld [vmem:[%s8425 + $0x18] sm:$0xff]
      %v8430 = vld [vmem:[%s8425 + $0x20] sm:$0xff]
      %v8431 = vld [vmem:[%s8425 + $0x28] sm:$0xff]
      %v8432 = vld [vmem:[%s8425 + $0x30] sm:$0xff]
      %v8433 = vld [vmem:[%s8425 + $0x38] sm:$0xff]
      %v8434 = vld [vmem:[%s8425 + $0x40] sm:$0xff]
      %v8435 = vld [vmem:[%s8425 + $0x48] sm:$0xff]
      %v8436 = vld [vmem:[%s8425 + $0x50] sm:$0xff]
      %v8437 = vld [vmem:[%s8425 + $0x58] sm:$0xff]
      %v8438 = vld [vmem:[%s8425 + $0x60] sm:$0xff]
      %v8439 = vld [vmem:[%s8425 + $0x68] sm:$0xff]
      %v8440 = vld [vmem:[%s8425 + $0x70] sm:$0xff]
      %v8441 = vld [vmem:[%s8425 + $0x78] sm:$0xff]
      %v8442 = vld [vmem:[%s8425 + $0x80] sm:$0xff]
      %v8443 = vld [vmem:[%s8425 + $0x88] sm:$0xff]
      %v8444 = vld [vmem:[%s8425 + $0x90] sm:$0xff]
      %v8445 = vld [vmem:[%s8425 + $0x98] sm:$0xff]
      %v8446 = vld [vmem:[%s8425 + $0xa0] sm:$0xff]
      %v8447 = vld [vmem:[%s8425 + $0xa8] sm:$0xff]
      %v8448 = vld [vmem:[%s8425 + $0xb0] sm:$0xff]
      %v8449 = vld [vmem:[%s8425 + $0xb8] sm:$0xff]
      %8450 = vrot.lane.b32.xlu0 %v8335, 110
      %v8451 = vpop.permute.xlu0 %8450
      %8452 = vrot.lane.b32.xlu0 %v8338, 110
      %v8453 = vpop.permute.xlu0 %8452
      %8454 = vrot.lane.b32.xlu0 %v8340, 110
      %v8455 = vpop.permute.xlu0 %8454
      %8456 = vrot.lane.b32.xlu0 %v8342, 110
      %v8457 = vpop.permute.xlu0 %8456
      %8458 = vrot.lane.b32.xlu0 %v8344, 110
      %v8459 = vpop.permute.xlu0 %8458
      %8460 = vrot.lane.b32.xlu0 %v8346, 110
      %v8461 = vpop.permute.xlu0 %8460
      %8462 = vrot.lane.b32.xlu0 %v8348, 110
      %v8463 = vpop.permute.xlu0 %8462
      %8464 = vrot.lane.b32.xlu0 %v8350, 110
      %v8465 = vpop.permute.xlu0 %8464
      %v8466 = vsel %vm8045, %v8451, %v8453
      %v8467 = vsel %vm8045, %v8455, %v8457
      %v8468 = vsel %vm8045, %v8459, %v8461
      %v8469 = vsel %vm8045, %v8463, %v8465
      %v8474 = vsel %vm5886, %v8453, 0
      %v8476 = vsel %vm5886, %v8457, 0
      %v8478 = vsel %vm5886, %v8461, 0
      %v8480 = vsel %vm5886, %v8465, 0
      %8482 = vmatpush.msra.mxu0 %v8441
      %8483 = vmatpush.msra.mxu0 %v8440
      %8484 = vmatpush.msra.mxu0 %v8439
      %8485 = vmatpush.msra.mxu0 %v8438
      %8486 = vmatpush.msra.mxu0 %v8437
      %8487 = vmatpush.msra.mxu0 %v8436
      %8488 = vmatpush.msra.mxu0 %v8435
      %8489 = vmatpush.msra.mxu0 %v8434
      %8490 = vmatpush.msra.mxu0 %v8433
      %8491 = vmatpush.msra.mxu0 %v8432
      %8492 = vmatpush.msra.mxu0 %v8431
      %8493 = vmatpush.msra.mxu0 %v8430
      %8494 = vmatpush.msra.mxu0 %v8429
      %8495 = vmatpush.msra.mxu0 %v8428
      %8496 = vmatpush.msra.mxu0 %v8427
      %8497 = vmatpush.msra.mxu0 %v8426
      %8498 = vmatmul.f32.gmra.mxu0 %v8466
      %v8499 = vpop.f32.mrf.mxu0
      %v8500 = vadd.f32 0.0, %v8499
      %8501 = vmatmul.f32.gmra.mxu0 %v8467
      %v8502 = vpop.f32.mrf.mxu0
      %v8503 = vadd.f32 0.0, %v8502
      %8504 = vmatmul.f32.gmra.mxu0 %v8468
      %v8505 = vpop.f32.mrf.mxu0
      %v8506 = vadd.f32 0.0, %v8505
      %8507 = vmatmul.f32.gmra.mxu0 %v8469
      %v8508 = vpop.f32.mrf.mxu0
      %v8509 = vadd.f32 0.0, %v8508
      %8510 = vdwg.mxu0
      %8511 = vmatpush.msra.mxu0 0.0
      %8512 = vmatpush.msra.mxu0 0.0
      %8513 = vmatpush.msra.mxu0 0.0
      %8514 = vmatpush.msra.mxu0 0.0
      %8515 = vmatpush.msra.mxu0 0.0
      %8516 = vmatpush.msra.mxu0 0.0
      %8517 = vmatpush.msra.mxu0 0.0
      %8518 = vmatpush.msra.mxu0 0.0
      %8519 = vmatpush.msra.mxu0 %v8449
      %8520 = vmatpush.msra.mxu0 %v8448
      %8521 = vmatpush.msra.mxu0 %v8447
      %8522 = vmatpush.msra.mxu0 %v8446
      %8523 = vmatpush.msra.mxu0 %v8445
      %8524 = vmatpush.msra.mxu0 %v8444
      %8525 = vmatpush.msra.mxu0 %v8443
      %8526 = vmatpush.msra.mxu0 %v8442
      %8527 = vmatmul.f32.gmra.mxu0 %v8474
      %v8528 = vpop.f32.mrf.mxu0
      %v8529 = vadd.f32 %v8500, %v8528
      %8530 = vmatmul.f32.gmra.mxu0 %v8476
      %v8531 = vpop.f32.mrf.mxu0
      %v8532 = vadd.f32 %v8503, %v8531
      %8533 = vmatmul.f32.gmra.mxu0 %v8478
      %v8534 = vpop.f32.mrf.mxu0
      %v8535 = vadd.f32 %v8506, %v8534
      %8536 = vmatmul.f32.gmra.mxu0 %v8480
      %v8537 = vpop.f32.mrf.mxu0
      %v8538 = vadd.f32 %v8509, %v8537
      %8539 = vdwg.mxu0
      %v8540 = vadd.f32 %v8421, %v8529
      %v8541 = vadd.f32 %v8422, %v8532
      %v8542 = vadd.f32 %v8423, %v8535
      %v8543 = vadd.f32 %v8424, %v8538
      %s8544 = scalar_lea.vmem %s26, 960
      %v8545 = vld [vmem:[%s8544] sm:$0xff]
      %v8546 = vld [vmem:[%s8544 + $0x8] sm:$0xff]
      %v8547 = vld [vmem:[%s8544 + $0x10] sm:$0xff]
      %v8548 = vld [vmem:[%s8544 + $0x18] sm:$0xff]
      %v8549 = vld [vmem:[%s8544 + $0x20] sm:$0xff]
      %v8550 = vld [vmem:[%s8544 + $0x28] sm:$0xff]
      %v8551 = vld [vmem:[%s8544 + $0x30] sm:$0xff]
      %v8552 = vld [vmem:[%s8544 + $0x38] sm:$0xff]
      %v8553 = vld [vmem:[%s8544 + $0x40] sm:$0xff]
      %v8554 = vld [vmem:[%s8544 + $0x48] sm:$0xff]
      %v8555 = vld [vmem:[%s8544 + $0x50] sm:$0xff]
      %v8556 = vld [vmem:[%s8544 + $0x58] sm:$0xff]
      %v8557 = vld [vmem:[%s8544 + $0x60] sm:$0xff]
      %v8558 = vld [vmem:[%s8544 + $0x68] sm:$0xff]
      %v8559 = vld [vmem:[%s8544 + $0x70] sm:$0xff]
      %v8560 = vld [vmem:[%s8544 + $0x78] sm:$0xff]
      %v8561 = vld [vmem:[%s8544 + $0x80] sm:$0xff]
      %v8562 = vld [vmem:[%s8544 + $0x88] sm:$0xff]
      %v8563 = vld [vmem:[%s8544 + $0x90] sm:$0xff]
      %v8564 = vld [vmem:[%s8544 + $0x98] sm:$0xff]
      %v8565 = vld [vmem:[%s8544 + $0xa0] sm:$0xff]
      %v8566 = vld [vmem:[%s8544 + $0xa8] sm:$0xff]
      %v8567 = vld [vmem:[%s8544 + $0xb0] sm:$0xff]
      %v8568 = vld [vmem:[%s8544 + $0xb8] sm:$0xff]
      %8569 = vrot.lane.b32.xlu0 %v8335, 92
      %v8570 = vpop.permute.xlu0 %8569
      %8571 = vrot.lane.b32.xlu0 %v8338, 92
      %v8572 = vpop.permute.xlu0 %8571
      %8573 = vrot.lane.b32.xlu0 %v8340, 92
      %v8574 = vpop.permute.xlu0 %8573
      %8575 = vrot.lane.b32.xlu0 %v8342, 92
      %v8576 = vpop.permute.xlu0 %8575
      %8577 = vrot.lane.b32.xlu0 %v8344, 92
      %v8578 = vpop.permute.xlu0 %8577
      %8579 = vrot.lane.b32.xlu0 %v8346, 92
      %v8580 = vpop.permute.xlu0 %8579
      %8581 = vrot.lane.b32.xlu0 %v8348, 92
      %v8582 = vpop.permute.xlu0 %8581
      %8583 = vrot.lane.b32.xlu0 %v8350, 92
      %v8584 = vpop.permute.xlu0 %8583
      %v8585 = vsel %vm8227, %v8570, %v8572
      %v8586 = vsel %vm8227, %v8574, %v8576
      %v8587 = vsel %vm8227, %v8578, %v8580
      %v8588 = vsel %vm8227, %v8582, %v8584
      %v8593 = vsel %vm5886, %v8572, 0
      %v8595 = vsel %vm5886, %v8576, 0
      %v8597 = vsel %vm5886, %v8580, 0
      %v8599 = vsel %vm5886, %v8584, 0
      %8601 = vmatpush.msra.mxu0 %v8560
      %8602 = vmatpush.msra.mxu0 %v8559
      %8603 = vmatpush.msra.mxu0 %v8558
      %8604 = vmatpush.msra.mxu0 %v8557
      %8605 = vmatpush.msra.mxu0 %v8556
      %8606 = vmatpush.msra.mxu0 %v8555
      %8607 = vmatpush.msra.mxu0 %v8554
      %8608 = vmatpush.msra.mxu0 %v8553
      %8609 = vmatpush.msra.mxu0 %v8552
      %8610 = vmatpush.msra.mxu0 %v8551
      %8611 = vmatpush.msra.mxu0 %v8550
      %8612 = vmatpush.msra.mxu0 %v8549
      %8613 = vmatpush.msra.mxu0 %v8548
      %8614 = vmatpush.msra.mxu0 %v8547
      %8615 = vmatpush.msra.mxu0 %v8546
      %8616 = vmatpush.msra.mxu0 %v8545
      %8617 = vmatmul.f32.gmra.mxu0 %v8585
      %v8618 = vpop.f32.mrf.mxu0
      %v8619 = vadd.f32 0.0, %v8618
      %8620 = vmatmul.f32.gmra.mxu0 %v8586
      %v8621 = vpop.f32.mrf.mxu0
      %v8622 = vadd.f32 0.0, %v8621
      %8623 = vmatmul.f32.gmra.mxu0 %v8587
      %v8624 = vpop.f32.mrf.mxu0
      %v8625 = vadd.f32 0.0, %v8624
      %8626 = vmatmul.f32.gmra.mxu0 %v8588
      %v8627 = vpop.f32.mrf.mxu0
      %v8628 = vadd.f32 0.0, %v8627
      %8629 = vdwg.mxu0
      %8630 = vmatpush.msra.mxu0 0.0
      %8631 = vmatpush.msra.mxu0 0.0
      %8632 = vmatpush.msra.mxu0 0.0
      %8633 = vmatpush.msra.mxu0 0.0
      %8634 = vmatpush.msra.mxu0 0.0
      %8635 = vmatpush.msra.mxu0 0.0
      %8636 = vmatpush.msra.mxu0 0.0
      %8637 = vmatpush.msra.mxu0 0.0
      %8638 = vmatpush.msra.mxu0 %v8568
      %8639 = vmatpush.msra.mxu0 %v8567
      %8640 = vmatpush.msra.mxu0 %v8566
      %8641 = vmatpush.msra.mxu0 %v8565
      %8642 = vmatpush.msra.mxu0 %v8564
      %8643 = vmatpush.msra.mxu0 %v8563
      %8644 = vmatpush.msra.mxu0 %v8562
      %8645 = vmatpush.msra.mxu0 %v8561
      %8646 = vmatmul.f32.gmra.mxu0 %v8593
      %v8647 = vpop.f32.mrf.mxu0
      %v8648 = vadd.f32 %v8619, %v8647
      %8649 = vmatmul.f32.gmra.mxu0 %v8595
      %v8650 = vpop.f32.mrf.mxu0
      %v8651 = vadd.f32 %v8622, %v8650
      %8652 = vmatmul.f32.gmra.mxu0 %v8597
      %v8653 = vpop.f32.mrf.mxu0
      %v8654 = vadd.f32 %v8625, %v8653
      %8655 = vmatmul.f32.gmra.mxu0 %v8599
      %v8656 = vpop.f32.mrf.mxu0
      %v8657 = vadd.f32 %v8628, %v8656
      %8658 = vdwg.mxu0
      %v8659 = vadd.f32 %v8540, %v8648
      %v8660 = vadd.f32 %v8541, %v8651
      %v8661 = vadd.f32 %v8542, %v8654
      %v8662 = vadd.f32 %v8543, %v8657
      %s8663 = scalar_lea.vmem %s26, 1152
      %v8664 = vld [vmem:[%s8663] sm:$0xff]
      %v8665 = vld [vmem:[%s8663 + $0x8] sm:$0xff]
      %v8666 = vld [vmem:[%s8663 + $0x10] sm:$0xff]
      %v8667 = vld [vmem:[%s8663 + $0x18] sm:$0xff]
      %v8668 = vld [vmem:[%s8663 + $0x20] sm:$0xff]
      %v8669 = vld [vmem:[%s8663 + $0x28] sm:$0xff]
      %v8670 = vld [vmem:[%s8663 + $0x30] sm:$0xff]
      %v8671 = vld [vmem:[%s8663 + $0x38] sm:$0xff]
      %v8672 = vld [vmem:[%s8663 + $0x40] sm:$0xff]
      %v8673 = vld [vmem:[%s8663 + $0x48] sm:$0xff]
      %v8674 = vld [vmem:[%s8663 + $0x50] sm:$0xff]
      %v8675 = vld [vmem:[%s8663 + $0x58] sm:$0xff]
      %v8676 = vld [vmem:[%s8663 + $0x60] sm:$0xff]
      %v8677 = vld [vmem:[%s8663 + $0x68] sm:$0xff]
      %v8678 = vld [vmem:[%s8663 + $0x70] sm:$0xff]
      %v8679 = vld [vmem:[%s8663 + $0x78] sm:$0xff]
      %v8680 = vld [vmem:[%s8663 + $0x80] sm:$0xff]
      %v8681 = vld [vmem:[%s8663 + $0x88] sm:$0xff]
      %v8682 = vld [vmem:[%s8663 + $0x90] sm:$0xff]
      %v8683 = vld [vmem:[%s8663 + $0x98] sm:$0xff]
      %v8684 = vld [vmem:[%s8663 + $0xa0] sm:$0xff]
      %v8685 = vld [vmem:[%s8663 + $0xa8] sm:$0xff]
      %v8686 = vld [vmem:[%s8663 + $0xb0] sm:$0xff]
      %v8687 = vld [vmem:[%s8663 + $0xb8] sm:$0xff]
      %v8688 = vrot.slane %v7926, 6
      %v8689 = vrot.slane %v7929, 6
      %v8690 = vsel %vm920, %v8688, %v8689
      %v8691 = vrot.slane %v7958, 6
      %v8692 = vrot.slane %v7961, 6
      %v8693 = vsel %vm920, %v8691, %v8692
      %v8694 = vrot.slane %v7932, 6
      %v8695 = vsel %vm920, %v8689, %v8694
      %v8696 = vrot.slane %v7964, 6
      %v8697 = vsel %vm920, %v8692, %v8696
      %v8698 = vrot.slane %v7935, 6
      %v8699 = vsel %vm920, %v8694, %v8698
      %v8700 = vrot.slane %v7967, 6
      %v8701 = vsel %vm920, %v8696, %v8700
      %v8702 = vrot.slane %v7938, 6
      %v8703 = vsel %vm920, %v8698, %v8702
      %v8704 = vrot.slane %v7970, 6
      %v8705 = vsel %vm920, %v8700, %v8704
      %v8710 = vsel %vm5886, %v8693, 0
      %v8712 = vsel %vm5886, %v8697, 0
      %v8714 = vsel %vm5886, %v8701, 0
      %v8716 = vsel %vm5886, %v8705, 0
      %8718 = vmatpush.msra.mxu0 %v8679
      %8719 = vmatpush.msra.mxu0 %v8678
      %8720 = vmatpush.msra.mxu0 %v8677
      %8721 = vmatpush.msra.mxu0 %v8676
      %8722 = vmatpush.msra.mxu0 %v8675
      %8723 = vmatpush.msra.mxu0 %v8674
      %8724 = vmatpush.msra.mxu0 %v8673
      %8725 = vmatpush.msra.mxu0 %v8672
      %8726 = vmatpush.msra.mxu0 %v8671
      %8727 = vmatpush.msra.mxu0 %v8670
      %8728 = vmatpush.msra.mxu0 %v8669
      %8729 = vmatpush.msra.mxu0 %v8668
      %8730 = vmatpush.msra.mxu0 %v8667
      %8731 = vmatpush.msra.mxu0 %v8666
      %8732 = vmatpush.msra.mxu0 %v8665
      %8733 = vmatpush.msra.mxu0 %v8664
      %8734 = vmatmul.f32.gmra.mxu0 %v8690
      %v8735 = vpop.f32.mrf.mxu0
      %v8736 = vadd.f32 0.0, %v8735
      %8737 = vmatmul.f32.gmra.mxu0 %v8695
      %v8738 = vpop.f32.mrf.mxu0
      %v8739 = vadd.f32 0.0, %v8738
      %8740 = vmatmul.f32.gmra.mxu0 %v8699
      %v8741 = vpop.f32.mrf.mxu0
      %v8742 = vadd.f32 0.0, %v8741
      %8743 = vmatmul.f32.gmra.mxu0 %v8703
      %v8744 = vpop.f32.mrf.mxu0
      %v8745 = vadd.f32 0.0, %v8744
      %8746 = vdwg.mxu0
      %8747 = vmatpush.msra.mxu0 0.0
      %8748 = vmatpush.msra.mxu0 0.0
      %8749 = vmatpush.msra.mxu0 0.0
      %8750 = vmatpush.msra.mxu0 0.0
      %8751 = vmatpush.msra.mxu0 0.0
      %8752 = vmatpush.msra.mxu0 0.0
      %8753 = vmatpush.msra.mxu0 0.0
      %8754 = vmatpush.msra.mxu0 0.0
      %8755 = vmatpush.msra.mxu0 %v8687
      %8756 = vmatpush.msra.mxu0 %v8686
      %8757 = vmatpush.msra.mxu0 %v8685
      %8758 = vmatpush.msra.mxu0 %v8684
      %8759 = vmatpush.msra.mxu0 %v8683
      %8760 = vmatpush.msra.mxu0 %v8682
      %8761 = vmatpush.msra.mxu0 %v8681
      %8762 = vmatpush.msra.mxu0 %v8680
      %8763 = vmatmul.f32.gmra.mxu0 %v8710
      %v8764 = vpop.f32.mrf.mxu0
      %v8765 = vadd.f32 %v8736, %v8764
      %8766 = vmatmul.f32.gmra.mxu0 %v8712
      %v8767 = vpop.f32.mrf.mxu0
      %v8768 = vadd.f32 %v8739, %v8767
      %8769 = vmatmul.f32.gmra.mxu0 %v8714
      %v8770 = vpop.f32.mrf.mxu0
      %v8771 = vadd.f32 %v8742, %v8770
      %8772 = vmatmul.f32.gmra.mxu0 %v8716
      %v8773 = vpop.f32.mrf.mxu0
      %v8774 = vadd.f32 %v8745, %v8773
      %8775 = vdwg.mxu0
      %v8776 = vadd.f32 %v8659, %v8765
      %v8777 = vadd.f32 %v8660, %v8768
      %v8778 = vadd.f32 %v8661, %v8771
      %v8779 = vadd.f32 %v8662, %v8774
      %s8780 = scalar_lea.vmem %s26, 1344
      %v8781 = vld [vmem:[%s8780] sm:$0xff]
      %v8782 = vld [vmem:[%s8780 + $0x8] sm:$0xff]
      %v8783 = vld [vmem:[%s8780 + $0x10] sm:$0xff]
      %v8784 = vld [vmem:[%s8780 + $0x18] sm:$0xff]
      %v8785 = vld [vmem:[%s8780 + $0x20] sm:$0xff]
      %v8786 = vld [vmem:[%s8780 + $0x28] sm:$0xff]
      %v8787 = vld [vmem:[%s8780 + $0x30] sm:$0xff]
      %v8788 = vld [vmem:[%s8780 + $0x38] sm:$0xff]
      %v8789 = vld [vmem:[%s8780 + $0x40] sm:$0xff]
      %v8790 = vld [vmem:[%s8780 + $0x48] sm:$0xff]
      %v8791 = vld [vmem:[%s8780 + $0x50] sm:$0xff]
      %v8792 = vld [vmem:[%s8780 + $0x58] sm:$0xff]
      %v8793 = vld [vmem:[%s8780 + $0x60] sm:$0xff]
      %v8794 = vld [vmem:[%s8780 + $0x68] sm:$0xff]
      %v8795 = vld [vmem:[%s8780 + $0x70] sm:$0xff]
      %v8796 = vld [vmem:[%s8780 + $0x78] sm:$0xff]
      %v8797 = vld [vmem:[%s8780 + $0x80] sm:$0xff]
      %v8798 = vld [vmem:[%s8780 + $0x88] sm:$0xff]
      %v8799 = vld [vmem:[%s8780 + $0x90] sm:$0xff]
      %v8800 = vld [vmem:[%s8780 + $0x98] sm:$0xff]
      %v8801 = vld [vmem:[%s8780 + $0xa0] sm:$0xff]
      %v8802 = vld [vmem:[%s8780 + $0xa8] sm:$0xff]
      %v8803 = vld [vmem:[%s8780 + $0xb0] sm:$0xff]
      %v8804 = vld [vmem:[%s8780 + $0xb8] sm:$0xff]
      %8805 = vrot.lane.b32.xlu0 %v8690, 110
      %v8806 = vpop.permute.xlu0 %8805
      %8807 = vrot.lane.b32.xlu0 %v8693, 110
      %v8808 = vpop.permute.xlu0 %8807
      %8809 = vrot.lane.b32.xlu0 %v8695, 110
      %v8810 = vpop.permute.xlu0 %8809
      %8811 = vrot.lane.b32.xlu0 %v8697, 110
      %v8812 = vpop.permute.xlu0 %8811
      %8813 = vrot.lane.b32.xlu0 %v8699, 110
      %v8814 = vpop.permute.xlu0 %8813
      %8815 = vrot.lane.b32.xlu0 %v8701, 110
      %v8816 = vpop.permute.xlu0 %8815
      %8817 = vrot.lane.b32.xlu0 %v8703, 110
      %v8818 = vpop.permute.xlu0 %8817
      %8819 = vrot.lane.b32.xlu0 %v8705, 110
      %v8820 = vpop.permute.xlu0 %8819
      %v8821 = vsel %vm8045, %v8806, %v8808
      %v8822 = vsel %vm8045, %v8810, %v8812
      %v8823 = vsel %vm8045, %v8814, %v8816
      %v8824 = vsel %vm8045, %v8818, %v8820
      %v8829 = vsel %vm5886, %v8808, 0
      %v8831 = vsel %vm5886, %v8812, 0
      %v8833 = vsel %vm5886, %v8816, 0
      %v8835 = vsel %vm5886, %v8820, 0
      %8837 = vmatpush.msra.mxu0 %v8796
      %8838 = vmatpush.msra.mxu0 %v8795
      %8839 = vmatpush.msra.mxu0 %v8794
      %8840 = vmatpush.msra.mxu0 %v8793
      %8841 = vmatpush.msra.mxu0 %v8792
      %8842 = vmatpush.msra.mxu0 %v8791
      %8843 = vmatpush.msra.mxu0 %v8790
      %8844 = vmatpush.msra.mxu0 %v8789
      %8845 = vmatpush.msra.mxu0 %v8788
      %8846 = vmatpush.msra.mxu0 %v8787
      %8847 = vmatpush.msra.mxu0 %v8786
      %8848 = vmatpush.msra.mxu0 %v8785
      %8849 = vmatpush.msra.mxu0 %v8784
      %8850 = vmatpush.msra.mxu0 %v8783
      %8851 = vmatpush.msra.mxu0 %v8782
      %8852 = vmatpush.msra.mxu0 %v8781
      %8853 = vmatmul.f32.gmra.mxu0 %v8821
      %v8854 = vpop.f32.mrf.mxu0
      %v8855 = vadd.f32 0.0, %v8854
      %8856 = vmatmul.f32.gmra.mxu0 %v8822
      %v8857 = vpop.f32.mrf.mxu0
      %v8858 = vadd.f32 0.0, %v8857
      %8859 = vmatmul.f32.gmra.mxu0 %v8823
      %v8860 = vpop.f32.mrf.mxu0
      %v8861 = vadd.f32 0.0, %v8860
      %8862 = vmatmul.f32.gmra.mxu0 %v8824
      %v8863 = vpop.f32.mrf.mxu0
      %v8864 = vadd.f32 0.0, %v8863
      %8865 = vdwg.mxu0
      %8866 = vmatpush.msra.mxu0 0.0
      %8867 = vmatpush.msra.mxu0 0.0
      %8868 = vmatpush.msra.mxu0 0.0
      %8869 = vmatpush.msra.mxu0 0.0
      %8870 = vmatpush.msra.mxu0 0.0
      %8871 = vmatpush.msra.mxu0 0.0
      %8872 = vmatpush.msra.mxu0 0.0
      %8873 = vmatpush.msra.mxu0 0.0
      %8874 = vmatpush.msra.mxu0 %v8804
      %8875 = vmatpush.msra.mxu0 %v8803
      %8876 = vmatpush.msra.mxu0 %v8802
      %8877 = vmatpush.msra.mxu0 %v8801
      %8878 = vmatpush.msra.mxu0 %v8800
      %8879 = vmatpush.msra.mxu0 %v8799
      %8880 = vmatpush.msra.mxu0 %v8798
      %8881 = vmatpush.msra.mxu0 %v8797
      %8882 = vmatmul.f32.gmra.mxu0 %v8829
      %v8883 = vpop.f32.mrf.mxu0
      %v8884 = vadd.f32 %v8855, %v8883
      %8885 = vmatmul.f32.gmra.mxu0 %v8831
      %v8886 = vpop.f32.mrf.mxu0
      %v8887 = vadd.f32 %v8858, %v8886
      %8888 = vmatmul.f32.gmra.mxu0 %v8833
      %v8889 = vpop.f32.mrf.mxu0
      %v8890 = vadd.f32 %v8861, %v8889
      %8891 = vmatmul.f32.gmra.mxu0 %v8835
      %v8892 = vpop.f32.mrf.mxu0
      %v8893 = vadd.f32 %v8864, %v8892
      %8894 = vdwg.mxu0
      %v8895 = vadd.f32 %v8776, %v8884
      %v8896 = vadd.f32 %v8777, %v8887
      %v8897 = vadd.f32 %v8778, %v8890
      %v8898 = vadd.f32 %v8779, %v8893
      %s8899 = scalar_lea.vmem %s26, 1536
      %v8900 = vld [vmem:[%s8899] sm:$0xff]
      %v8901 = vld [vmem:[%s8899 + $0x8] sm:$0xff]
      %v8902 = vld [vmem:[%s8899 + $0x10] sm:$0xff]
      %v8903 = vld [vmem:[%s8899 + $0x18] sm:$0xff]
      %v8904 = vld [vmem:[%s8899 + $0x20] sm:$0xff]
      %v8905 = vld [vmem:[%s8899 + $0x28] sm:$0xff]
      %v8906 = vld [vmem:[%s8899 + $0x30] sm:$0xff]
      %v8907 = vld [vmem:[%s8899 + $0x38] sm:$0xff]
      %v8908 = vld [vmem:[%s8899 + $0x40] sm:$0xff]
      %v8909 = vld [vmem:[%s8899 + $0x48] sm:$0xff]
      %v8910 = vld [vmem:[%s8899 + $0x50] sm:$0xff]
      %v8911 = vld [vmem:[%s8899 + $0x58] sm:$0xff]
      %v8912 = vld [vmem:[%s8899 + $0x60] sm:$0xff]
      %v8913 = vld [vmem:[%s8899 + $0x68] sm:$0xff]
      %v8914 = vld [vmem:[%s8899 + $0x70] sm:$0xff]
      %v8915 = vld [vmem:[%s8899 + $0x78] sm:$0xff]
      %v8916 = vld [vmem:[%s8899 + $0x80] sm:$0xff]
      %v8917 = vld [vmem:[%s8899 + $0x88] sm:$0xff]
      %v8918 = vld [vmem:[%s8899 + $0x90] sm:$0xff]
      %v8919 = vld [vmem:[%s8899 + $0x98] sm:$0xff]
      %v8920 = vld [vmem:[%s8899 + $0xa0] sm:$0xff]
      %v8921 = vld [vmem:[%s8899 + $0xa8] sm:$0xff]
      %v8922 = vld [vmem:[%s8899 + $0xb0] sm:$0xff]
      %v8923 = vld [vmem:[%s8899 + $0xb8] sm:$0xff]
      %8924 = vrot.lane.b32.xlu0 %v8690, 92
      %v8925 = vpop.permute.xlu0 %8924
      %8926 = vrot.lane.b32.xlu0 %v8693, 92
      %v8927 = vpop.permute.xlu0 %8926
      %8928 = vrot.lane.b32.xlu0 %v8695, 92
      %v8929 = vpop.permute.xlu0 %8928
      %8930 = vrot.lane.b32.xlu0 %v8697, 92
      %v8931 = vpop.permute.xlu0 %8930
      %8932 = vrot.lane.b32.xlu0 %v8699, 92
      %v8933 = vpop.permute.xlu0 %8932
      %8934 = vrot.lane.b32.xlu0 %v8701, 92
      %v8935 = vpop.permute.xlu0 %8934
      %8936 = vrot.lane.b32.xlu0 %v8703, 92
      %v8937 = vpop.permute.xlu0 %8936
      %8938 = vrot.lane.b32.xlu0 %v8705, 92
      %v8939 = vpop.permute.xlu0 %8938
      %v8940 = vsel %vm8227, %v8925, %v8927
      %v8941 = vsel %vm8227, %v8929, %v8931
      %v8942 = vsel %vm8227, %v8933, %v8935
      %v8943 = vsel %vm8227, %v8937, %v8939
      %v8948 = vsel %vm5886, %v8927, 0
      %v8950 = vsel %vm5886, %v8931, 0
      %v8952 = vsel %vm5886, %v8935, 0
      %v8954 = vsel %vm5886, %v8939, 0
      %8956 = vmatpush.msra.mxu0 %v8915
      %8957 = vmatpush.msra.mxu0 %v8914
      %8958 = vmatpush.msra.mxu0 %v8913
      %8959 = vmatpush.msra.mxu0 %v8912
      %8960 = vmatpush.msra.mxu0 %v8911
      %8961 = vmatpush.msra.mxu0 %v8910
      %8962 = vmatpush.msra.mxu0 %v8909
      %8963 = vmatpush.msra.mxu0 %v8908
      %8964 = vmatpush.msra.mxu0 %v8907
      %8965 = vmatpush.msra.mxu0 %v8906
      %8966 = vmatpush.msra.mxu0 %v8905
      %8967 = vmatpush.msra.mxu0 %v8904
      %8968 = vmatpush.msra.mxu0 %v8903
      %8969 = vmatpush.msra.mxu0 %v8902
      %8970 = vmatpush.msra.mxu0 %v8901
      %8971 = vmatpush.msra.mxu0 %v8900
      %8972 = vmatmul.f32.gmra.mxu0 %v8940
      %v8973 = vpop.f32.mrf.mxu0
      %v8974 = vadd.f32 0.0, %v8973
      %8975 = vmatmul.f32.gmra.mxu0 %v8941
      %v8976 = vpop.f32.mrf.mxu0
      %v8977 = vadd.f32 0.0, %v8976
      %8978 = vmatmul.f32.gmra.mxu0 %v8942
      %v8979 = vpop.f32.mrf.mxu0
      %v8980 = vadd.f32 0.0, %v8979
      %8981 = vmatmul.f32.gmra.mxu0 %v8943
      %v8982 = vpop.f32.mrf.mxu0
      %v8983 = vadd.f32 0.0, %v8982
      %8984 = vdwg.mxu0
      %8985 = vmatpush.msra.mxu0 0.0
      %8986 = vmatpush.msra.mxu0 0.0
      %8987 = vmatpush.msra.mxu0 0.0
      %8988 = vmatpush.msra.mxu0 0.0
      %8989 = vmatpush.msra.mxu0 0.0
      %8990 = vmatpush.msra.mxu0 0.0
      %8991 = vmatpush.msra.mxu0 0.0
      %8992 = vmatpush.msra.mxu0 0.0
      %8993 = vmatpush.msra.mxu0 %v8923
      %8994 = vmatpush.msra.mxu0 %v8922
      %8995 = vmatpush.msra.mxu0 %v8921
      %8996 = vmatpush.msra.mxu0 %v8920
      %8997 = vmatpush.msra.mxu0 %v8919
      %8998 = vmatpush.msra.mxu0 %v8918
      %8999 = vmatpush.msra.mxu0 %v8917
      %9000 = vmatpush.msra.mxu0 %v8916
      %9001 = vmatmul.f32.gmra.mxu0 %v8948
      %v9002 = vpop.f32.mrf.mxu0
      %v9003 = vadd.f32 %v8974, %v9002
      %9004 = vmatmul.f32.gmra.mxu0 %v8950
      %v9005 = vpop.f32.mrf.mxu0
      %v9006 = vadd.f32 %v8977, %v9005
      %9007 = vmatmul.f32.gmra.mxu0 %v8952
      %v9008 = vpop.f32.mrf.mxu0
      %v9009 = vadd.f32 %v8980, %v9008
      %9010 = vmatmul.f32.gmra.mxu0 %v8954
      %v9011 = vpop.f32.mrf.mxu0
      %v9012 = vadd.f32 %v8983, %v9011
      %9013 = vdwg.mxu0
      %v9014 = vadd.f32 %v8895, %v9003
      %v9015 = vadd.f32 %v8896, %v9006
      %v9016 = vadd.f32 %v8897, %v9009
      %v9017 = vadd.f32 %v8898, %v9012
      %v9018 = vld [vmem:[%s27] sm:$0x1]
      %v9020 = vperm.slane %v9018, 0
      %v9022 = vadd.f32 %v9014, %v9020
      %v9023 = vadd.f32 %v9015, %v9020
      %v9024 = vadd.f32 %v9016, %v9020
      %v9025 = vadd.f32 %v9017, %v9020
      %v9026 = vsub.f32 0.0, %v9022
      %v9027 = vsub.f32 0.0, %v9023
      %v9028 = vsub.f32 0.0, %v9024
      %v9029 = vsub.f32 0.0, %v9025
      %v9030 = vmul.f32 %v9026, 1.442695
      %v9031 = vpow.pop %v9030
      %v9032 = vmul.f32 %v9027, 1.442695
      %v9033 = vpow.pop %v9032
      %v9034 = vmul.f32 %v9028, 1.442695
      %v9035 = vpow.pop %v9034
      %v9036 = vmul.f32 %v9029, 1.442695
      %v9037 = vpow.pop %v9036
      %v9038 = vadd.f32 %v9031, 1.0
      %v9039 = vadd.f32 %v9033, 1.0
      %v9040 = vadd.f32 %v9035, 1.0
      %v9041 = vadd.f32 %v9037, 1.0
      %v9042 = vrcp.pop %v9038
      %v9043 = vmul.f32 %v9038, %v9042
      %v9044 = vsub.f32 1.0, %v9043
      %v9045 = vmul.f32 %v9042, %v9044
      %v9046 = vadd.f32 %v9042, %v9045
      %vm9047 = vweird.f32 %v9038
      %vm9048 = vweird.f32 %v9042
      %vm9049 = vmor %vm9047, %vm9048
      %v9050 = vsel %vm9049, %v9042, %v9046
      %v9051 = vand.u32 2147483647, %v9038
      %vm9052 = vcmp.eq.f32.partialorder %v9051, 8.507059e+37
      %v9053 = vand.u32 %v9038, 2147483648
      %v9054 = vor.u32 1.1754944e-38, %v9053
      %v9055 = vsel %vm9052, %v9054, %v9050
      %v9056 = vrcp.pop %v9039
      %v9057 = vmul.f32 %v9039, %v9056
      %v9058 = vsub.f32 1.0, %v9057
      %v9059 = vmul.f32 %v9056, %v9058
      %v9060 = vadd.f32 %v9056, %v9059
      %vm9061 = vweird.f32 %v9039
      %vm9062 = vweird.f32 %v9056
      %vm9063 = vmor %vm9061, %vm9062
      %v9064 = vsel %vm9063, %v9056, %v9060
      %v9065 = vand.u32 2147483647, %v9039
      %vm9066 = vcmp.eq.f32.partialorder %v9065, 8.507059e+37
      %v9067 = vand.u32 %v9039, 2147483648
      %v9068 = vor.u32 1.1754944e-38, %v9067
      %v9069 = vsel %vm9066, %v9068, %v9064
      %v9070 = vrcp.pop %v9040
      %v9071 = vmul.f32 %v9040, %v9070
      %v9072 = vsub.f32 1.0, %v9071
      %v9073 = vmul.f32 %v9070, %v9072
      %v9074 = vadd.f32 %v9070, %v9073
      %vm9075 = vweird.f32 %v9040
      %vm9076 = vweird.f32 %v9070
      %vm9077 = vmor %vm9075, %vm9076
      %v9078 = vsel %vm9077, %v9070, %v9074
      %v9079 = vand.u32 2147483647, %v9040
      %vm9080 = vcmp.eq.f32.partialorder %v9079, 8.507059e+37
      %v9081 = vand.u32 %v9040, 2147483648
      %v9082 = vor.u32 1.1754944e-38, %v9081
      %v9083 = vsel %vm9080, %v9082, %v9078
      %v9084 = vrcp.pop %v9041
      %v9085 = vmul.f32 %v9041, %v9084
      %v9086 = vsub.f32 1.0, %v9085
      %v9087 = vmul.f32 %v9084, %v9086
      %v9088 = vadd.f32 %v9084, %v9087
      %vm9089 = vweird.f32 %v9041
      %vm9090 = vweird.f32 %v9084
      %vm9091 = vmor %vm9089, %vm9090
      %v9092 = vsel %vm9091, %v9084, %v9088
      %v9093 = vand.u32 2147483647, %v9041
      %vm9094 = vcmp.eq.f32.partialorder %v9093, 8.507059e+37
      %v9095 = vand.u32 %v9041, 2147483648
      %v9096 = vor.u32 1.1754944e-38, %v9095
      %v9097 = vsel %vm9094, %v9096, %v9092
      %9098 = vst.msk [vmem:[%s845] sm:$0xff] %vm5697, %v9055
      %9099 = vst.msk [vmem:[%s845 + $0x8] sm:$0xff] %vm5697, %v9069
      %9100 = vst.msk [vmem:[%s845 + $0x10] sm:$0xff] %vm5697, %v9083
      %9101 = vst.msk [vmem:[%s845 + $0x18] sm:$0xff] %vm5697, %v9097
      %p9102 = scmp.lt.s32.totalorder %s39, 1
      %s9103 = scalar_select %p9102, %s39, 1
      %s9104 = smul.addr %s9103, 4
      %s9105 = smul.addr %s9104, 8
      %s9106 = scalar_lea.vmem %s28, %s9105
      // Predicated region
      $region133: #{lenet_autoencoder_forward.1} parent=131 // pred_check
        %p9107 = pneg %p650
      $region134: #{lenet_autoencoder_forward.1} parent=131 // pred_check_branch
        %9109 = sbr.rel (%p9107) target = $region136
      $region135: #{lenet_autoencoder_forward.1} parent=131 // pred_region
        _
      $region136: #{lenet_autoencoder_forward.1} parent=131 // pred_fallthru
        _
    $region132: #{lenet_autoencoder_forward.1} parent=5 // pred_fallthru
      _
    %p9110 = scmp.le.s32.totalorder 2, %s34
    // Predicated region
    $region137: #{lenet_autoencoder_forward.1} parent=5 // pred_check
      %p9111 = pneg %p9110
    $region138: #{lenet_autoencoder_forward.1} parent=5 // pred_check_branch
      %9113 = sbr.rel (%p9111) target = $region140
    $region139: #{lenet_autoencoder_forward.1} parent=5 // pred_region
      %s9114 = ssub.s32 %s34, 2
      // Predicated region
      $region141: #{lenet_autoencoder_forward.1} parent=139 // pred_check
        %p9115 = pneg %p656
      $region142: #{lenet_autoencoder_forward.1} parent=139 // pred_check_branch
        %9117 = sbr.rel (%p9115) target = $region144
      $region143: #{lenet_autoencoder_forward.1} parent=139 // pred_region
        %p9118 = scmp.lt.s32.totalorder %s40, 1
        %s9119 = scalar_select %p9118, %s40, 1
        %s9120 = smul.addr %s9119, 4
        %s9121 = smul.addr %s9120, 8
        %s9122 = scalar_lea.vmem %s28, %s9121
      $region144: #{lenet_autoencoder_forward.1} parent=139 // pred_fallthru
        _
    $region140: #{lenet_autoencoder_forward.1} parent=5 // pred_fallthru
      _
  $region6: #{lenet_autoencoder_forward.1} parent=0 // loop_footer
    %s38 = sadd.s32 1, %s34
  $region7: #{lenet_autoencoder_forward.1} parent=0 // loop_footer_branch
    %33 = sbr.rel target = $region3
  $region8: #{lenet_autoencoder_forward.1} parent=0 // loop_exit
    _

</llo_original>
